<compile_context>
chip_gen: v7x
topology: tpu7x:2x2x1
jax: 0.10.0
libtpu: 0.0.40
codegen_flags: <defaults>
</compile_context>

<pallas_src>
import numpy as np
import jax
import jax.numpy as jnp
from jax.experimental import pallas as pl
from jax.experimental.pallas import tpu as pltpu

VMEM_SPEC = pl.BlockSpec(memory_space=pltpu.MemorySpace.VMEM)

H_IN, W_IN, C_STATE = 20, 8, 4          # implied by fc = Linear(560, 512)
HID = 256                               # LSTM hidden size

# Fixed ordering of prepared weights as passed to the kernels.
WEIGHT_NAMES = ("mfuse", "bfuse", "m2", "b2", "m3", "b3",
                "wfa", "wfc", "wfr", "bf",
                "wgy", "wgh", "bg", "wm", "bm", "wh", "bh")


# ---------------------------------------------------------------------------
# Shared single-step math (operates on values already loaded from VMEM refs).
# bf16 weights + bf16 LHS into the MXU, f32 accumulation, f32 elementwise.
# ---------------------------------------------------------------------------
def _step(s, hx, cx, w):
    f32, bf16 = jnp.float32, jnp.bfloat16

    def mm(x, w_ref):
        return jnp.dot(x.astype(bf16), w_ref[...], preferred_element_type=f32)

    # Fused conv1 | conv_col | conv_row on the raw state (im2col folded into
    # one dense RHS at prep time; segments padded to 128-lane boundaries).
    r = jnp.maximum(mm(s, w["mfuse"]) + w["bfuse"][...], 0.0)   # [B, 1280]
    a1 = r[:, 0:896]        # conv1  (864 real + 32 zero-pad lanes)
    col = r[:, 896:1152]    # conv_col (160 real + 96 zero-pad lanes)
    row = r[:, 1152:1280]   # conv_row (64 real + 64 zero-pad lanes)

    a2 = jnp.maximum(mm(a1, w["m2"]) + w["b2"][...], 0.0)       # conv2  [B, 768]
    a3 = jnp.maximum(mm(a2, w["m3"]) + w["b3"][...], 0.0)       # conv3  [B, 336]

    # fc(cat([img_feat, col, row])) as three partial matmuls (no concat).
    z = (mm(a3, w["wfa"]) + mm(col, w["wfc"]) + mm(row, w["wfr"]) + w["bf"][...])
    y = jnp.where(z > 0, z, 0.01 * z)                            # leaky_relu(0.01)

    # LSTMCell: y and hx matmuls kept separate (hx path is independent of the
    # conv/fc chain); biases pre-fused.  Gate order i, f, g, o (torch).
    gates = mm(y, w["wgy"]) + mm(hx, w["wgh"]) + w["bg"][...]    # [B, 1024]
    i_g = jax.nn.sigmoid(gates[:, 0 * HID:1 * HID])
    f_g = jax.nn.sigmoid(gates[:, 1 * HID:2 * HID])
    g_g = jnp.tanh(gates[:, 2 * HID:3 * HID])
    o_g = jax.nn.sigmoid(gates[:, 3 * HID:4 * HID])
    c_new = f_g * cx + i_g * g_g
    h_new = o_g * jnp.tanh(c_new)

    # mlp + fused (critic | actor) block-diagonal head -> [B, 8] slab.
    mlp = mm(h_new, w["wm"]) + w["bm"][...]
    head = mm(mlp, w["wh"]) + w["bh"][...]
    return head, h_new, c_new


# ---------------------------------------------------------------------------
# Kernels.
# ---------------------------------------------------------------------------
def _a3c_lstm_kernel(*refs):
    """Single-step, gridless: (state, hx, cx, *weights) -> (head, hx', cx')."""
    n_w = len(WEIGHT_NAMES)
    state_ref, hx_ref, cx_ref = refs[0:3]
    w = dict(zip(WEIGHT_NAMES, refs[3:3 + n_w]))
    head_ref, hxo_ref, cxo_ref = refs[3 + n_w:]

    head, h_new, c_new = _step(state_ref[...], hx_ref[...], cx_ref[...], w)
    head_ref[...] = head
    hxo_ref[...] = h_new
    cxo_ref[...] = c_new


def _a3c_rollout_kernel(*refs):
    """grid=(T,).  Weights have constant block index (fetched once, resident).
    hx/cx carried across the 'arbitrary' time axis in VMEM scratch."""
    n_w = len(WEIGHT_NAMES)
    state_ref, hx0_ref, cx0_ref = refs[0:3]
    w = dict(zip(WEIGHT_NAMES, refs[3:3 + n_w]))
    heads_ref, hxo_ref, cxo_ref, h_sc, c_sc = refs[3 + n_w:]

    t = pl.program_id(0)

    @pl.when(t == 0)
    def _():
        h_sc[...] = hx0_ref[...]
        c_sc[...] = cx0_ref[...]

    head, h_new, c_new = _step(state_ref[...], h_sc[...], c_sc[...], w)
    h_sc[...] = h_new
    c_sc[...] = c_new
    heads_ref[...] = head
    hxo_ref[...] = h_new          # constant block index -> last write survives
    cxo_ref[...] = c_new


# ---------------------------------------------------------------------------
# One-time parameter preparation (OUTSIDE jit).  Folds each conv's im2col
# gather into a dense [in_flat, out_flat] matrix (NCHW flatten on both sides,
# matching torch .view(B, -1)), fuses the three state-consuming convs into one
# lane-padded RHS, pre-transposes fc/lstm/mlp weights, fuses LSTM biases and
# the actor/critic heads, and casts all matrices to bf16.
# ---------------------------------------------------------------------------
def prepare_params(params):
    p = {k: np.asarray(v, np.float32) for k, v in params.items()}

    def dense_conv(w, h_in, w_in):
        cout, cin, kh, kw = w.shape
        oh, ow = h_in - kh + 1, w_in - kw + 1
        m = np.zeros((cin, h_in, w_in, cout, oh, ow), np.float32)
        wt = np.transpose(w, (1, 0, 2, 3))                  # [cin, cout, kh, kw]
        for i in range(kh):
            for j in range(kw):
                for y in range(oh):
                    for x in range(ow):
                        m[:, y + i, x + j, :, y, x] = wt[:, :, i, j]
        return m.reshape(cin * h_in * w_in, cout * oh * ow)

    # conv1 / conv_col / conv_row all consume the raw state -> one fused RHS.
    m1 = dense_conv(p["conv1_w"], 20, 8)        # [640, 864]
    mcol = dense_conv(p["conv_col_w"], 20, 8)   # [640, 160]
    mrow = dense_conv(p["conv_row_w"], 20, 8)   # [640, 64]
    mfuse = np.zeros((640, 1280), np.float32)   # segments padded to 128 lanes
    mfuse[:, 0:864] = m1
    mfuse[:, 896:1056] = mcol
    mfuse[:, 1152:1216] = mrow
    bfuse = np.zeros((1, 1280), np.float32)
    bfuse[0, 0:864] = np.repeat(p["conv1_b"], 18 * 6)
    bfuse[0, 896:1056] = np.repeat(p["conv_col_b"], 20 * 1)
    bfuse[0, 1152:1216] = np.repeat(p["conv_row_b"], 1 * 8)

    m2 = np.zeros((896, 768), np.float32)       # rows 864.. zero (match a1 pad)
    m2[:864, :] = dense_conv(p["conv2_w"], 18, 6)
    b2 = np.repeat(p["conv2_b"], 16 * 4)[None, :]
    m3 = dense_conv(p["conv3_w"], 16, 4)        # [768, 336]
    b3 = np.repeat(p["conv3_b"], 14 * 2)[None, :]

    fc_w = p["fc_w"]                            # [512, 560]
    wfa = np.ascontiguousarray(fc_w[:, 0:336].T)             # img part  [336, 512]
    wfc = np.zeros((256, 512), np.float32)
    wfc[:160, :] = fc_w[:, 336:496].T                        # col part (padded rows)
    wfr = np.zeros((128, 512), np.float32)
    wfr[:64, :] = fc_w[:, 496:560].T                         # row part (padded rows)
    bf_b = p["fc_b"][None, :]

    wgy = np.ascontiguousarray(p["lstm_w_ih"].T)             # [512, 1024]
    wgh = np.ascontiguousarray(p["lstm_w_hh"].T)             # [256, 1024]
    bg = (p["lstm_b_ih"] + p["lstm_b_hh"])[None, :]

    wm = np.ascontiguousarray(p["mlp_w"].T)                  # [256, 128]
    bm = p["mlp_b"][None, :]

    # Fused head: col 0 = critic (mlp[:, 64:]), cols 1..6 = actor (mlp[:, :64]),
    # col 7 is unused zero padding.
    wh = np.zeros((128, 8), np.float32)
    wh[0:64, 1:7] = p["actor_w"].T
    wh[64:128, 0:1] = p["critic_w"].T
    bh = np.zeros((1, 8), np.float32)
    bh[0, 0] = p["critic_b"][0]
    bh[0, 1:7] = p["actor_b"]

    def jm(x):   # matrices -> bf16: halves HBM DMA, native MXU bf16 path
        return jnp.asarray(x, dtype=jnp.bfloat16)

    def jb(x):   # biases stay f32 (tiny; added to f32 accumulators)
        return jnp.asarray(x, dtype=jnp.float32)

    return {"mfuse": jm(mfuse), "bfuse": jb(bfuse),
            "m2": jm(m2), "b2": jb(b2), "m3": jm(m3), "b3": jb(b3),
            "wfa": jm(wfa), "wfc": jm(wfc), "wfr": jm(wfr), "bf": jb(bf_b),
            "wgy": jm(wgy), "wgh": jm(wgh), "bg": jb(bg),
            "wm": jm(wm), "bm": jb(bm), "wh": jm(wh), "bh": jb(bh)}


def _cost_estimate(prepared, b, t=1, weight_fetches=1):
    mats = ("mfuse", "m2", "m3", "wfa", "wfc", "wfr", "wgy", "wgh", "wm", "wh")
    flops = 2 * b * t * sum(int(prepared[n].shape[0]) * int(prepared[n].shape[1])
                            for n in mats)
    w_bytes = weight_fetches * sum(
        int(np.prod(prepared[n].shape)) * int(prepared[n].dtype.itemsize)
        for n in WEIGHT_NAMES)
    act_bytes = t * b * (640 + 2 * 256 + 8 + 2 * 256) * 4
    return pl.CostEstimate(flops=flops, transcendentals=5 * HID * b * t,
                           bytes_accessed=w_bytes + act_bytes)


# ---------------------------------------------------------------------------
# Single-step forward: one gridless pallas_call, everything resident in VMEM.
# ---------------------------------------------------------------------------
def a3c_lstm_forward(prepared, state, hx, cx):
    b = state.shape[0]
    s_flat = state.reshape(b, -1).astype(jnp.float32)        # NCHW flatten (free)
    w_ins = tuple(prepared[n] for n in WEIGHT_NAMES)
    ins = (s_flat, hx.astype(jnp.float32), cx.astype(jnp.float32)) + w_ins

    head, h_new, c_new = pl.pallas_call(
        _a3c_lstm_kernel,
        out_shape=(jax.ShapeDtypeStruct((b, 8), jnp.float32),
                   jax.ShapeDtypeStruct((b, HID), jnp.float32),
                   jax.ShapeDtypeStruct((b, HID), jnp.float32)),
        in_specs=[VMEM_SPEC] * len(ins),
        out_specs=(VMEM_SPEC, VMEM_SPEC, VMEM_SPEC),
        compiler_params=pltpu.CompilerParams(vmem_limit_bytes=32 * 1024 * 1024),
        cost_estimate=_cost_estimate(prepared, b, t=1, weight_fetches=1),
    )(*ins)

    return head[:, 0:1], head[:, 1:7], h_new, c_new


# ---------------------------------------------------------------------------
# Rollout forward: grid=(T,), weights DMA'd once (constant index_map) and kept
# VMEM-resident for all steps; hx/cx carried in scratch across the time axis.
# Returns per-step (critic, actor) plus the final (hx, cx).
# ---------------------------------------------------------------------------
def a3c_lstm_rollout(prepared, states, hx, cx):
    t_steps, b = states.shape[0], states.shape[1]
    s_flat = states.reshape(t_steps, b, -1).astype(jnp.float32)   # [T, B, 640]
    w_ins = tuple(prepared[n] for n in WEIGHT_NAMES)
    ins = (s_flat, hx.astype(jnp.float32), cx.astype(jnp.float32)) + w_ins

    def const_spec(arr):                      # whole array, same block every step
        nd = arr.ndim
        return pl.BlockSpec(arr.shape, lambda *_, _nd=nd: (0,) * _nd)

    in_specs = ([pl.BlockSpec((None, b, s_flat.shape[-1]), lambda t: (t, 0, 0)),
                 const_spec(ins[1]), const_spec(ins[2])]
                + [const_spec(wv) for wv in w_ins])
    out_specs = (pl.BlockSpec((None, b, 8), lambda t: (t, 0, 0)),
                 pl.BlockSpec((b, HID), lambda t: (0, 0)),
                 pl.BlockSpec((b, HID), lambda t: (0, 0)))

    heads, h_last, c_last = pl.pallas_call(
        _a3c_rollout_kernel,
        out_shape=(jax.ShapeDtypeStruct((t_steps, b, 8), jnp.float32),
                   jax.ShapeDtypeStruct((b, HID), jnp.float32),
                   jax.ShapeDtypeStruct((b, HID), jnp.float32)),
        grid_spec=pltpu.PrefetchScalarGridSpec(
            num_scalar_prefetch=0,
            grid=(t_steps,),
            in_specs=in_specs,
            out_specs=out_specs,
            scratch_shapes=[pltpu.VMEM((b, HID), jnp.float32),
                            pltpu.VMEM((b, HID), jnp.float32)]),
        compiler_params=pltpu.CompilerParams(
            dimension_semantics=("arbitrary",),
            vmem_limit_bytes=32 * 1024 * 1024),
        cost_estimate=_cost_estimate(prepared, b, t=t_steps, weight_fetches=1),
    )(*ins)

    return heads[:, :, 0:1], heads[:, :, 1:7], h_last, c_last


# ---------------------------------------------------------------------------
# Pure-JAX f32 reference of the PyTorch module (for correctness checks).
# ---------------------------------------------------------------------------
def reference_forward(params, state, hx, cx):
    def conv(x, w, bias):
        y = jax.lax.conv_general_dilated(
            x, w, window_strides=(1, 1), padding="VALID",
            dimension_numbers=("NCHW", "OIHW", "NCHW"))
        return y + bias.reshape(1, -1, 1, 1)

    b = state.shape[0]
    x = jax.nn.relu(conv(state, params["conv1_w"], params["conv1_b"]))
    x = jax.nn.relu(conv(x, params["conv2_w"], params["conv2_b"]))
    x = jax.nn.relu(conv(x, params["conv3_w"], params["conv3_b"]))
    img = x.reshape(b, -1)
    col = jax.nn.relu(conv(state, params["conv_col_w"], params["conv_col_b"])).reshape(b, -1)
    row = jax.nn.relu(conv(state, params["conv_row_w"], params["conv_row_b"])).reshape(b, -1)
    feat = jnp.concatenate([img, col, row], axis=1)
    z = feat @ params["fc_w"].T + params["fc_b"]
    y = jnp.where(z > 0, z, 0.01 * z)
    gates = (y @ params["lstm_w_ih"].T + params["lstm_b_ih"]
             + hx @ params["lstm_w_hh"].T + params["lstm_b_hh"])
    i_g, f_g, g_g, o_g = jnp.split(gates, 4, axis=1)
    i_g, f_g, o_g = jax.nn.sigmoid(i_g), jax.nn.sigmoid(f_g), jax.nn.sigmoid(o_g)
    g_g = jnp.tanh(g_g)
    c_new = f_g * cx + i_g * g_g
    h_new = o_g * jnp.tanh(c_new)
    mlp = h_new @ params["mlp_w"].T + params["mlp_b"]
    act, cr = mlp[:, :64], mlp[:, 64:]
    critic = cr @ params["critic_w"].T + params["critic_b"]
    actor = act @ params["actor_w"].T + params["actor_b"]
    return critic, actor, h_new, c_new


# ---------------------------------------------------------------------------
# Deterministic synthetic parameters (shapes from the torch module __init__).
# ---------------------------------------------------------------------------
def init_params(key):
    specs = {
        "conv1_w": (8, 4, 3, 3), "conv1_b": (8,),
        "conv2_w": (12, 8, 3, 3), "conv2_b": (12,),
        "conv3_w": (12, 12, 3, 3), "conv3_b": (12,),
        "conv_col_w": (8, 4, 1, 8), "conv_col_b": (8,),
        "conv_row_w": (8, 4, 20, 1), "conv_row_b": (8,),
        "fc_w": (512, 560), "fc_b": (512,),
        "lstm_w_ih": (1024, 512), "lstm_b_ih": (1024,),
        "lstm_w_hh": (1024, 256), "lstm_b_hh": (1024,),
        "mlp_w": (128, 256), "mlp_b": (128,),
        "critic_w": (1, 64), "critic_b": (1,),
        "actor_w": (6, 64), "actor_b": (6,),
    }
    names = sorted(specs)
    keys = jax.random.split(key, len(names))
    return {n: jax.random.normal(k, specs[n], jnp.float32) * 0.05
            for n, k in zip(names, keys)}


if __name__ == "__main__":
    key = jax.random.PRNGKey(0)
    k_p, k_s, k_h, k_c, k_r = jax.random.split(key, 5)

    B, T = 2, 8
    params = init_params(k_p)
    prepared = prepare_params(params)                         # one-time, outside jit
    state = jax.random.normal(k_s, (B, C_STATE, H_IN, W_IN), jnp.float32)
    hx = jax.random.normal(k_h, (B, HID), jnp.float32)
    cx = jax.random.normal(k_c, (B, HID), jnp.float32)

    # ---- single-step forward (exact module.forward semantics) ----
    fwd = jax.jit(a3c_lstm_forward)
    critic, actor, h_new, c_new = fwd(prepared, state, hx, cx)
    jax.block_until_ready((critic, actor, h_new, c_new))
    assert critic.shape == (B, 1)
    assert actor.shape == (B, 6)
    assert h_new.shape == (B, HID)
    assert c_new.shape == (B, HID)

    ref_step = jax.jit(reference_forward)
    rc, ra, rh, rcx = ref_step(params, state, hx, cx)
    np.testing.assert_allclose(np.asarray(critic), np.asarray(rc), rtol=3e-2, atol=3e-2)
    np.testing.assert_allclose(np.asarray(actor), np.asarray(ra), rtol=3e-2, atol=3e-2)
    np.testing.assert_allclose(np.asarray(h_new), np.asarray(rh), rtol=3e-2, atol=3e-2)
    np.testing.assert_allclose(np.asarray(c_new), np.asarray(rcx), rtol=3e-2, atol=3e-2)

    # ---- T-step rollout: weights fetched into VMEM once, reused every step ----
    states = jax.random.normal(k_r, (T, B, C_STATE, H_IN, W_IN), jnp.float32)
    roll = jax.jit(a3c_lstm_rollout)
    critics_t, actors_t, h_T, c_T = roll(prepared, states, hx, cx)
    jax.block_until_ready((critics_t, actors_t, h_T, c_T))
    assert critics_t.shape == (T, B, 1)
    assert actors_t.shape == (T, B, 6)

    h_ref, c_ref = hx, cx
    rc_list, ra_list = [], []
    for t in range(T):
        rct, rat, h_ref, c_ref = ref_step(params, states[t], h_ref, c_ref)
        rc_list.append(np.asarray(rct))
        ra_list.append(np.asarray(rat))
    np.testing.assert_allclose(np.asarray(critics_t), np.stack(rc_list), rtol=4e-2, atol=4e-2)
    np.testing.assert_allclose(np.asarray(actors_t), np.stack(ra_list), rtol=4e-2, atol=4e-2)
    np.testing.assert_allclose(np.asarray(h_T), np.asarray(h_ref), rtol=4e-2, atol=4e-2)
    np.testing.assert_allclose(np.asarray(c_T), np.asarray(c_ref), rtol=4e-2, atol=4e-2)

    print("KERNEL_OK")
</pallas_src>

<mosaic_0001>
module attributes {stable_mosaic.version = 11 : i64} {
  func.func @_a3c_lstm_kernel(%arg0: memref<2x640xf32, #tpu.memory_space<vmem>>, %arg1: memref<2x256xf32, #tpu.memory_space<vmem>>, %arg2: memref<2x256xf32, #tpu.memory_space<vmem>>, %arg3: memref<640x1280xbf16, #tpu.memory_space<vmem>>, %arg4: memref<1x1280xf32, #tpu.memory_space<vmem>>, %arg5: memref<896x768xbf16, #tpu.memory_space<vmem>>, %arg6: memref<1x768xf32, #tpu.memory_space<vmem>>, %arg7: memref<768x336xbf16, #tpu.memory_space<vmem>>, %arg8: memref<1x336xf32, #tpu.memory_space<vmem>>, %arg9: memref<336x512xbf16, #tpu.memory_space<vmem>>, %arg10: memref<256x512xbf16, #tpu.memory_space<vmem>>, %arg11: memref<128x512xbf16, #tpu.memory_space<vmem>>, %arg12: memref<1x512xf32, #tpu.memory_space<vmem>>, %arg13: memref<512x1024xbf16, #tpu.memory_space<vmem>>, %arg14: memref<256x1024xbf16, #tpu.memory_space<vmem>>, %arg15: memref<1x1024xf32, #tpu.memory_space<vmem>>, %arg16: memref<256x128xbf16, #tpu.memory_space<vmem>>, %arg17: memref<1x128xf32, #tpu.memory_space<vmem>>, %arg18: memref<128x8xbf16, #tpu.memory_space<vmem>>, %arg19: memref<1x8xf32, #tpu.memory_space<vmem>>, %arg20: memref<2x8xf32, #tpu.memory_space<vmem>>, %arg21: memref<2x256xf32, #tpu.memory_space<vmem>>, %arg22: memref<2x256xf32, #tpu.memory_space<vmem>>) attributes {dimension_semantics = [], scalar_prefetch = 0 : i64, scratch_operands = 0 : i64, tpu.core_type = #tpu.core_type<tc>} {
    %c0 = arith.constant 0 : index
    %c0_0 = arith.constant 0 : index
    %0 = vector.load %arg0[%c0, %c0_0] : memref<2x640xf32, #tpu.memory_space<vmem>>, vector<2x640xf32>
    %c0_1 = arith.constant 0 : index
    %c0_2 = arith.constant 0 : index
    %1 = vector.load %arg1[%c0_1, %c0_2] : memref<2x256xf32, #tpu.memory_space<vmem>>, vector<2x256xf32>
    %c0_3 = arith.constant 0 : index
    %c0_4 = arith.constant 0 : index
    %2 = vector.load %arg2[%c0_3, %c0_4] : memref<2x256xf32, #tpu.memory_space<vmem>>, vector<2x256xf32>
    %3 = arith.truncf %0 : vector<2x640xf32> to vector<2x640xbf16>
    %c0_5 = arith.constant 0 : index
    %c0_6 = arith.constant 0 : index
    %4 = vector.load %arg3[%c0_5, %c0_6] : memref<640x1280xbf16, #tpu.memory_space<vmem>>, vector<640x1280xbf16>
    %cst = arith.constant dense<0.000000e+00> : vector<2x1280xf32>
    %5 = tpu.matmul %3, %4, %cst {dimension_numbers = #tpu.dot_dimension_numbers<[1], [0], [0], [1], [0, 0, 1, 1], [], []>} : vector<2x640xbf16>, vector<640x1280xbf16>, vector<2x1280xf32> -> vector<2x1280xf32>
    %c0_7 = arith.constant 0 : index
    %c0_8 = arith.constant 0 : index
    %6 = vector.load %arg4[%c0_7, %c0_8] : memref<1x1280xf32, #tpu.memory_space<vmem>>, vector<1x1280xf32>
    %7 = vector.broadcast %6 : vector<1x1280xf32> to vector<2x1280xf32>
    %8 = arith.addf %5, %7 : vector<2x1280xf32>
    %cst_9 = arith.constant 0.000000e+00 : f32
    %9 = vector.broadcast %cst_9 : f32 to vector<2x1280xf32>
    %10 = arith.maximumf %8, %9 : vector<2x1280xf32>
    %11 = vector.extract_strided_slice %10 {offsets = [0, 0], sizes = [2, 896], strides = [1, 1]} : vector<2x1280xf32> to vector<2x896xf32>
    %12 = vector.extract_strided_slice %10 {offsets = [0, 896], sizes = [2, 256], strides = [1, 1]} : vector<2x1280xf32> to vector<2x256xf32>
    %13 = vector.extract_strided_slice %10 {offsets = [0, 1152], sizes = [2, 128], strides = [1, 1]} : vector<2x1280xf32> to vector<2x128xf32>
    %14 = arith.truncf %11 : vector<2x896xf32> to vector<2x896xbf16>
    %c0_10 = arith.constant 0 : index
    %c0_11 = arith.constant 0 : index
    %15 = vector.load %arg5[%c0_10, %c0_11] : memref<896x768xbf16, #tpu.memory_space<vmem>>, vector<896x768xbf16>
    %cst_12 = arith.constant dense<0.000000e+00> : vector<2x768xf32>
    %16 = tpu.matmul %14, %15, %cst_12 {dimension_numbers = #tpu.dot_dimension_numbers<[1], [0], [0], [1], [0, 0, 1, 1], [], []>} : vector<2x896xbf16>, vector<896x768xbf16>, vector<2x768xf32> -> vector<2x768xf32>
    %c0_13 = arith.constant 0 : index
    %c0_14 = arith.constant 0 : index
    %17 = vector.load %arg6[%c0_13, %c0_14] : memref<1x768xf32, #tpu.memory_space<vmem>>, vector<1x768xf32>
    %18 = vector.broadcast %17 : vector<1x768xf32> to vector<2x768xf32>
    %19 = arith.addf %16, %18 : vector<2x768xf32>
    %cst_15 = arith.constant 0.000000e+00 : f32
    %20 = vector.broadcast %cst_15 : f32 to vector<2x768xf32>
    %21 = arith.maximumf %19, %20 : vector<2x768xf32>
    %22 = arith.truncf %21 : vector<2x768xf32> to vector<2x768xbf16>
    %c0_16 = arith.constant 0 : index
    %c0_17 = arith.constant 0 : index
    %23 = vector.load %arg7[%c0_16, %c0_17] : memref<768x336xbf16, #tpu.memory_space<vmem>>, vector<768x336xbf16>
    %cst_18 = arith.constant dense<0.000000e+00> : vector<2x336xf32>
    %24 = tpu.matmul %22, %23, %cst_18 {dimension_numbers = #tpu.dot_dimension_numbers<[1], [0], [0], [1], [0, 0, 1, 1], [], []>} : vector<2x768xbf16>, vector<768x336xbf16>, vector<2x336xf32> -> vector<2x336xf32>
    %c0_19 = arith.constant 0 : index
    %c0_20 = arith.constant 0 : index
    %25 = vector.load %arg8[%c0_19, %c0_20] : memref<1x336xf32, #tpu.memory_space<vmem>>, vector<1x336xf32>
    %26 = vector.broadcast %25 : vector<1x336xf32> to vector<2x336xf32>
    %27 = arith.addf %24, %26 : vector<2x336xf32>
    %cst_21 = arith.constant 0.000000e+00 : f32
    %28 = vector.broadcast %cst_21 : f32 to vector<2x336xf32>
    %29 = arith.maximumf %27, %28 : vector<2x336xf32>
    %30 = arith.truncf %29 : vector<2x336xf32> to vector<2x336xbf16>
    %c0_22 = arith.constant 0 : index
    %c0_23 = arith.constant 0 : index
    %31 = vector.load %arg9[%c0_22, %c0_23] : memref<336x512xbf16, #tpu.memory_space<vmem>>, vector<336x512xbf16>
    %cst_24 = arith.constant dense<0.000000e+00> : vector<2x512xf32>
    %32 = tpu.matmul %30, %31, %cst_24 {dimension_numbers = #tpu.dot_dimension_numbers<[1], [0], [0], [1], [0, 0, 1, 1], [], []>} : vector<2x336xbf16>, vector<336x512xbf16>, vector<2x512xf32> -> vector<2x512xf32>
    %33 = arith.truncf %12 : vector<2x256xf32> to vector<2x256xbf16>
    %c0_25 = arith.constant 0 : index
    %c0_26 = arith.constant 0 : index
    %34 = vector.load %arg10[%c0_25, %c0_26] : memref<256x512xbf16, #tpu.memory_space<vmem>>, vector<256x512xbf16>
    %cst_27 = arith.constant dense<0.000000e+00> : vector<2x512xf32>
    %35 = tpu.matmul %33, %34, %cst_27 {dimension_numbers = #tpu.dot_dimension_numbers<[1], [0], [0], [1], [0, 0, 1, 1], [], []>} : vector<2x256xbf16>, vector<256x512xbf16>, vector<2x512xf32> -> vector<2x512xf32>
    %36 = arith.addf %32, %35 : vector<2x512xf32>
    %37 = arith.truncf %13 : vector<2x128xf32> to vector<2x128xbf16>
    %c0_28 = arith.constant 0 : index
    %c0_29 = arith.constant 0 : index
    %38 = vector.load %arg11[%c0_28, %c0_29] : memref<128x512xbf16, #tpu.memory_space<vmem>>, vector<128x512xbf16>
    %cst_30 = arith.constant dense<0.000000e+00> : vector<2x512xf32>
    %39 = tpu.matmul %37, %38, %cst_30 {dimension_numbers = #tpu.dot_dimension_numbers<[1], [0], [0], [1], [0, 0, 1, 1], [], []>} : vector<2x128xbf16>, vector<128x512xbf16>, vector<2x512xf32> -> vector<2x512xf32>
    %40 = arith.addf %36, %39 : vector<2x512xf32>
    %c0_31 = arith.constant 0 : index
    %c0_32 = arith.constant 0 : index
    %41 = vector.load %arg12[%c0_31, %c0_32] : memref<1x512xf32, #tpu.memory_space<vmem>>, vector<1x512xf32>
    %42 = vector.broadcast %41 : vector<1x512xf32> to vector<2x512xf32>
    %43 = arith.addf %40, %42 : vector<2x512xf32>
    %cst_33 = arith.constant 0.000000e+00 : f32
    %44 = vector.broadcast %cst_33 : f32 to vector<2x512xf32>
    %45 = arith.cmpf ogt, %43, %44 : vector<2x512xf32>
    %cst_34 = arith.constant 0.00999999977 : f32
    %46 = vector.broadcast %cst_34 : f32 to vector<2x512xf32>
    %47 = arith.mulf %46, %43 : vector<2x512xf32>
    %48 = arith.select %45, %43, %47 : vector<2x512xi1>, vector<2x512xf32>
    %49 = arith.truncf %48 : vector<2x512xf32> to vector<2x512xbf16>
    %c0_35 = arith.constant 0 : index
    %c0_36 = arith.constant 0 : index
    %50 = vector.load %arg13[%c0_35, %c0_36] : memref<512x1024xbf16, #tpu.memory_space<vmem>>, vector<512x1024xbf16>
    %cst_37 = arith.constant dense<0.000000e+00> : vector<2x1024xf32>
    %51 = tpu.matmul %49, %50, %cst_37 {dimension_numbers = #tpu.dot_dimension_numbers<[1], [0], [0], [1], [0, 0, 1, 1], [], []>} : vector<2x512xbf16>, vector<512x1024xbf16>, vector<2x1024xf32> -> vector<2x1024xf32>
    %52 = arith.truncf %1 : vector<2x256xf32> to vector<2x256xbf16>
    %c0_38 = arith.constant 0 : index
    %c0_39 = arith.constant 0 : index
    %53 = vector.load %arg14[%c0_38, %c0_39] : memref<256x1024xbf16, #tpu.memory_space<vmem>>, vector<256x1024xbf16>
    %cst_40 = arith.constant dense<0.000000e+00> : vector<2x1024xf32>
    %54 = tpu.matmul %52, %53, %cst_40 {dimension_numbers = #tpu.dot_dimension_numbers<[1], [0], [0], [1], [0, 0, 1, 1], [], []>} : vector<2x256xbf16>, vector<256x1024xbf16>, vector<2x1024xf32> -> vector<2x1024xf32>
    %55 = arith.addf %51, %54 : vector<2x1024xf32>
    %c0_41 = arith.constant 0 : index
    %c0_42 = arith.constant 0 : index
    %56 = vector.load %arg15[%c0_41, %c0_42] : memref<1x1024xf32, #tpu.memory_space<vmem>>, vector<1x1024xf32>
    %57 = vector.broadcast %56 : vector<1x1024xf32> to vector<2x1024xf32>
    %58 = arith.addf %55, %57 : vector<2x1024xf32>
    %59 = vector.extract_strided_slice %58 {offsets = [0, 0], sizes = [2, 256], strides = [1, 1]} : vector<2x1024xf32> to vector<2x256xf32>
    %60 = arith.negf %59 : vector<2x256xf32>
    %61 = math.exp %60 : vector<2x256xf32>
    %cst_43 = arith.constant 1.000000e+00 : f32
    %62 = vector.broadcast %cst_43 : f32 to vector<2x256xf32>
    %63 = arith.addf %62, %61 : vector<2x256xf32>
    %64 = arith.divf %62, %63 : vector<2x256xf32>
    %65 = vector.extract_strided_slice %58 {offsets = [0, 256], sizes = [2, 256], strides = [1, 1]} : vector<2x1024xf32> to vector<2x256xf32>
    %66 = arith.negf %65 : vector<2x256xf32>
    %67 = math.exp %66 : vector<2x256xf32>
    %cst_44 = arith.constant 1.000000e+00 : f32
    %68 = vector.broadcast %cst_44 : f32 to vector<2x256xf32>
    %69 = arith.addf %68, %67 : vector<2x256xf32>
    %70 = arith.divf %68, %69 : vector<2x256xf32>
    %71 = vector.extract_strided_slice %58 {offsets = [0, 512], sizes = [2, 256], strides = [1, 1]} : vector<2x1024xf32> to vector<2x256xf32>
    %72 = math.tanh %71 : vector<2x256xf32>
    %73 = vector.extract_strided_slice %58 {offsets = [0, 768], sizes = [2, 256], strides = [1, 1]} : vector<2x1024xf32> to vector<2x256xf32>
    %74 = arith.negf %73 : vector<2x256xf32>
    %75 = math.exp %74 : vector<2x256xf32>
    %cst_45 = arith.constant 1.000000e+00 : f32
    %76 = vector.broadcast %cst_45 : f32 to vector<2x256xf32>
    %77 = arith.addf %76, %75 : vector<2x256xf32>
    %78 = arith.divf %76, %77 : vector<2x256xf32>
    %79 = arith.mulf %70, %2 : vector<2x256xf32>
    %80 = arith.mulf %64, %72 : vector<2x256xf32>
    %81 = arith.addf %79, %80 : vector<2x256xf32>
    %82 = math.tanh %81 : vector<2x256xf32>
    %83 = arith.mulf %78, %82 : vector<2x256xf32>
    %84 = arith.truncf %83 : vector<2x256xf32> to vector<2x256xbf16>
    %c0_46 = arith.constant 0 : index
    %c0_47 = arith.constant 0 : index
    %85 = vector.load %arg16[%c0_46, %c0_47] : memref<256x128xbf16, #tpu.memory_space<vmem>>, vector<256x128xbf16>
    %cst_48 = arith.constant dense<0.000000e+00> : vector<2x128xf32>
    %86 = tpu.matmul %84, %85, %cst_48 {dimension_numbers = #tpu.dot_dimension_numbers<[1], [0], [0], [1], [0, 0, 1, 1], [], []>} : vector<2x256xbf16>, vector<256x128xbf16>, vector<2x128xf32> -> vector<2x128xf32>
    %c0_49 = arith.constant 0 : index
    %c0_50 = arith.constant 0 : index
    %87 = vector.load %arg17[%c0_49, %c0_50] : memref<1x128xf32, #tpu.memory_space<vmem>>, vector<1x128xf32>
    %88 = vector.broadcast %87 : vector<1x128xf32> to vector<2x128xf32>
    %89 = arith.addf %86, %88 : vector<2x128xf32>
    %90 = arith.truncf %89 : vector<2x128xf32> to vector<2x128xbf16>
    %c0_51 = arith.constant 0 : index
    %c0_52 = arith.constant 0 : index
    %91 = vector.load %arg18[%c0_51, %c0_52] : memref<128x8xbf16, #tpu.memory_space<vmem>>, vector<128x8xbf16>
    %cst_53 = arith.constant dense<0.000000e+00> : vector<2x8xf32>
    %92 = tpu.matmul %90, %91, %cst_53 {dimension_numbers = #tpu.dot_dimension_numbers<[1], [0], [0], [1], [0, 0, 1, 1], [], []>} : vector<2x128xbf16>, vector<128x8xbf16>, vector<2x8xf32> -> vector<2x8xf32>
    %c0_54 = arith.constant 0 : index
    %c0_55 = arith.constant 0 : index
    %93 = vector.load %arg19[%c0_54, %c0_55] : memref<1x8xf32, #tpu.memory_space<vmem>>, vector<1x8xf32>
    %94 = vector.broadcast %93 : vector<1x8xf32> to vector<2x8xf32>
    %95 = arith.addf %92, %94 : vector<2x8xf32>
    %c0_56 = arith.constant 0 : index
    %c0_57 = arith.constant 0 : index
    %96 = vector.load %arg20[%c0_56, %c0_57] : memref<2x8xf32, #tpu.memory_space<vmem>>, vector<2x8xf32>
    tpu.vector_store %arg20[%c0_56, %c0_57], %95 {strides = array<i32>} : memref<2x8xf32, #tpu.memory_space<vmem>>, vector<2x8xf32>,
    %c0_58 = arith.constant 0 : index
    %c0_59 = arith.constant 0 : index
    %97 = vector.load %arg21[%c0_58, %c0_59] : memref<2x256xf32, #tpu.memory_space<vmem>>, vector<2x256xf32>
    tpu.vector_store %arg21[%c0_58, %c0_59], %83 {strides = array<i32>} : memref<2x256xf32, #tpu.memory_space<vmem>>, vector<2x256xf32>,
    %c0_60 = arith.constant 0 : index
    %c0_61 = arith.constant 0 : index
    %98 = vector.load %arg22[%c0_60, %c0_61] : memref<2x256xf32, #tpu.memory_space<vmem>>, vector<2x256xf32>
    tpu.vector_store %arg22[%c0_60, %c0_61], %81 {strides = array<i32>} : memref<2x256xf32, #tpu.memory_space<vmem>>, vector<2x256xf32>,
    return
  }
}

</mosaic_0001>

<llo_original>
// kernel: a3c_lstm_forward.1
$region0: #{a3c_lstm_forward.1}
  #allocation0 [shape = 'u32[]', space=smem, size = 0x4, offset = 0x4, fixed_abs, tag = 'smem constant byte address 0x4 - core index']
  #allocation1 [shape = 'u32[144,128]{1,0:T(1,128)}', space=vmem, size = 0x12000, scoped, tag = 'internal scratch']
  %s0 = inlined_call_operand.vmem [shape: f32[2,640], index: 0, kind: input, shape index: {}]
  %s1 = inlined_call_operand.hbm [shape: f32[2,256], index: 1, kind: input, shape index: {}]
  %s2 = inlined_call_operand.hbm [shape: f32[2,256], index: 2, kind: input, shape index: {}]
  %s3 = inlined_call_operand.hbm [shape: bf16[640,1280], index: 3, kind: input, shape index: {}]
  %s4 = inlined_call_operand.hbm [shape: f32[1,1280], index: 4, kind: input, shape index: {}]
  %s5 = inlined_call_operand.vmem [shape: bf16[896,768], index: 5, kind: input, shape index: {}]
  %s6 = inlined_call_operand.hbm [shape: f32[1,768], index: 6, kind: input, shape index: {}]
  %s7 = inlined_call_operand.vmem [shape: bf16[768,336], index: 7, kind: input, shape index: {}]
  %s8 = inlined_call_operand.hbm [shape: f32[1,336], index: 8, kind: input, shape index: {}]
  %s9 = inlined_call_operand.hbm [shape: bf16[336,512], index: 9, kind: input, shape index: {}]
  %s10 = inlined_call_operand.hbm [shape: bf16[256,512], index: 10, kind: input, shape index: {}]
  %s11 = inlined_call_operand.hbm [shape: bf16[128,512], index: 11, kind: input, shape index: {}]
  %s12 = inlined_call_operand.hbm [shape: f32[1,512], index: 12, kind: input, shape index: {}]
  %s13 = inlined_call_operand.hbm [shape: bf16[512,1024], index: 13, kind: input, shape index: {}]
  %s14 = inlined_call_operand.hbm [shape: bf16[256,1024], index: 14, kind: input, shape index: {}]
  %s15 = inlined_call_operand.hbm [shape: f32[1,1024], index: 15, kind: input, shape index: {}]
  %s16 = inlined_call_operand.hbm [shape: bf16[256,128], index: 16, kind: input, shape index: {}]
  %s17 = inlined_call_operand.hbm [shape: f32[1,128], index: 17, kind: input, shape index: {}]
  %s18 = inlined_call_operand.vmem [shape: bf16[128,8], index: 18, kind: input, shape index: {}]
  %s19 = inlined_call_operand.hbm [shape: f32[1,8], index: 19, kind: input, shape index: {}]
  %s20 = inlined_call_operand.vmem [shape: f32[2,8], index: 20, kind: output, shape index: {0}]
  %s21 = inlined_call_operand.hbm [shape: f32[2,256], index: 21, kind: output, shape index: {1}]
  %s22 = inlined_call_operand.hbm [shape: f32[2,256], index: 22, kind: output, shape index: {2}]
  %23 = xla_tuple %s20, %s21, %s22
  %s24 = sld [smem:[#allocation0]]
  $region170: #{a3c_lstm_forward.1} parent=0
    _
  %s26 = ssub.s32 1, %s24
  %s27 = scalar_select 0, %s26, %s24
  $region1: #{a3c_lstm_forward.1} parent=0
    #allocation2 [shape = 'u8[2048]{0}', space=vmem, size = 0x800, scoped, tag = 'input window, operand 1, single buffered']
    #allocation3 [shape = 's32[1]{0}', space=sflag, size = 0x4, scoped, tag = 'scoped memory for a3c_lstm_forward.1']
    #allocation4 [shape = 's32[1]{0}', space=sflag, size = 0x4, scoped, tag = 'scoped memory for a3c_lstm_forward.1']
    #allocation5 [shape = 'u8[2048]{0}', space=vmem, size = 0x800, scoped, tag = 'input window, operand 2, single buffered']
    #allocation6 [shape = 's32[1]{0}', space=sflag, size = 0x4, scoped, tag = 'scoped memory for a3c_lstm_forward.1']
    #allocation7 [shape = 'u8[1638400]{0}', space=vmem, size = 0x190000, scoped, tag = 'input window, operand 3, single buffered']
    #allocation8 [shape = 'u8[5120]{0}', space=vmem, size = 0x1400, scoped, tag = 'input window, operand 4, single buffered']
    #allocation9 [shape = 's32[1]{0}', space=sflag, size = 0x4, scoped, tag = 'scoped memory for a3c_lstm_forward.1']
    #allocation10 [shape = 'u8[3072]{0}', space=vmem, size = 0xc00, scoped, tag = 'input window, operand 6, single buffered']
    #allocation11 [shape = 'u8[1536]{0}', space=vmem, size = 0x800, scoped, tag = 'input window, operand 8, single buffered']
    #allocation12 [shape = 's32[1]{0}', space=sflag, size = 0x4, scoped, tag = 'scoped memory for a3c_lstm_forward.1']
    #allocation13 [shape = 'u8[344064]{0}', space=vmem, size = 0x54000, scoped, tag = 'input window, operand 9, single buffered']
    #allocation14 [shape = 'u8[262144]{0}', space=vmem, size = 0x40000, scoped, tag = 'input window, operand 10, single buffered']
    #allocation15 [shape = 's32[1]{0}', space=sflag, size = 0x4, scoped, tag = 'scoped memory for a3c_lstm_forward.1']
    #allocation16 [shape = 'u8[131072]{0}', space=vmem, size = 0x20000, scoped, tag = 'input window, operand 11, single buffered']
    #allocation17 [shape = 'u8[2048]{0}', space=vmem, size = 0x800, scoped, tag = 'input window, operand 12, single buffered']
    #allocation18 [shape = 's32[1]{0}', space=sflag, size = 0x4, scoped, tag = 'scoped memory for a3c_lstm_forward.1']
    #allocation19 [shape = 'u8[1048576]{0}', space=vmem, size = 0x100000, scoped, tag = 'input window, operand 13, single buffered']
    #allocation20 [shape = 'u8[524288]{0}', space=vmem, size = 0x80000, scoped, tag = 'input window, operand 14, single buffered']
    #allocation21 [shape = 's32[1]{0}', space=sflag, size = 0x4, scoped, tag = 'scoped memory for a3c_lstm_forward.1']
    #allocation22 [shape = 'u8[4096]{0}', space=vmem, size = 0x1000, scoped, tag = 'input window, operand 15, single buffered']
    #allocation23 [shape = 'u8[65536]{0}', space=vmem, size = 0x10000, scoped, tag = 'input window, operand 16, single buffered']
    #allocation24 [shape = 's32[1]{0}', space=sflag, size = 0x4, scoped, tag = 'scoped memory for a3c_lstm_forward.1']
    #allocation25 [shape = 'u8[512]{0}', space=vmem, size = 0x400, scoped, tag = 'input window, operand 17, single buffered']
    #allocation26 [shape = 'u8[512]{0}', space=vmem, size = 0x400, scoped, tag = 'input window, operand 19, single buffered']
    #allocation27 [shape = 's32[1]{0}', space=sflag, size = 0x4, scoped, tag = 'scoped memory for a3c_lstm_forward.1']
    #allocation28 [shape = 'u8[2048]{0}', space=vmem, size = 0x800, scoped, tag = 'output window, operand 1, single buffered']
    #allocation29 [shape = 'u8[2048]{0}', space=vmem, size = 0x800, scoped, tag = 'output window, operand 2, single buffered']
    #allocation30 [shape = 's32[1]{0}', space=sflag, size = 0x4, scoped, tag = 'scoped memory for a3c_lstm_forward.1']
    %28 = vsyncpa [#allocation3], 0
    %29 = vsyncpa [#allocation6], 0
    %30 = vsyncpa [#allocation9], 0
    %31 = vsyncpa [#allocation12], 0
    %32 = vsyncpa [#allocation15], 0
    %33 = vsyncpa [#allocation18], 0
    %34 = vsyncpa [#allocation21], 0
    %35 = vsyncpa [#allocation24], 0
    %36 = vsyncpa [#allocation27], 0
    %37 = vsyncpa [#allocation4], 0
    %38 = vsyncpa [#allocation30], 0
    // Predicated region
    $region2: #{a3c_lstm_forward.1} parent=1 // pred_check
      _
    $region3: #{a3c_lstm_forward.1} parent=1 // pred_check_branch
      %40 = sbr.rel (0) target = $region5
    $region4: #{a3c_lstm_forward.1} parent=1 // pred_region
      _
    $region5: #{a3c_lstm_forward.1} parent=1 // pred_fallthru
      _
    // Predicated region
    $region6: #{a3c_lstm_forward.1} parent=1 // pred_check
      _
    $region7: #{a3c_lstm_forward.1} parent=1 // pred_check_branch
      %42 = sbr.rel (0) target = $region9
    $region8: #{a3c_lstm_forward.1} parent=1 // pred_region
      %s44 = ssub.s32 64, 64
      %45 = vsyncadd [#allocation3], %s44
      %s47 = sshll.u32 [#allocation2], 4
      %s48 = int_to_ptr.vmem [resolvable:$true] %s47
      %50 = dma.hbm_to_vmem [thread:$0]  %s1, 64, %s48, [#allocation3]
    $region9: #{a3c_lstm_forward.1} parent=1 // pred_fallthru
      _
    // Predicated region
    $region10: #{a3c_lstm_forward.1} parent=1 // pred_check
      _
    $region11: #{a3c_lstm_forward.1} parent=1 // pred_check_branch
      %52 = sbr.rel (0) target = $region13
    $region12: #{a3c_lstm_forward.1} parent=1 // pred_region
      %s54 = ssub.s32 64, 64
      %55 = vsyncadd [#allocation6], %s54
      %s57 = sshll.u32 [#allocation5], 4
      %s58 = int_to_ptr.vmem [resolvable:$true] %s57
      %60 = dma.hbm_to_vmem [thread:$0]  %s2, 64, %s58, [#allocation6]
    $region13: #{a3c_lstm_forward.1} parent=1 // pred_fallthru
      _
    // Predicated region
    $region14: #{a3c_lstm_forward.1} parent=1 // pred_check
      _
    $region15: #{a3c_lstm_forward.1} parent=1 // pred_check_branch
      %62 = sbr.rel (0) target = $region17
    $region16: #{a3c_lstm_forward.1} parent=1 // pred_region
      %s64 = ssub.s32 51200, 51200
      %65 = vsyncadd [#allocation6], %s64
      %s66 = sshll.u32 [#allocation7], 4
      %s67 = int_to_ptr.vmem [resolvable:$true] %s66
      %72 = dma.hbm_to_vmem [thread:$0]  %s3, 51200, %s67, [#allocation6], 640, 640, 40
    $region17: #{a3c_lstm_forward.1} parent=1 // pred_fallthru
      _
    // Predicated region
    $region18: #{a3c_lstm_forward.1} parent=1 // pred_check
      _
    $region19: #{a3c_lstm_forward.1} parent=1 // pred_check_branch
      %74 = sbr.rel (0) target = $region21
    $region20: #{a3c_lstm_forward.1} parent=1 // pred_region
      %s76 = ssub.s32 160, 160
      %77 = vsyncadd [#allocation9], %s76
      %s79 = sshll.u32 [#allocation8], 4
      %s80 = int_to_ptr.vmem [resolvable:$true] %s79
      %82 = dma.hbm_to_vmem [thread:$0]  %s4, 160, %s80, [#allocation9]
    $region21: #{a3c_lstm_forward.1} parent=1 // pred_fallthru
      _
    // Predicated region
    $region22: #{a3c_lstm_forward.1} parent=1 // pred_check
      _
    $region23: #{a3c_lstm_forward.1} parent=1 // pred_check_branch
      %84 = sbr.rel (0) target = $region25
    $region24: #{a3c_lstm_forward.1} parent=1 // pred_region
      _
    $region25: #{a3c_lstm_forward.1} parent=1 // pred_fallthru
      _
    // Predicated region
    $region26: #{a3c_lstm_forward.1} parent=1 // pred_check
      _
    $region27: #{a3c_lstm_forward.1} parent=1 // pred_check_branch
      %86 = sbr.rel (0) target = $region29
    $region28: #{a3c_lstm_forward.1} parent=1 // pred_region
      %s88 = ssub.s32 96, 96
      %89 = vsyncadd [#allocation9], %s88
      %s91 = sshll.u32 [#allocation10], 4
      %s92 = int_to_ptr.vmem [resolvable:$true] %s91
      %94 = dma.hbm_to_vmem [thread:$0]  %s6, 96, %s92, [#allocation9]
    $region29: #{a3c_lstm_forward.1} parent=1 // pred_fallthru
      _
    // Predicated region
    $region30: #{a3c_lstm_forward.1} parent=1 // pred_check
      _
    $region31: #{a3c_lstm_forward.1} parent=1 // pred_check_branch
      %96 = sbr.rel (0) target = $region33
    $region32: #{a3c_lstm_forward.1} parent=1 // pred_region
      _
    $region33: #{a3c_lstm_forward.1} parent=1 // pred_fallthru
      _
    // Predicated region
    $region34: #{a3c_lstm_forward.1} parent=1 // pred_check
      _
    $region35: #{a3c_lstm_forward.1} parent=1 // pred_check_branch
      %98 = sbr.rel (0) target = $region37
    $region36: #{a3c_lstm_forward.1} parent=1 // pred_region
      %s100 = ssub.s32 48, 48
      %101 = vsyncadd [#allocation12], %s100
      %s103 = sshll.u32 [#allocation11], 4
      %s104 = int_to_ptr.vmem [resolvable:$true] %s103
      %106 = dma.hbm_to_vmem [thread:$0]  %s8, 48, %s104, [#allocation12]
    $region37: #{a3c_lstm_forward.1} parent=1 // pred_fallthru
      _
    // Predicated region
    $region38: #{a3c_lstm_forward.1} parent=1 // pred_check
      _
    $region39: #{a3c_lstm_forward.1} parent=1 // pred_check_branch
      %108 = sbr.rel (0) target = $region41
    $region40: #{a3c_lstm_forward.1} parent=1 // pred_region
      %s110 = ssub.s32 10752, 10752
      %111 = vsyncadd [#allocation12], %s110
      %s112 = sshll.u32 [#allocation13], 4
      %s113 = int_to_ptr.vmem [resolvable:$true] %s112
      %118 = dma.hbm_to_vmem [thread:$0]  %s9, 10752, %s113, [#allocation12], 256, 256, 16
    $region41: #{a3c_lstm_forward.1} parent=1 // pred_fallthru
      _
    // Predicated region
    $region42: #{a3c_lstm_forward.1} parent=1 // pred_check
      _
    $region43: #{a3c_lstm_forward.1} parent=1 // pred_check_branch
      %120 = sbr.rel (0) target = $region45
    $region44: #{a3c_lstm_forward.1} parent=1 // pred_region
      %s122 = ssub.s32 8192, 8192
      %123 = vsyncadd [#allocation15], %s122
      %s124 = sshll.u32 [#allocation14], 4
      %s125 = int_to_ptr.vmem [resolvable:$true] %s124
      %130 = dma.hbm_to_vmem [thread:$0]  %s10, 8192, %s125, [#allocation15], 256, 256, 16
    $region45: #{a3c_lstm_forward.1} parent=1 // pred_fallthru
      _
    // Predicated region
    $region46: #{a3c_lstm_forward.1} parent=1 // pred_check
      _
    $region47: #{a3c_lstm_forward.1} parent=1 // pred_check_branch
      %132 = sbr.rel (0) target = $region49
    $region48: #{a3c_lstm_forward.1} parent=1 // pred_region
      %s134 = ssub.s32 4096, 4096
      %135 = vsyncadd [#allocation15], %s134
      %s136 = sshll.u32 [#allocation16], 4
      %s137 = int_to_ptr.vmem [resolvable:$true] %s136
      %142 = dma.hbm_to_vmem [thread:$0]  %s11, 4096, %s137, [#allocation15], 256, 256, 16
    $region49: #{a3c_lstm_forward.1} parent=1 // pred_fallthru
      _
    // Predicated region
    $region50: #{a3c_lstm_forward.1} parent=1 // pred_check
      _
    $region51: #{a3c_lstm_forward.1} parent=1 // pred_check_branch
      %144 = sbr.rel (0) target = $region53
    $region52: #{a3c_lstm_forward.1} parent=1 // pred_region
      %s146 = ssub.s32 64, 64
      %147 = vsyncadd [#allocation18], %s146
      %s149 = sshll.u32 [#allocation17], 4
      %s150 = int_to_ptr.vmem [resolvable:$true] %s149
      %152 = dma.hbm_to_vmem [thread:$0]  %s12, 64, %s150, [#allocation18]
    $region53: #{a3c_lstm_forward.1} parent=1 // pred_fallthru
      _
    // Predicated region
    $region54: #{a3c_lstm_forward.1} parent=1 // pred_check
      _
    $region55: #{a3c_lstm_forward.1} parent=1 // pred_check_branch
      %154 = sbr.rel (0) target = $region57
    $region56: #{a3c_lstm_forward.1} parent=1 // pred_region
      %s156 = ssub.s32 32768, 32768
      %157 = vsyncadd [#allocation18], %s156
      %s158 = sshll.u32 [#allocation19], 4
      %s159 = int_to_ptr.vmem [resolvable:$true] %s158
      %164 = dma.hbm_to_vmem [thread:$0]  %s13, 32768, %s159, [#allocation18], 512, 512, 32
    $region57: #{a3c_lstm_forward.1} parent=1 // pred_fallthru
      _
    // Predicated region
    $region58: #{a3c_lstm_forward.1} parent=1 // pred_check
      _
    $region59: #{a3c_lstm_forward.1} parent=1 // pred_check_branch
      %166 = sbr.rel (0) target = $region61
    $region60: #{a3c_lstm_forward.1} parent=1 // pred_region
      %s168 = ssub.s32 16384, 16384
      %169 = vsyncadd [#allocation21], %s168
      %s170 = sshll.u32 [#allocation20], 4
      %s171 = int_to_ptr.vmem [resolvable:$true] %s170
      %176 = dma.hbm_to_vmem [thread:$0]  %s14, 16384, %s171, [#allocation21], 512, 512, 32
    $region61: #{a3c_lstm_forward.1} parent=1 // pred_fallthru
      _
    // Predicated region
    $region62: #{a3c_lstm_forward.1} parent=1 // pred_check
      _
    $region63: #{a3c_lstm_forward.1} parent=1 // pred_check_branch
      %178 = sbr.rel (0) target = $region65
    $region64: #{a3c_lstm_forward.1} parent=1 // pred_region
      %s180 = ssub.s32 128, 128
      %181 = vsyncadd [#allocation21], %s180
      %s183 = sshll.u32 [#allocation22], 4
      %s184 = int_to_ptr.vmem [resolvable:$true] %s183
      %186 = dma.hbm_to_vmem [thread:$0]  %s15, 128, %s184, [#allocation21]
    $region65: #{a3c_lstm_forward.1} parent=1 // pred_fallthru
      _
    // Predicated region
    $region66: #{a3c_lstm_forward.1} parent=1 // pred_check
      _
    $region67: #{a3c_lstm_forward.1} parent=1 // pred_check_branch
      %188 = sbr.rel (0) target = $region69
    $region68: #{a3c_lstm_forward.1} parent=1 // pred_region
      %s190 = ssub.s32 2048, 2048
      %191 = vsyncadd [#allocation24], %s190
      %s192 = sshll.u32 [#allocation23], 4
      %s193 = int_to_ptr.vmem [resolvable:$true] %s192
      %198 = dma.hbm_to_vmem [thread:$0]  %s16, 2048, %s193, [#allocation24], 64, 64, 4
    $region69: #{a3c_lstm_forward.1} parent=1 // pred_fallthru
      _
    // Predicated region
    $region70: #{a3c_lstm_forward.1} parent=1 // pred_check
      _
    $region71: #{a3c_lstm_forward.1} parent=1 // pred_check_branch
      %200 = sbr.rel (0) target = $region73
    $region72: #{a3c_lstm_forward.1} parent=1 // pred_region
      %s202 = ssub.s32 16, 16
      %203 = vsyncadd [#allocation24], %s202
      %s205 = sshll.u32 [#allocation25], 4
      %s206 = int_to_ptr.vmem [resolvable:$true] %s205
      %208 = dma.hbm_to_vmem [thread:$0]  %s17, 16, %s206, [#allocation24]
    $region73: #{a3c_lstm_forward.1} parent=1 // pred_fallthru
      _
    // Predicated region
    $region74: #{a3c_lstm_forward.1} parent=1 // pred_check
      _
    $region75: #{a3c_lstm_forward.1} parent=1 // pred_check_branch
      %210 = sbr.rel (0) target = $region77
    $region76: #{a3c_lstm_forward.1} parent=1 // pred_region
      _
    $region77: #{a3c_lstm_forward.1} parent=1 // pred_fallthru
      _
    // Predicated region
    $region78: #{a3c_lstm_forward.1} parent=1 // pred_check
      _
    $region79: #{a3c_lstm_forward.1} parent=1 // pred_check_branch
      %212 = sbr.rel (0) target = $region81
    $region80: #{a3c_lstm_forward.1} parent=1 // pred_region
      %s214 = ssub.s32 16, 16
      %215 = vsyncadd [#allocation27], %s214
      %s217 = sshll.u32 [#allocation26], 4
      %s218 = int_to_ptr.vmem [resolvable:$true] %s217
      %220 = dma.hbm_to_vmem [thread:$0]  %s19, 16, %s218, [#allocation27]
    $region81: #{a3c_lstm_forward.1} parent=1 // pred_fallthru
      _
    // Predicated region
    $region82: #{a3c_lstm_forward.1} parent=1 // pred_check
      _
    $region83: #{a3c_lstm_forward.1} parent=1 // pred_check_branch
      %222 = sbr.rel (0) target = $region85
    $region84: #{a3c_lstm_forward.1} parent=1 // pred_region
      %223 = dma.done [#allocation3], 64
    $region85: #{a3c_lstm_forward.1} parent=1 // pred_fallthru
      _
    // Predicated region
    $region86: #{a3c_lstm_forward.1} parent=1 // pred_check
      _
    $region87: #{a3c_lstm_forward.1} parent=1 // pred_check_branch
      %225 = sbr.rel (0) target = $region89
    $region88: #{a3c_lstm_forward.1} parent=1 // pred_region
      %226 = dma.done [#allocation6], 64
    $region89: #{a3c_lstm_forward.1} parent=1 // pred_fallthru
      _
    // Predicated region
    $region90: #{a3c_lstm_forward.1} parent=1 // pred_check
      _
    $region91: #{a3c_lstm_forward.1} parent=1 // pred_check_branch
      %228 = sbr.rel (0) target = $region93
    $region92: #{a3c_lstm_forward.1} parent=1 // pred_region
      %229 = dma.done [#allocation6], 51200
    $region93: #{a3c_lstm_forward.1} parent=1 // pred_fallthru
      _
    // Predicated region
    $region94: #{a3c_lstm_forward.1} parent=1 // pred_check
      _
    $region95: #{a3c_lstm_forward.1} parent=1 // pred_check_branch
      %231 = sbr.rel (0) target = $region97
    $region96: #{a3c_lstm_forward.1} parent=1 // pred_region
      %232 = dma.done [#allocation9], 160
    $region97: #{a3c_lstm_forward.1} parent=1 // pred_fallthru
      _
    // Predicated region
    $region98: #{a3c_lstm_forward.1} parent=1 // pred_check
      _
    $region99: #{a3c_lstm_forward.1} parent=1 // pred_check_branch
      %234 = sbr.rel (0) target = $region101
    $region100: #{a3c_lstm_forward.1} parent=1 // pred_region
      %235 = dma.done [#allocation9], 96
    $region101: #{a3c_lstm_forward.1} parent=1 // pred_fallthru
      _
    // Predicated region
    $region102: #{a3c_lstm_forward.1} parent=1 // pred_check
      _
    $region103: #{a3c_lstm_forward.1} parent=1 // pred_check_branch
      %237 = sbr.rel (0) target = $region105
    $region104: #{a3c_lstm_forward.1} parent=1 // pred_region
      %238 = dma.done [#allocation12], 48
    $region105: #{a3c_lstm_forward.1} parent=1 // pred_fallthru
      _
    // Predicated region
    $region106: #{a3c_lstm_forward.1} parent=1 // pred_check
      _
    $region107: #{a3c_lstm_forward.1} parent=1 // pred_check_branch
      %240 = sbr.rel (0) target = $region109
    $region108: #{a3c_lstm_forward.1} parent=1 // pred_region
      %241 = dma.done [#allocation12], 10752
    $region109: #{a3c_lstm_forward.1} parent=1 // pred_fallthru
      _
    // Predicated region
    $region110: #{a3c_lstm_forward.1} parent=1 // pred_check
      _
    $region111: #{a3c_lstm_forward.1} parent=1 // pred_check_branch
      %243 = sbr.rel (0) target = $region113
    $region112: #{a3c_lstm_forward.1} parent=1 // pred_region
      %244 = dma.done [#allocation15], 8192
    $region113: #{a3c_lstm_forward.1} parent=1 // pred_fallthru
      _
    // Predicated region
    $region114: #{a3c_lstm_forward.1} parent=1 // pred_check
      _
    $region115: #{a3c_lstm_forward.1} parent=1 // pred_check_branch
      %246 = sbr.rel (0) target = $region117
    $region116: #{a3c_lstm_forward.1} parent=1 // pred_region
      %247 = dma.done [#allocation15], 4096
    $region117: #{a3c_lstm_forward.1} parent=1 // pred_fallthru
      _
    // Predicated region
    $region118: #{a3c_lstm_forward.1} parent=1 // pred_check
      _
    $region119: #{a3c_lstm_forward.1} parent=1 // pred_check_branch
      %249 = sbr.rel (0) target = $region121
    $region120: #{a3c_lstm_forward.1} parent=1 // pred_region
      %250 = dma.done [#allocation18], 64
    $region121: #{a3c_lstm_forward.1} parent=1 // pred_fallthru
      _
    // Predicated region
    $region122: #{a3c_lstm_forward.1} parent=1 // pred_check
      _
    $region123: #{a3c_lstm_forward.1} parent=1 // pred_check_branch
      %252 = sbr.rel (0) target = $region125
    $region124: #{a3c_lstm_forward.1} parent=1 // pred_region
      %253 = dma.done [#allocation18], 32768
    $region125: #{a3c_lstm_forward.1} parent=1 // pred_fallthru
      _
    // Predicated region
    $region126: #{a3c_lstm_forward.1} parent=1 // pred_check
      _
    $region127: #{a3c_lstm_forward.1} parent=1 // pred_check_branch
      %255 = sbr.rel (0) target = $region129
    $region128: #{a3c_lstm_forward.1} parent=1 // pred_region
      %256 = dma.done [#allocation21], 16384
    $region129: #{a3c_lstm_forward.1} parent=1 // pred_fallthru
      _
    // Predicated region
    $region130: #{a3c_lstm_forward.1} parent=1 // pred_check
      _
    $region131: #{a3c_lstm_forward.1} parent=1 // pred_check_branch
      %258 = sbr.rel (0) target = $region133
    $region132: #{a3c_lstm_forward.1} parent=1 // pred_region
      %259 = dma.done [#allocation21], 128
    $region133: #{a3c_lstm_forward.1} parent=1 // pred_fallthru
      _
    // Predicated region
    $region134: #{a3c_lstm_forward.1} parent=1 // pred_check
      _
    $region135: #{a3c_lstm_forward.1} parent=1 // pred_check_branch
      %261 = sbr.rel (0) target = $region137
    $region136: #{a3c_lstm_forward.1} parent=1 // pred_region
      %262 = dma.done [#allocation24], 2048
    $region137: #{a3c_lstm_forward.1} parent=1 // pred_fallthru
      _
    // Predicated region
    $region138: #{a3c_lstm_forward.1} parent=1 // pred_check
      _
    $region139: #{a3c_lstm_forward.1} parent=1 // pred_check_branch
      %264 = sbr.rel (0) target = $region141
    $region140: #{a3c_lstm_forward.1} parent=1 // pred_region
      %265 = dma.done [#allocation24], 16
    $region141: #{a3c_lstm_forward.1} parent=1 // pred_fallthru
      _
    // Predicated region
    $region142: #{a3c_lstm_forward.1} parent=1 // pred_check
      _
    $region143: #{a3c_lstm_forward.1} parent=1 // pred_check_branch
      %267 = sbr.rel (0) target = $region145
    $region144: #{a3c_lstm_forward.1} parent=1 // pred_region
      %268 = dma.done [#allocation27], 16
    $region145: #{a3c_lstm_forward.1} parent=1 // pred_fallthru
      _
    %v270 = vld [vmem:[%s0] sm:$0xff]
    %v271 = vld [vmem:[%s0 + $0x8] sm:$0x3]
    %v272 = vld [vmem:[#allocation2] sm:$0xf]
    %v273 = vld [vmem:[#allocation5] sm:$0xf]
    %v276 = vcombine.high %v270, %v270
    %v278 = vunpack.c.l.s4 1983009808
    %v279 = vunpack.c.0.s8 %v278
    %v280 = vlaneseq
    %v281 = vshrl.u32 %v280, 7
    %v282 = vsub.s32 %v279, %v281
    %v283 = vrot.slane %v270, %v282
    %v285 = vunpack.c.l.s4 1983009808
    %v286 = vunpack.c.0.s8 %v285
    %v287 = vlaneseq
    %v288 = vshrl.u32 %v287, 7
    %v289 = vsub.s32 %v286, %v288
    %v290 = vrot.slane %v276, %v289
    %v291 = vcombine.high %v283, %v283
    %v292 = vcombine.high %v290, %v290
    %v294 = vunpack.c.l.s4 1983009808
    %v295 = vunpack.c.0.s8 %v294
    %v296 = vlaneseq
    %v297 = vshrl.u32 %v296, 7
    %v298 = vsub.s32 %v295, %v297
    %v299 = vrot.slane %v271, %v298
    %v305 = vpack.c.bf16 %v283, %v283
    %v306 = vpack.c.bf16 %v291, %v291
    %v307 = vpack.c.bf16 %v290, %v290
    %v308 = vpack.c.bf16 %v292, %v292
    %v309 = vpack.c.bf16 %v299, %v299
    %v310 = vld [vmem:[#allocation7] sm:$0xff]
    %v311 = vld [vmem:[#allocation7 + $0x8] sm:$0xff]
    %v312 = vld [vmem:[#allocation7 + $0x10] sm:$0xff]
    %v313 = vld [vmem:[#allocation7 + $0x18] sm:$0xff]
    %v314 = vld [vmem:[#allocation7 + $0x20] sm:$0xff]
    %v315 = vld [vmem:[#allocation7 + $0x28] sm:$0xff]
    %v316 = vld [vmem:[#allocation7 + $0x30] sm:$0xff]
    %v317 = vld [vmem:[#allocation7 + $0x38] sm:$0xff]
    %v318 = vld [vmem:[#allocation7 + $0x40] sm:$0xff]
    %v319 = vld [vmem:[#allocation7 + $0x48] sm:$0xff]
    %v320 = vld [vmem:[#allocation7 + $0x50] sm:$0xff]
    %v321 = vld [vmem:[#allocation7 + $0x58] sm:$0xff]
    %v322 = vld [vmem:[#allocation7 + $0x60] sm:$0xff]
    %v323 = vld [vmem:[#allocation7 + $0x68] sm:$0xff]
    %v324 = vld [vmem:[#allocation7 + $0x70] sm:$0xff]
    %v325 = vld [vmem:[#allocation7 + $0x78] sm:$0xff]
    %v326 = vld [vmem:[#allocation7 + $0x80] sm:$0xff]
    %v327 = vld [vmem:[#allocation7 + $0x88] sm:$0xff]
    %v328 = vld [vmem:[#allocation7 + $0x90] sm:$0xff]
    %v329 = vld [vmem:[#allocation7 + $0x98] sm:$0xff]
    %v330 = vld [vmem:[#allocation7 + $0xa0] sm:$0xff]
    %v331 = vld [vmem:[#allocation7 + $0xa8] sm:$0xff]
    %v332 = vld [vmem:[#allocation7 + $0xb0] sm:$0xff]
    %v333 = vld [vmem:[#allocation7 + $0xb8] sm:$0xff]
    %v334 = vld [vmem:[#allocation7 + $0xc0] sm:$0xff]
    %v335 = vld [vmem:[#allocation7 + $0xc8] sm:$0xff]
    %v336 = vld [vmem:[#allocation7 + $0xd0] sm:$0xff]
    %v337 = vld [vmem:[#allocation7 + $0xd8] sm:$0xff]
    %v338 = vld [vmem:[#allocation7 + $0xe0] sm:$0xff]
    %v339 = vld [vmem:[#allocation7 + $0xe8] sm:$0xff]
    %v340 = vld [vmem:[#allocation7 + $0xf0] sm:$0xff]
    %v341 = vld [vmem:[#allocation7 + $0xf8] sm:$0xff]
    %v342 = vld [vmem:[#allocation7 + $0x100] sm:$0xff]
    %v343 = vld [vmem:[#allocation7 + $0x108] sm:$0xff]
    %v344 = vld [vmem:[#allocation7 + $0x110] sm:$0xff]
    %v345 = vld [vmem:[#allocation7 + $0x118] sm:$0xff]
    %v346 = vld [vmem:[#allocation7 + $0x120] sm:$0xff]
    %v347 = vld [vmem:[#allocation7 + $0x128] sm:$0xff]
    %v348 = vld [vmem:[#allocation7 + $0x130] sm:$0xff]
    %v349 = vld [vmem:[#allocation7 + $0x138] sm:$0xff]
    %v350 = vld [vmem:[#allocation7 + $0x140] sm:$0xff]
    %v351 = vld [vmem:[#allocation7 + $0x148] sm:$0xff]
    %v352 = vld [vmem:[#allocation7 + $0x150] sm:$0xff]
    %v353 = vld [vmem:[#allocation7 + $0x158] sm:$0xff]
    %v354 = vld [vmem:[#allocation7 + $0x160] sm:$0xff]
    %v355 = vld [vmem:[#allocation7 + $0x168] sm:$0xff]
    %v356 = vld [vmem:[#allocation7 + $0x170] sm:$0xff]
    %v357 = vld [vmem:[#allocation7 + $0x178] sm:$0xff]
    %v358 = vld [vmem:[#allocation7 + $0x180] sm:$0xff]
    %v359 = vld [vmem:[#allocation7 + $0x188] sm:$0xff]
    %v360 = vld [vmem:[#allocation7 + $0x190] sm:$0xff]
    %v361 = vld [vmem:[#allocation7 + $0x198] sm:$0xff]
    %v362 = vld [vmem:[#allocation7 + $0x1a0] sm:$0xff]
    %v363 = vld [vmem:[#allocation7 + $0x1a8] sm:$0xff]
    %v364 = vld [vmem:[#allocation7 + $0x1b0] sm:$0xff]
    %v365 = vld [vmem:[#allocation7 + $0x1b8] sm:$0xff]
    %v366 = vld [vmem:[#allocation7 + $0x1c0] sm:$0xff]
    %v367 = vld [vmem:[#allocation7 + $0x1c8] sm:$0xff]
    %v368 = vld [vmem:[#allocation7 + $0x1d0] sm:$0xff]
    %v369 = vld [vmem:[#allocation7 + $0x1d8] sm:$0xff]
    %v370 = vld [vmem:[#allocation7 + $0x1e0] sm:$0xff]
    %v371 = vld [vmem:[#allocation7 + $0x1e8] sm:$0xff]
    %v372 = vld [vmem:[#allocation7 + $0x1f0] sm:$0xff]
    %v373 = vld [vmem:[#allocation7 + $0x1f8] sm:$0xff]
    %v374 = vld [vmem:[#allocation7 + $0x200] sm:$0xff]
    %v375 = vld [vmem:[#allocation7 + $0x208] sm:$0xff]
    %v376 = vld [vmem:[#allocation7 + $0x210] sm:$0xff]
    %v377 = vld [vmem:[#allocation7 + $0x218] sm:$0xff]
    %v378 = vld [vmem:[#allocation7 + $0x220] sm:$0xff]
    %v379 = vld [vmem:[#allocation7 + $0x228] sm:$0xff]
    %v380 = vld [vmem:[#allocation7 + $0x230] sm:$0xff]
    %v381 = vld [vmem:[#allocation7 + $0x238] sm:$0xff]
    %v382 = vld [vmem:[#allocation7 + $0x240] sm:$0xff]
    %v383 = vld [vmem:[#allocation7 + $0x248] sm:$0xff]
    %v384 = vld [vmem:[#allocation7 + $0x250] sm:$0xff]
    %v385 = vld [vmem:[#allocation7 + $0x258] sm:$0xff]
    %v386 = vld [vmem:[#allocation7 + $0x260] sm:$0xff]
    %v387 = vld [vmem:[#allocation7 + $0x268] sm:$0xff]
    %v388 = vld [vmem:[#allocation7 + $0x270] sm:$0xff]
    %v389 = vld [vmem:[#allocation7 + $0x278] sm:$0xff]
    %v390 = vld [vmem:[#allocation7 + $0x280] sm:$0xff]
    %v391 = vld [vmem:[#allocation7 + $0x288] sm:$0xff]
    %v392 = vld [vmem:[#allocation7 + $0x290] sm:$0xff]
    %v393 = vld [vmem:[#allocation7 + $0x298] sm:$0xff]
    %v394 = vld [vmem:[#allocation7 + $0x2a0] sm:$0xff]
    %v395 = vld [vmem:[#allocation7 + $0x2a8] sm:$0xff]
    %v396 = vld [vmem:[#allocation7 + $0x2b0] sm:$0xff]
    %v397 = vld [vmem:[#allocation7 + $0x2b8] sm:$0xff]
    %v398 = vld [vmem:[#allocation7 + $0x2c0] sm:$0xff]
    %v399 = vld [vmem:[#allocation7 + $0x2c8] sm:$0xff]
    %v400 = vld [vmem:[#allocation7 + $0x2d0] sm:$0xff]
    %v401 = vld [vmem:[#allocation7 + $0x2d8] sm:$0xff]
    %v402 = vld [vmem:[#allocation7 + $0x2e0] sm:$0xff]
    %v403 = vld [vmem:[#allocation7 + $0x2e8] sm:$0xff]
    %v404 = vld [vmem:[#allocation7 + $0x2f0] sm:$0xff]
    %v405 = vld [vmem:[#allocation7 + $0x2f8] sm:$0xff]
    %v406 = vld [vmem:[#allocation7 + $0x300] sm:$0xff]
    %v407 = vld [vmem:[#allocation7 + $0x308] sm:$0xff]
    %v408 = vld [vmem:[#allocation7 + $0x310] sm:$0xff]
    %v409 = vld [vmem:[#allocation7 + $0x318] sm:$0xff]
    %v410 = vld [vmem:[#allocation7 + $0x320] sm:$0xff]
    %v411 = vld [vmem:[#allocation7 + $0x328] sm:$0xff]
    %v412 = vld [vmem:[#allocation7 + $0x330] sm:$0xff]
    %v413 = vld [vmem:[#allocation7 + $0x338] sm:$0xff]
    %v414 = vld [vmem:[#allocation7 + $0x340] sm:$0xff]
    %v415 = vld [vmem:[#allocation7 + $0x348] sm:$0xff]
    %v416 = vld [vmem:[#allocation7 + $0x350] sm:$0xff]
    %v417 = vld [vmem:[#allocation7 + $0x358] sm:$0xff]
    %v418 = vld [vmem:[#allocation7 + $0x360] sm:$0xff]
    %v419 = vld [vmem:[#allocation7 + $0x368] sm:$0xff]
    %v420 = vld [vmem:[#allocation7 + $0x370] sm:$0xff]
    %v421 = vld [vmem:[#allocation7 + $0x378] sm:$0xff]
    %v422 = vld [vmem:[#allocation7 + $0x380] sm:$0xff]
    %v423 = vld [vmem:[#allocation7 + $0x388] sm:$0xff]
    %v424 = vld [vmem:[#allocation7 + $0x390] sm:$0xff]
    %v425 = vld [vmem:[#allocation7 + $0x398] sm:$0xff]
    %v426 = vld [vmem:[#allocation7 + $0x3a0] sm:$0xff]
    %v427 = vld [vmem:[#allocation7 + $0x3a8] sm:$0xff]
    %v428 = vld [vmem:[#allocation7 + $0x3b0] sm:$0xff]
    %v429 = vld [vmem:[#allocation7 + $0x3b8] sm:$0xff]
    %v430 = vld [vmem:[#allocation7 + $0x3c0] sm:$0xff]
    %v431 = vld [vmem:[#allocation7 + $0x3c8] sm:$0xff]
    %v432 = vld [vmem:[#allocation7 + $0x3d0] sm:$0xff]
    %v433 = vld [vmem:[#allocation7 + $0x3d8] sm:$0xff]
    %v434 = vld [vmem:[#allocation7 + $0x3e0] sm:$0xff]
    %v435 = vld [vmem:[#allocation7 + $0x3e8] sm:$0xff]
    %v436 = vld [vmem:[#allocation7 + $0x3f0] sm:$0xff]
    %v437 = vld [vmem:[#allocation7 + $0x3f8] sm:$0xff]
    %v438 = vld [vmem:[#allocation7 + $0x400] sm:$0xff]
    %v439 = vld [vmem:[#allocation7 + $0x408] sm:$0xff]
    %v440 = vld [vmem:[#allocation7 + $0x410] sm:$0xff]
    %v441 = vld [vmem:[#allocation7 + $0x418] sm:$0xff]
    %v442 = vld [vmem:[#allocation7 + $0x420] sm:$0xff]
    %v443 = vld [vmem:[#allocation7 + $0x428] sm:$0xff]
    %v444 = vld [vmem:[#allocation7 + $0x430] sm:$0xff]
    %v445 = vld [vmem:[#allocation7 + $0x438] sm:$0xff]
    %v446 = vld [vmem:[#allocation7 + $0x440] sm:$0xff]
    %v447 = vld [vmem:[#allocation7 + $0x448] sm:$0xff]
    %v448 = vld [vmem:[#allocation7 + $0x450] sm:$0xff]
    %v449 = vld [vmem:[#allocation7 + $0x458] sm:$0xff]
    %v450 = vld [vmem:[#allocation7 + $0x460] sm:$0xff]
    %v451 = vld [vmem:[#allocation7 + $0x468] sm:$0xff]
    %v452 = vld [vmem:[#allocation7 + $0x470] sm:$0xff]
    %v453 = vld [vmem:[#allocation7 + $0x478] sm:$0xff]
    %v454 = vld [vmem:[#allocation7 + $0x480] sm:$0xff]
    %v455 = vld [vmem:[#allocation7 + $0x488] sm:$0xff]
    %v456 = vld [vmem:[#allocation7 + $0x490] sm:$0xff]
    %v457 = vld [vmem:[#allocation7 + $0x498] sm:$0xff]
    %v458 = vld [vmem:[#allocation7 + $0x4a0] sm:$0xff]
    %v459 = vld [vmem:[#allocation7 + $0x4a8] sm:$0xff]
    %v460 = vld [vmem:[#allocation7 + $0x4b0] sm:$0xff]
    %v461 = vld [vmem:[#allocation7 + $0x4b8] sm:$0xff]
    %v462 = vld [vmem:[#allocation7 + $0x4c0] sm:$0xff]
    %v463 = vld [vmem:[#allocation7 + $0x4c8] sm:$0xff]
    %v464 = vld [vmem:[#allocation7 + $0x4d0] sm:$0xff]
    %v465 = vld [vmem:[#allocation7 + $0x4d8] sm:$0xff]
    %v466 = vld [vmem:[#allocation7 + $0x4e0] sm:$0xff]
    %v467 = vld [vmem:[#allocation7 + $0x4e8] sm:$0xff]
    %v468 = vld [vmem:[#allocation7 + $0x4f0] sm:$0xff]
    %v469 = vld [vmem:[#allocation7 + $0x4f8] sm:$0xff]
    %v470 = vld [vmem:[#allocation7 + $0x500] sm:$0xff]
    %v471 = vld [vmem:[#allocation7 + $0x508] sm:$0xff]
    %v472 = vld [vmem:[#allocation7 + $0x510] sm:$0xff]
    %v473 = vld [vmem:[#allocation7 + $0x518] sm:$0xff]
    %v474 = vld [vmem:[#allocation7 + $0x520] sm:$0xff]
    %v475 = vld [vmem:[#allocation7 + $0x528] sm:$0xff]
    %v476 = vld [vmem:[#allocation7 + $0x530] sm:$0xff]
    %v477 = vld [vmem:[#allocation7 + $0x538] sm:$0xff]
    %v478 = vld [vmem:[#allocation7 + $0x540] sm:$0xff]
    %v479 = vld [vmem:[#allocation7 + $0x548] sm:$0xff]
    %v480 = vld [vmem:[#allocation7 + $0x550] sm:$0xff]
    %v481 = vld [vmem:[#allocation7 + $0x558] sm:$0xff]
    %v482 = vld [vmem:[#allocation7 + $0x560] sm:$0xff]
    %v483 = vld [vmem:[#allocation7 + $0x568] sm:$0xff]
    %v484 = vld [vmem:[#allocation7 + $0x570] sm:$0xff]
    %v485 = vld [vmem:[#allocation7 + $0x578] sm:$0xff]
    %v486 = vld [vmem:[#allocation7 + $0x580] sm:$0xff]
    %v487 = vld [vmem:[#allocation7 + $0x588] sm:$0xff]
    %v488 = vld [vmem:[#allocation7 + $0x590] sm:$0xff]
    %v489 = vld [vmem:[#allocation7 + $0x598] sm:$0xff]
    %v490 = vld [vmem:[#allocation7 + $0x5a0] sm:$0xff]
    %v491 = vld [vmem:[#allocation7 + $0x5a8] sm:$0xff]
    %v492 = vld [vmem:[#allocation7 + $0x5b0] sm:$0xff]
    %v493 = vld [vmem:[#allocation7 + $0x5b8] sm:$0xff]
    %v494 = vld [vmem:[#allocation7 + $0x5c0] sm:$0xff]
    %v495 = vld [vmem:[#allocation7 + $0x5c8] sm:$0xff]
    %v496 = vld [vmem:[#allocation7 + $0x5d0] sm:$0xff]
    %v497 = vld [vmem:[#allocation7 + $0x5d8] sm:$0xff]
    %v498 = vld [vmem:[#allocation7 + $0x5e0] sm:$0xff]
    %v499 = vld [vmem:[#allocation7 + $0x5e8] sm:$0xff]
    %v500 = vld [vmem:[#allocation7 + $0x5f0] sm:$0xff]
    %v501 = vld [vmem:[#allocation7 + $0x5f8] sm:$0xff]
    %v502 = vld [vmem:[#allocation7 + $0x600] sm:$0xff]
    %v503 = vld [vmem:[#allocation7 + $0x608] sm:$0xff]
    %v504 = vld [vmem:[#allocation7 + $0x610] sm:$0xff]
    %v505 = vld [vmem:[#allocation7 + $0x618] sm:$0xff]
    %v506 = vld [vmem:[#allocation7 + $0x620] sm:$0xff]
    %v507 = vld [vmem:[#allocation7 + $0x628] sm:$0xff]
    %v508 = vld [vmem:[#allocation7 + $0x630] sm:$0xff]
    %v509 = vld [vmem:[#allocation7 + $0x638] sm:$0xff]
    %v510 = vld [vmem:[#allocation7 + $0x640] sm:$0xff]
    %v511 = vld [vmem:[#allocation7 + $0x648] sm:$0xff]
    %v512 = vld [vmem:[#allocation7 + $0x650] sm:$0xff]
    %v513 = vld [vmem:[#allocation7 + $0x658] sm:$0xff]
    %v514 = vld [vmem:[#allocation7 + $0x660] sm:$0xff]
    %v515 = vld [vmem:[#allocation7 + $0x668] sm:$0xff]
    %v516 = vld [vmem:[#allocation7 + $0x670] sm:$0xff]
    %v517 = vld [vmem:[#allocation7 + $0x678] sm:$0xff]
    %v518 = vld [vmem:[#allocation7 + $0x680] sm:$0xff]
    %v519 = vld [vmem:[#allocation7 + $0x688] sm:$0xff]
    %v520 = vld [vmem:[#allocation7 + $0x690] sm:$0xff]
    %v521 = vld [vmem:[#allocation7 + $0x698] sm:$0xff]
    %v522 = vld [vmem:[#allocation7 + $0x6a0] sm:$0xff]
    %v523 = vld [vmem:[#allocation7 + $0x6a8] sm:$0xff]
    %v524 = vld [vmem:[#allocation7 + $0x6b0] sm:$0xff]
    %v525 = vld [vmem:[#allocation7 + $0x6b8] sm:$0xff]
    %v526 = vld [vmem:[#allocation7 + $0x6c0] sm:$0xff]
    %v527 = vld [vmem:[#allocation7 + $0x6c8] sm:$0xff]
    %v528 = vld [vmem:[#allocation7 + $0x6d0] sm:$0xff]
    %v529 = vld [vmem:[#allocation7 + $0x6d8] sm:$0xff]
    %v530 = vld [vmem:[#allocation7 + $0x6e0] sm:$0xff]
    %v531 = vld [vmem:[#allocation7 + $0x6e8] sm:$0xff]
    %v532 = vld [vmem:[#allocation7 + $0x6f0] sm:$0xff]
    %v533 = vld [vmem:[#allocation7 + $0x6f8] sm:$0xff]
    %v534 = vld [vmem:[#allocation7 + $0x700] sm:$0xff]
    %v535 = vld [vmem:[#allocation7 + $0x708] sm:$0xff]
    %v536 = vld [vmem:[#allocation7 + $0x710] sm:$0xff]
    %v537 = vld [vmem:[#allocation7 + $0x718] sm:$0xff]
    %v538 = vld [vmem:[#allocation7 + $0x720] sm:$0xff]
    %v539 = vld [vmem:[#allocation7 + $0x728] sm:$0xff]
    %v540 = vld [vmem:[#allocation7 + $0x730] sm:$0xff]
    %v541 = vld [vmem:[#allocation7 + $0x738] sm:$0xff]
    %v542 = vld [vmem:[#allocation7 + $0x740] sm:$0xff]
    %v543 = vld [vmem:[#allocation7 + $0x748] sm:$0xff]
    %v544 = vld [vmem:[#allocation7 + $0x750] sm:$0xff]
    %v545 = vld [vmem:[#allocation7 + $0x758] sm:$0xff]
    %v546 = vld [vmem:[#allocation7 + $0x760] sm:$0xff]
    %v547 = vld [vmem:[#allocation7 + $0x768] sm:$0xff]
    %v548 = vld [vmem:[#allocation7 + $0x770] sm:$0xff]
    %v549 = vld [vmem:[#allocation7 + $0x778] sm:$0xff]
    %v550 = vld [vmem:[#allocation7 + $0x780] sm:$0xff]
    %v551 = vld [vmem:[#allocation7 + $0x788] sm:$0xff]
    %v552 = vld [vmem:[#allocation7 + $0x790] sm:$0xff]
    %v553 = vld [vmem:[#allocation7 + $0x798] sm:$0xff]
    %v554 = vld [vmem:[#allocation7 + $0x7a0] sm:$0xff]
    %v555 = vld [vmem:[#allocation7 + $0x7a8] sm:$0xff]
    %v556 = vld [vmem:[#allocation7 + $0x7b0] sm:$0xff]
    %v557 = vld [vmem:[#allocation7 + $0x7b8] sm:$0xff]
    %v558 = vld [vmem:[#allocation7 + $0x7c0] sm:$0xff]
    %v559 = vld [vmem:[#allocation7 + $0x7c8] sm:$0xff]
    %v560 = vld [vmem:[#allocation7 + $0x7d0] sm:$0xff]
    %v561 = vld [vmem:[#allocation7 + $0x7d8] sm:$0xff]
    %v562 = vld [vmem:[#allocation7 + $0x7e0] sm:$0xff]
    %v563 = vld [vmem:[#allocation7 + $0x7e8] sm:$0xff]
    %v564 = vld [vmem:[#allocation7 + $0x7f0] sm:$0xff]
    %v565 = vld [vmem:[#allocation7 + $0x7f8] sm:$0xff]
    %v566 = vld [vmem:[#allocation7 + $0x800] sm:$0xff]
    %v567 = vld [vmem:[#allocation7 + $0x808] sm:$0xff]
    %v568 = vld [vmem:[#allocation7 + $0x810] sm:$0xff]
    %v569 = vld [vmem:[#allocation7 + $0x818] sm:$0xff]
    %v570 = vld [vmem:[#allocation7 + $0x820] sm:$0xff]
    %v571 = vld [vmem:[#allocation7 + $0x828] sm:$0xff]
    %v572 = vld [vmem:[#allocation7 + $0x830] sm:$0xff]
    %v573 = vld [vmem:[#allocation7 + $0x838] sm:$0xff]
    %v574 = vld [vmem:[#allocation7 + $0x840] sm:$0xff]
    %v575 = vld [vmem:[#allocation7 + $0x848] sm:$0xff]
    %v576 = vld [vmem:[#allocation7 + $0x850] sm:$0xff]
    %v577 = vld [vmem:[#allocation7 + $0x858] sm:$0xff]
    %v578 = vld [vmem:[#allocation7 + $0x860] sm:$0xff]
    %v579 = vld [vmem:[#allocation7 + $0x868] sm:$0xff]
    %v580 = vld [vmem:[#allocation7 + $0x870] sm:$0xff]
    %v581 = vld [vmem:[#allocation7 + $0x878] sm:$0xff]
    %v582 = vld [vmem:[#allocation7 + $0x880] sm:$0xff]
    %v583 = vld [vmem:[#allocation7 + $0x888] sm:$0xff]
    %v584 = vld [vmem:[#allocation7 + $0x890] sm:$0xff]
    %v585 = vld [vmem:[#allocation7 + $0x898] sm:$0xff]
    %v586 = vld [vmem:[#allocation7 + $0x8a0] sm:$0xff]
    %v587 = vld [vmem:[#allocation7 + $0x8a8] sm:$0xff]
    %v588 = vld [vmem:[#allocation7 + $0x8b0] sm:$0xff]
    %v589 = vld [vmem:[#allocation7 + $0x8b8] sm:$0xff]
    %v590 = vld [vmem:[#allocation7 + $0x8c0] sm:$0xff]
    %v591 = vld [vmem:[#allocation7 + $0x8c8] sm:$0xff]
    %v592 = vld [vmem:[#allocation7 + $0x8d0] sm:$0xff]
    %v593 = vld [vmem:[#allocation7 + $0x8d8] sm:$0xff]
    %v594 = vld [vmem:[#allocation7 + $0x8e0] sm:$0xff]
    %v595 = vld [vmem:[#allocation7 + $0x8e8] sm:$0xff]
    %v596 = vld [vmem:[#allocation7 + $0x8f0] sm:$0xff]
    %v597 = vld [vmem:[#allocation7 + $0x8f8] sm:$0xff]
    %v598 = vld [vmem:[#allocation7 + $0x900] sm:$0xff]
    %v599 = vld [vmem:[#allocation7 + $0x908] sm:$0xff]
    %v600 = vld [vmem:[#allocation7 + $0x910] sm:$0xff]
    %v601 = vld [vmem:[#allocation7 + $0x918] sm:$0xff]
    %v602 = vld [vmem:[#allocation7 + $0x920] sm:$0xff]
    %v603 = vld [vmem:[#allocation7 + $0x928] sm:$0xff]
    %v604 = vld [vmem:[#allocation7 + $0x930] sm:$0xff]
    %v605 = vld [vmem:[#allocation7 + $0x938] sm:$0xff]
    %v606 = vld [vmem:[#allocation7 + $0x940] sm:$0xff]
    %v607 = vld [vmem:[#allocation7 + $0x948] sm:$0xff]
    %v608 = vld [vmem:[#allocation7 + $0x950] sm:$0xff]
    %v609 = vld [vmem:[#allocation7 + $0x958] sm:$0xff]
    %v610 = vld [vmem:[#allocation7 + $0x960] sm:$0xff]
    %v611 = vld [vmem:[#allocation7 + $0x968] sm:$0xff]
    %v612 = vld [vmem:[#allocation7 + $0x970] sm:$0xff]
    %v613 = vld [vmem:[#allocation7 + $0x978] sm:$0xff]
    %v614 = vld [vmem:[#allocation7 + $0x980] sm:$0xff]
    %v615 = vld [vmem:[#allocation7 + $0x988] sm:$0xff]
    %v616 = vld [vmem:[#allocation7 + $0x990] sm:$0xff]
    %v617 = vld [vmem:[#allocation7 + $0x998] sm:$0xff]
    %v618 = vld [vmem:[#allocation7 + $0x9a0] sm:$0xff]
    %v619 = vld [vmem:[#allocation7 + $0x9a8] sm:$0xff]
    %v620 = vld [vmem:[#allocation7 + $0x9b0] sm:$0xff]
    %v621 = vld [vmem:[#allocation7 + $0x9b8] sm:$0xff]
    %v622 = vld [vmem:[#allocation7 + $0x9c0] sm:$0xff]
    %v623 = vld [vmem:[#allocation7 + $0x9c8] sm:$0xff]
    %v624 = vld [vmem:[#allocation7 + $0x9d0] sm:$0xff]
    %v625 = vld [vmem:[#allocation7 + $0x9d8] sm:$0xff]
    %v626 = vld [vmem:[#allocation7 + $0x9e0] sm:$0xff]
    %v627 = vld [vmem:[#allocation7 + $0x9e8] sm:$0xff]
    %v628 = vld [vmem:[#allocation7 + $0x9f0] sm:$0xff]
    %v629 = vld [vmem:[#allocation7 + $0x9f8] sm:$0xff]
    %v630 = vld [vmem:[#allocation7 + $0xa00] sm:$0xff]
    %v631 = vld [vmem:[#allocation7 + $0xa08] sm:$0xff]
    %v632 = vld [vmem:[#allocation7 + $0xa10] sm:$0xff]
    %v633 = vld [vmem:[#allocation7 + $0xa18] sm:$0xff]
    %v634 = vld [vmem:[#allocation7 + $0xa20] sm:$0xff]
    %v635 = vld [vmem:[#allocation7 + $0xa28] sm:$0xff]
    %v636 = vld [vmem:[#allocation7 + $0xa30] sm:$0xff]
    %v637 = vld [vmem:[#allocation7 + $0xa38] sm:$0xff]
    %v638 = vld [vmem:[#allocation7 + $0xa40] sm:$0xff]
    %v639 = vld [vmem:[#allocation7 + $0xa48] sm:$0xff]
    %v640 = vld [vmem:[#allocation7 + $0xa50] sm:$0xff]
    %v641 = vld [vmem:[#allocation7 + $0xa58] sm:$0xff]
    %v642 = vld [vmem:[#allocation7 + $0xa60] sm:$0xff]
    %v643 = vld [vmem:[#allocation7 + $0xa68] sm:$0xff]
    %v644 = vld [vmem:[#allocation7 + $0xa70] sm:$0xff]
    %v645 = vld [vmem:[#allocation7 + $0xa78] sm:$0xff]
    %v646 = vld [vmem:[#allocation7 + $0xa80] sm:$0xff]
    %v647 = vld [vmem:[#allocation7 + $0xa88] sm:$0xff]
    %v648 = vld [vmem:[#allocation7 + $0xa90] sm:$0xff]
    %v649 = vld [vmem:[#allocation7 + $0xa98] sm:$0xff]
    %v650 = vld [vmem:[#allocation7 + $0xaa0] sm:$0xff]
    %v651 = vld [vmem:[#allocation7 + $0xaa8] sm:$0xff]
    %v652 = vld [vmem:[#allocation7 + $0xab0] sm:$0xff]
    %v653 = vld [vmem:[#allocation7 + $0xab8] sm:$0xff]
    %v654 = vld [vmem:[#allocation7 + $0xac0] sm:$0xff]
    %v655 = vld [vmem:[#allocation7 + $0xac8] sm:$0xff]
    %v656 = vld [vmem:[#allocation7 + $0xad0] sm:$0xff]
    %v657 = vld [vmem:[#allocation7 + $0xad8] sm:$0xff]
    %v658 = vld [vmem:[#allocation7 + $0xae0] sm:$0xff]
    %v659 = vld [vmem:[#allocation7 + $0xae8] sm:$0xff]
    %v660 = vld [vmem:[#allocation7 + $0xaf0] sm:$0xff]
    %v661 = vld [vmem:[#allocation7 + $0xaf8] sm:$0xff]
    %v662 = vld [vmem:[#allocation7 + $0xb00] sm:$0xff]
    %v663 = vld [vmem:[#allocation7 + $0xb08] sm:$0xff]
    %v664 = vld [vmem:[#allocation7 + $0xb10] sm:$0xff]
    %v665 = vld [vmem:[#allocation7 + $0xb18] sm:$0xff]
    %v666 = vld [vmem:[#allocation7 + $0xb20] sm:$0xff]
    %v667 = vld [vmem:[#allocation7 + $0xb28] sm:$0xff]
    %v668 = vld [vmem:[#allocation7 + $0xb30] sm:$0xff]
    %v669 = vld [vmem:[#allocation7 + $0xb38] sm:$0xff]
    %v670 = vld [vmem:[#allocation7 + $0xb40] sm:$0xff]
    %v671 = vld [vmem:[#allocation7 + $0xb48] sm:$0xff]
    %v672 = vld [vmem:[#allocation7 + $0xb50] sm:$0xff]
    %v673 = vld [vmem:[#allocation7 + $0xb58] sm:$0xff]
    %v674 = vld [vmem:[#allocation7 + $0xb60] sm:$0xff]
    %v675 = vld [vmem:[#allocation7 + $0xb68] sm:$0xff]
    %v676 = vld [vmem:[#allocation7 + $0xb70] sm:$0xff]
    %v677 = vld [vmem:[#allocation7 + $0xb78] sm:$0xff]
    %v678 = vld [vmem:[#allocation7 + $0xb80] sm:$0xff]
    %v679 = vld [vmem:[#allocation7 + $0xb88] sm:$0xff]
    %v680 = vld [vmem:[#allocation7 + $0xb90] sm:$0xff]
    %v681 = vld [vmem:[#allocation7 + $0xb98] sm:$0xff]
    %v682 = vld [vmem:[#allocation7 + $0xba0] sm:$0xff]
    %v683 = vld [vmem:[#allocation7 + $0xba8] sm:$0xff]
    %v684 = vld [vmem:[#allocation7 + $0xbb0] sm:$0xff]
    %v685 = vld [vmem:[#allocation7 + $0xbb8] sm:$0xff]
    %v686 = vld [vmem:[#allocation7 + $0xbc0] sm:$0xff]
    %v687 = vld [vmem:[#allocation7 + $0xbc8] sm:$0xff]
    %v688 = vld [vmem:[#allocation7 + $0xbd0] sm:$0xff]
    %v689 = vld [vmem:[#allocation7 + $0xbd8] sm:$0xff]
    %v690 = vld [vmem:[#allocation7 + $0xbe0] sm:$0xff]
    %v691 = vld [vmem:[#allocation7 + $0xbe8] sm:$0xff]
    %v692 = vld [vmem:[#allocation7 + $0xbf0] sm:$0xff]
    %v693 = vld [vmem:[#allocation7 + $0xbf8] sm:$0xff]
    %v694 = vld [vmem:[#allocation7 + $0xc00] sm:$0xff]
    %v695 = vld [vmem:[#allocation7 + $0xc08] sm:$0xff]
    %v696 = vld [vmem:[#allocation7 + $0xc10] sm:$0xff]
    %v697 = vld [vmem:[#allocation7 + $0xc18] sm:$0xff]
    %v698 = vld [vmem:[#allocation7 + $0xc20] sm:$0xff]
    %v699 = vld [vmem:[#allocation7 + $0xc28] sm:$0xff]
    %v700 = vld [vmem:[#allocation7 + $0xc30] sm:$0xff]
    %v701 = vld [vmem:[#allocation7 + $0xc38] sm:$0xff]
    %v702 = vld [vmem:[#allocation7 + $0xc40] sm:$0xff]
    %v703 = vld [vmem:[#allocation7 + $0xc48] sm:$0xff]
    %v704 = vld [vmem:[#allocation7 + $0xc50] sm:$0xff]
    %v705 = vld [vmem:[#allocation7 + $0xc58] sm:$0xff]
    %v706 = vld [vmem:[#allocation7 + $0xc60] sm:$0xff]
    %v707 = vld [vmem:[#allocation7 + $0xc68] sm:$0xff]
    %v708 = vld [vmem:[#allocation7 + $0xc70] sm:$0xff]
    %v709 = vld [vmem:[#allocation7 + $0xc78] sm:$0xff]
    %v710 = vld [vmem:[#allocation8] sm:$0xff]
    %v711 = vld [vmem:[#allocation8 + $0x8] sm:$0x3]
    %v714 = vlaneseq
    %v715 = vshrl.u32 %v714, 7
    %v716 = vsub.s32 0, %v715
    %v717 = vrot.slane %v710, %v716
    %v718 = vlaneseq
    %v719 = vshrl.u32 %v718, 7
    %v720 = vsub.s32 1, %v719
    %v721 = vrot.slane %v710, %v720
    %v722 = vlaneseq
    %v723 = vshrl.u32 %v722, 7
    %v724 = vsub.s32 2, %v723
    %v725 = vrot.slane %v710, %v724
    %v726 = vlaneseq
    %v727 = vshrl.u32 %v726, 7
    %v728 = vsub.s32 3, %v727
    %v729 = vrot.slane %v710, %v728
    %v730 = vlaneseq
    %v731 = vshrl.u32 %v730, 7
    %v732 = vsub.s32 4, %v731
    %v733 = vrot.slane %v710, %v732
    %v734 = vlaneseq
    %v735 = vshrl.u32 %v734, 7
    %v736 = vsub.s32 5, %v735
    %v737 = vrot.slane %v710, %v736
    %v738 = vlaneseq
    %v739 = vshrl.u32 %v738, 7
    %v740 = vsub.s32 6, %v739
    %v741 = vrot.slane %v710, %v740
    %v742 = vlaneseq
    %v743 = vshrl.u32 %v742, 7
    %v744 = vsub.s32 7, %v743
    %v745 = vrot.slane %v710, %v744
    %v746 = vlaneseq
    %v747 = vshrl.u32 %v746, 7
    %v748 = vsub.s32 0, %v747
    %v749 = vrot.slane %v711, %v748
    %v750 = vlaneseq
    %v751 = vshrl.u32 %v750, 7
    %v752 = vsub.s32 1, %v751
    %v753 = vrot.slane %v711, %v752
    %v1164 = vunpack.c.l.b16 %v310
    %v1165 = vunpack.c.h.b16 %v310
    %v1166 = vunpack.c.l.b16 %v311
    %v1167 = vunpack.c.h.b16 %v311
    %v1168 = vunpack.c.l.b16 %v312
    %v1169 = vunpack.c.h.b16 %v312
    %v1170 = vunpack.c.l.b16 %v313
    %v1171 = vunpack.c.h.b16 %v313
    %v1172 = vunpack.c.l.b16 %v314
    %v1173 = vunpack.c.h.b16 %v314
    %v1174 = vunpack.c.l.b16 %v315
    %v1175 = vunpack.c.h.b16 %v315
    %v1176 = vunpack.c.l.b16 %v316
    %v1177 = vunpack.c.h.b16 %v316
    %v1178 = vunpack.c.l.b16 %v317
    %v1179 = vunpack.c.h.b16 %v317
    %v1180 = vunpack.c.l.b16 %v318
    %v1181 = vunpack.c.h.b16 %v318
    %v1182 = vunpack.c.l.b16 %v319
    %v1183 = vunpack.c.h.b16 %v319
    %v1184 = vunpack.c.l.b16 %v320
    %v1185 = vunpack.c.h.b16 %v320
    %v1186 = vunpack.c.l.b16 %v321
    %v1187 = vunpack.c.h.b16 %v321
    %v1188 = vunpack.c.l.b16 %v322
    %v1189 = vunpack.c.h.b16 %v322
    %v1190 = vunpack.c.l.b16 %v323
    %v1191 = vunpack.c.h.b16 %v323
    %v1192 = vunpack.c.l.b16 %v324
    %v1193 = vunpack.c.h.b16 %v324
    %v1194 = vunpack.c.l.b16 %v325
    %v1195 = vunpack.c.h.b16 %v325
    %v1196 = vunpack.c.l.b16 %v326
    %v1197 = vunpack.c.h.b16 %v326
    %v1198 = vunpack.c.l.b16 %v327
    %v1199 = vunpack.c.h.b16 %v327
    %v1200 = vunpack.c.l.b16 %v328
    %v1201 = vunpack.c.h.b16 %v328
    %v1202 = vunpack.c.l.b16 %v329
    %v1203 = vunpack.c.h.b16 %v329
    %v1204 = vunpack.c.l.b16 %v330
    %v1205 = vunpack.c.h.b16 %v330
    %v1206 = vunpack.c.l.b16 %v331
    %v1207 = vunpack.c.h.b16 %v331
    %v1208 = vunpack.c.l.b16 %v332
    %v1209 = vunpack.c.h.b16 %v332
    %v1210 = vunpack.c.l.b16 %v333
    %v1211 = vunpack.c.h.b16 %v333
    %v1212 = vunpack.c.l.b16 %v334
    %v1213 = vunpack.c.h.b16 %v334
    %v1214 = vunpack.c.l.b16 %v335
    %v1215 = vunpack.c.h.b16 %v335
    %v1216 = vunpack.c.l.b16 %v336
    %v1217 = vunpack.c.h.b16 %v336
    %v1218 = vunpack.c.l.b16 %v337
    %v1219 = vunpack.c.h.b16 %v337
    %v1220 = vunpack.c.l.b16 %v338
    %v1221 = vunpack.c.h.b16 %v338
    %v1222 = vunpack.c.l.b16 %v339
    %v1223 = vunpack.c.h.b16 %v339
    %v1224 = vunpack.c.l.b16 %v340
    %v1225 = vunpack.c.h.b16 %v340
    %v1226 = vunpack.c.l.b16 %v341
    %v1227 = vunpack.c.h.b16 %v341
    %v1228 = vunpack.c.l.b16 %v342
    %v1229 = vunpack.c.h.b16 %v342
    %v1230 = vunpack.c.l.b16 %v343
    %v1231 = vunpack.c.h.b16 %v343
    %v1232 = vunpack.c.l.b16 %v344
    %v1233 = vunpack.c.h.b16 %v344
    %v1234 = vunpack.c.l.b16 %v345
    %v1235 = vunpack.c.h.b16 %v345
    %v1236 = vunpack.c.l.b16 %v346
    %v1237 = vunpack.c.h.b16 %v346
    %v1238 = vunpack.c.l.b16 %v347
    %v1239 = vunpack.c.h.b16 %v347
    %v1240 = vunpack.c.l.b16 %v348
    %v1241 = vunpack.c.h.b16 %v348
    %v1242 = vunpack.c.l.b16 %v349
    %v1243 = vunpack.c.h.b16 %v349
    %v1244 = vunpack.c.l.b16 %v350
    %v1245 = vunpack.c.h.b16 %v350
    %v1246 = vunpack.c.l.b16 %v351
    %v1247 = vunpack.c.h.b16 %v351
    %v1248 = vunpack.c.l.b16 %v352
    %v1249 = vunpack.c.h.b16 %v352
    %v1250 = vunpack.c.l.b16 %v353
    %v1251 = vunpack.c.h.b16 %v353
    %v1252 = vunpack.c.l.b16 %v354
    %v1253 = vunpack.c.h.b16 %v354
    %v1254 = vunpack.c.l.b16 %v355
    %v1255 = vunpack.c.h.b16 %v355
    %v1256 = vunpack.c.l.b16 %v356
    %v1257 = vunpack.c.h.b16 %v356
    %v1258 = vunpack.c.l.b16 %v357
    %v1259 = vunpack.c.h.b16 %v357
    %v1260 = vunpack.c.l.b16 %v358
    %v1261 = vunpack.c.h.b16 %v358
    %v1262 = vunpack.c.l.b16 %v359
    %v1263 = vunpack.c.h.b16 %v359
    %v1264 = vunpack.c.l.b16 %v360
    %v1265 = vunpack.c.h.b16 %v360
    %v1266 = vunpack.c.l.b16 %v361
    %v1267 = vunpack.c.h.b16 %v361
    %v1268 = vunpack.c.l.b16 %v362
    %v1269 = vunpack.c.h.b16 %v362
    %v1270 = vunpack.c.l.b16 %v363
    %v1271 = vunpack.c.h.b16 %v363
    %v1272 = vunpack.c.l.b16 %v364
    %v1273 = vunpack.c.h.b16 %v364
    %v1274 = vunpack.c.l.b16 %v365
    %v1275 = vunpack.c.h.b16 %v365
    %v1276 = vunpack.c.l.b16 %v366
    %v1277 = vunpack.c.h.b16 %v366
    %v1278 = vunpack.c.l.b16 %v367
    %v1279 = vunpack.c.h.b16 %v367
    %v1280 = vunpack.c.l.b16 %v368
    %v1281 = vunpack.c.h.b16 %v368
    %v1282 = vunpack.c.l.b16 %v369
    %v1283 = vunpack.c.h.b16 %v369
    %v1284 = vunpack.c.l.b16 %v370
    %v1285 = vunpack.c.h.b16 %v370
    %v1286 = vunpack.c.l.b16 %v371
    %v1287 = vunpack.c.h.b16 %v371
    %v1288 = vunpack.c.l.b16 %v372
    %v1289 = vunpack.c.h.b16 %v372
    %v1290 = vunpack.c.l.b16 %v373
    %v1291 = vunpack.c.h.b16 %v373
    %v1292 = vunpack.c.l.b16 %v374
    %v1293 = vunpack.c.h.b16 %v374
    %v1294 = vunpack.c.l.b16 %v375
    %v1295 = vunpack.c.h.b16 %v375
    %v1296 = vunpack.c.l.b16 %v376
    %v1297 = vunpack.c.h.b16 %v376
    %v1298 = vunpack.c.l.b16 %v377
    %v1299 = vunpack.c.h.b16 %v377
    %v1300 = vunpack.c.l.b16 %v378
    %v1301 = vunpack.c.h.b16 %v378
    %v1302 = vunpack.c.l.b16 %v379
    %v1303 = vunpack.c.h.b16 %v379
    %v1304 = vunpack.c.l.b16 %v380
    %v1305 = vunpack.c.h.b16 %v380
    %v1306 = vunpack.c.l.b16 %v381
    %v1307 = vunpack.c.h.b16 %v381
    %v1308 = vunpack.c.l.b16 %v382
    %v1309 = vunpack.c.h.b16 %v382
    %v1310 = vunpack.c.l.b16 %v383
    %v1311 = vunpack.c.h.b16 %v383
    %v1312 = vunpack.c.l.b16 %v384
    %v1313 = vunpack.c.h.b16 %v384
    %v1314 = vunpack.c.l.b16 %v385
    %v1315 = vunpack.c.h.b16 %v385
    %v1316 = vunpack.c.l.b16 %v386
    %v1317 = vunpack.c.h.b16 %v386
    %v1318 = vunpack.c.l.b16 %v387
    %v1319 = vunpack.c.h.b16 %v387
    %v1320 = vunpack.c.l.b16 %v388
    %v1321 = vunpack.c.h.b16 %v388
    %v1322 = vunpack.c.l.b16 %v389
    %v1323 = vunpack.c.h.b16 %v389
    %v1324 = vunpack.c.l.b16 %v390
    %v1325 = vunpack.c.h.b16 %v390
    %v1326 = vunpack.c.l.b16 %v391
    %v1327 = vunpack.c.h.b16 %v391
    %v1328 = vunpack.c.l.b16 %v392
    %v1329 = vunpack.c.h.b16 %v392
    %v1330 = vunpack.c.l.b16 %v393
    %v1331 = vunpack.c.h.b16 %v393
    %v1332 = vunpack.c.l.b16 %v394
    %v1333 = vunpack.c.h.b16 %v394
    %v1334 = vunpack.c.l.b16 %v395
    %v1335 = vunpack.c.h.b16 %v395
    %v1336 = vunpack.c.l.b16 %v396
    %v1337 = vunpack.c.h.b16 %v396
    %v1338 = vunpack.c.l.b16 %v397
    %v1339 = vunpack.c.h.b16 %v397
    %v1340 = vunpack.c.l.b16 %v398
    %v1341 = vunpack.c.h.b16 %v398
    %v1342 = vunpack.c.l.b16 %v399
    %v1343 = vunpack.c.h.b16 %v399
    %v1344 = vunpack.c.l.b16 %v400
    %v1345 = vunpack.c.h.b16 %v400
    %v1346 = vunpack.c.l.b16 %v401
    %v1347 = vunpack.c.h.b16 %v401
    %v1348 = vunpack.c.l.b16 %v402
    %v1349 = vunpack.c.h.b16 %v402
    %v1350 = vunpack.c.l.b16 %v403
    %v1351 = vunpack.c.h.b16 %v403
    %v1352 = vunpack.c.l.b16 %v404
    %v1353 = vunpack.c.h.b16 %v404
    %v1354 = vunpack.c.l.b16 %v405
    %v1355 = vunpack.c.h.b16 %v405
    %v1356 = vunpack.c.l.b16 %v406
    %v1357 = vunpack.c.h.b16 %v406
    %v1358 = vunpack.c.l.b16 %v407
    %v1359 = vunpack.c.h.b16 %v407
    %v1360 = vunpack.c.l.b16 %v408
    %v1361 = vunpack.c.h.b16 %v408
    %v1362 = vunpack.c.l.b16 %v409
    %v1363 = vunpack.c.h.b16 %v409
    %v1364 = vunpack.c.l.b16 %v410
    %v1365 = vunpack.c.h.b16 %v410
    %v1366 = vunpack.c.l.b16 %v411
    %v1367 = vunpack.c.h.b16 %v411
    %v1368 = vunpack.c.l.b16 %v412
    %v1369 = vunpack.c.h.b16 %v412
    %v1370 = vunpack.c.l.b16 %v413
    %v1371 = vunpack.c.h.b16 %v413
    %v1372 = vunpack.c.l.b16 %v414
    %v1373 = vunpack.c.h.b16 %v414
    %v1374 = vunpack.c.l.b16 %v415
    %v1375 = vunpack.c.h.b16 %v415
    %v1376 = vunpack.c.l.b16 %v416
    %v1377 = vunpack.c.h.b16 %v416
    %v1378 = vunpack.c.l.b16 %v417
    %v1379 = vunpack.c.h.b16 %v417
    %v1380 = vunpack.c.l.b16 %v418
    %v1381 = vunpack.c.h.b16 %v418
    %v1382 = vunpack.c.l.b16 %v419
    %v1383 = vunpack.c.h.b16 %v419
    %v1384 = vunpack.c.l.b16 %v420
    %v1385 = vunpack.c.h.b16 %v420
    %v1386 = vunpack.c.l.b16 %v421
    %v1387 = vunpack.c.h.b16 %v421
    %v1388 = vunpack.c.l.b16 %v422
    %v1389 = vunpack.c.h.b16 %v422
    %v1390 = vunpack.c.l.b16 %v423
    %v1391 = vunpack.c.h.b16 %v423
    %v1392 = vunpack.c.l.b16 %v424
    %v1393 = vunpack.c.h.b16 %v424
    %v1394 = vunpack.c.l.b16 %v425
    %v1395 = vunpack.c.h.b16 %v425
    %v1396 = vunpack.c.l.b16 %v426
    %v1397 = vunpack.c.h.b16 %v426
    %v1398 = vunpack.c.l.b16 %v427
    %v1399 = vunpack.c.h.b16 %v427
    %v1400 = vunpack.c.l.b16 %v428
    %v1401 = vunpack.c.h.b16 %v428
    %v1402 = vunpack.c.l.b16 %v429
    %v1403 = vunpack.c.h.b16 %v429
    %v1404 = vunpack.c.l.b16 %v430
    %v1405 = vunpack.c.h.b16 %v430
    %v1406 = vunpack.c.l.b16 %v431
    %v1407 = vunpack.c.h.b16 %v431
    %v1408 = vunpack.c.l.b16 %v432
    %v1409 = vunpack.c.h.b16 %v432
    %v1410 = vunpack.c.l.b16 %v433
    %v1411 = vunpack.c.h.b16 %v433
    %v1412 = vunpack.c.l.b16 %v434
    %v1413 = vunpack.c.h.b16 %v434
    %v1414 = vunpack.c.l.b16 %v435
    %v1415 = vunpack.c.h.b16 %v435
    %v1416 = vunpack.c.l.b16 %v436
    %v1417 = vunpack.c.h.b16 %v436
    %v1418 = vunpack.c.l.b16 %v437
    %v1419 = vunpack.c.h.b16 %v437
    %v1420 = vunpack.c.l.b16 %v438
    %v1421 = vunpack.c.h.b16 %v438
    %v1422 = vunpack.c.l.b16 %v439
    %v1423 = vunpack.c.h.b16 %v439
    %v1424 = vunpack.c.l.b16 %v440
    %v1425 = vunpack.c.h.b16 %v440
    %v1426 = vunpack.c.l.b16 %v441
    %v1427 = vunpack.c.h.b16 %v441
    %v1428 = vunpack.c.l.b16 %v442
    %v1429 = vunpack.c.h.b16 %v442
    %v1430 = vunpack.c.l.b16 %v443
    %v1431 = vunpack.c.h.b16 %v443
    %v1432 = vunpack.c.l.b16 %v444
    %v1433 = vunpack.c.h.b16 %v444
    %v1434 = vunpack.c.l.b16 %v445
    %v1435 = vunpack.c.h.b16 %v445
    %v1436 = vunpack.c.l.b16 %v446
    %v1437 = vunpack.c.h.b16 %v446
    %v1438 = vunpack.c.l.b16 %v447
    %v1439 = vunpack.c.h.b16 %v447
    %v1440 = vunpack.c.l.b16 %v448
    %v1441 = vunpack.c.h.b16 %v448
    %v1442 = vunpack.c.l.b16 %v449
    %v1443 = vunpack.c.h.b16 %v449
    %v1444 = vunpack.c.l.b16 %v450
    %v1445 = vunpack.c.h.b16 %v450
    %v1446 = vunpack.c.l.b16 %v451
    %v1447 = vunpack.c.h.b16 %v451
    %v1448 = vunpack.c.l.b16 %v452
    %v1449 = vunpack.c.h.b16 %v452
    %v1450 = vunpack.c.l.b16 %v453
    %v1451 = vunpack.c.h.b16 %v453
    %v1452 = vunpack.c.l.b16 %v454
    %v1453 = vunpack.c.h.b16 %v454
    %v1454 = vunpack.c.l.b16 %v455
    %v1455 = vunpack.c.h.b16 %v455
    %v1456 = vunpack.c.l.b16 %v456
    %v1457 = vunpack.c.h.b16 %v456
    %v1458 = vunpack.c.l.b16 %v457
    %v1459 = vunpack.c.h.b16 %v457
    %v1460 = vunpack.c.l.b16 %v458
    %v1461 = vunpack.c.h.b16 %v458
    %v1462 = vunpack.c.l.b16 %v459
    %v1463 = vunpack.c.h.b16 %v459
    %v1464 = vunpack.c.l.b16 %v460
    %v1465 = vunpack.c.h.b16 %v460
    %v1466 = vunpack.c.l.b16 %v461
    %v1467 = vunpack.c.h.b16 %v461
    %v1468 = vunpack.c.l.b16 %v462
    %v1469 = vunpack.c.h.b16 %v462
    %v1470 = vunpack.c.l.b16 %v463
    %v1471 = vunpack.c.h.b16 %v463
    %v1472 = vunpack.c.l.b16 %v464
    %v1473 = vunpack.c.h.b16 %v464
    %v1474 = vunpack.c.l.b16 %v465
    %v1475 = vunpack.c.h.b16 %v465
    %v1476 = vunpack.c.l.b16 %v466
    %v1477 = vunpack.c.h.b16 %v466
    %v1478 = vunpack.c.l.b16 %v467
    %v1479 = vunpack.c.h.b16 %v467
    %v1480 = vunpack.c.l.b16 %v468
    %v1481 = vunpack.c.h.b16 %v468
    %v1482 = vunpack.c.l.b16 %v469
    %v1483 = vunpack.c.h.b16 %v469
    %v1484 = vunpack.c.l.b16 %v470
    %v1485 = vunpack.c.h.b16 %v470
    %v1486 = vunpack.c.l.b16 %v471
    %v1487 = vunpack.c.h.b16 %v471
    %v1488 = vunpack.c.l.b16 %v472
    %v1489 = vunpack.c.h.b16 %v472
    %v1490 = vunpack.c.l.b16 %v473
    %v1491 = vunpack.c.h.b16 %v473
    %v1492 = vunpack.c.l.b16 %v474
    %v1493 = vunpack.c.h.b16 %v474
    %v1494 = vunpack.c.l.b16 %v475
    %v1495 = vunpack.c.h.b16 %v475
    %v1496 = vunpack.c.l.b16 %v476
    %v1497 = vunpack.c.h.b16 %v476
    %v1498 = vunpack.c.l.b16 %v477
    %v1499 = vunpack.c.h.b16 %v477
    %v1500 = vunpack.c.l.b16 %v478
    %v1501 = vunpack.c.h.b16 %v478
    %v1502 = vunpack.c.l.b16 %v479
    %v1503 = vunpack.c.h.b16 %v479
    %v1504 = vunpack.c.l.b16 %v480
    %v1505 = vunpack.c.h.b16 %v480
    %v1506 = vunpack.c.l.b16 %v481
    %v1507 = vunpack.c.h.b16 %v481
    %v1508 = vunpack.c.l.b16 %v482
    %v1509 = vunpack.c.h.b16 %v482
    %v1510 = vunpack.c.l.b16 %v483
    %v1511 = vunpack.c.h.b16 %v483
    %v1512 = vunpack.c.l.b16 %v484
    %v1513 = vunpack.c.h.b16 %v484
    %v1514 = vunpack.c.l.b16 %v485
    %v1515 = vunpack.c.h.b16 %v485
    %v1516 = vunpack.c.l.b16 %v486
    %v1517 = vunpack.c.h.b16 %v486
    %v1518 = vunpack.c.l.b16 %v487
    %v1519 = vunpack.c.h.b16 %v487
    %v1520 = vunpack.c.l.b16 %v488
    %v1521 = vunpack.c.h.b16 %v488
    %v1522 = vunpack.c.l.b16 %v489
    %v1523 = vunpack.c.h.b16 %v489
    %v1524 = vunpack.c.l.b16 %v490
    %v1525 = vunpack.c.h.b16 %v490
    %v1526 = vunpack.c.l.b16 %v491
    %v1527 = vunpack.c.h.b16 %v491
    %v1528 = vunpack.c.l.b16 %v492
    %v1529 = vunpack.c.h.b16 %v492
    %v1530 = vunpack.c.l.b16 %v493
    %v1531 = vunpack.c.h.b16 %v493
    %v1532 = vunpack.c.l.b16 %v494
    %v1533 = vunpack.c.h.b16 %v494
    %v1534 = vunpack.c.l.b16 %v495
    %v1535 = vunpack.c.h.b16 %v495
    %v1536 = vunpack.c.l.b16 %v496
    %v1537 = vunpack.c.h.b16 %v496
    %v1538 = vunpack.c.l.b16 %v497
    %v1539 = vunpack.c.h.b16 %v497
    %v1540 = vunpack.c.l.b16 %v498
    %v1541 = vunpack.c.h.b16 %v498
    %v1542 = vunpack.c.l.b16 %v499
    %v1543 = vunpack.c.h.b16 %v499
    %v1544 = vunpack.c.l.b16 %v500
    %v1545 = vunpack.c.h.b16 %v500
    %v1546 = vunpack.c.l.b16 %v501
    %v1547 = vunpack.c.h.b16 %v501
    %v1548 = vunpack.c.l.b16 %v502
    %v1549 = vunpack.c.h.b16 %v502
    %v1550 = vunpack.c.l.b16 %v503
    %v1551 = vunpack.c.h.b16 %v503
    %v1552 = vunpack.c.l.b16 %v504
    %v1553 = vunpack.c.h.b16 %v504
    %v1554 = vunpack.c.l.b16 %v505
    %v1555 = vunpack.c.h.b16 %v505
    %v1556 = vunpack.c.l.b16 %v506
    %v1557 = vunpack.c.h.b16 %v506
    %v1558 = vunpack.c.l.b16 %v507
    %v1559 = vunpack.c.h.b16 %v507
    %v1560 = vunpack.c.l.b16 %v508
    %v1561 = vunpack.c.h.b16 %v508
    %v1562 = vunpack.c.l.b16 %v509
    %v1563 = vunpack.c.h.b16 %v509
    %v1564 = vunpack.c.l.b16 %v510
    %v1565 = vunpack.c.h.b16 %v510
    %v1566 = vunpack.c.l.b16 %v511
    %v1567 = vunpack.c.h.b16 %v511
    %v1568 = vunpack.c.l.b16 %v512
    %v1569 = vunpack.c.h.b16 %v512
    %v1570 = vunpack.c.l.b16 %v513
    %v1571 = vunpack.c.h.b16 %v513
    %v1572 = vunpack.c.l.b16 %v514
    %v1573 = vunpack.c.h.b16 %v514
    %v1574 = vunpack.c.l.b16 %v515
    %v1575 = vunpack.c.h.b16 %v515
    %v1576 = vunpack.c.l.b16 %v516
    %v1577 = vunpack.c.h.b16 %v516
    %v1578 = vunpack.c.l.b16 %v517
    %v1579 = vunpack.c.h.b16 %v517
    %v1580 = vunpack.c.l.b16 %v518
    %v1581 = vunpack.c.h.b16 %v518
    %v1582 = vunpack.c.l.b16 %v519
    %v1583 = vunpack.c.h.b16 %v519
    %v1584 = vunpack.c.l.b16 %v520
    %v1585 = vunpack.c.h.b16 %v520
    %v1586 = vunpack.c.l.b16 %v521
    %v1587 = vunpack.c.h.b16 %v521
    %v1588 = vunpack.c.l.b16 %v522
    %v1589 = vunpack.c.h.b16 %v522
    %v1590 = vunpack.c.l.b16 %v523
    %v1591 = vunpack.c.h.b16 %v523
    %v1592 = vunpack.c.l.b16 %v524
    %v1593 = vunpack.c.h.b16 %v524
    %v1594 = vunpack.c.l.b16 %v525
    %v1595 = vunpack.c.h.b16 %v525
    %v1596 = vunpack.c.l.b16 %v526
    %v1597 = vunpack.c.h.b16 %v526
    %v1598 = vunpack.c.l.b16 %v527
    %v1599 = vunpack.c.h.b16 %v527
    %v1600 = vunpack.c.l.b16 %v528
    %v1601 = vunpack.c.h.b16 %v528
    %v1602 = vunpack.c.l.b16 %v529
    %v1603 = vunpack.c.h.b16 %v529
    %v1604 = vunpack.c.l.b16 %v530
    %v1605 = vunpack.c.h.b16 %v530
    %v1606 = vunpack.c.l.b16 %v531
    %v1607 = vunpack.c.h.b16 %v531
    %v1608 = vunpack.c.l.b16 %v532
    %v1609 = vunpack.c.h.b16 %v532
    %v1610 = vunpack.c.l.b16 %v533
    %v1611 = vunpack.c.h.b16 %v533
    %v1612 = vunpack.c.l.b16 %v534
    %v1613 = vunpack.c.h.b16 %v534
    %v1614 = vunpack.c.l.b16 %v535
    %v1615 = vunpack.c.h.b16 %v535
    %v1616 = vunpack.c.l.b16 %v536
    %v1617 = vunpack.c.h.b16 %v536
    %v1618 = vunpack.c.l.b16 %v537
    %v1619 = vunpack.c.h.b16 %v537
    %v1620 = vunpack.c.l.b16 %v538
    %v1621 = vunpack.c.h.b16 %v538
    %v1622 = vunpack.c.l.b16 %v539
    %v1623 = vunpack.c.h.b16 %v539
    %v1624 = vunpack.c.l.b16 %v540
    %v1625 = vunpack.c.h.b16 %v540
    %v1626 = vunpack.c.l.b16 %v541
    %v1627 = vunpack.c.h.b16 %v541
    %v1628 = vunpack.c.l.b16 %v542
    %v1629 = vunpack.c.h.b16 %v542
    %v1630 = vunpack.c.l.b16 %v543
    %v1631 = vunpack.c.h.b16 %v543
    %v1632 = vunpack.c.l.b16 %v544
    %v1633 = vunpack.c.h.b16 %v544
    %v1634 = vunpack.c.l.b16 %v545
    %v1635 = vunpack.c.h.b16 %v545
    %v1636 = vunpack.c.l.b16 %v546
    %v1637 = vunpack.c.h.b16 %v546
    %v1638 = vunpack.c.l.b16 %v547
    %v1639 = vunpack.c.h.b16 %v547
    %v1640 = vunpack.c.l.b16 %v548
    %v1641 = vunpack.c.h.b16 %v548
    %v1642 = vunpack.c.l.b16 %v549
    %v1643 = vunpack.c.h.b16 %v549
    %v1644 = vunpack.c.l.b16 %v550
    %v1645 = vunpack.c.h.b16 %v550
    %v1646 = vunpack.c.l.b16 %v551
    %v1647 = vunpack.c.h.b16 %v551
    %v1648 = vunpack.c.l.b16 %v552
    %v1649 = vunpack.c.h.b16 %v552
    %v1650 = vunpack.c.l.b16 %v553
    %v1651 = vunpack.c.h.b16 %v553
    %v1652 = vunpack.c.l.b16 %v554
    %v1653 = vunpack.c.h.b16 %v554
    %v1654 = vunpack.c.l.b16 %v555
    %v1655 = vunpack.c.h.b16 %v555
    %v1656 = vunpack.c.l.b16 %v556
    %v1657 = vunpack.c.h.b16 %v556
    %v1658 = vunpack.c.l.b16 %v557
    %v1659 = vunpack.c.h.b16 %v557
    %v1660 = vunpack.c.l.b16 %v558
    %v1661 = vunpack.c.h.b16 %v558
    %v1662 = vunpack.c.l.b16 %v559
    %v1663 = vunpack.c.h.b16 %v559
    %v1664 = vunpack.c.l.b16 %v560
    %v1665 = vunpack.c.h.b16 %v560
    %v1666 = vunpack.c.l.b16 %v561
    %v1667 = vunpack.c.h.b16 %v561
    %v1668 = vunpack.c.l.b16 %v562
    %v1669 = vunpack.c.h.b16 %v562
    %v1670 = vunpack.c.l.b16 %v563
    %v1671 = vunpack.c.h.b16 %v563
    %v1672 = vunpack.c.l.b16 %v564
    %v1673 = vunpack.c.h.b16 %v564
    %v1674 = vunpack.c.l.b16 %v565
    %v1675 = vunpack.c.h.b16 %v565
    %v1676 = vunpack.c.l.b16 %v566
    %v1677 = vunpack.c.h.b16 %v566
    %v1678 = vunpack.c.l.b16 %v567
    %v1679 = vunpack.c.h.b16 %v567
    %v1680 = vunpack.c.l.b16 %v568
    %v1681 = vunpack.c.h.b16 %v568
    %v1682 = vunpack.c.l.b16 %v569
    %v1683 = vunpack.c.h.b16 %v569
    %v1684 = vunpack.c.l.b16 %v570
    %v1685 = vunpack.c.h.b16 %v570
    %v1686 = vunpack.c.l.b16 %v571
    %v1687 = vunpack.c.h.b16 %v571
    %v1688 = vunpack.c.l.b16 %v572
    %v1689 = vunpack.c.h.b16 %v572
    %v1690 = vunpack.c.l.b16 %v573
    %v1691 = vunpack.c.h.b16 %v573
    %v1692 = vunpack.c.l.b16 %v574
    %v1693 = vunpack.c.h.b16 %v574
    %v1694 = vunpack.c.l.b16 %v575
    %v1695 = vunpack.c.h.b16 %v575
    %v1696 = vunpack.c.l.b16 %v576
    %v1697 = vunpack.c.h.b16 %v576
    %v1698 = vunpack.c.l.b16 %v577
    %v1699 = vunpack.c.h.b16 %v577
    %v1700 = vunpack.c.l.b16 %v578
    %v1701 = vunpack.c.h.b16 %v578
    %v1702 = vunpack.c.l.b16 %v579
    %v1703 = vunpack.c.h.b16 %v579
    %v1704 = vunpack.c.l.b16 %v580
    %v1705 = vunpack.c.h.b16 %v580
    %v1706 = vunpack.c.l.b16 %v581
    %v1707 = vunpack.c.h.b16 %v581
    %v1708 = vunpack.c.l.b16 %v582
    %v1709 = vunpack.c.h.b16 %v582
    %v1710 = vunpack.c.l.b16 %v583
    %v1711 = vunpack.c.h.b16 %v583
    %v1712 = vunpack.c.l.b16 %v584
    %v1713 = vunpack.c.h.b16 %v584
    %v1714 = vunpack.c.l.b16 %v585
    %v1715 = vunpack.c.h.b16 %v585
    %v1716 = vunpack.c.l.b16 %v586
    %v1717 = vunpack.c.h.b16 %v586
    %v1718 = vunpack.c.l.b16 %v587
    %v1719 = vunpack.c.h.b16 %v587
    %v1720 = vunpack.c.l.b16 %v588
    %v1721 = vunpack.c.h.b16 %v588
    %v1722 = vunpack.c.l.b16 %v589
    %v1723 = vunpack.c.h.b16 %v589
    %v1724 = vunpack.c.l.b16 %v590
    %v1725 = vunpack.c.h.b16 %v590
    %v1726 = vunpack.c.l.b16 %v591
    %v1727 = vunpack.c.h.b16 %v591
    %v1728 = vunpack.c.l.b16 %v592
    %v1729 = vunpack.c.h.b16 %v592
    %v1730 = vunpack.c.l.b16 %v593
    %v1731 = vunpack.c.h.b16 %v593
    %v1732 = vunpack.c.l.b16 %v594
    %v1733 = vunpack.c.h.b16 %v594
    %v1734 = vunpack.c.l.b16 %v595
    %v1735 = vunpack.c.h.b16 %v595
    %v1736 = vunpack.c.l.b16 %v596
    %v1737 = vunpack.c.h.b16 %v596
    %v1738 = vunpack.c.l.b16 %v597
    %v1739 = vunpack.c.h.b16 %v597
    %v1740 = vunpack.c.l.b16 %v598
    %v1741 = vunpack.c.h.b16 %v598
    %v1742 = vunpack.c.l.b16 %v599
    %v1743 = vunpack.c.h.b16 %v599
    %v1744 = vunpack.c.l.b16 %v600
    %v1745 = vunpack.c.h.b16 %v600
    %v1746 = vunpack.c.l.b16 %v601
    %v1747 = vunpack.c.h.b16 %v601
    %v1748 = vunpack.c.l.b16 %v602
    %v1749 = vunpack.c.h.b16 %v602
    %v1750 = vunpack.c.l.b16 %v603
    %v1751 = vunpack.c.h.b16 %v603
    %v1752 = vunpack.c.l.b16 %v604
    %v1753 = vunpack.c.h.b16 %v604
    %v1754 = vunpack.c.l.b16 %v605
    %v1755 = vunpack.c.h.b16 %v605
    %v1756 = vunpack.c.l.b16 %v606
    %v1757 = vunpack.c.h.b16 %v606
    %v1758 = vunpack.c.l.b16 %v607
    %v1759 = vunpack.c.h.b16 %v607
    %v1760 = vunpack.c.l.b16 %v608
    %v1761 = vunpack.c.h.b16 %v608
    %v1762 = vunpack.c.l.b16 %v609
    %v1763 = vunpack.c.h.b16 %v609
    %v1764 = vunpack.c.l.b16 %v610
    %v1765 = vunpack.c.h.b16 %v610
    %v1766 = vunpack.c.l.b16 %v611
    %v1767 = vunpack.c.h.b16 %v611
    %v1768 = vunpack.c.l.b16 %v612
    %v1769 = vunpack.c.h.b16 %v612
    %v1770 = vunpack.c.l.b16 %v613
    %v1771 = vunpack.c.h.b16 %v613
    %v1772 = vunpack.c.l.b16 %v614
    %v1773 = vunpack.c.h.b16 %v614
    %v1774 = vunpack.c.l.b16 %v615
    %v1775 = vunpack.c.h.b16 %v615
    %v1776 = vunpack.c.l.b16 %v616
    %v1777 = vunpack.c.h.b16 %v616
    %v1778 = vunpack.c.l.b16 %v617
    %v1779 = vunpack.c.h.b16 %v617
    %v1780 = vunpack.c.l.b16 %v618
    %v1781 = vunpack.c.h.b16 %v618
    %v1782 = vunpack.c.l.b16 %v619
    %v1783 = vunpack.c.h.b16 %v619
    %v1784 = vunpack.c.l.b16 %v620
    %v1785 = vunpack.c.h.b16 %v620
    %v1786 = vunpack.c.l.b16 %v621
    %v1787 = vunpack.c.h.b16 %v621
    %v1788 = vunpack.c.l.b16 %v622
    %v1789 = vunpack.c.h.b16 %v622
    %v1790 = vunpack.c.l.b16 %v623
    %v1791 = vunpack.c.h.b16 %v623
    %v1792 = vunpack.c.l.b16 %v624
    %v1793 = vunpack.c.h.b16 %v624
    %v1794 = vunpack.c.l.b16 %v625
    %v1795 = vunpack.c.h.b16 %v625
    %v1796 = vunpack.c.l.b16 %v626
    %v1797 = vunpack.c.h.b16 %v626
    %v1798 = vunpack.c.l.b16 %v627
    %v1799 = vunpack.c.h.b16 %v627
    %v1800 = vunpack.c.l.b16 %v628
    %v1801 = vunpack.c.h.b16 %v628
    %v1802 = vunpack.c.l.b16 %v629
    %v1803 = vunpack.c.h.b16 %v629
    %v1804 = vunpack.c.l.b16 %v630
    %v1805 = vunpack.c.h.b16 %v630
    %v1806 = vunpack.c.l.b16 %v631
    %v1807 = vunpack.c.h.b16 %v631
    %v1808 = vunpack.c.l.b16 %v632
    %v1809 = vunpack.c.h.b16 %v632
    %v1810 = vunpack.c.l.b16 %v633
    %v1811 = vunpack.c.h.b16 %v633
    %v1812 = vunpack.c.l.b16 %v634
    %v1813 = vunpack.c.h.b16 %v634
    %v1814 = vunpack.c.l.b16 %v635
    %v1815 = vunpack.c.h.b16 %v635
    %v1816 = vunpack.c.l.b16 %v636
    %v1817 = vunpack.c.h.b16 %v636
    %v1818 = vunpack.c.l.b16 %v637
    %v1819 = vunpack.c.h.b16 %v637
    %v1820 = vunpack.c.l.b16 %v638
    %v1821 = vunpack.c.h.b16 %v638
    %v1822 = vunpack.c.l.b16 %v639
    %v1823 = vunpack.c.h.b16 %v639
    %v1824 = vunpack.c.l.b16 %v640
    %v1825 = vunpack.c.h.b16 %v640
    %v1826 = vunpack.c.l.b16 %v641
    %v1827 = vunpack.c.h.b16 %v641
    %v1828 = vunpack.c.l.b16 %v642
    %v1829 = vunpack.c.h.b16 %v642
    %v1830 = vunpack.c.l.b16 %v643
    %v1831 = vunpack.c.h.b16 %v643
    %v1832 = vunpack.c.l.b16 %v644
    %v1833 = vunpack.c.h.b16 %v644
    %v1834 = vunpack.c.l.b16 %v645
    %v1835 = vunpack.c.h.b16 %v645
    %v1836 = vunpack.c.l.b16 %v646
    %v1837 = vunpack.c.h.b16 %v646
    %v1838 = vunpack.c.l.b16 %v647
    %v1839 = vunpack.c.h.b16 %v647
    %v1840 = vunpack.c.l.b16 %v648
    %v1841 = vunpack.c.h.b16 %v648
    %v1842 = vunpack.c.l.b16 %v649
    %v1843 = vunpack.c.h.b16 %v649
    %v1844 = vunpack.c.l.b16 %v650
    %v1845 = vunpack.c.h.b16 %v650
    %v1846 = vunpack.c.l.b16 %v651
    %v1847 = vunpack.c.h.b16 %v651
    %v1848 = vunpack.c.l.b16 %v652
    %v1849 = vunpack.c.h.b16 %v652
    %v1850 = vunpack.c.l.b16 %v653
    %v1851 = vunpack.c.h.b16 %v653
    %v1852 = vunpack.c.l.b16 %v654
    %v1853 = vunpack.c.h.b16 %v654
    %v1854 = vunpack.c.l.b16 %v655
    %v1855 = vunpack.c.h.b16 %v655
    %v1856 = vunpack.c.l.b16 %v656
    %v1857 = vunpack.c.h.b16 %v656
    %v1858 = vunpack.c.l.b16 %v657
    %v1859 = vunpack.c.h.b16 %v657
    %v1860 = vunpack.c.l.b16 %v658
    %v1861 = vunpack.c.h.b16 %v658
    %v1862 = vunpack.c.l.b16 %v659
    %v1863 = vunpack.c.h.b16 %v659
    %v1864 = vunpack.c.l.b16 %v660
    %v1865 = vunpack.c.h.b16 %v660
    %v1866 = vunpack.c.l.b16 %v661
    %v1867 = vunpack.c.h.b16 %v661
    %v1868 = vunpack.c.l.b16 %v662
    %v1869 = vunpack.c.h.b16 %v662
    %v1870 = vunpack.c.l.b16 %v663
    %v1871 = vunpack.c.h.b16 %v663
    %v1872 = vunpack.c.l.b16 %v664
    %v1873 = vunpack.c.h.b16 %v664
    %v1874 = vunpack.c.l.b16 %v665
    %v1875 = vunpack.c.h.b16 %v665
    %v1876 = vunpack.c.l.b16 %v666
    %v1877 = vunpack.c.h.b16 %v666
    %v1878 = vunpack.c.l.b16 %v667
    %v1879 = vunpack.c.h.b16 %v667
    %v1880 = vunpack.c.l.b16 %v668
    %v1881 = vunpack.c.h.b16 %v668
    %v1882 = vunpack.c.l.b16 %v669
    %v1883 = vunpack.c.h.b16 %v669
    %v1884 = vunpack.c.l.b16 %v670
    %v1885 = vunpack.c.h.b16 %v670
    %v1886 = vunpack.c.l.b16 %v671
    %v1887 = vunpack.c.h.b16 %v671
    %v1888 = vunpack.c.l.b16 %v672
    %v1889 = vunpack.c.h.b16 %v672
    %v1890 = vunpack.c.l.b16 %v673
    %v1891 = vunpack.c.h.b16 %v673
    %v1892 = vunpack.c.l.b16 %v674
    %v1893 = vunpack.c.h.b16 %v674
    %v1894 = vunpack.c.l.b16 %v675
    %v1895 = vunpack.c.h.b16 %v675
    %v1896 = vunpack.c.l.b16 %v676
    %v1897 = vunpack.c.h.b16 %v676
    %v1898 = vunpack.c.l.b16 %v677
    %v1899 = vunpack.c.h.b16 %v677
    %v1900 = vunpack.c.l.b16 %v678
    %v1901 = vunpack.c.h.b16 %v678
    %v1902 = vunpack.c.l.b16 %v679
    %v1903 = vunpack.c.h.b16 %v679
    %v1904 = vunpack.c.l.b16 %v680
    %v1905 = vunpack.c.h.b16 %v680
    %v1906 = vunpack.c.l.b16 %v681
    %v1907 = vunpack.c.h.b16 %v681
    %v1908 = vunpack.c.l.b16 %v682
    %v1909 = vunpack.c.h.b16 %v682
    %v1910 = vunpack.c.l.b16 %v683
    %v1911 = vunpack.c.h.b16 %v683
    %v1912 = vunpack.c.l.b16 %v684
    %v1913 = vunpack.c.h.b16 %v684
    %v1914 = vunpack.c.l.b16 %v685
    %v1915 = vunpack.c.h.b16 %v685
    %v1916 = vunpack.c.l.b16 %v686
    %v1917 = vunpack.c.h.b16 %v686
    %v1918 = vunpack.c.l.b16 %v687
    %v1919 = vunpack.c.h.b16 %v687
    %v1920 = vunpack.c.l.b16 %v688
    %v1921 = vunpack.c.h.b16 %v688
    %v1922 = vunpack.c.l.b16 %v689
    %v1923 = vunpack.c.h.b16 %v689
    %v1924 = vunpack.c.l.b16 %v690
    %v1925 = vunpack.c.h.b16 %v690
    %v1926 = vunpack.c.l.b16 %v691
    %v1927 = vunpack.c.h.b16 %v691
    %v1928 = vunpack.c.l.b16 %v692
    %v1929 = vunpack.c.h.b16 %v692
    %v1930 = vunpack.c.l.b16 %v693
    %v1931 = vunpack.c.h.b16 %v693
    %v1932 = vunpack.c.l.b16 %v694
    %v1933 = vunpack.c.h.b16 %v694
    %v1934 = vunpack.c.l.b16 %v695
    %v1935 = vunpack.c.h.b16 %v695
    %v1936 = vunpack.c.l.b16 %v696
    %v1937 = vunpack.c.h.b16 %v696
    %v1938 = vunpack.c.l.b16 %v697
    %v1939 = vunpack.c.h.b16 %v697
    %v1940 = vunpack.c.l.b16 %v698
    %v1941 = vunpack.c.h.b16 %v698
    %v1942 = vunpack.c.l.b16 %v699
    %v1943 = vunpack.c.h.b16 %v699
    %v1944 = vunpack.c.l.b16 %v700
    %v1945 = vunpack.c.h.b16 %v700
    %v1946 = vunpack.c.l.b16 %v701
    %v1947 = vunpack.c.h.b16 %v701
    %v1948 = vunpack.c.l.b16 %v702
    %v1949 = vunpack.c.h.b16 %v702
    %v1950 = vunpack.c.l.b16 %v703
    %v1951 = vunpack.c.h.b16 %v703
    %v1952 = vunpack.c.l.b16 %v704
    %v1953 = vunpack.c.h.b16 %v704
    %v1954 = vunpack.c.l.b16 %v705
    %v1955 = vunpack.c.h.b16 %v705
    %v1956 = vunpack.c.l.b16 %v706
    %v1957 = vunpack.c.h.b16 %v706
    %v1958 = vunpack.c.l.b16 %v707
    %v1959 = vunpack.c.h.b16 %v707
    %v1960 = vunpack.c.l.b16 %v708
    %v1961 = vunpack.c.h.b16 %v708
    %v1962 = vunpack.c.l.b16 %v709
    %v1963 = vunpack.c.h.b16 %v709
    %v1964 = vpack.c.b16 %v1174, %v1164
    %v1965 = vpack.c.b16 %v1175, %v1165
    %v1966 = vpack.c.b16 %v1176, %v1166
    %v1967 = vpack.c.b16 %v1177, %v1167
    %v1968 = vpack.c.b16 %v1178, %v1168
    %v1969 = vpack.c.b16 %v1179, %v1169
    %v1970 = vpack.c.b16 %v1180, %v1170
    %v1971 = vpack.c.b16 %v1181, %v1171
    %v1972 = vpack.c.b16 %v1182, %v1172
    %v1973 = vpack.c.b16 %v1183, %v1173
    %v1974 = vpack.c.b16 %v1194, %v1184
    %v1975 = vpack.c.b16 %v1195, %v1185
    %v1976 = vpack.c.b16 %v1196, %v1186
    %v1977 = vpack.c.b16 %v1197, %v1187
    %v1978 = vpack.c.b16 %v1198, %v1188
    %v1979 = vpack.c.b16 %v1199, %v1189
    %v1980 = vpack.c.b16 %v1200, %v1190
    %v1981 = vpack.c.b16 %v1201, %v1191
    %v1982 = vpack.c.b16 %v1202, %v1192
    %v1983 = vpack.c.b16 %v1203, %v1193
    %v1984 = vpack.c.b16 %v1214, %v1204
    %v1985 = vpack.c.b16 %v1215, %v1205
    %v1986 = vpack.c.b16 %v1216, %v1206
    %v1987 = vpack.c.b16 %v1217, %v1207
    %v1988 = vpack.c.b16 %v1218, %v1208
    %v1989 = vpack.c.b16 %v1219, %v1209
    %v1990 = vpack.c.b16 %v1220, %v1210
    %v1991 = vpack.c.b16 %v1221, %v1211
    %v1992 = vpack.c.b16 %v1222, %v1212
    %v1993 = vpack.c.b16 %v1223, %v1213
    %v1994 = vpack.c.b16 %v1234, %v1224
    %v1995 = vpack.c.b16 %v1235, %v1225
    %v1996 = vpack.c.b16 %v1236, %v1226
    %v1997 = vpack.c.b16 %v1237, %v1227
    %v1998 = vpack.c.b16 %v1238, %v1228
    %v1999 = vpack.c.b16 %v1239, %v1229
    %v2000 = vpack.c.b16 %v1240, %v1230
    %v2001 = vpack.c.b16 %v1241, %v1231
    %v2002 = vpack.c.b16 %v1242, %v1232
    %v2003 = vpack.c.b16 %v1243, %v1233
    %v2004 = vpack.c.b16 %v1254, %v1244
    %v2005 = vpack.c.b16 %v1255, %v1245
    %v2006 = vpack.c.b16 %v1256, %v1246
    %v2007 = vpack.c.b16 %v1257, %v1247
    %v2008 = vpack.c.b16 %v1258, %v1248
    %v2009 = vpack.c.b16 %v1259, %v1249
    %v2010 = vpack.c.b16 %v1260, %v1250
    %v2011 = vpack.c.b16 %v1261, %v1251
    %v2012 = vpack.c.b16 %v1262, %v1252
    %v2013 = vpack.c.b16 %v1263, %v1253
    %v2014 = vpack.c.b16 %v1274, %v1264
    %v2015 = vpack.c.b16 %v1275, %v1265
    %v2016 = vpack.c.b16 %v1276, %v1266
    %v2017 = vpack.c.b16 %v1277, %v1267
    %v2018 = vpack.c.b16 %v1278, %v1268
    %v2019 = vpack.c.b16 %v1279, %v1269
    %v2020 = vpack.c.b16 %v1280, %v1270
    %v2021 = vpack.c.b16 %v1281, %v1271
    %v2022 = vpack.c.b16 %v1282, %v1272
    %v2023 = vpack.c.b16 %v1283, %v1273
    %v2024 = vpack.c.b16 %v1294, %v1284
    %v2025 = vpack.c.b16 %v1295, %v1285
    %v2026 = vpack.c.b16 %v1296, %v1286
    %v2027 = vpack.c.b16 %v1297, %v1287
    %v2028 = vpack.c.b16 %v1298, %v1288
    %v2029 = vpack.c.b16 %v1299, %v1289
    %v2030 = vpack.c.b16 %v1300, %v1290
    %v2031 = vpack.c.b16 %v1301, %v1291
    %v2032 = vpack.c.b16 %v1302, %v1292
    %v2033 = vpack.c.b16 %v1303, %v1293
    %v2034 = vpack.c.b16 %v1314, %v1304
    %v2035 = vpack.c.b16 %v1315, %v1305
    %v2036 = vpack.c.b16 %v1316, %v1306
    %v2037 = vpack.c.b16 %v1317, %v1307
    %v2038 = vpack.c.b16 %v1318, %v1308
    %v2039 = vpack.c.b16 %v1319, %v1309
    %v2040 = vpack.c.b16 %v1320, %v1310
    %v2041 = vpack.c.b16 %v1321, %v1311
    %v2042 = vpack.c.b16 %v1322, %v1312
    %v2043 = vpack.c.b16 %v1323, %v1313
    %v2044 = vpack.c.b16 %v1334, %v1324
    %v2045 = vpack.c.b16 %v1335, %v1325
    %v2046 = vpack.c.b16 %v1336, %v1326
    %v2047 = vpack.c.b16 %v1337, %v1327
    %v2048 = vpack.c.b16 %v1338, %v1328
    %v2049 = vpack.c.b16 %v1339, %v1329
    %v2050 = vpack.c.b16 %v1340, %v1330
    %v2051 = vpack.c.b16 %v1341, %v1331
    %v2052 = vpack.c.b16 %v1342, %v1332
    %v2053 = vpack.c.b16 %v1343, %v1333
    %v2054 = vpack.c.b16 %v1354, %v1344
    %v2055 = vpack.c.b16 %v1355, %v1345
    %v2056 = vpack.c.b16 %v1356, %v1346
    %v2057 = vpack.c.b16 %v1357, %v1347
    %v2058 = vpack.c.b16 %v1358, %v1348
    %v2059 = vpack.c.b16 %v1359, %v1349
    %v2060 = vpack.c.b16 %v1360, %v1350
    %v2061 = vpack.c.b16 %v1361, %v1351
    %v2062 = vpack.c.b16 %v1362, %v1352
    %v2063 = vpack.c.b16 %v1363, %v1353
    %v2064 = vpack.c.b16 %v1374, %v1364
    %v2065 = vpack.c.b16 %v1375, %v1365
    %v2066 = vpack.c.b16 %v1376, %v1366
    %v2067 = vpack.c.b16 %v1377, %v1367
    %v2068 = vpack.c.b16 %v1378, %v1368
    %v2069 = vpack.c.b16 %v1379, %v1369
    %v2070 = vpack.c.b16 %v1380, %v1370
    %v2071 = vpack.c.b16 %v1381, %v1371
    %v2072 = vpack.c.b16 %v1382, %v1372
    %v2073 = vpack.c.b16 %v1383, %v1373
    %v2074 = vpack.c.b16 %v1394, %v1384
    %v2075 = vpack.c.b16 %v1395, %v1385
    %v2076 = vpack.c.b16 %v1396, %v1386
    %v2077 = vpack.c.b16 %v1397, %v1387
    %v2078 = vpack.c.b16 %v1398, %v1388
    %v2079 = vpack.c.b16 %v1399, %v1389
    %v2080 = vpack.c.b16 %v1400, %v1390
    %v2081 = vpack.c.b16 %v1401, %v1391
    %v2082 = vpack.c.b16 %v1402, %v1392
    %v2083 = vpack.c.b16 %v1403, %v1393
    %v2084 = vpack.c.b16 %v1414, %v1404
    %v2085 = vpack.c.b16 %v1415, %v1405
    %v2086 = vpack.c.b16 %v1416, %v1406
    %v2087 = vpack.c.b16 %v1417, %v1407
    %v2088 = vpack.c.b16 %v1418, %v1408
    %v2089 = vpack.c.b16 %v1419, %v1409
    %v2090 = vpack.c.b16 %v1420, %v1410
    %v2091 = vpack.c.b16 %v1421, %v1411
    %v2092 = vpack.c.b16 %v1422, %v1412
    %v2093 = vpack.c.b16 %v1423, %v1413
    %v2094 = vpack.c.b16 %v1434, %v1424
    %v2095 = vpack.c.b16 %v1435, %v1425
    %v2096 = vpack.c.b16 %v1436, %v1426
    %v2097 = vpack.c.b16 %v1437, %v1427
    %v2098 = vpack.c.b16 %v1438, %v1428
    %v2099 = vpack.c.b16 %v1439, %v1429
    %v2100 = vpack.c.b16 %v1440, %v1430
    %v2101 = vpack.c.b16 %v1441, %v1431
    %v2102 = vpack.c.b16 %v1442, %v1432
    %v2103 = vpack.c.b16 %v1443, %v1433
    %v2104 = vpack.c.b16 %v1454, %v1444
    %v2105 = vpack.c.b16 %v1455, %v1445
    %v2106 = vpack.c.b16 %v1456, %v1446
    %v2107 = vpack.c.b16 %v1457, %v1447
    %v2108 = vpack.c.b16 %v1458, %v1448
    %v2109 = vpack.c.b16 %v1459, %v1449
    %v2110 = vpack.c.b16 %v1460, %v1450
    %v2111 = vpack.c.b16 %v1461, %v1451
    %v2112 = vpack.c.b16 %v1462, %v1452
    %v2113 = vpack.c.b16 %v1463, %v1453
    %v2114 = vpack.c.b16 %v1474, %v1464
    %v2115 = vpack.c.b16 %v1475, %v1465
    %v2116 = vpack.c.b16 %v1476, %v1466
    %v2117 = vpack.c.b16 %v1477, %v1467
    %v2118 = vpack.c.b16 %v1478, %v1468
    %v2119 = vpack.c.b16 %v1479, %v1469
    %v2120 = vpack.c.b16 %v1480, %v1470
    %v2121 = vpack.c.b16 %v1481, %v1471
    %v2122 = vpack.c.b16 %v1482, %v1472
    %v2123 = vpack.c.b16 %v1483, %v1473
    %v2124 = vpack.c.b16 %v1494, %v1484
    %v2125 = vpack.c.b16 %v1495, %v1485
    %v2126 = vpack.c.b16 %v1496, %v1486
    %v2127 = vpack.c.b16 %v1497, %v1487
    %v2128 = vpack.c.b16 %v1498, %v1488
    %v2129 = vpack.c.b16 %v1499, %v1489
    %v2130 = vpack.c.b16 %v1500, %v1490
    %v2131 = vpack.c.b16 %v1501, %v1491
    %v2132 = vpack.c.b16 %v1502, %v1492
    %v2133 = vpack.c.b16 %v1503, %v1493
    %v2134 = vpack.c.b16 %v1514, %v1504
    %v2135 = vpack.c.b16 %v1515, %v1505
    %v2136 = vpack.c.b16 %v1516, %v1506
    %v2137 = vpack.c.b16 %v1517, %v1507
    %v2138 = vpack.c.b16 %v1518, %v1508
    %v2139 = vpack.c.b16 %v1519, %v1509
    %v2140 = vpack.c.b16 %v1520, %v1510
    %v2141 = vpack.c.b16 %v1521, %v1511
    %v2142 = vpack.c.b16 %v1522, %v1512
    %v2143 = vpack.c.b16 %v1523, %v1513
    %v2144 = vpack.c.b16 %v1534, %v1524
    %v2145 = vpack.c.b16 %v1535, %v1525
    %v2146 = vpack.c.b16 %v1536, %v1526
    %v2147 = vpack.c.b16 %v1537, %v1527
    %v2148 = vpack.c.b16 %v1538, %v1528
    %v2149 = vpack.c.b16 %v1539, %v1529
    %v2150 = vpack.c.b16 %v1540, %v1530
    %v2151 = vpack.c.b16 %v1541, %v1531
    %v2152 = vpack.c.b16 %v1542, %v1532
    %v2153 = vpack.c.b16 %v1543, %v1533
    %v2154 = vpack.c.b16 %v1554, %v1544
    %v2155 = vpack.c.b16 %v1555, %v1545
    %v2156 = vpack.c.b16 %v1556, %v1546
    %v2157 = vpack.c.b16 %v1557, %v1547
    %v2158 = vpack.c.b16 %v1558, %v1548
    %v2159 = vpack.c.b16 %v1559, %v1549
    %v2160 = vpack.c.b16 %v1560, %v1550
    %v2161 = vpack.c.b16 %v1561, %v1551
    %v2162 = vpack.c.b16 %v1562, %v1552
    %v2163 = vpack.c.b16 %v1563, %v1553
    %v2164 = vpack.c.b16 %v1574, %v1564
    %v2165 = vpack.c.b16 %v1575, %v1565
    %v2166 = vpack.c.b16 %v1576, %v1566
    %v2167 = vpack.c.b16 %v1577, %v1567
    %v2168 = vpack.c.b16 %v1578, %v1568
    %v2169 = vpack.c.b16 %v1579, %v1569
    %v2170 = vpack.c.b16 %v1580, %v1570
    %v2171 = vpack.c.b16 %v1581, %v1571
    %v2172 = vpack.c.b16 %v1582, %v1572
    %v2173 = vpack.c.b16 %v1583, %v1573
    %v2174 = vpack.c.b16 %v1594, %v1584
    %v2175 = vpack.c.b16 %v1595, %v1585
    %v2176 = vpack.c.b16 %v1596, %v1586
    %v2177 = vpack.c.b16 %v1597, %v1587
    %v2178 = vpack.c.b16 %v1598, %v1588
    %v2179 = vpack.c.b16 %v1599, %v1589
    %v2180 = vpack.c.b16 %v1600, %v1590
    %v2181 = vpack.c.b16 %v1601, %v1591
    %v2182 = vpack.c.b16 %v1602, %v1592
    %v2183 = vpack.c.b16 %v1603, %v1593
    %v2184 = vpack.c.b16 %v1614, %v1604
    %v2185 = vpack.c.b16 %v1615, %v1605
    %v2186 = vpack.c.b16 %v1616, %v1606
    %v2187 = vpack.c.b16 %v1617, %v1607
    %v2188 = vpack.c.b16 %v1618, %v1608
    %v2189 = vpack.c.b16 %v1619, %v1609
    %v2190 = vpack.c.b16 %v1620, %v1610
    %v2191 = vpack.c.b16 %v1621, %v1611
    %v2192 = vpack.c.b16 %v1622, %v1612
    %v2193 = vpack.c.b16 %v1623, %v1613
    %v2194 = vpack.c.b16 %v1634, %v1624
    %v2195 = vpack.c.b16 %v1635, %v1625
    %v2196 = vpack.c.b16 %v1636, %v1626
    %v2197 = vpack.c.b16 %v1637, %v1627
    %v2198 = vpack.c.b16 %v1638, %v1628
    %v2199 = vpack.c.b16 %v1639, %v1629
    %v2200 = vpack.c.b16 %v1640, %v1630
    %v2201 = vpack.c.b16 %v1641, %v1631
    %v2202 = vpack.c.b16 %v1642, %v1632
    %v2203 = vpack.c.b16 %v1643, %v1633
    %v2204 = vpack.c.b16 %v1654, %v1644
    %v2205 = vpack.c.b16 %v1655, %v1645
    %v2206 = vpack.c.b16 %v1656, %v1646
    %v2207 = vpack.c.b16 %v1657, %v1647
    %v2208 = vpack.c.b16 %v1658, %v1648
    %v2209 = vpack.c.b16 %v1659, %v1649
    %v2210 = vpack.c.b16 %v1660, %v1650
    %v2211 = vpack.c.b16 %v1661, %v1651
    %v2212 = vpack.c.b16 %v1662, %v1652
    %v2213 = vpack.c.b16 %v1663, %v1653
    %v2214 = vpack.c.b16 %v1674, %v1664
    %v2215 = vpack.c.b16 %v1675, %v1665
    %v2216 = vpack.c.b16 %v1676, %v1666
    %v2217 = vpack.c.b16 %v1677, %v1667
    %v2218 = vpack.c.b16 %v1678, %v1668
    %v2219 = vpack.c.b16 %v1679, %v1669
    %v2220 = vpack.c.b16 %v1680, %v1670
    %v2221 = vpack.c.b16 %v1681, %v1671
    %v2222 = vpack.c.b16 %v1682, %v1672
    %v2223 = vpack.c.b16 %v1683, %v1673
    %v2224 = vpack.c.b16 %v1694, %v1684
    %v2225 = vpack.c.b16 %v1695, %v1685
    %v2226 = vpack.c.b16 %v1696, %v1686
    %v2227 = vpack.c.b16 %v1697, %v1687
    %v2228 = vpack.c.b16 %v1698, %v1688
    %v2229 = vpack.c.b16 %v1699, %v1689
    %v2230 = vpack.c.b16 %v1700, %v1690
    %v2231 = vpack.c.b16 %v1701, %v1691
    %v2232 = vpack.c.b16 %v1702, %v1692
    %v2233 = vpack.c.b16 %v1703, %v1693
    %v2234 = vpack.c.b16 %v1714, %v1704
    %v2235 = vpack.c.b16 %v1715, %v1705
    %v2236 = vpack.c.b16 %v1716, %v1706
    %v2237 = vpack.c.b16 %v1717, %v1707
    %v2238 = vpack.c.b16 %v1718, %v1708
    %v2239 = vpack.c.b16 %v1719, %v1709
    %v2240 = vpack.c.b16 %v1720, %v1710
    %v2241 = vpack.c.b16 %v1721, %v1711
    %v2242 = vpack.c.b16 %v1722, %v1712
    %v2243 = vpack.c.b16 %v1723, %v1713
    %v2244 = vpack.c.b16 %v1734, %v1724
    %v2245 = vpack.c.b16 %v1735, %v1725
    %v2246 = vpack.c.b16 %v1736, %v1726
    %v2247 = vpack.c.b16 %v1737, %v1727
    %v2248 = vpack.c.b16 %v1738, %v1728
    %v2249 = vpack.c.b16 %v1739, %v1729
    %v2250 = vpack.c.b16 %v1740, %v1730
    %v2251 = vpack.c.b16 %v1741, %v1731
    %v2252 = vpack.c.b16 %v1742, %v1732
    %v2253 = vpack.c.b16 %v1743, %v1733
    %v2254 = vpack.c.b16 %v1754, %v1744
    %v2255 = vpack.c.b16 %v1755, %v1745
    %v2256 = vpack.c.b16 %v1756, %v1746
    %v2257 = vpack.c.b16 %v1757, %v1747
    %v2258 = vpack.c.b16 %v1758, %v1748
    %v2259 = vpack.c.b16 %v1759, %v1749
    %v2260 = vpack.c.b16 %v1760, %v1750
    %v2261 = vpack.c.b16 %v1761, %v1751
    %v2262 = vpack.c.b16 %v1762, %v1752
    %v2263 = vpack.c.b16 %v1763, %v1753
    %v2264 = vpack.c.b16 %v1774, %v1764
    %v2265 = vpack.c.b16 %v1775, %v1765
    %v2266 = vpack.c.b16 %v1776, %v1766
    %v2267 = vpack.c.b16 %v1777, %v1767
    %v2268 = vpack.c.b16 %v1778, %v1768
    %v2269 = vpack.c.b16 %v1779, %v1769
    %v2270 = vpack.c.b16 %v1780, %v1770
    %v2271 = vpack.c.b16 %v1781, %v1771
    %v2272 = vpack.c.b16 %v1782, %v1772
    %v2273 = vpack.c.b16 %v1783, %v1773
    %v2274 = vpack.c.b16 %v1794, %v1784
    %v2275 = vpack.c.b16 %v1795, %v1785
    %v2276 = vpack.c.b16 %v1796, %v1786
    %v2277 = vpack.c.b16 %v1797, %v1787
    %v2278 = vpack.c.b16 %v1798, %v1788
    %v2279 = vpack.c.b16 %v1799, %v1789
    %v2280 = vpack.c.b16 %v1800, %v1790
    %v2281 = vpack.c.b16 %v1801, %v1791
    %v2282 = vpack.c.b16 %v1802, %v1792
    %v2283 = vpack.c.b16 %v1803, %v1793
    %v2284 = vpack.c.b16 %v1814, %v1804
    %v2285 = vpack.c.b16 %v1815, %v1805
    %v2286 = vpack.c.b16 %v1816, %v1806
    %v2287 = vpack.c.b16 %v1817, %v1807
    %v2288 = vpack.c.b16 %v1818, %v1808
    %v2289 = vpack.c.b16 %v1819, %v1809
    %v2290 = vpack.c.b16 %v1820, %v1810
    %v2291 = vpack.c.b16 %v1821, %v1811
    %v2292 = vpack.c.b16 %v1822, %v1812
    %v2293 = vpack.c.b16 %v1823, %v1813
    %v2294 = vpack.c.b16 %v1834, %v1824
    %v2295 = vpack.c.b16 %v1835, %v1825
    %v2296 = vpack.c.b16 %v1836, %v1826
    %v2297 = vpack.c.b16 %v1837, %v1827
    %v2298 = vpack.c.b16 %v1838, %v1828
    %v2299 = vpack.c.b16 %v1839, %v1829
    %v2300 = vpack.c.b16 %v1840, %v1830
    %v2301 = vpack.c.b16 %v1841, %v1831
    %v2302 = vpack.c.b16 %v1842, %v1832
    %v2303 = vpack.c.b16 %v1843, %v1833
    %v2304 = vpack.c.b16 %v1854, %v1844
    %v2305 = vpack.c.b16 %v1855, %v1845
    %v2306 = vpack.c.b16 %v1856, %v1846
    %v2307 = vpack.c.b16 %v1857, %v1847
    %v2308 = vpack.c.b16 %v1858, %v1848
    %v2309 = vpack.c.b16 %v1859, %v1849
    %v2310 = vpack.c.b16 %v1860, %v1850
    %v2311 = vpack.c.b16 %v1861, %v1851
    %v2312 = vpack.c.b16 %v1862, %v1852
    %v2313 = vpack.c.b16 %v1863, %v1853
    %v2314 = vpack.c.b16 %v1874, %v1864
    %v2315 = vpack.c.b16 %v1875, %v1865
    %v2316 = vpack.c.b16 %v1876, %v1866
    %v2317 = vpack.c.b16 %v1877, %v1867
    %v2318 = vpack.c.b16 %v1878, %v1868
    %v2319 = vpack.c.b16 %v1879, %v1869
    %v2320 = vpack.c.b16 %v1880, %v1870
    %v2321 = vpack.c.b16 %v1881, %v1871
    %v2322 = vpack.c.b16 %v1882, %v1872
    %v2323 = vpack.c.b16 %v1883, %v1873
    %v2324 = vpack.c.b16 %v1894, %v1884
    %v2325 = vpack.c.b16 %v1895, %v1885
    %v2326 = vpack.c.b16 %v1896, %v1886
    %v2327 = vpack.c.b16 %v1897, %v1887
    %v2328 = vpack.c.b16 %v1898, %v1888
    %v2329 = vpack.c.b16 %v1899, %v1889
    %v2330 = vpack.c.b16 %v1900, %v1890
    %v2331 = vpack.c.b16 %v1901, %v1891
    %v2332 = vpack.c.b16 %v1902, %v1892
    %v2333 = vpack.c.b16 %v1903, %v1893
    %v2334 = vpack.c.b16 %v1914, %v1904
    %v2335 = vpack.c.b16 %v1915, %v1905
    %v2336 = vpack.c.b16 %v1916, %v1906
    %v2337 = vpack.c.b16 %v1917, %v1907
    %v2338 = vpack.c.b16 %v1918, %v1908
    %v2339 = vpack.c.b16 %v1919, %v1909
    %v2340 = vpack.c.b16 %v1920, %v1910
    %v2341 = vpack.c.b16 %v1921, %v1911
    %v2342 = vpack.c.b16 %v1922, %v1912
    %v2343 = vpack.c.b16 %v1923, %v1913
    %v2344 = vpack.c.b16 %v1934, %v1924
    %v2345 = vpack.c.b16 %v1935, %v1925
    %v2346 = vpack.c.b16 %v1936, %v1926
    %v2347 = vpack.c.b16 %v1937, %v1927
    %v2348 = vpack.c.b16 %v1938, %v1928
    %v2349 = vpack.c.b16 %v1939, %v1929
    %v2350 = vpack.c.b16 %v1940, %v1930
    %v2351 = vpack.c.b16 %v1941, %v1931
    %v2352 = vpack.c.b16 %v1942, %v1932
    %v2353 = vpack.c.b16 %v1943, %v1933
    %v2354 = vpack.c.b16 %v1954, %v1944
    %v2355 = vpack.c.b16 %v1955, %v1945
    %v2356 = vpack.c.b16 %v1956, %v1946
    %v2357 = vpack.c.b16 %v1957, %v1947
    %v2358 = vpack.c.b16 %v1958, %v1948
    %v2359 = vpack.c.b16 %v1959, %v1949
    %v2360 = vpack.c.b16 %v1960, %v1950
    %v2361 = vpack.c.b16 %v1961, %v1951
    %v2362 = vpack.c.b16 %v1962, %v1952
    %v2363 = vpack.c.b16 %v1963, %v1953
    %2764 = vmatprep.subr.bf16.mxu0 %v1965
    %2765 = vmatpush1.bf16.msra.mxu0 %v1964
    %2766 = vmatprep.subr.bf16.mxu0 %v1975
    %2767 = vmatpush1.bf16.msra.mxu0 %v1974
    %2768 = vmatprep.subr.bf16.mxu0 %v1985
    %2769 = vmatpush1.bf16.msra.mxu0 %v1984
    %2770 = vmatprep.subr.bf16.mxu0 %v1995
    %2771 = vmatpush1.bf16.msra.mxu0 %v1994
    %2772 = vmatprep.subr.bf16.mxu0 %v2005
    %2773 = vmatpush1.bf16.msra.mxu0 %v2004
    %2774 = vmatprep.subr.bf16.mxu0 %v2015
    %2775 = vmatpush1.bf16.msra.mxu0 %v2014
    %2776 = vmatprep.subr.bf16.mxu0 %v2025
    %2777 = vmatpush1.bf16.msra.mxu0 %v2024
    %2778 = vmatprep.subr.bf16.mxu0 %v2035
    %2779 = vmatpush1.bf16.msra.mxu0 %v2034
    %2780 = vmatprep.subr.bf16.mxu0 %v2045
    %2781 = vmatpush1.bf16.msra.mxu0 %v2044
    %2782 = vmatprep.subr.bf16.mxu0 %v2055
    %2783 = vmatpush1.bf16.msra.mxu0 %v2054
    %2784 = vmatprep.subr.bf16.mxu0 %v2065
    %2785 = vmatpush1.bf16.msra.mxu0 %v2064
    %2786 = vmatprep.subr.bf16.mxu0 %v2075
    %2787 = vmatpush1.bf16.msra.mxu0 %v2074
    %2788 = vmatprep.subr.bf16.mxu0 %v2085
    %2789 = vmatpush1.bf16.msra.mxu0 %v2084
    %2790 = vmatprep.subr.bf16.mxu0 %v2095
    %2791 = vmatpush1.bf16.msra.mxu0 %v2094
    %2792 = vmatprep.subr.bf16.mxu0 %v2105
    %2793 = vmatpush1.bf16.msra.mxu0 %v2104
    %2794 = vmatprep.subr.bf16.mxu0 %v2115
    %2795 = vmatpush1.bf16.msra.mxu0 %v2114
    %2796 = vmatprep.mubr.bf16.mxu0 %v306
    %2797 = vmatmul.mubr.bf16.gmra.mrb[0].mxu0 %v305
    %v2798 = vpop.f32.mrb[0].mxu0
    %v2799 = vadd.f32 %v717, %v2798
    %v2800 = vpop.f32.mrb[0].mxu0
    %v2801 = vadd.f32 %v721, %v2800
    %v2802 = vpop.f32.mrb[0].mxu0
    %v2803 = vpop.f32.mrb[0].mxu0
    %2804 = vdwg.mxu0
    %2805 = vmatprep.subr.bf16.mxu0 %v2125
    %2806 = vmatpush1.bf16.msra.mxu0 %v2124
    %2807 = vmatprep.subr.bf16.mxu0 %v2135
    %2808 = vmatpush1.bf16.msra.mxu0 %v2134
    %2809 = vmatprep.subr.bf16.mxu0 %v2145
    %2810 = vmatpush1.bf16.msra.mxu0 %v2144
    %2811 = vmatprep.subr.bf16.mxu0 %v2155
    %2812 = vmatpush1.bf16.msra.mxu0 %v2154
    %2813 = vmatprep.subr.bf16.mxu0 %v2165
    %2814 = vmatpush1.bf16.msra.mxu0 %v2164
    %2815 = vmatprep.subr.bf16.mxu0 %v2175
    %2816 = vmatpush1.bf16.msra.mxu0 %v2174
    %2817 = vmatprep.subr.bf16.mxu0 %v2185
    %2818 = vmatpush1.bf16.msra.mxu0 %v2184
    %2819 = vmatprep.subr.bf16.mxu0 %v2195
    %2820 = vmatpush1.bf16.msra.mxu0 %v2194
    %2821 = vmatprep.subr.bf16.mxu0 %v2205
    %2822 = vmatpush1.bf16.msra.mxu0 %v2204
    %2823 = vmatprep.subr.bf16.mxu0 %v2215
    %2824 = vmatpush1.bf16.msra.mxu0 %v2214
    %2825 = vmatprep.subr.bf16.mxu0 %v2225
    %2826 = vmatpush1.bf16.msra.mxu0 %v2224
    %2827 = vmatprep.subr.bf16.mxu0 %v2235
    %2828 = vmatpush1.bf16.msra.mxu0 %v2234
    %2829 = vmatprep.subr.bf16.mxu0 %v2245
    %2830 = vmatpush1.bf16.msra.mxu0 %v2244
    %2831 = vmatprep.subr.bf16.mxu0 %v2255
    %2832 = vmatpush1.bf16.msra.mxu0 %v2254
    %2833 = vmatprep.subr.bf16.mxu0 %v2265
    %2834 = vmatpush1.bf16.msra.mxu0 %v2264
    %2835 = vmatprep.subr.bf16.mxu0 %v2275
    %2836 = vmatpush1.bf16.msra.mxu0 %v2274
    %2837 = vmatprep.mubr.bf16.mxu0 %v308
    %2838 = vmatmul.mubr.bf16.gmra.mrb[0].mxu0 %v307
    %v2839 = vpop.f32.mrb[0].mxu0
    %v2840 = vadd.f32 %v2799, %v2839
    %v2841 = vpop.f32.mrb[0].mxu0
    %v2842 = vadd.f32 %v2801, %v2841
    %v2843 = vpop.f32.mrb[0].mxu0
    %v2844 = vpop.f32.mrb[0].mxu0
    %2845 = vdwg.mxu0
    %2846 = vmatprep.subr.bf16.mxu0 %v2285
    %2847 = vmatpush1.bf16.msra.mxu0 %v2284
    %2848 = vmatprep.subr.bf16.mxu0 %v2295
    %2849 = vmatpush1.bf16.msra.mxu0 %v2294
    %2850 = vmatprep.subr.bf16.mxu0 %v2305
    %2851 = vmatpush1.bf16.msra.mxu0 %v2304
    %2852 = vmatprep.subr.bf16.mxu0 %v2315
    %2853 = vmatpush1.bf16.msra.mxu0 %v2314
    %2854 = vmatprep.subr.bf16.mxu0 %v2325
    %2855 = vmatpush1.bf16.msra.mxu0 %v2324
    %2856 = vmatprep.subr.bf16.mxu0 %v2335
    %2857 = vmatpush1.bf16.msra.mxu0 %v2334
    %2858 = vmatprep.subr.bf16.mxu0 %v2345
    %2859 = vmatpush1.bf16.msra.mxu0 %v2344
    %2860 = vmatprep.subr.bf16.mxu0 %v2355
    %2861 = vmatpush1.bf16.msra.mxu0 %v2354
    %2862 = vmatprep.subr.bf16.mxu0 0
    %2863 = vmatpush1.bf16.msra.mxu0 0
    %2864 = vmatprep.subr.bf16.mxu0 0
    %2865 = vmatpush1.bf16.msra.mxu0 0
    %2866 = vmatprep.subr.bf16.mxu0 0
    %2867 = vmatpush1.bf16.msra.mxu0 0
    %2868 = vmatprep.subr.bf16.mxu0 0
    %2869 = vmatpush1.bf16.msra.mxu0 0
    %2870 = vmatprep.subr.bf16.mxu0 0
    %2871 = vmatpush1.bf16.msra.mxu0 0
    %2872 = vmatprep.subr.bf16.mxu0 0
    %2873 = vmatpush1.bf16.msra.mxu0 0
    %2874 = vmatprep.subr.bf16.mxu0 0
    %2875 = vmatpush1.bf16.msra.mxu0 0
    %2876 = vmatprep.subr.bf16.mxu0 0
    %2877 = vmatpush1.bf16.msra.mxu0 0
    %2878 = vmatprep.mubr.bf16.mxu0 0
    %2879 = vmatmul.mubr.bf16.gmra.mrb[0].mxu0 %v309
    %v2880 = vpop.f32.mrb[0].mxu0
    %v2881 = vadd.f32 %v2840, %v2880
    %v2882 = vpop.f32.mrb[0].mxu0
    %v2883 = vadd.f32 %v2842, %v2882
    %v2884 = vpop.f32.mrb[0].mxu0
    %v2885 = vpop.f32.mrb[0].mxu0
    %2886 = vdwg.mxu0
    %2887 = vmatprep.subr.bf16.mxu0 %v1967
    %2888 = vmatpush1.bf16.msra.mxu0 %v1966
    %2889 = vmatprep.subr.bf16.mxu0 %v1977
    %2890 = vmatpush1.bf16.msra.mxu0 %v1976
    %2891 = vmatprep.subr.bf16.mxu0 %v1987
    %2892 = vmatpush1.bf16.msra.mxu0 %v1986
    %2893 = vmatprep.subr.bf16.mxu0 %v1997
    %2894 = vmatpush1.bf16.msra.mxu0 %v1996
    %2895 = vmatprep.subr.bf16.mxu0 %v2007
    %2896 = vmatpush1.bf16.msra.mxu0 %v2006
    %2897 = vmatprep.subr.bf16.mxu0 %v2017
    %2898 = vmatpush1.bf16.msra.mxu0 %v2016
    %2899 = vmatprep.subr.bf16.mxu0 %v2027
    %2900 = vmatpush1.bf16.msra.mxu0 %v2026
    %2901 = vmatprep.subr.bf16.mxu0 %v2037
    %2902 = vmatpush1.bf16.msra.mxu0 %v2036
    %2903 = vmatprep.subr.bf16.mxu0 %v2047
    %2904 = vmatpush1.bf16.msra.mxu0 %v2046
    %2905 = vmatprep.subr.bf16.mxu0 %v2057
    %2906 = vmatpush1.bf16.msra.mxu0 %v2056
    %2907 = vmatprep.subr.bf16.mxu0 %v2067
    %2908 = vmatpush1.bf16.msra.mxu0 %v2066
    %2909 = vmatprep.subr.bf16.mxu0 %v2077
    %2910 = vmatpush1.bf16.msra.mxu0 %v2076
    %2911 = vmatprep.subr.bf16.mxu0 %v2087
    %2912 = vmatpush1.bf16.msra.mxu0 %v2086
    %2913 = vmatprep.subr.bf16.mxu0 %v2097
    %2914 = vmatpush1.bf16.msra.mxu0 %v2096
    %2915 = vmatprep.subr.bf16.mxu0 %v2107
    %2916 = vmatpush1.bf16.msra.mxu0 %v2106
    %2917 = vmatprep.subr.bf16.mxu0 %v2117
    %2918 = vmatpush1.bf16.msra.mxu0 %v2116
    %2919 = vmatprep.mubr.bf16.mxu0 %v306
    %2920 = vmatmul.mubr.bf16.gmra.mrb[0].mxu0 %v305
    %v2921 = vpop.f32.mrb[0].mxu0
    %v2922 = vadd.f32 %v725, %v2921
    %v2923 = vpop.f32.mrb[0].mxu0
    %v2924 = vadd.f32 %v729, %v2923
    %v2925 = vpop.f32.mrb[0].mxu0
    %v2926 = vpop.f32.mrb[0].mxu0
    %2927 = vdwg.mxu0
    %2928 = vmatprep.subr.bf16.mxu0 %v2127
    %2929 = vmatpush1.bf16.msra.mxu0 %v2126
    %2930 = vmatprep.subr.bf16.mxu0 %v2137
    %2931 = vmatpush1.bf16.msra.mxu0 %v2136
    %2932 = vmatprep.subr.bf16.mxu0 %v2147
    %2933 = vmatpush1.bf16.msra.mxu0 %v2146
    %2934 = vmatprep.subr.bf16.mxu0 %v2157
    %2935 = vmatpush1.bf16.msra.mxu0 %v2156
    %2936 = vmatprep.subr.bf16.mxu0 %v2167
    %2937 = vmatpush1.bf16.msra.mxu0 %v2166
    %2938 = vmatprep.subr.bf16.mxu0 %v2177
    %2939 = vmatpush1.bf16.msra.mxu0 %v2176
    %2940 = vmatprep.subr.bf16.mxu0 %v2187
    %2941 = vmatpush1.bf16.msra.mxu0 %v2186
    %2942 = vmatprep.subr.bf16.mxu0 %v2197
    %2943 = vmatpush1.bf16.msra.mxu0 %v2196
    %2944 = vmatprep.subr.bf16.mxu0 %v2207
    %2945 = vmatpush1.bf16.msra.mxu0 %v2206
    %2946 = vmatprep.subr.bf16.mxu0 %v2217
    %2947 = vmatpush1.bf16.msra.mxu0 %v2216
    %2948 = vmatprep.subr.bf16.mxu0 %v2227
    %2949 = vmatpush1.bf16.msra.mxu0 %v2226
    %2950 = vmatprep.subr.bf16.mxu0 %v2237
    %2951 = vmatpush1.bf16.msra.mxu0 %v2236
    %2952 = vmatprep.subr.bf16.mxu0 %v2247
    %2953 = vmatpush1.bf16.msra.mxu0 %v2246
    %2954 = vmatprep.subr.bf16.mxu0 %v2257
    %2955 = vmatpush1.bf16.msra.mxu0 %v2256
    %2956 = vmatprep.subr.bf16.mxu0 %v2267
    %2957 = vmatpush1.bf16.msra.mxu0 %v2266
    %2958 = vmatprep.subr.bf16.mxu0 %v2277
    %2959 = vmatpush1.bf16.msra.mxu0 %v2276
    %2960 = vmatprep.mubr.bf16.mxu0 %v308
    %2961 = vmatmul.mubr.bf16.gmra.mrb[0].mxu0 %v307
    %v2962 = vpop.f32.mrb[0].mxu0
    %v2963 = vadd.f32 %v2922, %v2962
    %v2964 = vpop.f32.mrb[0].mxu0
    %v2965 = vadd.f32 %v2924, %v2964
    %v2966 = vpop.f32.mrb[0].mxu0
    %v2967 = vpop.f32.mrb[0].mxu0
    %2968 = vdwg.mxu0
    %2969 = vmatprep.subr.bf16.mxu0 %v2287
    %2970 = vmatpush1.bf16.msra.mxu0 %v2286
    %2971 = vmatprep.subr.bf16.mxu0 %v2297
    %2972 = vmatpush1.bf16.msra.mxu0 %v2296
    %2973 = vmatprep.subr.bf16.mxu0 %v2307
    %2974 = vmatpush1.bf16.msra.mxu0 %v2306
    %2975 = vmatprep.subr.bf16.mxu0 %v2317
    %2976 = vmatpush1.bf16.msra.mxu0 %v2316
    %2977 = vmatprep.subr.bf16.mxu0 %v2327
    %2978 = vmatpush1.bf16.msra.mxu0 %v2326
    %2979 = vmatprep.subr.bf16.mxu0 %v2337
    %2980 = vmatpush1.bf16.msra.mxu0 %v2336
    %2981 = vmatprep.subr.bf16.mxu0 %v2347
    %2982 = vmatpush1.bf16.msra.mxu0 %v2346
    %2983 = vmatprep.subr.bf16.mxu0 %v2357
    %2984 = vmatpush1.bf16.msra.mxu0 %v2356
    %2985 = vmatprep.subr.bf16.mxu0 0
    %2986 = vmatpush1.bf16.msra.mxu0 0
    %2987 = vmatprep.subr.bf16.mxu0 0
    %2988 = vmatpush1.bf16.msra.mxu0 0
    %2989 = vmatprep.subr.bf16.mxu0 0
    %2990 = vmatpush1.bf16.msra.mxu0 0
    %2991 = vmatprep.subr.bf16.mxu0 0
    %2992 = vmatpush1.bf16.msra.mxu0 0
    %2993 = vmatprep.subr.bf16.mxu0 0
    %2994 = vmatpush1.bf16.msra.mxu0 0
    %2995 = vmatprep.subr.bf16.mxu0 0
    %2996 = vmatpush1.bf16.msra.mxu0 0
    %2997 = vmatprep.subr.bf16.mxu0 0
    %2998 = vmatpush1.bf16.msra.mxu0 0
    %2999 = vmatprep.subr.bf16.mxu0 0
    %3000 = vmatpush1.bf16.msra.mxu0 0
    %3001 = vmatprep.mubr.bf16.mxu0 0
    %3002 = vmatmul.mubr.bf16.gmra.mrb[0].mxu0 %v309
    %v3003 = vpop.f32.mrb[0].mxu0
    %v3004 = vadd.f32 %v2963, %v3003
    %v3005 = vpop.f32.mrb[0].mxu0
    %v3006 = vadd.f32 %v2965, %v3005
    %v3007 = vpop.f32.mrb[0].mxu0
    %v3008 = vpop.f32.mrb[0].mxu0
    %3009 = vdwg.mxu0
    %3010 = vmatprep.subr.bf16.mxu0 %v1969
    %3011 = vmatpush1.bf16.msra.mxu0 %v1968
    %3012 = vmatprep.subr.bf16.mxu0 %v1979
    %3013 = vmatpush1.bf16.msra.mxu0 %v1978
    %3014 = vmatprep.subr.bf16.mxu0 %v1989
    %3015 = vmatpush1.bf16.msra.mxu0 %v1988
    %3016 = vmatprep.subr.bf16.mxu0 %v1999
    %3017 = vmatpush1.bf16.msra.mxu0 %v1998
    %3018 = vmatprep.subr.bf16.mxu0 %v2009
    %3019 = vmatpush1.bf16.msra.mxu0 %v2008
    %3020 = vmatprep.subr.bf16.mxu0 %v2019
    %3021 = vmatpush1.bf16.msra.mxu0 %v2018
    %3022 = vmatprep.subr.bf16.mxu0 %v2029
    %3023 = vmatpush1.bf16.msra.mxu0 %v2028
    %3024 = vmatprep.subr.bf16.mxu0 %v2039
    %3025 = vmatpush1.bf16.msra.mxu0 %v2038
    %3026 = vmatprep.subr.bf16.mxu0 %v2049
    %3027 = vmatpush1.bf16.msra.mxu0 %v2048
    %3028 = vmatprep.subr.bf16.mxu0 %v2059
    %3029 = vmatpush1.bf16.msra.mxu0 %v2058
    %3030 = vmatprep.subr.bf16.mxu0 %v2069
    %3031 = vmatpush1.bf16.msra.mxu0 %v2068
    %3032 = vmatprep.subr.bf16.mxu0 %v2079
    %3033 = vmatpush1.bf16.msra.mxu0 %v2078
    %3034 = vmatprep.subr.bf16.mxu0 %v2089
    %3035 = vmatpush1.bf16.msra.mxu0 %v2088
    %3036 = vmatprep.subr.bf16.mxu0 %v2099
    %3037 = vmatpush1.bf16.msra.mxu0 %v2098
    %3038 = vmatprep.subr.bf16.mxu0 %v2109
    %3039 = vmatpush1.bf16.msra.mxu0 %v2108
    %3040 = vmatprep.subr.bf16.mxu0 %v2119
    %3041 = vmatpush1.bf16.msra.mxu0 %v2118
    %3042 = vmatprep.mubr.bf16.mxu0 %v306
    %3043 = vmatmul.mubr.bf16.gmra.mrb[0].mxu0 %v305
    %v3044 = vpop.f32.mrb[0].mxu0
    %v3045 = vadd.f32 %v733, %v3044
    %v3046 = vpop.f32.mrb[0].mxu0
    %v3047 = vadd.f32 %v737, %v3046
    %v3048 = vpop.f32.mrb[0].mxu0
    %v3049 = vpop.f32.mrb[0].mxu0
    %3050 = vdwg.mxu0
    %3051 = vmatprep.subr.bf16.mxu0 %v2129
    %3052 = vmatpush1.bf16.msra.mxu0 %v2128
    %3053 = vmatprep.subr.bf16.mxu0 %v2139
    %3054 = vmatpush1.bf16.msra.mxu0 %v2138
    %3055 = vmatprep.subr.bf16.mxu0 %v2149
    %3056 = vmatpush1.bf16.msra.mxu0 %v2148
    %3057 = vmatprep.subr.bf16.mxu0 %v2159
    %3058 = vmatpush1.bf16.msra.mxu0 %v2158
    %3059 = vmatprep.subr.bf16.mxu0 %v2169
    %3060 = vmatpush1.bf16.msra.mxu0 %v2168
    %3061 = vmatprep.subr.bf16.mxu0 %v2179
    %3062 = vmatpush1.bf16.msra.mxu0 %v2178
    %3063 = vmatprep.subr.bf16.mxu0 %v2189
    %3064 = vmatpush1.bf16.msra.mxu0 %v2188
    %3065 = vmatprep.subr.bf16.mxu0 %v2199
    %3066 = vmatpush1.bf16.msra.mxu0 %v2198
    %3067 = vmatprep.subr.bf16.mxu0 %v2209
    %3068 = vmatpush1.bf16.msra.mxu0 %v2208
    %3069 = vmatprep.subr.bf16.mxu0 %v2219
    %3070 = vmatpush1.bf16.msra.mxu0 %v2218
    %3071 = vmatprep.subr.bf16.mxu0 %v2229
    %3072 = vmatpush1.bf16.msra.mxu0 %v2228
    %3073 = vmatprep.subr.bf16.mxu0 %v2239
    %3074 = vmatpush1.bf16.msra.mxu0 %v2238
    %3075 = vmatprep.subr.bf16.mxu0 %v2249
    %3076 = vmatpush1.bf16.msra.mxu0 %v2248
    %3077 = vmatprep.subr.bf16.mxu0 %v2259
    %3078 = vmatpush1.bf16.msra.mxu0 %v2258
    %3079 = vmatprep.subr.bf16.mxu0 %v2269
    %3080 = vmatpush1.bf16.msra.mxu0 %v2268
    %3081 = vmatprep.subr.bf16.mxu0 %v2279
    %3082 = vmatpush1.bf16.msra.mxu0 %v2278
    %3083 = vmatprep.mubr.bf16.mxu0 %v308
    %3084 = vmatmul.mubr.bf16.gmra.mrb[0].mxu0 %v307
    %v3085 = vpop.f32.mrb[0].mxu0
    %v3086 = vadd.f32 %v3045, %v3085
    %v3087 = vpop.f32.mrb[0].mxu0
    %v3088 = vadd.f32 %v3047, %v3087
    %v3089 = vpop.f32.mrb[0].mxu0
    %v3090 = vpop.f32.mrb[0].mxu0
    %3091 = vdwg.mxu0
    %3092 = vmatprep.subr.bf16.mxu0 %v2289
    %3093 = vmatpush1.bf16.msra.mxu0 %v2288
    %3094 = vmatprep.subr.bf16.mxu0 %v2299
    %3095 = vmatpush1.bf16.msra.mxu0 %v2298
    %3096 = vmatprep.subr.bf16.mxu0 %v2309
    %3097 = vmatpush1.bf16.msra.mxu0 %v2308
    %3098 = vmatprep.subr.bf16.mxu0 %v2319
    %3099 = vmatpush1.bf16.msra.mxu0 %v2318
    %3100 = vmatprep.subr.bf16.mxu0 %v2329
    %3101 = vmatpush1.bf16.msra.mxu0 %v2328
    %3102 = vmatprep.subr.bf16.mxu0 %v2339
    %3103 = vmatpush1.bf16.msra.mxu0 %v2338
    %3104 = vmatprep.subr.bf16.mxu0 %v2349
    %3105 = vmatpush1.bf16.msra.mxu0 %v2348
    %3106 = vmatprep.subr.bf16.mxu0 %v2359
    %3107 = vmatpush1.bf16.msra.mxu0 %v2358
    %3108 = vmatprep.subr.bf16.mxu0 0
    %3109 = vmatpush1.bf16.msra.mxu0 0
    %3110 = vmatprep.subr.bf16.mxu0 0
    %3111 = vmatpush1.bf16.msra.mxu0 0
    %3112 = vmatprep.subr.bf16.mxu0 0
    %3113 = vmatpush1.bf16.msra.mxu0 0
    %3114 = vmatprep.subr.bf16.mxu0 0
    %3115 = vmatpush1.bf16.msra.mxu0 0
    %3116 = vmatprep.subr.bf16.mxu0 0
    %3117 = vmatpush1.bf16.msra.mxu0 0
    %3118 = vmatprep.subr.bf16.mxu0 0
    %3119 = vmatpush1.bf16.msra.mxu0 0
    %3120 = vmatprep.subr.bf16.mxu0 0
    %3121 = vmatpush1.bf16.msra.mxu0 0
    %3122 = vmatprep.subr.bf16.mxu0 0
    %3123 = vmatpush1.bf16.msra.mxu0 0
    %3124 = vmatprep.mubr.bf16.mxu0 0
    %3125 = vmatmul.mubr.bf16.gmra.mrb[0].mxu0 %v309
    %v3126 = vpop.f32.mrb[0].mxu0
    %v3127 = vadd.f32 %v3086, %v3126
    %v3128 = vpop.f32.mrb[0].mxu0
    %v3129 = vadd.f32 %v3088, %v3128
    %v3130 = vpop.f32.mrb[0].mxu0
    %v3131 = vpop.f32.mrb[0].mxu0
    %3132 = vdwg.mxu0
    %3133 = vmatprep.subr.bf16.mxu0 %v1971
    %3134 = vmatpush1.bf16.msra.mxu0 %v1970
    %3135 = vmatprep.subr.bf16.mxu0 %v1981
    %3136 = vmatpush1.bf16.msra.mxu0 %v1980
    %3137 = vmatprep.subr.bf16.mxu0 %v1991
    %3138 = vmatpush1.bf16.msra.mxu0 %v1990
    %3139 = vmatprep.subr.bf16.mxu0 %v2001
    %3140 = vmatpush1.bf16.msra.mxu0 %v2000
    %3141 = vmatprep.subr.bf16.mxu0 %v2011
    %3142 = vmatpush1.bf16.msra.mxu0 %v2010
    %3143 = vmatprep.subr.bf16.mxu0 %v2021
    %3144 = vmatpush1.bf16.msra.mxu0 %v2020
    %3145 = vmatprep.subr.bf16.mxu0 %v2031
    %3146 = vmatpush1.bf16.msra.mxu0 %v2030
    %3147 = vmatprep.subr.bf16.mxu0 %v2041
    %3148 = vmatpush1.bf16.msra.mxu0 %v2040
    %3149 = vmatprep.subr.bf16.mxu0 %v2051
    %3150 = vmatpush1.bf16.msra.mxu0 %v2050
    %3151 = vmatprep.subr.bf16.mxu0 %v2061
    %3152 = vmatpush1.bf16.msra.mxu0 %v2060
    %3153 = vmatprep.subr.bf16.mxu0 %v2071
    %3154 = vmatpush1.bf16.msra.mxu0 %v2070
    %3155 = vmatprep.subr.bf16.mxu0 %v2081
    %3156 = vmatpush1.bf16.msra.mxu0 %v2080
    %3157 = vmatprep.subr.bf16.mxu0 %v2091
    %3158 = vmatpush1.bf16.msra.mxu0 %v2090
    %3159 = vmatprep.subr.bf16.mxu0 %v2101
    %3160 = vmatpush1.bf16.msra.mxu0 %v2100
    %3161 = vmatprep.subr.bf16.mxu0 %v2111
    %3162 = vmatpush1.bf16.msra.mxu0 %v2110
    %3163 = vmatprep.subr.bf16.mxu0 %v2121
    %3164 = vmatpush1.bf16.msra.mxu0 %v2120
    %3165 = vmatprep.mubr.bf16.mxu0 %v306
    %3166 = vmatmul.mubr.bf16.gmra.mrb[0].mxu0 %v305
    %v3167 = vpop.f32.mrb[0].mxu0
    %v3168 = vadd.f32 %v741, %v3167
    %v3169 = vpop.f32.mrb[0].mxu0
    %v3170 = vadd.f32 %v745, %v3169
    %v3171 = vpop.f32.mrb[0].mxu0
    %v3172 = vpop.f32.mrb[0].mxu0
    %3173 = vdwg.mxu0
    %3174 = vmatprep.subr.bf16.mxu0 %v2131
    %3175 = vmatpush1.bf16.msra.mxu0 %v2130
    %3176 = vmatprep.subr.bf16.mxu0 %v2141
    %3177 = vmatpush1.bf16.msra.mxu0 %v2140
    %3178 = vmatprep.subr.bf16.mxu0 %v2151
    %3179 = vmatpush1.bf16.msra.mxu0 %v2150
    %3180 = vmatprep.subr.bf16.mxu0 %v2161
    %3181 = vmatpush1.bf16.msra.mxu0 %v2160
    %3182 = vmatprep.subr.bf16.mxu0 %v2171
    %3183 = vmatpush1.bf16.msra.mxu0 %v2170
    %3184 = vmatprep.subr.bf16.mxu0 %v2181
    %3185 = vmatpush1.bf16.msra.mxu0 %v2180
    %3186 = vmatprep.subr.bf16.mxu0 %v2191
    %3187 = vmatpush1.bf16.msra.mxu0 %v2190
    %3188 = vmatprep.subr.bf16.mxu0 %v2201
    %3189 = vmatpush1.bf16.msra.mxu0 %v2200
    %3190 = vmatprep.subr.bf16.mxu0 %v2211
    %3191 = vmatpush1.bf16.msra.mxu0 %v2210
    %3192 = vmatprep.subr.bf16.mxu0 %v2221
    %3193 = vmatpush1.bf16.msra.mxu0 %v2220
    %3194 = vmatprep.subr.bf16.mxu0 %v2231
    %3195 = vmatpush1.bf16.msra.mxu0 %v2230
    %3196 = vmatprep.subr.bf16.mxu0 %v2241
    %3197 = vmatpush1.bf16.msra.mxu0 %v2240
    %3198 = vmatprep.subr.bf16.mxu0 %v2251
    %3199 = vmatpush1.bf16.msra.mxu0 %v2250
    %3200 = vmatprep.subr.bf16.mxu0 %v2261
    %3201 = vmatpush1.bf16.msra.mxu0 %v2260
    %3202 = vmatprep.subr.bf16.mxu0 %v2271
    %3203 = vmatpush1.bf16.msra.mxu0 %v2270
    %3204 = vmatprep.subr.bf16.mxu0 %v2281
    %3205 = vmatpush1.bf16.msra.mxu0 %v2280
    %3206 = vmatprep.mubr.bf16.mxu0 %v308
    %3207 = vmatmul.mubr.bf16.gmra.mrb[0].mxu0 %v307
    %v3208 = vpop.f32.mrb[0].mxu0
    %v3209 = vadd.f32 %v3168, %v3208
    %v3210 = vpop.f32.mrb[0].mxu0
    %v3211 = vadd.f32 %v3170, %v3210
    %v3212 = vpop.f32.mrb[0].mxu0
    %v3213 = vpop.f32.mrb[0].mxu0
    %3214 = vdwg.mxu0
    %3215 = vmatprep.subr.bf16.mxu0 %v2291
    %3216 = vmatpush1.bf16.msra.mxu0 %v2290
    %3217 = vmatprep.subr.bf16.mxu0 %v2301
    %3218 = vmatpush1.bf16.msra.mxu0 %v2300
    %3219 = vmatprep.subr.bf16.mxu0 %v2311
    %3220 = vmatpush1.bf16.msra.mxu0 %v2310
    %3221 = vmatprep.subr.bf16.mxu0 %v2321
    %3222 = vmatpush1.bf16.msra.mxu0 %v2320
    %3223 = vmatprep.subr.bf16.mxu0 %v2331
    %3224 = vmatpush1.bf16.msra.mxu0 %v2330
    %3225 = vmatprep.subr.bf16.mxu0 %v2341
    %3226 = vmatpush1.bf16.msra.mxu0 %v2340
    %3227 = vmatprep.subr.bf16.mxu0 %v2351
    %3228 = vmatpush1.bf16.msra.mxu0 %v2350
    %3229 = vmatprep.subr.bf16.mxu0 %v2361
    %3230 = vmatpush1.bf16.msra.mxu0 %v2360
    %3231 = vmatprep.subr.bf16.mxu0 0
    %3232 = vmatpush1.bf16.msra.mxu0 0
    %3233 = vmatprep.subr.bf16.mxu0 0
    %3234 = vmatpush1.bf16.msra.mxu0 0
    %3235 = vmatprep.subr.bf16.mxu0 0
    %3236 = vmatpush1.bf16.msra.mxu0 0
    %3237 = vmatprep.subr.bf16.mxu0 0
    %3238 = vmatpush1.bf16.msra.mxu0 0
    %3239 = vmatprep.subr.bf16.mxu0 0
    %3240 = vmatpush1.bf16.msra.mxu0 0
    %3241 = vmatprep.subr.bf16.mxu0 0
    %3242 = vmatpush1.bf16.msra.mxu0 0
    %3243 = vmatprep.subr.bf16.mxu0 0
    %3244 = vmatpush1.bf16.msra.mxu0 0
    %3245 = vmatprep.subr.bf16.mxu0 0
    %3246 = vmatpush1.bf16.msra.mxu0 0
    %3247 = vmatprep.mubr.bf16.mxu0 0
    %3248 = vmatmul.mubr.bf16.gmra.mrb[0].mxu0 %v309
    %v3249 = vpop.f32.mrb[0].mxu0
    %v3250 = vadd.f32 %v3209, %v3249
    %v3251 = vpop.f32.mrb[0].mxu0
    %v3252 = vadd.f32 %v3211, %v3251
    %v3253 = vpop.f32.mrb[0].mxu0
    %v3254 = vpop.f32.mrb[0].mxu0
    %3255 = vdwg.mxu0
    %3256 = vmatprep.subr.bf16.mxu0 %v1973
    %3257 = vmatpush1.bf16.msra.mxu0 %v1972
    %3258 = vmatprep.subr.bf16.mxu0 %v1983
    %3259 = vmatpush1.bf16.msra.mxu0 %v1982
    %3260 = vmatprep.subr.bf16.mxu0 %v1993
    %3261 = vmatpush1.bf16.msra.mxu0 %v1992
    %3262 = vmatprep.subr.bf16.mxu0 %v2003
    %3263 = vmatpush1.bf16.msra.mxu0 %v2002
    %3264 = vmatprep.subr.bf16.mxu0 %v2013
    %3265 = vmatpush1.bf16.msra.mxu0 %v2012
    %3266 = vmatprep.subr.bf16.mxu0 %v2023
    %3267 = vmatpush1.bf16.msra.mxu0 %v2022
    %3268 = vmatprep.subr.bf16.mxu0 %v2033
    %3269 = vmatpush1.bf16.msra.mxu0 %v2032
    %3270 = vmatprep.subr.bf16.mxu0 %v2043
    %3271 = vmatpush1.bf16.msra.mxu0 %v2042
    %3272 = vmatprep.subr.bf16.mxu0 %v2053
    %3273 = vmatpush1.bf16.msra.mxu0 %v2052
    %3274 = vmatprep.subr.bf16.mxu0 %v2063
    %3275 = vmatpush1.bf16.msra.mxu0 %v2062
    %3276 = vmatprep.subr.bf16.mxu0 %v2073
    %3277 = vmatpush1.bf16.msra.mxu0 %v2072
    %3278 = vmatprep.subr.bf16.mxu0 %v2083
    %3279 = vmatpush1.bf16.msra.mxu0 %v2082
    %3280 = vmatprep.subr.bf16.mxu0 %v2093
    %3281 = vmatpush1.bf16.msra.mxu0 %v2092
    %3282 = vmatprep.subr.bf16.mxu0 %v2103
    %3283 = vmatpush1.bf16.msra.mxu0 %v2102
    %3284 = vmatprep.subr.bf16.mxu0 %v2113
    %3285 = vmatpush1.bf16.msra.mxu0 %v2112
    %3286 = vmatprep.subr.bf16.mxu0 %v2123
    %3287 = vmatpush1.bf16.msra.mxu0 %v2122
    %3288 = vmatprep.mubr.bf16.mxu0 %v306
    %3289 = vmatmul.mubr.bf16.gmra.mrb[0].mxu0 %v305
    %v3290 = vpop.f32.mrb[0].mxu0
    %v3291 = vadd.f32 %v749, %v3290
    %v3292 = vpop.f32.mrb[0].mxu0
    %v3293 = vadd.f32 %v753, %v3292
    %v3294 = vpop.f32.mrb[0].mxu0
    %v3295 = vpop.f32.mrb[0].mxu0
    %3296 = vdwg.mxu0
    %3297 = vmatprep.subr.bf16.mxu0 %v2133
    %3298 = vmatpush1.bf16.msra.mxu0 %v2132
    %3299 = vmatprep.subr.bf16.mxu0 %v2143
    %3300 = vmatpush1.bf16.msra.mxu0 %v2142
    %3301 = vmatprep.subr.bf16.mxu0 %v2153
    %3302 = vmatpush1.bf16.msra.mxu0 %v2152
    %3303 = vmatprep.subr.bf16.mxu0 %v2163
    %3304 = vmatpush1.bf16.msra.mxu0 %v2162
    %3305 = vmatprep.subr.bf16.mxu0 %v2173
    %3306 = vmatpush1.bf16.msra.mxu0 %v2172
    %3307 = vmatprep.subr.bf16.mxu0 %v2183
    %3308 = vmatpush1.bf16.msra.mxu0 %v2182
    %3309 = vmatprep.subr.bf16.mxu0 %v2193
    %3310 = vmatpush1.bf16.msra.mxu0 %v2192
    %3311 = vmatprep.subr.bf16.mxu0 %v2203
    %3312 = vmatpush1.bf16.msra.mxu0 %v2202
    %3313 = vmatprep.subr.bf16.mxu0 %v2213
    %3314 = vmatpush1.bf16.msra.mxu0 %v2212
    %3315 = vmatprep.subr.bf16.mxu0 %v2223
    %3316 = vmatpush1.bf16.msra.mxu0 %v2222
    %3317 = vmatprep.subr.bf16.mxu0 %v2233
    %3318 = vmatpush1.bf16.msra.mxu0 %v2232
    %3319 = vmatprep.subr.bf16.mxu0 %v2243
    %3320 = vmatpush1.bf16.msra.mxu0 %v2242
    %3321 = vmatprep.subr.bf16.mxu0 %v2253
    %3322 = vmatpush1.bf16.msra.mxu0 %v2252
    %3323 = vmatprep.subr.bf16.mxu0 %v2263
    %3324 = vmatpush1.bf16.msra.mxu0 %v2262
    %3325 = vmatprep.subr.bf16.mxu0 %v2273
    %3326 = vmatpush1.bf16.msra.mxu0 %v2272
    %3327 = vmatprep.subr.bf16.mxu0 %v2283
    %3328 = vmatpush1.bf16.msra.mxu0 %v2282
    %3329 = vmatprep.mubr.bf16.mxu0 %v308
    %3330 = vmatmul.mubr.bf16.gmra.mrb[0].mxu0 %v307
    %v3331 = vpop.f32.mrb[0].mxu0
    %v3332 = vadd.f32 %v3291, %v3331
    %v3333 = vpop.f32.mrb[0].mxu0
    %v3334 = vadd.f32 %v3293, %v3333
    %v3335 = vpop.f32.mrb[0].mxu0
    %v3336 = vpop.f32.mrb[0].mxu0
    %3337 = vdwg.mxu0
    %3338 = vmatprep.subr.bf16.mxu0 %v2293
    %3339 = vmatpush1.bf16.msra.mxu0 %v2292
    %3340 = vmatprep.subr.bf16.mxu0 %v2303
    %3341 = vmatpush1.bf16.msra.mxu0 %v2302
    %3342 = vmatprep.subr.bf16.mxu0 %v2313
    %3343 = vmatpush1.bf16.msra.mxu0 %v2312
    %3344 = vmatprep.subr.bf16.mxu0 %v2323
    %3345 = vmatpush1.bf16.msra.mxu0 %v2322
    %3346 = vmatprep.subr.bf16.mxu0 %v2333
    %3347 = vmatpush1.bf16.msra.mxu0 %v2332
    %3348 = vmatprep.subr.bf16.mxu0 %v2343
    %3349 = vmatpush1.bf16.msra.mxu0 %v2342
    %3350 = vmatprep.subr.bf16.mxu0 %v2353
    %3351 = vmatpush1.bf16.msra.mxu0 %v2352
    %3352 = vmatprep.subr.bf16.mxu0 %v2363
    %3353 = vmatpush1.bf16.msra.mxu0 %v2362
    %3354 = vmatprep.subr.bf16.mxu0 0
    %3355 = vmatpush1.bf16.msra.mxu0 0
    %3356 = vmatprep.subr.bf16.mxu0 0
    %3357 = vmatpush1.bf16.msra.mxu0 0
    %3358 = vmatprep.subr.bf16.mxu0 0
    %3359 = vmatpush1.bf16.msra.mxu0 0
    %3360 = vmatprep.subr.bf16.mxu0 0
    %3361 = vmatpush1.bf16.msra.mxu0 0
    %3362 = vmatprep.subr.bf16.mxu0 0
    %3363 = vmatpush1.bf16.msra.mxu0 0
    %3364 = vmatprep.subr.bf16.mxu0 0
    %3365 = vmatpush1.bf16.msra.mxu0 0
    %3366 = vmatprep.subr.bf16.mxu0 0
    %3367 = vmatpush1.bf16.msra.mxu0 0
    %3368 = vmatprep.subr.bf16.mxu0 0
    %3369 = vmatpush1.bf16.msra.mxu0 0
    %3370 = vmatprep.mubr.bf16.mxu0 0
    %3371 = vmatmul.mubr.bf16.gmra.mrb[0].mxu0 %v309
    %v3372 = vpop.f32.mrb[0].mxu0
    %v3373 = vadd.f32 %v3332, %v3372
    %v3374 = vpop.f32.mrb[0].mxu0
    %v3375 = vadd.f32 %v3334, %v3374
    %v3376 = vpop.f32.mrb[0].mxu0
    %v3377 = vpop.f32.mrb[0].mxu0
    %3378 = vdwg.mxu0
    %v3379 = vmax.f32 %v2881, 0.0
    %v3380 = vmax.f32 %v2883, 0.0
    %v3381 = vmax.f32 %v3004, 0.0
    %v3382 = vmax.f32 %v3006, 0.0
    %v3383 = vmax.f32 %v3127, 0.0
    %v3384 = vmax.f32 %v3129, 0.0
    %v3385 = vmax.f32 %v3250, 0.0
    %v3386 = vmax.f32 %v3252, 0.0
    %v3387 = vmax.f32 %v3373, 0.0
    %v3388 = vmax.f32 %v3375, 0.0
    %v3389 = vpack.c.bf16 %v3379, %v3379
    %v3390 = vpack.c.bf16 %v3380, %v3380
    %v3391 = vpack.c.bf16 %v3381, %v3381
    %v3392 = vpack.c.bf16 %v3382, %v3382
    %v3393 = vpack.c.bf16 %v3383, %v3383
    %v3394 = vpack.c.bf16 %v3384, %v3384
    %v3395 = vpack.c.bf16 %v3385, %v3385
    %v3396 = vld [vmem:[%s5] sm:$0xff]
    %v3397 = vld [vmem:[%s5 + $0x8] sm:$0xff]
    %v3398 = vld [vmem:[%s5 + $0x10] sm:$0xff]
    %v3399 = vld [vmem:[%s5 + $0x18] sm:$0xff]
    %v3400 = vld [vmem:[%s5 + $0x20] sm:$0xff]
    %v3401 = vld [vmem:[%s5 + $0x28] sm:$0xff]
    %v3402 = vld [vmem:[%s5 + $0x30] sm:$0xff]
    %v3403 = vld [vmem:[%s5 + $0x38] sm:$0xff]
    %v3404 = vld [vmem:[%s5 + $0x40] sm:$0xff]
    %v3405 = vld [vmem:[%s5 + $0x48] sm:$0xff]
    %v3406 = vld [vmem:[%s5 + $0x50] sm:$0xff]
    %v3407 = vld [vmem:[%s5 + $0x58] sm:$0xff]
    %v3408 = vld [vmem:[%s5 + $0x60] sm:$0xff]
    %v3409 = vld [vmem:[%s5 + $0x68] sm:$0xff]
    %v3410 = vld [vmem:[%s5 + $0x70] sm:$0xff]
    %v3411 = vld [vmem:[%s5 + $0x78] sm:$0xff]
    %v3412 = vld [vmem:[%s5 + $0x80] sm:$0xff]
    %v3413 = vld [vmem:[%s5 + $0x88] sm:$0xff]
    %v3414 = vld [vmem:[%s5 + $0x90] sm:$0xff]
    %v3415 = vld [vmem:[%s5 + $0x98] sm:$0xff]
    %v3416 = vld [vmem:[%s5 + $0xa0] sm:$0xff]
    %v3417 = vld [vmem:[%s5 + $0xa8] sm:$0xff]
    %v3418 = vld [vmem:[%s5 + $0xb0] sm:$0xff]
    %v3419 = vld [vmem:[%s5 + $0xb8] sm:$0xff]
    %v3420 = vld [vmem:[%s5 + $0xc0] sm:$0xff]
    %v3421 = vld [vmem:[%s5 + $0xc8] sm:$0xff]
    %v3422 = vld [vmem:[%s5 + $0xd0] sm:$0xff]
    %v3423 = vld [vmem:[%s5 + $0xd8] sm:$0xff]
    %v3424 = vld [vmem:[%s5 + $0xe0] sm:$0xff]
    %v3425 = vld [vmem:[%s5 + $0xe8] sm:$0xff]
    %v3426 = vld [vmem:[%s5 + $0xf0] sm:$0xff]
    %v3427 = vld [vmem:[%s5 + $0xf8] sm:$0xff]
    %v3428 = vld [vmem:[%s5 + $0x100] sm:$0xff]
    %v3429 = vld [vmem:[%s5 + $0x108] sm:$0xff]
    %v3430 = vld [vmem:[%s5 + $0x110] sm:$0xff]
    %v3431 = vld [vmem:[%s5 + $0x118] sm:$0xff]
    %v3432 = vld [vmem:[%s5 + $0x120] sm:$0xff]
    %v3433 = vld [vmem:[%s5 + $0x128] sm:$0xff]
    %v3434 = vld [vmem:[%s5 + $0x130] sm:$0xff]
    %v3435 = vld [vmem:[%s5 + $0x138] sm:$0xff]
    %v3436 = vld [vmem:[%s5 + $0x140] sm:$0xff]
    %v3437 = vld [vmem:[%s5 + $0x148] sm:$0xff]
    %v3438 = vld [vmem:[%s5 + $0x150] sm:$0xff]
    %v3439 = vld [vmem:[%s5 + $0x158] sm:$0xff]
    %v3440 = vld [vmem:[%s5 + $0x160] sm:$0xff]
    %v3441 = vld [vmem:[%s5 + $0x168] sm:$0xff]
    %v3442 = vld [vmem:[%s5 + $0x170] sm:$0xff]
    %v3443 = vld [vmem:[%s5 + $0x178] sm:$0xff]
    %v3444 = vld [vmem:[%s5 + $0x180] sm:$0xff]
    %v3445 = vld [vmem:[%s5 + $0x188] sm:$0xff]
    %v3446 = vld [vmem:[%s5 + $0x190] sm:$0xff]
    %v3447 = vld [vmem:[%s5 + $0x198] sm:$0xff]
    %v3448 = vld [vmem:[%s5 + $0x1a0] sm:$0xff]
    %v3449 = vld [vmem:[%s5 + $0x1a8] sm:$0xff]
    %v3450 = vld [vmem:[%s5 + $0x1b0] sm:$0xff]
    %v3451 = vld [vmem:[%s5 + $0x1b8] sm:$0xff]
    %v3452 = vld [vmem:[%s5 + $0x1c0] sm:$0xff]
    %v3453 = vld [vmem:[%s5 + $0x1c8] sm:$0xff]
    %v3454 = vld [vmem:[%s5 + $0x1d0] sm:$0xff]
    %v3455 = vld [vmem:[%s5 + $0x1d8] sm:$0xff]
    %v3456 = vld [vmem:[%s5 + $0x1e0] sm:$0xff]
    %v3457 = vld [vmem:[%s5 + $0x1e8] sm:$0xff]
    %v3458 = vld [vmem:[%s5 + $0x1f0] sm:$0xff]
    %v3459 = vld [vmem:[%s5 + $0x1f8] sm:$0xff]
    %v3460 = vld [vmem:[%s5 + $0x200] sm:$0xff]
    %v3461 = vld [vmem:[%s5 + $0x208] sm:$0xff]
    %v3462 = vld [vmem:[%s5 + $0x210] sm:$0xff]
    %v3463 = vld [vmem:[%s5 + $0x218] sm:$0xff]
    %v3464 = vld [vmem:[%s5 + $0x220] sm:$0xff]
    %v3465 = vld [vmem:[%s5 + $0x228] sm:$0xff]
    %v3466 = vld [vmem:[%s5 + $0x230] sm:$0xff]
    %v3467 = vld [vmem:[%s5 + $0x238] sm:$0xff]
    %v3468 = vld [vmem:[%s5 + $0x240] sm:$0xff]
    %v3469 = vld [vmem:[%s5 + $0x248] sm:$0xff]
    %v3470 = vld [vmem:[%s5 + $0x250] sm:$0xff]
    %v3471 = vld [vmem:[%s5 + $0x258] sm:$0xff]
    %v3472 = vld [vmem:[%s5 + $0x260] sm:$0xff]
    %v3473 = vld [vmem:[%s5 + $0x268] sm:$0xff]
    %v3474 = vld [vmem:[%s5 + $0x270] sm:$0xff]
    %v3475 = vld [vmem:[%s5 + $0x278] sm:$0xff]
    %v3476 = vld [vmem:[%s5 + $0x280] sm:$0xff]
    %v3477 = vld [vmem:[%s5 + $0x288] sm:$0xff]
    %v3478 = vld [vmem:[%s5 + $0x290] sm:$0xff]
    %v3479 = vld [vmem:[%s5 + $0x298] sm:$0xff]
    %v3480 = vld [vmem:[%s5 + $0x2a0] sm:$0xff]
    %v3481 = vld [vmem:[%s5 + $0x2a8] sm:$0xff]
    %v3482 = vld [vmem:[%s5 + $0x2b0] sm:$0xff]
    %v3483 = vld [vmem:[%s5 + $0x2b8] sm:$0xff]
    %v3484 = vld [vmem:[%s5 + $0x2c0] sm:$0xff]
    %v3485 = vld [vmem:[%s5 + $0x2c8] sm:$0xff]
    %v3486 = vld [vmem:[%s5 + $0x2d0] sm:$0xff]
    %v3487 = vld [vmem:[%s5 + $0x2d8] sm:$0xff]
    %v3488 = vld [vmem:[%s5 + $0x2e0] sm:$0xff]
    %v3489 = vld [vmem:[%s5 + $0x2e8] sm:$0xff]
    %v3490 = vld [vmem:[%s5 + $0x2f0] sm:$0xff]
    %v3491 = vld [vmem:[%s5 + $0x2f8] sm:$0xff]
    %v3492 = vld [vmem:[%s5 + $0x300] sm:$0xff]
    %v3493 = vld [vmem:[%s5 + $0x308] sm:$0xff]
    %v3494 = vld [vmem:[%s5 + $0x310] sm:$0xff]
    %v3495 = vld [vmem:[%s5 + $0x318] sm:$0xff]
    %v3496 = vld [vmem:[%s5 + $0x320] sm:$0xff]
    %v3497 = vld [vmem:[%s5 + $0x328] sm:$0xff]
    %v3498 = vld [vmem:[%s5 + $0x330] sm:$0xff]
    %v3499 = vld [vmem:[%s5 + $0x338] sm:$0xff]
    %v3500 = vld [vmem:[%s5 + $0x340] sm:$0xff]
    %v3501 = vld [vmem:[%s5 + $0x348] sm:$0xff]
    %v3502 = vld [vmem:[%s5 + $0x350] sm:$0xff]
    %v3503 = vld [vmem:[%s5 + $0x358] sm:$0xff]
    %v3504 = vld [vmem:[%s5 + $0x360] sm:$0xff]
    %v3505 = vld [vmem:[%s5 + $0x368] sm:$0xff]
    %v3506 = vld [vmem:[%s5 + $0x370] sm:$0xff]
    %v3507 = vld [vmem:[%s5 + $0x378] sm:$0xff]
    %v3508 = vld [vmem:[%s5 + $0x380] sm:$0xff]
    %v3509 = vld [vmem:[%s5 + $0x388] sm:$0xff]
    %v3510 = vld [vmem:[%s5 + $0x390] sm:$0xff]
    %v3511 = vld [vmem:[%s5 + $0x398] sm:$0xff]
    %v3512 = vld [vmem:[%s5 + $0x3a0] sm:$0xff]
    %v3513 = vld [vmem:[%s5 + $0x3a8] sm:$0xff]
    %v3514 = vld [vmem:[%s5 + $0x3b0] sm:$0xff]
    %v3515 = vld [vmem:[%s5 + $0x3b8] sm:$0xff]
    %v3516 = vld [vmem:[%s5 + $0x3c0] sm:$0xff]
    %v3517 = vld [vmem:[%s5 + $0x3c8] sm:$0xff]
    %v3518 = vld [vmem:[%s5 + $0x3d0] sm:$0xff]
    %v3519 = vld [vmem:[%s5 + $0x3d8] sm:$0xff]
    %v3520 = vld [vmem:[%s5 + $0x3e0] sm:$0xff]
    %v3521 = vld [vmem:[%s5 + $0x3e8] sm:$0xff]
    %v3522 = vld [vmem:[%s5 + $0x3f0] sm:$0xff]
    %v3523 = vld [vmem:[%s5 + $0x3f8] sm:$0xff]
    %v3524 = vld [vmem:[%s5 + $0x400] sm:$0xff]
    %v3525 = vld [vmem:[%s5 + $0x408] sm:$0xff]
    %v3526 = vld [vmem:[%s5 + $0x410] sm:$0xff]
    %v3527 = vld [vmem:[%s5 + $0x418] sm:$0xff]
    %v3528 = vld [vmem:[%s5 + $0x420] sm:$0xff]
    %v3529 = vld [vmem:[%s5 + $0x428] sm:$0xff]
    %v3530 = vld [vmem:[%s5 + $0x430] sm:$0xff]
    %v3531 = vld [vmem:[%s5 + $0x438] sm:$0xff]
    %v3532 = vld [vmem:[%s5 + $0x440] sm:$0xff]
    %v3533 = vld [vmem:[%s5 + $0x448] sm:$0xff]
    %v3534 = vld [vmem:[%s5 + $0x450] sm:$0xff]
    %v3535 = vld [vmem:[%s5 + $0x458] sm:$0xff]
    %v3536 = vld [vmem:[%s5 + $0x460] sm:$0xff]
    %v3537 = vld [vmem:[%s5 + $0x468] sm:$0xff]
    %v3538 = vld [vmem:[%s5 + $0x470] sm:$0xff]
    %v3539 = vld [vmem:[%s5 + $0x478] sm:$0xff]
    %v3540 = vld [vmem:[%s5 + $0x480] sm:$0xff]
    %v3541 = vld [vmem:[%s5 + $0x488] sm:$0xff]
    %v3542 = vld [vmem:[%s5 + $0x490] sm:$0xff]
    %v3543 = vld [vmem:[%s5 + $0x498] sm:$0xff]
    %v3544 = vld [vmem:[%s5 + $0x4a0] sm:$0xff]
    %v3545 = vld [vmem:[%s5 + $0x4a8] sm:$0xff]
    %v3546 = vld [vmem:[%s5 + $0x4b0] sm:$0xff]
    %v3547 = vld [vmem:[%s5 + $0x4b8] sm:$0xff]
    %v3548 = vld [vmem:[%s5 + $0x4c0] sm:$0xff]
    %v3549 = vld [vmem:[%s5 + $0x4c8] sm:$0xff]
    %v3550 = vld [vmem:[%s5 + $0x4d0] sm:$0xff]
    %v3551 = vld [vmem:[%s5 + $0x4d8] sm:$0xff]
    %v3552 = vld [vmem:[%s5 + $0x4e0] sm:$0xff]
    %v3553 = vld [vmem:[%s5 + $0x4e8] sm:$0xff]
    %v3554 = vld [vmem:[%s5 + $0x4f0] sm:$0xff]
    %v3555 = vld [vmem:[%s5 + $0x4f8] sm:$0xff]
    %v3556 = vld [vmem:[%s5 + $0x500] sm:$0xff]
    %v3557 = vld [vmem:[%s5 + $0x508] sm:$0xff]
    %v3558 = vld [vmem:[%s5 + $0x510] sm:$0xff]
    %v3559 = vld [vmem:[%s5 + $0x518] sm:$0xff]
    %v3560 = vld [vmem:[%s5 + $0x520] sm:$0xff]
    %v3561 = vld [vmem:[%s5 + $0x528] sm:$0xff]
    %v3562 = vld [vmem:[%s5 + $0x530] sm:$0xff]
    %v3563 = vld [vmem:[%s5 + $0x538] sm:$0xff]
    %v3564 = vld [vmem:[%s5 + $0x540] sm:$0xff]
    %v3565 = vld [vmem:[%s5 + $0x548] sm:$0xff]
    %v3566 = vld [vmem:[%s5 + $0x550] sm:$0xff]
    %v3567 = vld [vmem:[%s5 + $0x558] sm:$0xff]
    %v3568 = vld [vmem:[%s5 + $0x560] sm:$0xff]
    %v3569 = vld [vmem:[%s5 + $0x568] sm:$0xff]
    %v3570 = vld [vmem:[%s5 + $0x570] sm:$0xff]
    %v3571 = vld [vmem:[%s5 + $0x578] sm:$0xff]
    %v3572 = vld [vmem:[%s5 + $0x580] sm:$0xff]
    %v3573 = vld [vmem:[%s5 + $0x588] sm:$0xff]
    %v3574 = vld [vmem:[%s5 + $0x590] sm:$0xff]
    %v3575 = vld [vmem:[%s5 + $0x598] sm:$0xff]
    %v3576 = vld [vmem:[%s5 + $0x5a0] sm:$0xff]
    %v3577 = vld [vmem:[%s5 + $0x5a8] sm:$0xff]
    %v3578 = vld [vmem:[%s5 + $0x5b0] sm:$0xff]
    %v3579 = vld [vmem:[%s5 + $0x5b8] sm:$0xff]
    %v3580 = vld [vmem:[%s5 + $0x5c0] sm:$0xff]
    %v3581 = vld [vmem:[%s5 + $0x5c8] sm:$0xff]
    %v3582 = vld [vmem:[%s5 + $0x5d0] sm:$0xff]
    %v3583 = vld [vmem:[%s5 + $0x5d8] sm:$0xff]
    %v3584 = vld [vmem:[%s5 + $0x5e0] sm:$0xff]
    %v3585 = vld [vmem:[%s5 + $0x5e8] sm:$0xff]
    %v3586 = vld [vmem:[%s5 + $0x5f0] sm:$0xff]
    %v3587 = vld [vmem:[%s5 + $0x5f8] sm:$0xff]
    %v3588 = vld [vmem:[%s5 + $0x600] sm:$0xff]
    %v3589 = vld [vmem:[%s5 + $0x608] sm:$0xff]
    %v3590 = vld [vmem:[%s5 + $0x610] sm:$0xff]
    %v3591 = vld [vmem:[%s5 + $0x618] sm:$0xff]
    %v3592 = vld [vmem:[%s5 + $0x620] sm:$0xff]
    %v3593 = vld [vmem:[%s5 + $0x628] sm:$0xff]
    %v3594 = vld [vmem:[%s5 + $0x630] sm:$0xff]
    %v3595 = vld [vmem:[%s5 + $0x638] sm:$0xff]
    %v3596 = vld [vmem:[%s5 + $0x640] sm:$0xff]
    %v3597 = vld [vmem:[%s5 + $0x648] sm:$0xff]
    %v3598 = vld [vmem:[%s5 + $0x650] sm:$0xff]
    %v3599 = vld [vmem:[%s5 + $0x658] sm:$0xff]
    %v3600 = vld [vmem:[%s5 + $0x660] sm:$0xff]
    %v3601 = vld [vmem:[%s5 + $0x668] sm:$0xff]
    %v3602 = vld [vmem:[%s5 + $0x670] sm:$0xff]
    %v3603 = vld [vmem:[%s5 + $0x678] sm:$0xff]
    %v3604 = vld [vmem:[%s5 + $0x680] sm:$0xff]
    %v3605 = vld [vmem:[%s5 + $0x688] sm:$0xff]
    %v3606 = vld [vmem:[%s5 + $0x690] sm:$0xff]
    %v3607 = vld [vmem:[%s5 + $0x698] sm:$0xff]
    %v3608 = vld [vmem:[%s5 + $0x6a0] sm:$0xff]
    %v3609 = vld [vmem:[%s5 + $0x6a8] sm:$0xff]
    %v3610 = vld [vmem:[%s5 + $0x6b0] sm:$0xff]
    %v3611 = vld [vmem:[%s5 + $0x6b8] sm:$0xff]
    %v3612 = vld [vmem:[%s5 + $0x6c0] sm:$0xff]
    %v3613 = vld [vmem:[%s5 + $0x6c8] sm:$0xff]
    %v3614 = vld [vmem:[%s5 + $0x6d0] sm:$0xff]
    %v3615 = vld [vmem:[%s5 + $0x6d8] sm:$0xff]
    %v3616 = vld [vmem:[%s5 + $0x6e0] sm:$0xff]
    %v3617 = vld [vmem:[%s5 + $0x6e8] sm:$0xff]
    %v3618 = vld [vmem:[%s5 + $0x6f0] sm:$0xff]
    %v3619 = vld [vmem:[%s5 + $0x6f8] sm:$0xff]
    %v3620 = vld [vmem:[%s5 + $0x700] sm:$0xff]
    %v3621 = vld [vmem:[%s5 + $0x708] sm:$0xff]
    %v3622 = vld [vmem:[%s5 + $0x710] sm:$0xff]
    %v3623 = vld [vmem:[%s5 + $0x718] sm:$0xff]
    %v3624 = vld [vmem:[%s5 + $0x720] sm:$0xff]
    %v3625 = vld [vmem:[%s5 + $0x728] sm:$0xff]
    %v3626 = vld [vmem:[%s5 + $0x730] sm:$0xff]
    %v3627 = vld [vmem:[%s5 + $0x738] sm:$0xff]
    %v3628 = vld [vmem:[%s5 + $0x740] sm:$0xff]
    %v3629 = vld [vmem:[%s5 + $0x748] sm:$0xff]
    %v3630 = vld [vmem:[%s5 + $0x750] sm:$0xff]
    %v3631 = vld [vmem:[%s5 + $0x758] sm:$0xff]
    %v3632 = vld [vmem:[%s5 + $0x760] sm:$0xff]
    %v3633 = vld [vmem:[%s5 + $0x768] sm:$0xff]
    %v3634 = vld [vmem:[%s5 + $0x770] sm:$0xff]
    %v3635 = vld [vmem:[%s5 + $0x778] sm:$0xff]
    %v3636 = vld [vmem:[%s5 + $0x780] sm:$0xff]
    %v3637 = vld [vmem:[%s5 + $0x788] sm:$0xff]
    %v3638 = vld [vmem:[%s5 + $0x790] sm:$0xff]
    %v3639 = vld [vmem:[%s5 + $0x798] sm:$0xff]
    %v3640 = vld [vmem:[%s5 + $0x7a0] sm:$0xff]
    %v3641 = vld [vmem:[%s5 + $0x7a8] sm:$0xff]
    %v3642 = vld [vmem:[%s5 + $0x7b0] sm:$0xff]
    %v3643 = vld [vmem:[%s5 + $0x7b8] sm:$0xff]
    %v3644 = vld [vmem:[%s5 + $0x7c0] sm:$0xff]
    %v3645 = vld [vmem:[%s5 + $0x7c8] sm:$0xff]
    %v3646 = vld [vmem:[%s5 + $0x7d0] sm:$0xff]
    %v3647 = vld [vmem:[%s5 + $0x7d8] sm:$0xff]
    %v3648 = vld [vmem:[%s5 + $0x7e0] sm:$0xff]
    %v3649 = vld [vmem:[%s5 + $0x7e8] sm:$0xff]
    %v3650 = vld [vmem:[%s5 + $0x7f0] sm:$0xff]
    %v3651 = vld [vmem:[%s5 + $0x7f8] sm:$0xff]
    %v3652 = vld [vmem:[%s5 + $0x800] sm:$0xff]
    %v3653 = vld [vmem:[%s5 + $0x808] sm:$0xff]
    %v3654 = vld [vmem:[%s5 + $0x810] sm:$0xff]
    %v3655 = vld [vmem:[%s5 + $0x818] sm:$0xff]
    %v3656 = vld [vmem:[%s5 + $0x820] sm:$0xff]
    %v3657 = vld [vmem:[%s5 + $0x828] sm:$0xff]
    %v3658 = vld [vmem:[%s5 + $0x830] sm:$0xff]
    %v3659 = vld [vmem:[%s5 + $0x838] sm:$0xff]
    %v3660 = vld [vmem:[%s5 + $0x840] sm:$0xff]
    %v3661 = vld [vmem:[%s5 + $0x848] sm:$0xff]
    %v3662 = vld [vmem:[%s5 + $0x850] sm:$0xff]
    %v3663 = vld [vmem:[%s5 + $0x858] sm:$0xff]
    %v3664 = vld [vmem:[%s5 + $0x860] sm:$0xff]
    %v3665 = vld [vmem:[%s5 + $0x868] sm:$0xff]
    %v3666 = vld [vmem:[%s5 + $0x870] sm:$0xff]
    %v3667 = vld [vmem:[%s5 + $0x878] sm:$0xff]
    %v3668 = vld [vmem:[%s5 + $0x880] sm:$0xff]
    %v3669 = vld [vmem:[%s5 + $0x888] sm:$0xff]
    %v3670 = vld [vmem:[%s5 + $0x890] sm:$0xff]
    %v3671 = vld [vmem:[%s5 + $0x898] sm:$0xff]
    %v3672 = vld [vmem:[%s5 + $0x8a0] sm:$0xff]
    %v3673 = vld [vmem:[%s5 + $0x8a8] sm:$0xff]
    %v3674 = vld [vmem:[%s5 + $0x8b0] sm:$0xff]
    %v3675 = vld [vmem:[%s5 + $0x8b8] sm:$0xff]
    %v3676 = vld [vmem:[%s5 + $0x8c0] sm:$0xff]
    %v3677 = vld [vmem:[%s5 + $0x8c8] sm:$0xff]
    %v3678 = vld [vmem:[%s5 + $0x8d0] sm:$0xff]
    %v3679 = vld [vmem:[%s5 + $0x8d8] sm:$0xff]
    %v3680 = vld [vmem:[%s5 + $0x8e0] sm:$0xff]
    %v3681 = vld [vmem:[%s5 + $0x8e8] sm:$0xff]
    %v3682 = vld [vmem:[%s5 + $0x8f0] sm:$0xff]
    %v3683 = vld [vmem:[%s5 + $0x8f8] sm:$0xff]
    %v3684 = vld [vmem:[%s5 + $0x900] sm:$0xff]
    %v3685 = vld [vmem:[%s5 + $0x908] sm:$0xff]
    %v3686 = vld [vmem:[%s5 + $0x910] sm:$0xff]
    %v3687 = vld [vmem:[%s5 + $0x918] sm:$0xff]
    %v3688 = vld [vmem:[%s5 + $0x920] sm:$0xff]
    %v3689 = vld [vmem:[%s5 + $0x928] sm:$0xff]
    %v3690 = vld [vmem:[%s5 + $0x930] sm:$0xff]
    %v3691 = vld [vmem:[%s5 + $0x938] sm:$0xff]
    %v3692 = vld [vmem:[%s5 + $0x940] sm:$0xff]
    %v3693 = vld [vmem:[%s5 + $0x948] sm:$0xff]
    %v3694 = vld [vmem:[%s5 + $0x950] sm:$0xff]
    %v3695 = vld [vmem:[%s5 + $0x958] sm:$0xff]
    %v3696 = vld [vmem:[%s5 + $0x960] sm:$0xff]
    %v3697 = vld [vmem:[%s5 + $0x968] sm:$0xff]
    %v3698 = vld [vmem:[%s5 + $0x970] sm:$0xff]
    %v3699 = vld [vmem:[%s5 + $0x978] sm:$0xff]
    %v3700 = vld [vmem:[%s5 + $0x980] sm:$0xff]
    %v3701 = vld [vmem:[%s5 + $0x988] sm:$0xff]
    %v3702 = vld [vmem:[%s5 + $0x990] sm:$0xff]
    %v3703 = vld [vmem:[%s5 + $0x998] sm:$0xff]
    %v3704 = vld [vmem:[%s5 + $0x9a0] sm:$0xff]
    %v3705 = vld [vmem:[%s5 + $0x9a8] sm:$0xff]
    %v3706 = vld [vmem:[%s5 + $0x9b0] sm:$0xff]
    %v3707 = vld [vmem:[%s5 + $0x9b8] sm:$0xff]
    %v3708 = vld [vmem:[%s5 + $0x9c0] sm:$0xff]
    %v3709 = vld [vmem:[%s5 + $0x9c8] sm:$0xff]
    %v3710 = vld [vmem:[%s5 + $0x9d0] sm:$0xff]
    %v3711 = vld [vmem:[%s5 + $0x9d8] sm:$0xff]
    %v3712 = vld [vmem:[%s5 + $0x9e0] sm:$0xff]
    %v3713 = vld [vmem:[%s5 + $0x9e8] sm:$0xff]
    %v3714 = vld [vmem:[%s5 + $0x9f0] sm:$0xff]
    %v3715 = vld [vmem:[%s5 + $0x9f8] sm:$0xff]
    %v3716 = vld [vmem:[%s5 + $0xa00] sm:$0xff]
    %v3717 = vld [vmem:[%s5 + $0xa08] sm:$0xff]
    %v3718 = vld [vmem:[%s5 + $0xa10] sm:$0xff]
    %v3719 = vld [vmem:[%s5 + $0xa18] sm:$0xff]
    %v3720 = vld [vmem:[%s5 + $0xa20] sm:$0xff]
    %v3721 = vld [vmem:[%s5 + $0xa28] sm:$0xff]
    %v3722 = vld [vmem:[%s5 + $0xa30] sm:$0xff]
    %v3723 = vld [vmem:[%s5 + $0xa38] sm:$0xff]
    %v3724 = vld [vmem:[%s5 + $0xa40] sm:$0xff]
    %v3725 = vld [vmem:[%s5 + $0xa48] sm:$0xff]
    %v3726 = vld [vmem:[%s5 + $0xa50] sm:$0xff]
    %v3727 = vld [vmem:[%s5 + $0xa58] sm:$0xff]
    %v3728 = vld [vmem:[%s5 + $0xa60] sm:$0xff]
    %v3729 = vld [vmem:[%s5 + $0xa68] sm:$0xff]
    %v3730 = vld [vmem:[%s5 + $0xa70] sm:$0xff]
    %v3731 = vld [vmem:[%s5 + $0xa78] sm:$0xff]
    %v3732 = vld [vmem:[#allocation10] sm:$0x3f]
    %v3734 = vlaneseq
    %v3735 = vshrl.u32 %v3734, 7
    %v3736 = vsub.s32 0, %v3735
    %v3737 = vrot.slane %v3732, %v3736
    %v3738 = vlaneseq
    %v3739 = vshrl.u32 %v3738, 7
    %v3740 = vsub.s32 1, %v3739
    %v3741 = vrot.slane %v3732, %v3740
    %v3742 = vlaneseq
    %v3743 = vshrl.u32 %v3742, 7
    %v3744 = vsub.s32 2, %v3743
    %v3745 = vrot.slane %v3732, %v3744
    %v3746 = vlaneseq
    %v3747 = vshrl.u32 %v3746, 7
    %v3748 = vsub.s32 3, %v3747
    %v3749 = vrot.slane %v3732, %v3748
    %v3750 = vlaneseq
    %v3751 = vshrl.u32 %v3750, 7
    %v3752 = vsub.s32 4, %v3751
    %v3753 = vrot.slane %v3732, %v3752
    %v3754 = vlaneseq
    %v3755 = vshrl.u32 %v3754, 7
    %v3756 = vsub.s32 5, %v3755
    %v3757 = vrot.slane %v3732, %v3756
    %v4100 = vunpack.c.l.b16 %v3396
    %v4101 = vunpack.c.h.b16 %v3396
    %v4102 = vunpack.c.l.b16 %v3397
    %v4103 = vunpack.c.h.b16 %v3397
    %v4104 = vunpack.c.l.b16 %v3398
    %v4105 = vunpack.c.h.b16 %v3398
    %v4106 = vunpack.c.l.b16 %v3399
    %v4107 = vunpack.c.h.b16 %v3399
    %v4108 = vunpack.c.l.b16 %v3400
    %v4109 = vunpack.c.h.b16 %v3400
    %v4110 = vunpack.c.l.b16 %v3401
    %v4111 = vunpack.c.h.b16 %v3401
    %v4112 = vunpack.c.l.b16 %v3402
    %v4113 = vunpack.c.h.b16 %v3402
    %v4114 = vunpack.c.l.b16 %v3403
    %v4115 = vunpack.c.h.b16 %v3403
    %v4116 = vunpack.c.l.b16 %v3404
    %v4117 = vunpack.c.h.b16 %v3404
    %v4118 = vunpack.c.l.b16 %v3405
    %v4119 = vunpack.c.h.b16 %v3405
    %v4120 = vunpack.c.l.b16 %v3406
    %v4121 = vunpack.c.h.b16 %v3406
    %v4122 = vunpack.c.l.b16 %v3407
    %v4123 = vunpack.c.h.b16 %v3407
    %v4124 = vunpack.c.l.b16 %v3408
    %v4125 = vunpack.c.h.b16 %v3408
    %v4126 = vunpack.c.l.b16 %v3409
    %v4127 = vunpack.c.h.b16 %v3409
    %v4128 = vunpack.c.l.b16 %v3410
    %v4129 = vunpack.c.h.b16 %v3410
    %v4130 = vunpack.c.l.b16 %v3411
    %v4131 = vunpack.c.h.b16 %v3411
    %v4132 = vunpack.c.l.b16 %v3412
    %v4133 = vunpack.c.h.b16 %v3412
    %v4134 = vunpack.c.l.b16 %v3413
    %v4135 = vunpack.c.h.b16 %v3413
    %v4136 = vunpack.c.l.b16 %v3414
    %v4137 = vunpack.c.h.b16 %v3414
    %v4138 = vunpack.c.l.b16 %v3415
    %v4139 = vunpack.c.h.b16 %v3415
    %v4140 = vunpack.c.l.b16 %v3416
    %v4141 = vunpack.c.h.b16 %v3416
    %v4142 = vunpack.c.l.b16 %v3417
    %v4143 = vunpack.c.h.b16 %v3417
    %v4144 = vunpack.c.l.b16 %v3418
    %v4145 = vunpack.c.h.b16 %v3418
    %v4146 = vunpack.c.l.b16 %v3419
    %v4147 = vunpack.c.h.b16 %v3419
    %v4148 = vunpack.c.l.b16 %v3420
    %v4149 = vunpack.c.h.b16 %v3420
    %v4150 = vunpack.c.l.b16 %v3421
    %v4151 = vunpack.c.h.b16 %v3421
    %v4152 = vunpack.c.l.b16 %v3422
    %v4153 = vunpack.c.h.b16 %v3422
    %v4154 = vunpack.c.l.b16 %v3423
    %v4155 = vunpack.c.h.b16 %v3423
    %v4156 = vunpack.c.l.b16 %v3424
    %v4157 = vunpack.c.h.b16 %v3424
    %v4158 = vunpack.c.l.b16 %v3425
    %v4159 = vunpack.c.h.b16 %v3425
    %v4160 = vunpack.c.l.b16 %v3426
    %v4161 = vunpack.c.h.b16 %v3426
    %v4162 = vunpack.c.l.b16 %v3427
    %v4163 = vunpack.c.h.b16 %v3427
    %v4164 = vunpack.c.l.b16 %v3428
    %v4165 = vunpack.c.h.b16 %v3428
    %v4166 = vunpack.c.l.b16 %v3429
    %v4167 = vunpack.c.h.b16 %v3429
    %v4168 = vunpack.c.l.b16 %v3430
    %v4169 = vunpack.c.h.b16 %v3430
    %v4170 = vunpack.c.l.b16 %v3431
    %v4171 = vunpack.c.h.b16 %v3431
    %v4172 = vunpack.c.l.b16 %v3432
    %v4173 = vunpack.c.h.b16 %v3432
    %v4174 = vunpack.c.l.b16 %v3433
    %v4175 = vunpack.c.h.b16 %v3433
    %v4176 = vunpack.c.l.b16 %v3434
    %v4177 = vunpack.c.h.b16 %v3434
    %v4178 = vunpack.c.l.b16 %v3435
    %v4179 = vunpack.c.h.b16 %v3435
    %v4180 = vunpack.c.l.b16 %v3436
    %v4181 = vunpack.c.h.b16 %v3436
    %v4182 = vunpack.c.l.b16 %v3437
    %v4183 = vunpack.c.h.b16 %v3437
    %v4184 = vunpack.c.l.b16 %v3438
    %v4185 = vunpack.c.h.b16 %v3438
    %v4186 = vunpack.c.l.b16 %v3439
    %v4187 = vunpack.c.h.b16 %v3439
    %v4188 = vunpack.c.l.b16 %v3440
    %v4189 = vunpack.c.h.b16 %v3440
    %v4190 = vunpack.c.l.b16 %v3441
    %v4191 = vunpack.c.h.b16 %v3441
    %v4192 = vunpack.c.l.b16 %v3442
    %v4193 = vunpack.c.h.b16 %v3442
    %v4194 = vunpack.c.l.b16 %v3443
    %v4195 = vunpack.c.h.b16 %v3443
    %v4196 = vunpack.c.l.b16 %v3444
    %v4197 = vunpack.c.h.b16 %v3444
    %v4198 = vunpack.c.l.b16 %v3445
    %v4199 = vunpack.c.h.b16 %v3445
    %v4200 = vunpack.c.l.b16 %v3446
    %v4201 = vunpack.c.h.b16 %v3446
    %v4202 = vunpack.c.l.b16 %v3447
    %v4203 = vunpack.c.h.b16 %v3447
    %v4204 = vunpack.c.l.b16 %v3448
    %v4205 = vunpack.c.h.b16 %v3448
    %v4206 = vunpack.c.l.b16 %v3449
    %v4207 = vunpack.c.h.b16 %v3449
    %v4208 = vunpack.c.l.b16 %v3450
    %v4209 = vunpack.c.h.b16 %v3450
    %v4210 = vunpack.c.l.b16 %v3451
    %v4211 = vunpack.c.h.b16 %v3451
    %v4212 = vunpack.c.l.b16 %v3452
    %v4213 = vunpack.c.h.b16 %v3452
    %v4214 = vunpack.c.l.b16 %v3453
    %v4215 = vunpack.c.h.b16 %v3453
    %v4216 = vunpack.c.l.b16 %v3454
    %v4217 = vunpack.c.h.b16 %v3454
    %v4218 = vunpack.c.l.b16 %v3455
    %v4219 = vunpack.c.h.b16 %v3455
    %v4220 = vunpack.c.l.b16 %v3456
    %v4221 = vunpack.c.h.b16 %v3456
    %v4222 = vunpack.c.l.b16 %v3457
    %v4223 = vunpack.c.h.b16 %v3457
    %v4224 = vunpack.c.l.b16 %v3458
    %v4225 = vunpack.c.h.b16 %v3458
    %v4226 = vunpack.c.l.b16 %v3459
    %v4227 = vunpack.c.h.b16 %v3459
    %v4228 = vunpack.c.l.b16 %v3460
    %v4229 = vunpack.c.h.b16 %v3460
    %v4230 = vunpack.c.l.b16 %v3461
    %v4231 = vunpack.c.h.b16 %v3461
    %v4232 = vunpack.c.l.b16 %v3462
    %v4233 = vunpack.c.h.b16 %v3462
    %v4234 = vunpack.c.l.b16 %v3463
    %v4235 = vunpack.c.h.b16 %v3463
    %v4236 = vunpack.c.l.b16 %v3464
    %v4237 = vunpack.c.h.b16 %v3464
    %v4238 = vunpack.c.l.b16 %v3465
    %v4239 = vunpack.c.h.b16 %v3465
    %v4240 = vunpack.c.l.b16 %v3466
    %v4241 = vunpack.c.h.b16 %v3466
    %v4242 = vunpack.c.l.b16 %v3467
    %v4243 = vunpack.c.h.b16 %v3467
    %v4244 = vunpack.c.l.b16 %v3468
    %v4245 = vunpack.c.h.b16 %v3468
    %v4246 = vunpack.c.l.b16 %v3469
    %v4247 = vunpack.c.h.b16 %v3469
    %v4248 = vunpack.c.l.b16 %v3470
    %v4249 = vunpack.c.h.b16 %v3470
    %v4250 = vunpack.c.l.b16 %v3471
    %v4251 = vunpack.c.h.b16 %v3471
    %v4252 = vunpack.c.l.b16 %v3472
    %v4253 = vunpack.c.h.b16 %v3472
    %v4254 = vunpack.c.l.b16 %v3473
    %v4255 = vunpack.c.h.b16 %v3473
    %v4256 = vunpack.c.l.b16 %v3474
    %v4257 = vunpack.c.h.b16 %v3474
    %v4258 = vunpack.c.l.b16 %v3475
    %v4259 = vunpack.c.h.b16 %v3475
    %v4260 = vunpack.c.l.b16 %v3476
    %v4261 = vunpack.c.h.b16 %v3476
    %v4262 = vunpack.c.l.b16 %v3477
    %v4263 = vunpack.c.h.b16 %v3477
    %v4264 = vunpack.c.l.b16 %v3478
    %v4265 = vunpack.c.h.b16 %v3478
    %v4266 = vunpack.c.l.b16 %v3479
    %v4267 = vunpack.c.h.b16 %v3479
    %v4268 = vunpack.c.l.b16 %v3480
    %v4269 = vunpack.c.h.b16 %v3480
    %v4270 = vunpack.c.l.b16 %v3481
    %v4271 = vunpack.c.h.b16 %v3481
    %v4272 = vunpack.c.l.b16 %v3482
    %v4273 = vunpack.c.h.b16 %v3482
    %v4274 = vunpack.c.l.b16 %v3483
    %v4275 = vunpack.c.h.b16 %v3483
    %v4276 = vunpack.c.l.b16 %v3484
    %v4277 = vunpack.c.h.b16 %v3484
    %v4278 = vunpack.c.l.b16 %v3485
    %v4279 = vunpack.c.h.b16 %v3485
    %v4280 = vunpack.c.l.b16 %v3486
    %v4281 = vunpack.c.h.b16 %v3486
    %v4282 = vunpack.c.l.b16 %v3487
    %v4283 = vunpack.c.h.b16 %v3487
    %v4284 = vunpack.c.l.b16 %v3488
    %v4285 = vunpack.c.h.b16 %v3488
    %v4286 = vunpack.c.l.b16 %v3489
    %v4287 = vunpack.c.h.b16 %v3489
    %v4288 = vunpack.c.l.b16 %v3490
    %v4289 = vunpack.c.h.b16 %v3490
    %v4290 = vunpack.c.l.b16 %v3491
    %v4291 = vunpack.c.h.b16 %v3491
    %v4292 = vunpack.c.l.b16 %v3492
    %v4293 = vunpack.c.h.b16 %v3492
    %v4294 = vunpack.c.l.b16 %v3493
    %v4295 = vunpack.c.h.b16 %v3493
    %v4296 = vunpack.c.l.b16 %v3494
    %v4297 = vunpack.c.h.b16 %v3494
    %v4298 = vunpack.c.l.b16 %v3495
    %v4299 = vunpack.c.h.b16 %v3495
    %v4300 = vunpack.c.l.b16 %v3496
    %v4301 = vunpack.c.h.b16 %v3496
    %v4302 = vunpack.c.l.b16 %v3497
    %v4303 = vunpack.c.h.b16 %v3497
    %v4304 = vunpack.c.l.b16 %v3498
    %v4305 = vunpack.c.h.b16 %v3498
    %v4306 = vunpack.c.l.b16 %v3499
    %v4307 = vunpack.c.h.b16 %v3499
    %v4308 = vunpack.c.l.b16 %v3500
    %v4309 = vunpack.c.h.b16 %v3500
    %v4310 = vunpack.c.l.b16 %v3501
    %v4311 = vunpack.c.h.b16 %v3501
    %v4312 = vunpack.c.l.b16 %v3502
    %v4313 = vunpack.c.h.b16 %v3502
    %v4314 = vunpack.c.l.b16 %v3503
    %v4315 = vunpack.c.h.b16 %v3503
    %v4316 = vunpack.c.l.b16 %v3504
    %v4317 = vunpack.c.h.b16 %v3504
    %v4318 = vunpack.c.l.b16 %v3505
    %v4319 = vunpack.c.h.b16 %v3505
    %v4320 = vunpack.c.l.b16 %v3506
    %v4321 = vunpack.c.h.b16 %v3506
    %v4322 = vunpack.c.l.b16 %v3507
    %v4323 = vunpack.c.h.b16 %v3507
    %v4324 = vunpack.c.l.b16 %v3508
    %v4325 = vunpack.c.h.b16 %v3508
    %v4326 = vunpack.c.l.b16 %v3509
    %v4327 = vunpack.c.h.b16 %v3509
    %v4328 = vunpack.c.l.b16 %v3510
    %v4329 = vunpack.c.h.b16 %v3510
    %v4330 = vunpack.c.l.b16 %v3511
    %v4331 = vunpack.c.h.b16 %v3511
    %v4332 = vunpack.c.l.b16 %v3512
    %v4333 = vunpack.c.h.b16 %v3512
    %v4334 = vunpack.c.l.b16 %v3513
    %v4335 = vunpack.c.h.b16 %v3513
    %v4336 = vunpack.c.l.b16 %v3514
    %v4337 = vunpack.c.h.b16 %v3514
    %v4338 = vunpack.c.l.b16 %v3515
    %v4339 = vunpack.c.h.b16 %v3515
    %v4340 = vunpack.c.l.b16 %v3516
    %v4341 = vunpack.c.h.b16 %v3516
    %v4342 = vunpack.c.l.b16 %v3517
    %v4343 = vunpack.c.h.b16 %v3517
    %v4344 = vunpack.c.l.b16 %v3518
    %v4345 = vunpack.c.h.b16 %v3518
    %v4346 = vunpack.c.l.b16 %v3519
    %v4347 = vunpack.c.h.b16 %v3519
    %v4348 = vunpack.c.l.b16 %v3520
    %v4349 = vunpack.c.h.b16 %v3520
    %v4350 = vunpack.c.l.b16 %v3521
    %v4351 = vunpack.c.h.b16 %v3521
    %v4352 = vunpack.c.l.b16 %v3522
    %v4353 = vunpack.c.h.b16 %v3522
    %v4354 = vunpack.c.l.b16 %v3523
    %v4355 = vunpack.c.h.b16 %v3523
    %v4356 = vunpack.c.l.b16 %v3524
    %v4357 = vunpack.c.h.b16 %v3524
    %v4358 = vunpack.c.l.b16 %v3525
    %v4359 = vunpack.c.h.b16 %v3525
    %v4360 = vunpack.c.l.b16 %v3526
    %v4361 = vunpack.c.h.b16 %v3526
    %v4362 = vunpack.c.l.b16 %v3527
    %v4363 = vunpack.c.h.b16 %v3527
    %v4364 = vunpack.c.l.b16 %v3528
    %v4365 = vunpack.c.h.b16 %v3528
    %v4366 = vunpack.c.l.b16 %v3529
    %v4367 = vunpack.c.h.b16 %v3529
    %v4368 = vunpack.c.l.b16 %v3530
    %v4369 = vunpack.c.h.b16 %v3530
    %v4370 = vunpack.c.l.b16 %v3531
    %v4371 = vunpack.c.h.b16 %v3531
    %v4372 = vunpack.c.l.b16 %v3532
    %v4373 = vunpack.c.h.b16 %v3532
    %v4374 = vunpack.c.l.b16 %v3533
    %v4375 = vunpack.c.h.b16 %v3533
    %v4376 = vunpack.c.l.b16 %v3534
    %v4377 = vunpack.c.h.b16 %v3534
    %v4378 = vunpack.c.l.b16 %v3535
    %v4379 = vunpack.c.h.b16 %v3535
    %v4380 = vunpack.c.l.b16 %v3536
    %v4381 = vunpack.c.h.b16 %v3536
    %v4382 = vunpack.c.l.b16 %v3537
    %v4383 = vunpack.c.h.b16 %v3537
    %v4384 = vunpack.c.l.b16 %v3538
    %v4385 = vunpack.c.h.b16 %v3538
    %v4386 = vunpack.c.l.b16 %v3539
    %v4387 = vunpack.c.h.b16 %v3539
    %v4388 = vunpack.c.l.b16 %v3540
    %v4389 = vunpack.c.h.b16 %v3540
    %v4390 = vunpack.c.l.b16 %v3541
    %v4391 = vunpack.c.h.b16 %v3541
    %v4392 = vunpack.c.l.b16 %v3542
    %v4393 = vunpack.c.h.b16 %v3542
    %v4394 = vunpack.c.l.b16 %v3543
    %v4395 = vunpack.c.h.b16 %v3543
    %v4396 = vunpack.c.l.b16 %v3544
    %v4397 = vunpack.c.h.b16 %v3544
    %v4398 = vunpack.c.l.b16 %v3545
    %v4399 = vunpack.c.h.b16 %v3545
    %v4400 = vunpack.c.l.b16 %v3546
    %v4401 = vunpack.c.h.b16 %v3546
    %v4402 = vunpack.c.l.b16 %v3547
    %v4403 = vunpack.c.h.b16 %v3547
    %v4404 = vunpack.c.l.b16 %v3548
    %v4405 = vunpack.c.h.b16 %v3548
    %v4406 = vunpack.c.l.b16 %v3549
    %v4407 = vunpack.c.h.b16 %v3549
    %v4408 = vunpack.c.l.b16 %v3550
    %v4409 = vunpack.c.h.b16 %v3550
    %v4410 = vunpack.c.l.b16 %v3551
    %v4411 = vunpack.c.h.b16 %v3551
    %v4412 = vunpack.c.l.b16 %v3552
    %v4413 = vunpack.c.h.b16 %v3552
    %v4414 = vunpack.c.l.b16 %v3553
    %v4415 = vunpack.c.h.b16 %v3553
    %v4416 = vunpack.c.l.b16 %v3554
    %v4417 = vunpack.c.h.b16 %v3554
    %v4418 = vunpack.c.l.b16 %v3555
    %v4419 = vunpack.c.h.b16 %v3555
    %v4420 = vunpack.c.l.b16 %v3556
    %v4421 = vunpack.c.h.b16 %v3556
    %v4422 = vunpack.c.l.b16 %v3557
    %v4423 = vunpack.c.h.b16 %v3557
    %v4424 = vunpack.c.l.b16 %v3558
    %v4425 = vunpack.c.h.b16 %v3558
    %v4426 = vunpack.c.l.b16 %v3559
    %v4427 = vunpack.c.h.b16 %v3559
    %v4428 = vunpack.c.l.b16 %v3560
    %v4429 = vunpack.c.h.b16 %v3560
    %v4430 = vunpack.c.l.b16 %v3561
    %v4431 = vunpack.c.h.b16 %v3561
    %v4432 = vunpack.c.l.b16 %v3562
    %v4433 = vunpack.c.h.b16 %v3562
    %v4434 = vunpack.c.l.b16 %v3563
    %v4435 = vunpack.c.h.b16 %v3563
    %v4436 = vunpack.c.l.b16 %v3564
    %v4437 = vunpack.c.h.b16 %v3564
    %v4438 = vunpack.c.l.b16 %v3565
    %v4439 = vunpack.c.h.b16 %v3565
    %v4440 = vunpack.c.l.b16 %v3566
    %v4441 = vunpack.c.h.b16 %v3566
    %v4442 = vunpack.c.l.b16 %v3567
    %v4443 = vunpack.c.h.b16 %v3567
    %v4444 = vunpack.c.l.b16 %v3568
    %v4445 = vunpack.c.h.b16 %v3568
    %v4446 = vunpack.c.l.b16 %v3569
    %v4447 = vunpack.c.h.b16 %v3569
    %v4448 = vunpack.c.l.b16 %v3570
    %v4449 = vunpack.c.h.b16 %v3570
    %v4450 = vunpack.c.l.b16 %v3571
    %v4451 = vunpack.c.h.b16 %v3571
    %v4452 = vunpack.c.l.b16 %v3572
    %v4453 = vunpack.c.h.b16 %v3572
    %v4454 = vunpack.c.l.b16 %v3573
    %v4455 = vunpack.c.h.b16 %v3573
    %v4456 = vunpack.c.l.b16 %v3574
    %v4457 = vunpack.c.h.b16 %v3574
    %v4458 = vunpack.c.l.b16 %v3575
    %v4459 = vunpack.c.h.b16 %v3575
    %v4460 = vunpack.c.l.b16 %v3576
    %v4461 = vunpack.c.h.b16 %v3576
    %v4462 = vunpack.c.l.b16 %v3577
    %v4463 = vunpack.c.h.b16 %v3577
    %v4464 = vunpack.c.l.b16 %v3578
    %v4465 = vunpack.c.h.b16 %v3578
    %v4466 = vunpack.c.l.b16 %v3579
    %v4467 = vunpack.c.h.b16 %v3579
    %v4468 = vunpack.c.l.b16 %v3580
    %v4469 = vunpack.c.h.b16 %v3580
    %v4470 = vunpack.c.l.b16 %v3581
    %v4471 = vunpack.c.h.b16 %v3581
    %v4472 = vunpack.c.l.b16 %v3582
    %v4473 = vunpack.c.h.b16 %v3582
    %v4474 = vunpack.c.l.b16 %v3583
    %v4475 = vunpack.c.h.b16 %v3583
    %v4476 = vunpack.c.l.b16 %v3584
    %v4477 = vunpack.c.h.b16 %v3584
    %v4478 = vunpack.c.l.b16 %v3585
    %v4479 = vunpack.c.h.b16 %v3585
    %v4480 = vunpack.c.l.b16 %v3586
    %v4481 = vunpack.c.h.b16 %v3586
    %v4482 = vunpack.c.l.b16 %v3587
    %v4483 = vunpack.c.h.b16 %v3587
    %v4484 = vunpack.c.l.b16 %v3588
    %v4485 = vunpack.c.h.b16 %v3588
    %v4486 = vunpack.c.l.b16 %v3589
    %v4487 = vunpack.c.h.b16 %v3589
    %v4488 = vunpack.c.l.b16 %v3590
    %v4489 = vunpack.c.h.b16 %v3590
    %v4490 = vunpack.c.l.b16 %v3591
    %v4491 = vunpack.c.h.b16 %v3591
    %v4492 = vunpack.c.l.b16 %v3592
    %v4493 = vunpack.c.h.b16 %v3592
    %v4494 = vunpack.c.l.b16 %v3593
    %v4495 = vunpack.c.h.b16 %v3593
    %v4496 = vunpack.c.l.b16 %v3594
    %v4497 = vunpack.c.h.b16 %v3594
    %v4498 = vunpack.c.l.b16 %v3595
    %v4499 = vunpack.c.h.b16 %v3595
    %v4500 = vunpack.c.l.b16 %v3596
    %v4501 = vunpack.c.h.b16 %v3596
    %v4502 = vunpack.c.l.b16 %v3597
    %v4503 = vunpack.c.h.b16 %v3597
    %v4504 = vunpack.c.l.b16 %v3598
    %v4505 = vunpack.c.h.b16 %v3598
    %v4506 = vunpack.c.l.b16 %v3599
    %v4507 = vunpack.c.h.b16 %v3599
    %v4508 = vunpack.c.l.b16 %v3600
    %v4509 = vunpack.c.h.b16 %v3600
    %v4510 = vunpack.c.l.b16 %v3601
    %v4511 = vunpack.c.h.b16 %v3601
    %v4512 = vunpack.c.l.b16 %v3602
    %v4513 = vunpack.c.h.b16 %v3602
    %v4514 = vunpack.c.l.b16 %v3603
    %v4515 = vunpack.c.h.b16 %v3603
    %v4516 = vunpack.c.l.b16 %v3604
    %v4517 = vunpack.c.h.b16 %v3604
    %v4518 = vunpack.c.l.b16 %v3605
    %v4519 = vunpack.c.h.b16 %v3605
    %v4520 = vunpack.c.l.b16 %v3606
    %v4521 = vunpack.c.h.b16 %v3606
    %v4522 = vunpack.c.l.b16 %v3607
    %v4523 = vunpack.c.h.b16 %v3607
    %v4524 = vunpack.c.l.b16 %v3608
    %v4525 = vunpack.c.h.b16 %v3608
    %v4526 = vunpack.c.l.b16 %v3609
    %v4527 = vunpack.c.h.b16 %v3609
    %v4528 = vunpack.c.l.b16 %v3610
    %v4529 = vunpack.c.h.b16 %v3610
    %v4530 = vunpack.c.l.b16 %v3611
    %v4531 = vunpack.c.h.b16 %v3611
    %v4532 = vunpack.c.l.b16 %v3612
    %v4533 = vunpack.c.h.b16 %v3612
    %v4534 = vunpack.c.l.b16 %v3613
    %v4535 = vunpack.c.h.b16 %v3613
    %v4536 = vunpack.c.l.b16 %v3614
    %v4537 = vunpack.c.h.b16 %v3614
    %v4538 = vunpack.c.l.b16 %v3615
    %v4539 = vunpack.c.h.b16 %v3615
    %v4540 = vunpack.c.l.b16 %v3616
    %v4541 = vunpack.c.h.b16 %v3616
    %v4542 = vunpack.c.l.b16 %v3617
    %v4543 = vunpack.c.h.b16 %v3617
    %v4544 = vunpack.c.l.b16 %v3618
    %v4545 = vunpack.c.h.b16 %v3618
    %v4546 = vunpack.c.l.b16 %v3619
    %v4547 = vunpack.c.h.b16 %v3619
    %v4548 = vunpack.c.l.b16 %v3620
    %v4549 = vunpack.c.h.b16 %v3620
    %v4550 = vunpack.c.l.b16 %v3621
    %v4551 = vunpack.c.h.b16 %v3621
    %v4552 = vunpack.c.l.b16 %v3622
    %v4553 = vunpack.c.h.b16 %v3622
    %v4554 = vunpack.c.l.b16 %v3623
    %v4555 = vunpack.c.h.b16 %v3623
    %v4556 = vunpack.c.l.b16 %v3624
    %v4557 = vunpack.c.h.b16 %v3624
    %v4558 = vunpack.c.l.b16 %v3625
    %v4559 = vunpack.c.h.b16 %v3625
    %v4560 = vunpack.c.l.b16 %v3626
    %v4561 = vunpack.c.h.b16 %v3626
    %v4562 = vunpack.c.l.b16 %v3627
    %v4563 = vunpack.c.h.b16 %v3627
    %v4564 = vunpack.c.l.b16 %v3628
    %v4565 = vunpack.c.h.b16 %v3628
    %v4566 = vunpack.c.l.b16 %v3629
    %v4567 = vunpack.c.h.b16 %v3629
    %v4568 = vunpack.c.l.b16 %v3630
    %v4569 = vunpack.c.h.b16 %v3630
    %v4570 = vunpack.c.l.b16 %v3631
    %v4571 = vunpack.c.h.b16 %v3631
    %v4572 = vunpack.c.l.b16 %v3632
    %v4573 = vunpack.c.h.b16 %v3632
    %v4574 = vunpack.c.l.b16 %v3633
    %v4575 = vunpack.c.h.b16 %v3633
    %v4576 = vunpack.c.l.b16 %v3634
    %v4577 = vunpack.c.h.b16 %v3634
    %v4578 = vunpack.c.l.b16 %v3635
    %v4579 = vunpack.c.h.b16 %v3635
    %v4580 = vunpack.c.l.b16 %v3636
    %v4581 = vunpack.c.h.b16 %v3636
    %v4582 = vunpack.c.l.b16 %v3637
    %v4583 = vunpack.c.h.b16 %v3637
    %v4584 = vunpack.c.l.b16 %v3638
    %v4585 = vunpack.c.h.b16 %v3638
    %v4586 = vunpack.c.l.b16 %v3639
    %v4587 = vunpack.c.h.b16 %v3639
    %v4588 = vunpack.c.l.b16 %v3640
    %v4589 = vunpack.c.h.b16 %v3640
    %v4590 = vunpack.c.l.b16 %v3641
    %v4591 = vunpack.c.h.b16 %v3641
    %v4592 = vunpack.c.l.b16 %v3642
    %v4593 = vunpack.c.h.b16 %v3642
    %v4594 = vunpack.c.l.b16 %v3643
    %v4595 = vunpack.c.h.b16 %v3643
    %v4596 = vunpack.c.l.b16 %v3644
    %v4597 = vunpack.c.h.b16 %v3644
    %v4598 = vunpack.c.l.b16 %v3645
    %v4599 = vunpack.c.h.b16 %v3645
    %v4600 = vunpack.c.l.b16 %v3646
    %v4601 = vunpack.c.h.b16 %v3646
    %v4602 = vunpack.c.l.b16 %v3647
    %v4603 = vunpack.c.h.b16 %v3647
    %v4604 = vunpack.c.l.b16 %v3648
    %v4605 = vunpack.c.h.b16 %v3648
    %v4606 = vunpack.c.l.b16 %v3649
    %v4607 = vunpack.c.h.b16 %v3649
    %v4608 = vunpack.c.l.b16 %v3650
    %v4609 = vunpack.c.h.b16 %v3650
    %v4610 = vunpack.c.l.b16 %v3651
    %v4611 = vunpack.c.h.b16 %v3651
    %v4612 = vunpack.c.l.b16 %v3652
    %v4613 = vunpack.c.h.b16 %v3652
    %v4614 = vunpack.c.l.b16 %v3653
    %v4615 = vunpack.c.h.b16 %v3653
    %v4616 = vunpack.c.l.b16 %v3654
    %v4617 = vunpack.c.h.b16 %v3654
    %v4618 = vunpack.c.l.b16 %v3655
    %v4619 = vunpack.c.h.b16 %v3655
    %v4620 = vunpack.c.l.b16 %v3656
    %v4621 = vunpack.c.h.b16 %v3656
    %v4622 = vunpack.c.l.b16 %v3657
    %v4623 = vunpack.c.h.b16 %v3657
    %v4624 = vunpack.c.l.b16 %v3658
    %v4625 = vunpack.c.h.b16 %v3658
    %v4626 = vunpack.c.l.b16 %v3659
    %v4627 = vunpack.c.h.b16 %v3659
    %v4628 = vunpack.c.l.b16 %v3660
    %v4629 = vunpack.c.h.b16 %v3660
    %v4630 = vunpack.c.l.b16 %v3661
    %v4631 = vunpack.c.h.b16 %v3661
    %v4632 = vunpack.c.l.b16 %v3662
    %v4633 = vunpack.c.h.b16 %v3662
    %v4634 = vunpack.c.l.b16 %v3663
    %v4635 = vunpack.c.h.b16 %v3663
    %v4636 = vunpack.c.l.b16 %v3664
    %v4637 = vunpack.c.h.b16 %v3664
    %v4638 = vunpack.c.l.b16 %v3665
    %v4639 = vunpack.c.h.b16 %v3665
    %v4640 = vunpack.c.l.b16 %v3666
    %v4641 = vunpack.c.h.b16 %v3666
    %v4642 = vunpack.c.l.b16 %v3667
    %v4643 = vunpack.c.h.b16 %v3667
    %v4644 = vunpack.c.l.b16 %v3668
    %v4645 = vunpack.c.h.b16 %v3668
    %v4646 = vunpack.c.l.b16 %v3669
    %v4647 = vunpack.c.h.b16 %v3669
    %v4648 = vunpack.c.l.b16 %v3670
    %v4649 = vunpack.c.h.b16 %v3670
    %v4650 = vunpack.c.l.b16 %v3671
    %v4651 = vunpack.c.h.b16 %v3671
    %v4652 = vunpack.c.l.b16 %v3672
    %v4653 = vunpack.c.h.b16 %v3672
    %v4654 = vunpack.c.l.b16 %v3673
    %v4655 = vunpack.c.h.b16 %v3673
    %v4656 = vunpack.c.l.b16 %v3674
    %v4657 = vunpack.c.h.b16 %v3674
    %v4658 = vunpack.c.l.b16 %v3675
    %v4659 = vunpack.c.h.b16 %v3675
    %v4660 = vunpack.c.l.b16 %v3676
    %v4661 = vunpack.c.h.b16 %v3676
    %v4662 = vunpack.c.l.b16 %v3677
    %v4663 = vunpack.c.h.b16 %v3677
    %v4664 = vunpack.c.l.b16 %v3678
    %v4665 = vunpack.c.h.b16 %v3678
    %v4666 = vunpack.c.l.b16 %v3679
    %v4667 = vunpack.c.h.b16 %v3679
    %v4668 = vunpack.c.l.b16 %v3680
    %v4669 = vunpack.c.h.b16 %v3680
    %v4670 = vunpack.c.l.b16 %v3681
    %v4671 = vunpack.c.h.b16 %v3681
    %v4672 = vunpack.c.l.b16 %v3682
    %v4673 = vunpack.c.h.b16 %v3682
    %v4674 = vunpack.c.l.b16 %v3683
    %v4675 = vunpack.c.h.b16 %v3683
    %v4676 = vunpack.c.l.b16 %v3684
    %v4677 = vunpack.c.h.b16 %v3684
    %v4678 = vunpack.c.l.b16 %v3685
    %v4679 = vunpack.c.h.b16 %v3685
    %v4680 = vunpack.c.l.b16 %v3686
    %v4681 = vunpack.c.h.b16 %v3686
    %v4682 = vunpack.c.l.b16 %v3687
    %v4683 = vunpack.c.h.b16 %v3687
    %v4684 = vunpack.c.l.b16 %v3688
    %v4685 = vunpack.c.h.b16 %v3688
    %v4686 = vunpack.c.l.b16 %v3689
    %v4687 = vunpack.c.h.b16 %v3689
    %v4688 = vunpack.c.l.b16 %v3690
    %v4689 = vunpack.c.h.b16 %v3690
    %v4690 = vunpack.c.l.b16 %v3691
    %v4691 = vunpack.c.h.b16 %v3691
    %v4692 = vunpack.c.l.b16 %v3692
    %v4693 = vunpack.c.h.b16 %v3692
    %v4694 = vunpack.c.l.b16 %v3693
    %v4695 = vunpack.c.h.b16 %v3693
    %v4696 = vunpack.c.l.b16 %v3694
    %v4697 = vunpack.c.h.b16 %v3694
    %v4698 = vunpack.c.l.b16 %v3695
    %v4699 = vunpack.c.h.b16 %v3695
    %v4700 = vunpack.c.l.b16 %v3696
    %v4701 = vunpack.c.h.b16 %v3696
    %v4702 = vunpack.c.l.b16 %v3697
    %v4703 = vunpack.c.h.b16 %v3697
    %v4704 = vunpack.c.l.b16 %v3698
    %v4705 = vunpack.c.h.b16 %v3698
    %v4706 = vunpack.c.l.b16 %v3699
    %v4707 = vunpack.c.h.b16 %v3699
    %v4708 = vunpack.c.l.b16 %v3700
    %v4709 = vunpack.c.h.b16 %v3700
    %v4710 = vunpack.c.l.b16 %v3701
    %v4711 = vunpack.c.h.b16 %v3701
    %v4712 = vunpack.c.l.b16 %v3702
    %v4713 = vunpack.c.h.b16 %v3702
    %v4714 = vunpack.c.l.b16 %v3703
    %v4715 = vunpack.c.h.b16 %v3703
    %v4716 = vunpack.c.l.b16 %v3704
    %v4717 = vunpack.c.h.b16 %v3704
    %v4718 = vunpack.c.l.b16 %v3705
    %v4719 = vunpack.c.h.b16 %v3705
    %v4720 = vunpack.c.l.b16 %v3706
    %v4721 = vunpack.c.h.b16 %v3706
    %v4722 = vunpack.c.l.b16 %v3707
    %v4723 = vunpack.c.h.b16 %v3707
    %v4724 = vunpack.c.l.b16 %v3708
    %v4725 = vunpack.c.h.b16 %v3708
    %v4726 = vunpack.c.l.b16 %v3709
    %v4727 = vunpack.c.h.b16 %v3709
    %v4728 = vunpack.c.l.b16 %v3710
    %v4729 = vunpack.c.h.b16 %v3710
    %v4730 = vunpack.c.l.b16 %v3711
    %v4731 = vunpack.c.h.b16 %v3711
    %v4732 = vunpack.c.l.b16 %v3712
    %v4733 = vunpack.c.h.b16 %v3712
    %v4734 = vunpack.c.l.b16 %v3713
    %v4735 = vunpack.c.h.b16 %v3713
    %v4736 = vunpack.c.l.b16 %v3714
    %v4737 = vunpack.c.h.b16 %v3714
    %v4738 = vunpack.c.l.b16 %v3715
    %v4739 = vunpack.c.h.b16 %v3715
    %v4740 = vunpack.c.l.b16 %v3716
    %v4741 = vunpack.c.h.b16 %v3716
    %v4742 = vunpack.c.l.b16 %v3717
    %v4743 = vunpack.c.h.b16 %v3717
    %v4744 = vunpack.c.l.b16 %v3718
    %v4745 = vunpack.c.h.b16 %v3718
    %v4746 = vunpack.c.l.b16 %v3719
    %v4747 = vunpack.c.h.b16 %v3719
    %v4748 = vunpack.c.l.b16 %v3720
    %v4749 = vunpack.c.h.b16 %v3720
    %v4750 = vunpack.c.l.b16 %v3721
    %v4751 = vunpack.c.h.b16 %v3721
    %v4752 = vunpack.c.l.b16 %v3722
    %v4753 = vunpack.c.h.b16 %v3722
    %v4754 = vunpack.c.l.b16 %v3723
    %v4755 = vunpack.c.h.b16 %v3723
    %v4756 = vunpack.c.l.b16 %v3724
    %v4757 = vunpack.c.h.b16 %v3724
    %v4758 = vunpack.c.l.b16 %v3725
    %v4759 = vunpack.c.h.b16 %v3725
    %v4760 = vunpack.c.l.b16 %v3726
    %v4761 = vunpack.c.h.b16 %v3726
    %v4762 = vunpack.c.l.b16 %v3727
    %v4763 = vunpack.c.h.b16 %v3727
    %v4764 = vunpack.c.l.b16 %v3728
    %v4765 = vunpack.c.h.b16 %v3728
    %v4766 = vunpack.c.l.b16 %v3729
    %v4767 = vunpack.c.h.b16 %v3729
    %v4768 = vunpack.c.l.b16 %v3730
    %v4769 = vunpack.c.h.b16 %v3730
    %v4770 = vunpack.c.l.b16 %v3731
    %v4771 = vunpack.c.h.b16 %v3731
    %v4772 = vpack.c.b16 %v4106, %v4100
    %v4773 = vpack.c.b16 %v4107, %v4101
    %v4774 = vpack.c.b16 %v4108, %v4102
    %v4775 = vpack.c.b16 %v4109, %v4103
    %v4776 = vpack.c.b16 %v4110, %v4104
    %v4777 = vpack.c.b16 %v4111, %v4105
    %v4778 = vpack.c.b16 %v4118, %v4112
    %v4779 = vpack.c.b16 %v4119, %v4113
    %v4780 = vpack.c.b16 %v4120, %v4114
    %v4781 = vpack.c.b16 %v4121, %v4115
    %v4782 = vpack.c.b16 %v4122, %v4116
    %v4783 = vpack.c.b16 %v4123, %v4117
    %v4784 = vpack.c.b16 %v4130, %v4124
    %v4785 = vpack.c.b16 %v4131, %v4125
    %v4786 = vpack.c.b16 %v4132, %v4126
    %v4787 = vpack.c.b16 %v4133, %v4127
    %v4788 = vpack.c.b16 %v4134, %v4128
    %v4789 = vpack.c.b16 %v4135, %v4129
    %v4790 = vpack.c.b16 %v4142, %v4136
    %v4791 = vpack.c.b16 %v4143, %v4137
    %v4792 = vpack.c.b16 %v4144, %v4138
    %v4793 = vpack.c.b16 %v4145, %v4139
    %v4794 = vpack.c.b16 %v4146, %v4140
    %v4795 = vpack.c.b16 %v4147, %v4141
    %v4796 = vpack.c.b16 %v4154, %v4148
    %v4797 = vpack.c.b16 %v4155, %v4149
    %v4798 = vpack.c.b16 %v4156, %v4150
    %v4799 = vpack.c.b16 %v4157, %v4151
    %v4800 = vpack.c.b16 %v4158, %v4152
    %v4801 = vpack.c.b16 %v4159, %v4153
    %v4802 = vpack.c.b16 %v4166, %v4160
    %v4803 = vpack.c.b16 %v4167, %v4161
    %v4804 = vpack.c.b16 %v4168, %v4162
    %v4805 = vpack.c.b16 %v4169, %v4163
    %v4806 = vpack.c.b16 %v4170, %v4164
    %v4807 = vpack.c.b16 %v4171, %v4165
    %v4808 = vpack.c.b16 %v4178, %v4172
    %v4809 = vpack.c.b16 %v4179, %v4173
    %v4810 = vpack.c.b16 %v4180, %v4174
    %v4811 = vpack.c.b16 %v4181, %v4175
    %v4812 = vpack.c.b16 %v4182, %v4176
    %v4813 = vpack.c.b16 %v4183, %v4177
    %v4814 = vpack.c.b16 %v4190, %v4184
    %v4815 = vpack.c.b16 %v4191, %v4185
    %v4816 = vpack.c.b16 %v4192, %v4186
    %v4817 = vpack.c.b16 %v4193, %v4187
    %v4818 = vpack.c.b16 %v4194, %v4188
    %v4819 = vpack.c.b16 %v4195, %v4189
    %v4820 = vpack.c.b16 %v4202, %v4196
    %v4821 = vpack.c.b16 %v4203, %v4197
    %v4822 = vpack.c.b16 %v4204, %v4198
    %v4823 = vpack.c.b16 %v4205, %v4199
    %v4824 = vpack.c.b16 %v4206, %v4200
    %v4825 = vpack.c.b16 %v4207, %v4201
    %v4826 = vpack.c.b16 %v4214, %v4208
    %v4827 = vpack.c.b16 %v4215, %v4209
    %v4828 = vpack.c.b16 %v4216, %v4210
    %v4829 = vpack.c.b16 %v4217, %v4211
    %v4830 = vpack.c.b16 %v4218, %v4212
    %v4831 = vpack.c.b16 %v4219, %v4213
    %v4832 = vpack.c.b16 %v4226, %v4220
    %v4833 = vpack.c.b16 %v4227, %v4221
    %v4834 = vpack.c.b16 %v4228, %v4222
    %v4835 = vpack.c.b16 %v4229, %v4223
    %v4836 = vpack.c.b16 %v4230, %v4224
    %v4837 = vpack.c.b16 %v4231, %v4225
    %v4838 = vpack.c.b16 %v4238, %v4232
    %v4839 = vpack.c.b16 %v4239, %v4233
    %v4840 = vpack.c.b16 %v4240, %v4234
    %v4841 = vpack.c.b16 %v4241, %v4235
    %v4842 = vpack.c.b16 %v4242, %v4236
    %v4843 = vpack.c.b16 %v4243, %v4237
    %v4844 = vpack.c.b16 %v4250, %v4244
    %v4845 = vpack.c.b16 %v4251, %v4245
    %v4846 = vpack.c.b16 %v4252, %v4246
    %v4847 = vpack.c.b16 %v4253, %v4247
    %v4848 = vpack.c.b16 %v4254, %v4248
    %v4849 = vpack.c.b16 %v4255, %v4249
    %v4850 = vpack.c.b16 %v4262, %v4256
    %v4851 = vpack.c.b16 %v4263, %v4257
    %v4852 = vpack.c.b16 %v4264, %v4258
    %v4853 = vpack.c.b16 %v4265, %v4259
    %v4854 = vpack.c.b16 %v4266, %v4260
    %v4855 = vpack.c.b16 %v4267, %v4261
    %v4856 = vpack.c.b16 %v4274, %v4268
    %v4857 = vpack.c.b16 %v4275, %v4269
    %v4858 = vpack.c.b16 %v4276, %v4270
    %v4859 = vpack.c.b16 %v4277, %v4271
    %v4860 = vpack.c.b16 %v4278, %v4272
    %v4861 = vpack.c.b16 %v4279, %v4273
    %v4862 = vpack.c.b16 %v4286, %v4280
    %v4863 = vpack.c.b16 %v4287, %v4281
    %v4864 = vpack.c.b16 %v4288, %v4282
    %v4865 = vpack.c.b16 %v4289, %v4283
    %v4866 = vpack.c.b16 %v4290, %v4284
    %v4867 = vpack.c.b16 %v4291, %v4285
    %v4868 = vpack.c.b16 %v4298, %v4292
    %v4869 = vpack.c.b16 %v4299, %v4293
    %v4870 = vpack.c.b16 %v4300, %v4294
    %v4871 = vpack.c.b16 %v4301, %v4295
    %v4872 = vpack.c.b16 %v4302, %v4296
    %v4873 = vpack.c.b16 %v4303, %v4297
    %v4874 = vpack.c.b16 %v4310, %v4304
    %v4875 = vpack.c.b16 %v4311, %v4305
    %v4876 = vpack.c.b16 %v4312, %v4306
    %v4877 = vpack.c.b16 %v4313, %v4307
    %v4878 = vpack.c.b16 %v4314, %v4308
    %v4879 = vpack.c.b16 %v4315, %v4309
    %v4880 = vpack.c.b16 %v4322, %v4316
    %v4881 = vpack.c.b16 %v4323, %v4317
    %v4882 = vpack.c.b16 %v4324, %v4318
    %v4883 = vpack.c.b16 %v4325, %v4319
    %v4884 = vpack.c.b16 %v4326, %v4320
    %v4885 = vpack.c.b16 %v4327, %v4321
    %v4886 = vpack.c.b16 %v4334, %v4328
    %v4887 = vpack.c.b16 %v4335, %v4329
    %v4888 = vpack.c.b16 %v4336, %v4330
    %v4889 = vpack.c.b16 %v4337, %v4331
    %v4890 = vpack.c.b16 %v4338, %v4332
    %v4891 = vpack.c.b16 %v4339, %v4333
    %v4892 = vpack.c.b16 %v4346, %v4340
    %v4893 = vpack.c.b16 %v4347, %v4341
    %v4894 = vpack.c.b16 %v4348, %v4342
    %v4895 = vpack.c.b16 %v4349, %v4343
    %v4896 = vpack.c.b16 %v4350, %v4344
    %v4897 = vpack.c.b16 %v4351, %v4345
    %v4898 = vpack.c.b16 %v4358, %v4352
    %v4899 = vpack.c.b16 %v4359, %v4353
    %v4900 = vpack.c.b16 %v4360, %v4354
    %v4901 = vpack.c.b16 %v4361, %v4355
    %v4902 = vpack.c.b16 %v4362, %v4356
    %v4903 = vpack.c.b16 %v4363, %v4357
    %v4904 = vpack.c.b16 %v4370, %v4364
    %v4905 = vpack.c.b16 %v4371, %v4365
    %v4906 = vpack.c.b16 %v4372, %v4366
    %v4907 = vpack.c.b16 %v4373, %v4367
    %v4908 = vpack.c.b16 %v4374, %v4368
    %v4909 = vpack.c.b16 %v4375, %v4369
    %v4910 = vpack.c.b16 %v4382, %v4376
    %v4911 = vpack.c.b16 %v4383, %v4377
    %v4912 = vpack.c.b16 %v4384, %v4378
    %v4913 = vpack.c.b16 %v4385, %v4379
    %v4914 = vpack.c.b16 %v4386, %v4380
    %v4915 = vpack.c.b16 %v4387, %v4381
    %v4916 = vpack.c.b16 %v4394, %v4388
    %v4917 = vpack.c.b16 %v4395, %v4389
    %v4918 = vpack.c.b16 %v4396, %v4390
    %v4919 = vpack.c.b16 %v4397, %v4391
    %v4920 = vpack.c.b16 %v4398, %v4392
    %v4921 = vpack.c.b16 %v4399, %v4393
    %v4922 = vpack.c.b16 %v4406, %v4400
    %v4923 = vpack.c.b16 %v4407, %v4401
    %v4924 = vpack.c.b16 %v4408, %v4402
    %v4925 = vpack.c.b16 %v4409, %v4403
    %v4926 = vpack.c.b16 %v4410, %v4404
    %v4927 = vpack.c.b16 %v4411, %v4405
    %v4928 = vpack.c.b16 %v4418, %v4412
    %v4929 = vpack.c.b16 %v4419, %v4413
    %v4930 = vpack.c.b16 %v4420, %v4414
    %v4931 = vpack.c.b16 %v4421, %v4415
    %v4932 = vpack.c.b16 %v4422, %v4416
    %v4933 = vpack.c.b16 %v4423, %v4417
    %v4934 = vpack.c.b16 %v4430, %v4424
    %v4935 = vpack.c.b16 %v4431, %v4425
    %v4936 = vpack.c.b16 %v4432, %v4426
    %v4937 = vpack.c.b16 %v4433, %v4427
    %v4938 = vpack.c.b16 %v4434, %v4428
    %v4939 = vpack.c.b16 %v4435, %v4429
    %v4940 = vpack.c.b16 %v4442, %v4436
    %v4941 = vpack.c.b16 %v4443, %v4437
    %v4942 = vpack.c.b16 %v4444, %v4438
    %v4943 = vpack.c.b16 %v4445, %v4439
    %v4944 = vpack.c.b16 %v4446, %v4440
    %v4945 = vpack.c.b16 %v4447, %v4441
    %v4946 = vpack.c.b16 %v4454, %v4448
    %v4947 = vpack.c.b16 %v4455, %v4449
    %v4948 = vpack.c.b16 %v4456, %v4450
    %v4949 = vpack.c.b16 %v4457, %v4451
    %v4950 = vpack.c.b16 %v4458, %v4452
    %v4951 = vpack.c.b16 %v4459, %v4453
    %v4952 = vpack.c.b16 %v4466, %v4460
    %v4953 = vpack.c.b16 %v4467, %v4461
    %v4954 = vpack.c.b16 %v4468, %v4462
    %v4955 = vpack.c.b16 %v4469, %v4463
    %v4956 = vpack.c.b16 %v4470, %v4464
    %v4957 = vpack.c.b16 %v4471, %v4465
    %v4958 = vpack.c.b16 %v4478, %v4472
    %v4959 = vpack.c.b16 %v4479, %v4473
    %v4960 = vpack.c.b16 %v4480, %v4474
    %v4961 = vpack.c.b16 %v4481, %v4475
    %v4962 = vpack.c.b16 %v4482, %v4476
    %v4963 = vpack.c.b16 %v4483, %v4477
    %v4964 = vpack.c.b16 %v4490, %v4484
    %v4965 = vpack.c.b16 %v4491, %v4485
    %v4966 = vpack.c.b16 %v4492, %v4486
    %v4967 = vpack.c.b16 %v4493, %v4487
    %v4968 = vpack.c.b16 %v4494, %v4488
    %v4969 = vpack.c.b16 %v4495, %v4489
    %v4970 = vpack.c.b16 %v4502, %v4496
    %v4971 = vpack.c.b16 %v4503, %v4497
    %v4972 = vpack.c.b16 %v4504, %v4498
    %v4973 = vpack.c.b16 %v4505, %v4499
    %v4974 = vpack.c.b16 %v4506, %v4500
    %v4975 = vpack.c.b16 %v4507, %v4501
    %v4976 = vpack.c.b16 %v4514, %v4508
    %v4977 = vpack.c.b16 %v4515, %v4509
    %v4978 = vpack.c.b16 %v4516, %v4510
    %v4979 = vpack.c.b16 %v4517, %v4511
    %v4980 = vpack.c.b16 %v4518, %v4512
    %v4981 = vpack.c.b16 %v4519, %v4513
    %v4982 = vpack.c.b16 %v4526, %v4520
    %v4983 = vpack.c.b16 %v4527, %v4521
    %v4984 = vpack.c.b16 %v4528, %v4522
    %v4985 = vpack.c.b16 %v4529, %v4523
    %v4986 = vpack.c.b16 %v4530, %v4524
    %v4987 = vpack.c.b16 %v4531, %v4525
    %v4988 = vpack.c.b16 %v4538, %v4532
    %v4989 = vpack.c.b16 %v4539, %v4533
    %v4990 = vpack.c.b16 %v4540, %v4534
    %v4991 = vpack.c.b16 %v4541, %v4535
    %v4992 = vpack.c.b16 %v4542, %v4536
    %v4993 = vpack.c.b16 %v4543, %v4537
    %v4994 = vpack.c.b16 %v4550, %v4544
    %v4995 = vpack.c.b16 %v4551, %v4545
    %v4996 = vpack.c.b16 %v4552, %v4546
    %v4997 = vpack.c.b16 %v4553, %v4547
    %v4998 = vpack.c.b16 %v4554, %v4548
    %v4999 = vpack.c.b16 %v4555, %v4549
    %v5000 = vpack.c.b16 %v4562, %v4556
    %v5001 = vpack.c.b16 %v4563, %v4557
    %v5002 = vpack.c.b16 %v4564, %v4558
    %v5003 = vpack.c.b16 %v4565, %v4559
    %v5004 = vpack.c.b16 %v4566, %v4560
    %v5005 = vpack.c.b16 %v4567, %v4561
    %v5006 = vpack.c.b16 %v4574, %v4568
    %v5007 = vpack.c.b16 %v4575, %v4569
    %v5008 = vpack.c.b16 %v4576, %v4570
    %v5009 = vpack.c.b16 %v4577, %v4571
    %v5010 = vpack.c.b16 %v4578, %v4572
    %v5011 = vpack.c.b16 %v4579, %v4573
    %v5012 = vpack.c.b16 %v4586, %v4580
    %v5013 = vpack.c.b16 %v4587, %v4581
    %v5014 = vpack.c.b16 %v4588, %v4582
    %v5015 = vpack.c.b16 %v4589, %v4583
    %v5016 = vpack.c.b16 %v4590, %v4584
    %v5017 = vpack.c.b16 %v4591, %v4585
    %v5018 = vpack.c.b16 %v4598, %v4592
    %v5019 = vpack.c.b16 %v4599, %v4593
    %v5020 = vpack.c.b16 %v4600, %v4594
    %v5021 = vpack.c.b16 %v4601, %v4595
    %v5022 = vpack.c.b16 %v4602, %v4596
    %v5023 = vpack.c.b16 %v4603, %v4597
    %v5024 = vpack.c.b16 %v4610, %v4604
    %v5025 = vpack.c.b16 %v4611, %v4605
    %v5026 = vpack.c.b16 %v4612, %v4606
    %v5027 = vpack.c.b16 %v4613, %v4607
    %v5028 = vpack.c.b16 %v4614, %v4608
    %v5029 = vpack.c.b16 %v4615, %v4609
    %v5030 = vpack.c.b16 %v4622, %v4616
    %v5031 = vpack.c.b16 %v4623, %v4617
    %v5032 = vpack.c.b16 %v4624, %v4618
    %v5033 = vpack.c.b16 %v4625, %v4619
    %v5034 = vpack.c.b16 %v4626, %v4620
    %v5035 = vpack.c.b16 %v4627, %v4621
    %v5036 = vpack.c.b16 %v4634, %v4628
    %v5037 = vpack.c.b16 %v4635, %v4629
    %v5038 = vpack.c.b16 %v4636, %v4630
    %v5039 = vpack.c.b16 %v4637, %v4631
    %v5040 = vpack.c.b16 %v4638, %v4632
    %v5041 = vpack.c.b16 %v4639, %v4633
    %v5042 = vpack.c.b16 %v4646, %v4640
    %v5043 = vpack.c.b16 %v4647, %v4641
    %v5044 = vpack.c.b16 %v4648, %v4642
    %v5045 = vpack.c.b16 %v4649, %v4643
    %v5046 = vpack.c.b16 %v4650, %v4644
    %v5047 = vpack.c.b16 %v4651, %v4645
    %v5048 = vpack.c.b16 %v4658, %v4652
    %v5049 = vpack.c.b16 %v4659, %v4653
    %v5050 = vpack.c.b16 %v4660, %v4654
    %v5051 = vpack.c.b16 %v4661, %v4655
    %v5052 = vpack.c.b16 %v4662, %v4656
    %v5053 = vpack.c.b16 %v4663, %v4657
    %v5054 = vpack.c.b16 %v4670, %v4664
    %v5055 = vpack.c.b16 %v4671, %v4665
    %v5056 = vpack.c.b16 %v4672, %v4666
    %v5057 = vpack.c.b16 %v4673, %v4667
    %v5058 = vpack.c.b16 %v4674, %v4668
    %v5059 = vpack.c.b16 %v4675, %v4669
    %v5060 = vpack.c.b16 %v4682, %v4676
    %v5061 = vpack.c.b16 %v4683, %v4677
    %v5062 = vpack.c.b16 %v4684, %v4678
    %v5063 = vpack.c.b16 %v4685, %v4679
    %v5064 = vpack.c.b16 %v4686, %v4680
    %v5065 = vpack.c.b16 %v4687, %v4681
    %v5066 = vpack.c.b16 %v4694, %v4688
    %v5067 = vpack.c.b16 %v4695, %v4689
    %v5068 = vpack.c.b16 %v4696, %v4690
    %v5069 = vpack.c.b16 %v4697, %v4691
    %v5070 = vpack.c.b16 %v4698, %v4692
    %v5071 = vpack.c.b16 %v4699, %v4693
    %v5072 = vpack.c.b16 %v4706, %v4700
    %v5073 = vpack.c.b16 %v4707, %v4701
    %v5074 = vpack.c.b16 %v4708, %v4702
    %v5075 = vpack.c.b16 %v4709, %v4703
    %v5076 = vpack.c.b16 %v4710, %v4704
    %v5077 = vpack.c.b16 %v4711, %v4705
    %v5078 = vpack.c.b16 %v4718, %v4712
    %v5079 = vpack.c.b16 %v4719, %v4713
    %v5080 = vpack.c.b16 %v4720, %v4714
    %v5081 = vpack.c.b16 %v4721, %v4715
    %v5082 = vpack.c.b16 %v4722, %v4716
    %v5083 = vpack.c.b16 %v4723, %v4717
    %v5084 = vpack.c.b16 %v4730, %v4724
    %v5085 = vpack.c.b16 %v4731, %v4725
    %v5086 = vpack.c.b16 %v4732, %v4726
    %v5087 = vpack.c.b16 %v4733, %v4727
    %v5088 = vpack.c.b16 %v4734, %v4728
    %v5089 = vpack.c.b16 %v4735, %v4729
    %v5090 = vpack.c.b16 %v4742, %v4736
    %v5091 = vpack.c.b16 %v4743, %v4737
    %v5092 = vpack.c.b16 %v4744, %v4738
    %v5093 = vpack.c.b16 %v4745, %v4739
    %v5094 = vpack.c.b16 %v4746, %v4740
    %v5095 = vpack.c.b16 %v4747, %v4741
    %v5096 = vpack.c.b16 %v4754, %v4748
    %v5097 = vpack.c.b16 %v4755, %v4749
    %v5098 = vpack.c.b16 %v4756, %v4750
    %v5099 = vpack.c.b16 %v4757, %v4751
    %v5100 = vpack.c.b16 %v4758, %v4752
    %v5101 = vpack.c.b16 %v4759, %v4753
    %v5102 = vpack.c.b16 %v4766, %v4760
    %v5103 = vpack.c.b16 %v4767, %v4761
    %v5104 = vpack.c.b16 %v4768, %v4762
    %v5105 = vpack.c.b16 %v4769, %v4763
    %v5106 = vpack.c.b16 %v4770, %v4764
    %v5107 = vpack.c.b16 %v4771, %v4765
    %5444 = vmatprep.subr.bf16.mxu0 %v4773
    %5445 = vmatpush1.bf16.msra.mxu0 %v4772
    %5446 = vmatprep.subr.bf16.mxu0 %v4779
    %5447 = vmatpush1.bf16.msra.mxu0 %v4778
    %5448 = vmatprep.subr.bf16.mxu0 %v4785
    %5449 = vmatpush1.bf16.msra.mxu0 %v4784
    %5450 = vmatprep.subr.bf16.mxu0 %v4791
    %5451 = vmatpush1.bf16.msra.mxu0 %v4790
    %5452 = vmatprep.subr.bf16.mxu0 %v4797
    %5453 = vmatpush1.bf16.msra.mxu0 %v4796
    %5454 = vmatprep.subr.bf16.mxu0 %v4803
    %5455 = vmatpush1.bf16.msra.mxu0 %v4802
    %5456 = vmatprep.subr.bf16.mxu0 %v4809
    %5457 = vmatpush1.bf16.msra.mxu0 %v4808
    %5458 = vmatprep.subr.bf16.mxu0 %v4815
    %5459 = vmatpush1.bf16.msra.mxu0 %v4814
    %5460 = vmatprep.subr.bf16.mxu0 %v4821
    %5461 = vmatpush1.bf16.msra.mxu0 %v4820
    %5462 = vmatprep.subr.bf16.mxu0 %v4827
    %5463 = vmatpush1.bf16.msra.mxu0 %v4826
    %5464 = vmatprep.subr.bf16.mxu0 %v4833
    %5465 = vmatpush1.bf16.msra.mxu0 %v4832
    %5466 = vmatprep.subr.bf16.mxu0 %v4839
    %5467 = vmatpush1.bf16.msra.mxu0 %v4838
    %5468 = vmatprep.subr.bf16.mxu0 %v4845
    %5469 = vmatpush1.bf16.msra.mxu0 %v4844
    %5470 = vmatprep.subr.bf16.mxu0 %v4851
    %5471 = vmatpush1.bf16.msra.mxu0 %v4850
    %5472 = vmatprep.subr.bf16.mxu0 %v4857
    %5473 = vmatpush1.bf16.msra.mxu0 %v4856
    %5474 = vmatprep.subr.bf16.mxu0 %v4863
    %5475 = vmatpush1.bf16.msra.mxu0 %v4862
    %5476 = vmatprep.mubr.bf16.mxu0 %v3390
    %5477 = vmatmul.mubr.bf16.gmra.mrb[0].mxu0 %v3389
    %v5478 = vpop.f32.mrb[0].mxu0
    %v5479 = vadd.f32 %v3737, %v5478
    %v5480 = vpop.f32.mrb[0].mxu0
    %v5481 = vadd.f32 %v3741, %v5480
    %v5482 = vpop.f32.mrb[0].mxu0
    %v5483 = vpop.f32.mrb[0].mxu0
    %5484 = vdwg.mxu0
    %5485 = vmatprep.subr.bf16.mxu0 %v4869
    %5486 = vmatpush1.bf16.msra.mxu0 %v4868
    %5487 = vmatprep.subr.bf16.mxu0 %v4875
    %5488 = vmatpush1.bf16.msra.mxu0 %v4874
    %5489 = vmatprep.subr.bf16.mxu0 %v4881
    %5490 = vmatpush1.bf16.msra.mxu0 %v4880
    %5491 = vmatprep.subr.bf16.mxu0 %v4887
    %5492 = vmatpush1.bf16.msra.mxu0 %v4886
    %5493 = vmatprep.subr.bf16.mxu0 %v4893
    %5494 = vmatpush1.bf16.msra.mxu0 %v4892
    %5495 = vmatprep.subr.bf16.mxu0 %v4899
    %5496 = vmatpush1.bf16.msra.mxu0 %v4898
    %5497 = vmatprep.subr.bf16.mxu0 %v4905
    %5498 = vmatpush1.bf16.msra.mxu0 %v4904
    %5499 = vmatprep.subr.bf16.mxu0 %v4911
    %5500 = vmatpush1.bf16.msra.mxu0 %v4910
    %5501 = vmatprep.subr.bf16.mxu0 %v4917
    %5502 = vmatpush1.bf16.msra.mxu0 %v4916
    %5503 = vmatprep.subr.bf16.mxu0 %v4923
    %5504 = vmatpush1.bf16.msra.mxu0 %v4922
    %5505 = vmatprep.subr.bf16.mxu0 %v4929
    %5506 = vmatpush1.bf16.msra.mxu0 %v4928
    %5507 = vmatprep.subr.bf16.mxu0 %v4935
    %5508 = vmatpush1.bf16.msra.mxu0 %v4934
    %5509 = vmatprep.subr.bf16.mxu0 %v4941
    %5510 = vmatpush1.bf16.msra.mxu0 %v4940
    %5511 = vmatprep.subr.bf16.mxu0 %v4947
    %5512 = vmatpush1.bf16.msra.mxu0 %v4946
    %5513 = vmatprep.subr.bf16.mxu0 %v4953
    %5514 = vmatpush1.bf16.msra.mxu0 %v4952
    %5515 = vmatprep.subr.bf16.mxu0 %v4959
    %5516 = vmatpush1.bf16.msra.mxu0 %v4958
    %5517 = vmatprep.mubr.bf16.mxu0 %v3392
    %5518 = vmatmul.mubr.bf16.gmra.mrb[0].mxu0 %v3391
    %v5519 = vpop.f32.mrb[0].mxu0
    %v5520 = vadd.f32 %v5479, %v5519
    %v5521 = vpop.f32.mrb[0].mxu0
    %v5522 = vadd.f32 %v5481, %v5521
    %v5523 = vpop.f32.mrb[0].mxu0
    %v5524 = vpop.f32.mrb[0].mxu0
    %5525 = vdwg.mxu0
    %5526 = vmatprep.subr.bf16.mxu0 %v4965
    %5527 = vmatpush1.bf16.msra.mxu0 %v4964
    %5528 = vmatprep.subr.bf16.mxu0 %v4971
    %5529 = vmatpush1.bf16.msra.mxu0 %v4970
    %5530 = vmatprep.subr.bf16.mxu0 %v4977
    %5531 = vmatpush1.bf16.msra.mxu0 %v4976
    %5532 = vmatprep.subr.bf16.mxu0 %v4983
    %5533 = vmatpush1.bf16.msra.mxu0 %v4982
    %5534 = vmatprep.subr.bf16.mxu0 %v4989
    %5535 = vmatpush1.bf16.msra.mxu0 %v4988
    %5536 = vmatprep.subr.bf16.mxu0 %v4995
    %5537 = vmatpush1.bf16.msra.mxu0 %v4994
    %5538 = vmatprep.subr.bf16.mxu0 %v5001
    %5539 = vmatpush1.bf16.msra.mxu0 %v5000
    %5540 = vmatprep.subr.bf16.mxu0 %v5007
    %5541 = vmatpush1.bf16.msra.mxu0 %v5006
    %5542 = vmatprep.subr.bf16.mxu0 %v5013
    %5543 = vmatpush1.bf16.msra.mxu0 %v5012
    %5544 = vmatprep.subr.bf16.mxu0 %v5019
    %5545 = vmatpush1.bf16.msra.mxu0 %v5018
    %5546 = vmatprep.subr.bf16.mxu0 %v5025
    %5547 = vmatpush1.bf16.msra.mxu0 %v5024
    %5548 = vmatprep.subr.bf16.mxu0 %v5031
    %5549 = vmatpush1.bf16.msra.mxu0 %v5030
    %5550 = vmatprep.subr.bf16.mxu0 %v5037
    %5551 = vmatpush1.bf16.msra.mxu0 %v5036
    %5552 = vmatprep.subr.bf16.mxu0 %v5043
    %5553 = vmatpush1.bf16.msra.mxu0 %v5042
    %5554 = vmatprep.subr.bf16.mxu0 %v5049
    %5555 = vmatpush1.bf16.msra.mxu0 %v5048
    %5556 = vmatprep.subr.bf16.mxu0 %v5055
    %5557 = vmatpush1.bf16.msra.mxu0 %v5054
    %5558 = vmatprep.mubr.bf16.mxu0 %v3394
    %5559 = vmatmul.mubr.bf16.gmra.mrb[0].mxu0 %v3393
    %v5560 = vpop.f32.mrb[0].mxu0
    %v5561 = vadd.f32 %v5520, %v5560
    %v5562 = vpop.f32.mrb[0].mxu0
    %v5563 = vadd.f32 %v5522, %v5562
    %v5564 = vpop.f32.mrb[0].mxu0
    %v5565 = vpop.f32.mrb[0].mxu0
    %5566 = vdwg.mxu0
    %5567 = vmatprep.subr.bf16.mxu0 %v5061
    %5568 = vmatpush1.bf16.msra.mxu0 %v5060
    %5569 = vmatprep.subr.bf16.mxu0 %v5067
    %5570 = vmatpush1.bf16.msra.mxu0 %v5066
    %5571 = vmatprep.subr.bf16.mxu0 %v5073
    %5572 = vmatpush1.bf16.msra.mxu0 %v5072
    %5573 = vmatprep.subr.bf16.mxu0 %v5079
    %5574 = vmatpush1.bf16.msra.mxu0 %v5078
    %5575 = vmatprep.subr.bf16.mxu0 %v5085
    %5576 = vmatpush1.bf16.msra.mxu0 %v5084
    %5577 = vmatprep.subr.bf16.mxu0 %v5091
    %5578 = vmatpush1.bf16.msra.mxu0 %v5090
    %5579 = vmatprep.subr.bf16.mxu0 %v5097
    %5580 = vmatpush1.bf16.msra.mxu0 %v5096
    %5581 = vmatprep.subr.bf16.mxu0 %v5103
    %5582 = vmatpush1.bf16.msra.mxu0 %v5102
    %5583 = vmatprep.subr.bf16.mxu0 0
    %5584 = vmatpush1.bf16.msra.mxu0 0
    %5585 = vmatprep.subr.bf16.mxu0 0
    %5586 = vmatpush1.bf16.msra.mxu0 0
    %5587 = vmatprep.subr.bf16.mxu0 0
    %5588 = vmatpush1.bf16.msra.mxu0 0
    %5589 = vmatprep.subr.bf16.mxu0 0
    %5590 = vmatpush1.bf16.msra.mxu0 0
    %5591 = vmatprep.subr.bf16.mxu0 0
    %5592 = vmatpush1.bf16.msra.mxu0 0
    %5593 = vmatprep.subr.bf16.mxu0 0
    %5594 = vmatpush1.bf16.msra.mxu0 0
    %5595 = vmatprep.subr.bf16.mxu0 0
    %5596 = vmatpush1.bf16.msra.mxu0 0
    %5597 = vmatprep.subr.bf16.mxu0 0
    %5598 = vmatpush1.bf16.msra.mxu0 0
    %5599 = vmatprep.mubr.bf16.mxu0 0
    %5600 = vmatmul.mubr.bf16.gmra.mrb[0].mxu0 %v3395
    %v5601 = vpop.f32.mrb[0].mxu0
    %v5602 = vadd.f32 %v5561, %v5601
    %v5603 = vpop.f32.mrb[0].mxu0
    %v5604 = vadd.f32 %v5563, %v5603
    %v5605 = vpop.f32.mrb[0].mxu0
    %v5606 = vpop.f32.mrb[0].mxu0
    %5607 = vdwg.mxu0
    %5608 = vmatprep.subr.bf16.mxu0 %v4775
    %5609 = vmatpush1.bf16.msra.mxu0 %v4774
    %5610 = vmatprep.subr.bf16.mxu0 %v4781
    %5611 = vmatpush1.bf16.msra.mxu0 %v4780
    %5612 = vmatprep.subr.bf16.mxu0 %v4787
    %5613 = vmatpush1.bf16.msra.mxu0 %v4786
    %5614 = vmatprep.subr.bf16.mxu0 %v4793
    %5615 = vmatpush1.bf16.msra.mxu0 %v4792
    %5616 = vmatprep.subr.bf16.mxu0 %v4799
    %5617 = vmatpush1.bf16.msra.mxu0 %v4798
    %5618 = vmatprep.subr.bf16.mxu0 %v4805
    %5619 = vmatpush1.bf16.msra.mxu0 %v4804
    %5620 = vmatprep.subr.bf16.mxu0 %v4811
    %5621 = vmatpush1.bf16.msra.mxu0 %v4810
    %5622 = vmatprep.subr.bf16.mxu0 %v4817
    %5623 = vmatpush1.bf16.msra.mxu0 %v4816
    %5624 = vmatprep.subr.bf16.mxu0 %v4823
    %5625 = vmatpush1.bf16.msra.mxu0 %v4822
    %5626 = vmatprep.subr.bf16.mxu0 %v4829
    %5627 = vmatpush1.bf16.msra.mxu0 %v4828
    %5628 = vmatprep.subr.bf16.mxu0 %v4835
    %5629 = vmatpush1.bf16.msra.mxu0 %v4834
    %5630 = vmatprep.subr.bf16.mxu0 %v4841
    %5631 = vmatpush1.bf16.msra.mxu0 %v4840
    %5632 = vmatprep.subr.bf16.mxu0 %v4847
    %5633 = vmatpush1.bf16.msra.mxu0 %v4846
    %5634 = vmatprep.subr.bf16.mxu0 %v4853
    %5635 = vmatpush1.bf16.msra.mxu0 %v4852
    %5636 = vmatprep.subr.bf16.mxu0 %v4859
    %5637 = vmatpush1.bf16.msra.mxu0 %v4858
    %5638 = vmatprep.subr.bf16.mxu0 %v4865
    %5639 = vmatpush1.bf16.msra.mxu0 %v4864
    %5640 = vmatprep.mubr.bf16.mxu0 %v3390
    %5641 = vmatmul.mubr.bf16.gmra.mrb[0].mxu0 %v3389
    %v5642 = vpop.f32.mrb[0].mxu0
    %v5643 = vadd.f32 %v3745, %v5642
    %v5644 = vpop.f32.mrb[0].mxu0
    %v5645 = vadd.f32 %v3749, %v5644
    %v5646 = vpop.f32.mrb[0].mxu0
    %v5647 = vpop.f32.mrb[0].mxu0
    %5648 = vdwg.mxu0
    %5649 = vmatprep.subr.bf16.mxu0 %v4871
    %5650 = vmatpush1.bf16.msra.mxu0 %v4870
    %5651 = vmatprep.subr.bf16.mxu0 %v4877
    %5652 = vmatpush1.bf16.msra.mxu0 %v4876
    %5653 = vmatprep.subr.bf16.mxu0 %v4883
    %5654 = vmatpush1.bf16.msra.mxu0 %v4882
    %5655 = vmatprep.subr.bf16.mxu0 %v4889
    %5656 = vmatpush1.bf16.msra.mxu0 %v4888
    %5657 = vmatprep.subr.bf16.mxu0 %v4895
    %5658 = vmatpush1.bf16.msra.mxu0 %v4894
    %5659 = vmatprep.subr.bf16.mxu0 %v4901
    %5660 = vmatpush1.bf16.msra.mxu0 %v4900
    %5661 = vmatprep.subr.bf16.mxu0 %v4907
    %5662 = vmatpush1.bf16.msra.mxu0 %v4906
    %5663 = vmatprep.subr.bf16.mxu0 %v4913
    %5664 = vmatpush1.bf16.msra.mxu0 %v4912
    %5665 = vmatprep.subr.bf16.mxu0 %v4919
    %5666 = vmatpush1.bf16.msra.mxu0 %v4918
    %5667 = vmatprep.subr.bf16.mxu0 %v4925
    %5668 = vmatpush1.bf16.msra.mxu0 %v4924
    %5669 = vmatprep.subr.bf16.mxu0 %v4931
    %5670 = vmatpush1.bf16.msra.mxu0 %v4930
    %5671 = vmatprep.subr.bf16.mxu0 %v4937
    %5672 = vmatpush1.bf16.msra.mxu0 %v4936
    %5673 = vmatprep.subr.bf16.mxu0 %v4943
    %5674 = vmatpush1.bf16.msra.mxu0 %v4942
    %5675 = vmatprep.subr.bf16.mxu0 %v4949
    %5676 = vmatpush1.bf16.msra.mxu0 %v4948
    %5677 = vmatprep.subr.bf16.mxu0 %v4955
    %5678 = vmatpush1.bf16.msra.mxu0 %v4954
    %5679 = vmatprep.subr.bf16.mxu0 %v4961
    %5680 = vmatpush1.bf16.msra.mxu0 %v4960
    %5681 = vmatprep.mubr.bf16.mxu0 %v3392
    %5682 = vmatmul.mubr.bf16.gmra.mrb[0].mxu0 %v3391
    %v5683 = vpop.f32.mrb[0].mxu0
    %v5684 = vadd.f32 %v5643, %v5683
    %v5685 = vpop.f32.mrb[0].mxu0
    %v5686 = vadd.f32 %v5645, %v5685
    %v5687 = vpop.f32.mrb[0].mxu0
    %v5688 = vpop.f32.mrb[0].mxu0
    %5689 = vdwg.mxu0
    %5690 = vmatprep.subr.bf16.mxu0 %v4967
    %5691 = vmatpush1.bf16.msra.mxu0 %v4966
    %5692 = vmatprep.subr.bf16.mxu0 %v4973
    %5693 = vmatpush1.bf16.msra.mxu0 %v4972
    %5694 = vmatprep.subr.bf16.mxu0 %v4979
    %5695 = vmatpush1.bf16.msra.mxu0 %v4978
    %5696 = vmatprep.subr.bf16.mxu0 %v4985
    %5697 = vmatpush1.bf16.msra.mxu0 %v4984
    %5698 = vmatprep.subr.bf16.mxu0 %v4991
    %5699 = vmatpush1.bf16.msra.mxu0 %v4990
    %5700 = vmatprep.subr.bf16.mxu0 %v4997
    %5701 = vmatpush1.bf16.msra.mxu0 %v4996
    %5702 = vmatprep.subr.bf16.mxu0 %v5003
    %5703 = vmatpush1.bf16.msra.mxu0 %v5002
    %5704 = vmatprep.subr.bf16.mxu0 %v5009
    %5705 = vmatpush1.bf16.msra.mxu0 %v5008
    %5706 = vmatprep.subr.bf16.mxu0 %v5015
    %5707 = vmatpush1.bf16.msra.mxu0 %v5014
    %5708 = vmatprep.subr.bf16.mxu0 %v5021
    %5709 = vmatpush1.bf16.msra.mxu0 %v5020
    %5710 = vmatprep.subr.bf16.mxu0 %v5027
    %5711 = vmatpush1.bf16.msra.mxu0 %v5026
    %5712 = vmatprep.subr.bf16.mxu0 %v5033
    %5713 = vmatpush1.bf16.msra.mxu0 %v5032
    %5714 = vmatprep.subr.bf16.mxu0 %v5039
    %5715 = vmatpush1.bf16.msra.mxu0 %v5038
    %5716 = vmatprep.subr.bf16.mxu0 %v5045
    %5717 = vmatpush1.bf16.msra.mxu0 %v5044
    %5718 = vmatprep.subr.bf16.mxu0 %v5051
    %5719 = vmatpush1.bf16.msra.mxu0 %v5050
    %5720 = vmatprep.subr.bf16.mxu0 %v5057
    %5721 = vmatpush1.bf16.msra.mxu0 %v5056
    %5722 = vmatprep.mubr.bf16.mxu0 %v3394
    %5723 = vmatmul.mubr.bf16.gmra.mrb[0].mxu0 %v3393
    %v5724 = vpop.f32.mrb[0].mxu0
    %v5725 = vadd.f32 %v5684, %v5724
    %v5726 = vpop.f32.mrb[0].mxu0
    %v5727 = vadd.f32 %v5686, %v5726
    %v5728 = vpop.f32.mrb[0].mxu0
    %v5729 = vpop.f32.mrb[0].mxu0
    %5730 = vdwg.mxu0
    %5731 = vmatprep.subr.bf16.mxu0 %v5063
    %5732 = vmatpush1.bf16.msra.mxu0 %v5062
    %5733 = vmatprep.subr.bf16.mxu0 %v5069
    %5734 = vmatpush1.bf16.msra.mxu0 %v5068
    %5735 = vmatprep.subr.bf16.mxu0 %v5075
    %5736 = vmatpush1.bf16.msra.mxu0 %v5074
    %5737 = vmatprep.subr.bf16.mxu0 %v5081
    %5738 = vmatpush1.bf16.msra.mxu0 %v5080
    %5739 = vmatprep.subr.bf16.mxu0 %v5087
    %5740 = vmatpush1.bf16.msra.mxu0 %v5086
    %5741 = vmatprep.subr.bf16.mxu0 %v5093
    %5742 = vmatpush1.bf16.msra.mxu0 %v5092
    %5743 = vmatprep.subr.bf16.mxu0 %v5099
    %5744 = vmatpush1.bf16.msra.mxu0 %v5098
    %5745 = vmatprep.subr.bf16.mxu0 %v5105
    %5746 = vmatpush1.bf16.msra.mxu0 %v5104
    %5747 = vmatprep.subr.bf16.mxu0 0
    %5748 = vmatpush1.bf16.msra.mxu0 0
    %5749 = vmatprep.subr.bf16.mxu0 0
    %5750 = vmatpush1.bf16.msra.mxu0 0
    %5751 = vmatprep.subr.bf16.mxu0 0
    %5752 = vmatpush1.bf16.msra.mxu0 0
    %5753 = vmatprep.subr.bf16.mxu0 0
    %5754 = vmatpush1.bf16.msra.mxu0 0
    %5755 = vmatprep.subr.bf16.mxu0 0
    %5756 = vmatpush1.bf16.msra.mxu0 0
    %5757 = vmatprep.subr.bf16.mxu0 0
    %5758 = vmatpush1.bf16.msra.mxu0 0
    %5759 = vmatprep.subr.bf16.mxu0 0
    %5760 = vmatpush1.bf16.msra.mxu0 0
    %5761 = vmatprep.subr.bf16.mxu0 0
    %5762 = vmatpush1.bf16.msra.mxu0 0
    %5763 = vmatprep.mubr.bf16.mxu0 0
    %5764 = vmatmul.mubr.bf16.gmra.mrb[0].mxu0 %v3395
    %v5765 = vpop.f32.mrb[0].mxu0
    %v5766 = vadd.f32 %v5725, %v5765
    %v5767 = vpop.f32.mrb[0].mxu0
    %v5768 = vadd.f32 %v5727, %v5767
    %v5769 = vpop.f32.mrb[0].mxu0
    %v5770 = vpop.f32.mrb[0].mxu0
    %5771 = vdwg.mxu0
    %5772 = vmatprep.subr.bf16.mxu0 %v4777
    %5773 = vmatpush1.bf16.msra.mxu0 %v4776
    %5774 = vmatprep.subr.bf16.mxu0 %v4783
    %5775 = vmatpush1.bf16.msra.mxu0 %v4782
    %5776 = vmatprep.subr.bf16.mxu0 %v4789
    %5777 = vmatpush1.bf16.msra.mxu0 %v4788
    %5778 = vmatprep.subr.bf16.mxu0 %v4795
    %5779 = vmatpush1.bf16.msra.mxu0 %v4794
    %5780 = vmatprep.subr.bf16.mxu0 %v4801
    %5781 = vmatpush1.bf16.msra.mxu0 %v4800
    %5782 = vmatprep.subr.bf16.mxu0 %v4807
    %5783 = vmatpush1.bf16.msra.mxu0 %v4806
    %5784 = vmatprep.subr.bf16.mxu0 %v4813
    %5785 = vmatpush1.bf16.msra.mxu0 %v4812
    %5786 = vmatprep.subr.bf16.mxu0 %v4819
    %5787 = vmatpush1.bf16.msra.mxu0 %v4818
    %5788 = vmatprep.subr.bf16.mxu0 %v4825
    %5789 = vmatpush1.bf16.msra.mxu0 %v4824
    %5790 = vmatprep.subr.bf16.mxu0 %v4831
    %5791 = vmatpush1.bf16.msra.mxu0 %v4830
    %5792 = vmatprep.subr.bf16.mxu0 %v4837
    %5793 = vmatpush1.bf16.msra.mxu0 %v4836
    %5794 = vmatprep.subr.bf16.mxu0 %v4843
    %5795 = vmatpush1.bf16.msra.mxu0 %v4842
    %5796 = vmatprep.subr.bf16.mxu0 %v4849
    %5797 = vmatpush1.bf16.msra.mxu0 %v4848
    %5798 = vmatprep.subr.bf16.mxu0 %v4855
    %5799 = vmatpush1.bf16.msra.mxu0 %v4854
    %5800 = vmatprep.subr.bf16.mxu0 %v4861
    %5801 = vmatpush1.bf16.msra.mxu0 %v4860
    %5802 = vmatprep.subr.bf16.mxu0 %v4867
    %5803 = vmatpush1.bf16.msra.mxu0 %v4866
    %5804 = vmatprep.mubr.bf16.mxu0 %v3390
    %5805 = vmatmul.mubr.bf16.gmra.mrb[0].mxu0 %v3389
    %v5806 = vpop.f32.mrb[0].mxu0
    %v5807 = vadd.f32 %v3753, %v5806
    %v5808 = vpop.f32.mrb[0].mxu0
    %v5809 = vadd.f32 %v3757, %v5808
    %v5810 = vpop.f32.mrb[0].mxu0
    %v5811 = vpop.f32.mrb[0].mxu0
    %5812 = vdwg.mxu0
    %5813 = vmatprep.subr.bf16.mxu0 %v4873
    %5814 = vmatpush1.bf16.msra.mxu0 %v4872
    %5815 = vmatprep.subr.bf16.mxu0 %v4879
    %5816 = vmatpush1.bf16.msra.mxu0 %v4878
    %5817 = vmatprep.subr.bf16.mxu0 %v4885
    %5818 = vmatpush1.bf16.msra.mxu0 %v4884
    %5819 = vmatprep.subr.bf16.mxu0 %v4891
    %5820 = vmatpush1.bf16.msra.mxu0 %v4890
    %5821 = vmatprep.subr.bf16.mxu0 %v4897
    %5822 = vmatpush1.bf16.msra.mxu0 %v4896
    %5823 = vmatprep.subr.bf16.mxu0 %v4903
    %5824 = vmatpush1.bf16.msra.mxu0 %v4902
    %5825 = vmatprep.subr.bf16.mxu0 %v4909
    %5826 = vmatpush1.bf16.msra.mxu0 %v4908
    %5827 = vmatprep.subr.bf16.mxu0 %v4915
    %5828 = vmatpush1.bf16.msra.mxu0 %v4914
    %5829 = vmatprep.subr.bf16.mxu0 %v4921
    %5830 = vmatpush1.bf16.msra.mxu0 %v4920
    %5831 = vmatprep.subr.bf16.mxu0 %v4927
    %5832 = vmatpush1.bf16.msra.mxu0 %v4926
    %5833 = vmatprep.subr.bf16.mxu0 %v4933
    %5834 = vmatpush1.bf16.msra.mxu0 %v4932
    %5835 = vmatprep.subr.bf16.mxu0 %v4939
    %5836 = vmatpush1.bf16.msra.mxu0 %v4938
    %5837 = vmatprep.subr.bf16.mxu0 %v4945
    %5838 = vmatpush1.bf16.msra.mxu0 %v4944
    %5839 = vmatprep.subr.bf16.mxu0 %v4951
    %5840 = vmatpush1.bf16.msra.mxu0 %v4950
    %5841 = vmatprep.subr.bf16.mxu0 %v4957
    %5842 = vmatpush1.bf16.msra.mxu0 %v4956
    %5843 = vmatprep.subr.bf16.mxu0 %v4963
    %5844 = vmatpush1.bf16.msra.mxu0 %v4962
    %5845 = vmatprep.mubr.bf16.mxu0 %v3392
    %5846 = vmatmul.mubr.bf16.gmra.mrb[0].mxu0 %v3391
    %v5847 = vpop.f32.mrb[0].mxu0
    %v5848 = vadd.f32 %v5807, %v5847
    %v5849 = vpop.f32.mrb[0].mxu0
    %v5850 = vadd.f32 %v5809, %v5849
    %v5851 = vpop.f32.mrb[0].mxu0
    %v5852 = vpop.f32.mrb[0].mxu0
    %5853 = vdwg.mxu0
    %5854 = vmatprep.subr.bf16.mxu0 %v4969
    %5855 = vmatpush1.bf16.msra.mxu0 %v4968
    %5856 = vmatprep.subr.bf16.mxu0 %v4975
    %5857 = vmatpush1.bf16.msra.mxu0 %v4974
    %5858 = vmatprep.subr.bf16.mxu0 %v4981
    %5859 = vmatpush1.bf16.msra.mxu0 %v4980
    %5860 = vmatprep.subr.bf16.mxu0 %v4987
    %5861 = vmatpush1.bf16.msra.mxu0 %v4986
    %5862 = vmatprep.subr.bf16.mxu0 %v4993
    %5863 = vmatpush1.bf16.msra.mxu0 %v4992
    %5864 = vmatprep.subr.bf16.mxu0 %v4999
    %5865 = vmatpush1.bf16.msra.mxu0 %v4998
    %5866 = vmatprep.subr.bf16.mxu0 %v5005
    %5867 = vmatpush1.bf16.msra.mxu0 %v5004
    %5868 = vmatprep.subr.bf16.mxu0 %v5011
    %5869 = vmatpush1.bf16.msra.mxu0 %v5010
    %5870 = vmatprep.subr.bf16.mxu0 %v5017
    %5871 = vmatpush1.bf16.msra.mxu0 %v5016
    %5872 = vmatprep.subr.bf16.mxu0 %v5023
    %5873 = vmatpush1.bf16.msra.mxu0 %v5022
    %5874 = vmatprep.subr.bf16.mxu0 %v5029
    %5875 = vmatpush1.bf16.msra.mxu0 %v5028
    %5876 = vmatprep.subr.bf16.mxu0 %v5035
    %5877 = vmatpush1.bf16.msra.mxu0 %v5034
    %5878 = vmatprep.subr.bf16.mxu0 %v5041
    %5879 = vmatpush1.bf16.msra.mxu0 %v5040
    %5880 = vmatprep.subr.bf16.mxu0 %v5047
    %5881 = vmatpush1.bf16.msra.mxu0 %v5046
    %5882 = vmatprep.subr.bf16.mxu0 %v5053
    %5883 = vmatpush1.bf16.msra.mxu0 %v5052
    %5884 = vmatprep.subr.bf16.mxu0 %v5059
    %5885 = vmatpush1.bf16.msra.mxu0 %v5058
    %5886 = vmatprep.mubr.bf16.mxu0 %v3394
    %5887 = vmatmul.mubr.bf16.gmra.mrb[0].mxu0 %v3393
    %v5888 = vpop.f32.mrb[0].mxu0
    %v5889 = vadd.f32 %v5848, %v5888
    %v5890 = vpop.f32.mrb[0].mxu0
    %v5891 = vadd.f32 %v5850, %v5890
    %v5892 = vpop.f32.mrb[0].mxu0
    %v5893 = vpop.f32.mrb[0].mxu0
    %5894 = vdwg.mxu0
    %5895 = vmatprep.subr.bf16.mxu0 %v5065
    %5896 = vmatpush1.bf16.msra.mxu0 %v5064
    %5897 = vmatprep.subr.bf16.mxu0 %v5071
    %5898 = vmatpush1.bf16.msra.mxu0 %v5070
    %5899 = vmatprep.subr.bf16.mxu0 %v5077
    %5900 = vmatpush1.bf16.msra.mxu0 %v5076
    %5901 = vmatprep.subr.bf16.mxu0 %v5083
    %5902 = vmatpush1.bf16.msra.mxu0 %v5082
    %5903 = vmatprep.subr.bf16.mxu0 %v5089
    %5904 = vmatpush1.bf16.msra.mxu0 %v5088
    %5905 = vmatprep.subr.bf16.mxu0 %v5095
    %5906 = vmatpush1.bf16.msra.mxu0 %v5094
    %5907 = vmatprep.subr.bf16.mxu0 %v5101
    %5908 = vmatpush1.bf16.msra.mxu0 %v5100
    %5909 = vmatprep.subr.bf16.mxu0 %v5107
    %5910 = vmatpush1.bf16.msra.mxu0 %v5106
    %5911 = vmatprep.subr.bf16.mxu0 0
    %5912 = vmatpush1.bf16.msra.mxu0 0
    %5913 = vmatprep.subr.bf16.mxu0 0
    %5914 = vmatpush1.bf16.msra.mxu0 0
    %5915 = vmatprep.subr.bf16.mxu0 0
    %5916 = vmatpush1.bf16.msra.mxu0 0
    %5917 = vmatprep.subr.bf16.mxu0 0
    %5918 = vmatpush1.bf16.msra.mxu0 0
    %5919 = vmatprep.subr.bf16.mxu0 0
    %5920 = vmatpush1.bf16.msra.mxu0 0
    %5921 = vmatprep.subr.bf16.mxu0 0
    %5922 = vmatpush1.bf16.msra.mxu0 0
    %5923 = vmatprep.subr.bf16.mxu0 0
    %5924 = vmatpush1.bf16.msra.mxu0 0
    %5925 = vmatprep.subr.bf16.mxu0 0
    %5926 = vmatpush1.bf16.msra.mxu0 0
    %5927 = vmatprep.mubr.bf16.mxu0 0
    %5928 = vmatmul.mubr.bf16.gmra.mrb[0].mxu0 %v3395
    %v5929 = vpop.f32.mrb[0].mxu0
    %v5930 = vadd.f32 %v5889, %v5929
    %v5931 = vpop.f32.mrb[0].mxu0
    %v5932 = vadd.f32 %v5891, %v5931
    %v5933 = vpop.f32.mrb[0].mxu0
    %v5934 = vpop.f32.mrb[0].mxu0
    %5935 = vdwg.mxu0
    %v5936 = vmax.f32 %v5602, 0.0
    %v5937 = vmax.f32 %v5604, 0.0
    %v5938 = vmax.f32 %v5766, 0.0
    %v5939 = vmax.f32 %v5768, 0.0
    %v5940 = vmax.f32 %v5930, 0.0
    %v5941 = vmax.f32 %v5932, 0.0
    %v5942 = vpack.c.bf16 %v5936, %v5936
    %v5943 = vpack.c.bf16 %v5937, %v5937
    %v5944 = vpack.c.bf16 %v5938, %v5938
    %v5945 = vpack.c.bf16 %v5939, %v5939
    %v5946 = vpack.c.bf16 %v5940, %v5940
    %v5947 = vpack.c.bf16 %v5941, %v5941
    %v5948 = vld [vmem:[%s7] sm:$0xff]
    %v5949 = vld [vmem:[%s7 + $0x8] sm:$0xf]
    %v5950 = vld [vmem:[%s7 + $0xc] sm:$0xff]
    %v5951 = vld [vmem:[%s7 + $0x14] sm:$0xf]
    %v5952 = vld [vmem:[%s7 + $0x18] sm:$0xff]
    %v5953 = vld [vmem:[%s7 + $0x20] sm:$0xf]
    %v5954 = vld [vmem:[%s7 + $0x24] sm:$0xff]
    %v5955 = vld [vmem:[%s7 + $0x2c] sm:$0xf]
    %v5956 = vld [vmem:[%s7 + $0x30] sm:$0xff]
    %v5957 = vld [vmem:[%s7 + $0x38] sm:$0xf]
    %v5958 = vld [vmem:[%s7 + $0x3c] sm:$0xff]
    %v5959 = vld [vmem:[%s7 + $0x44] sm:$0xf]
    %v5960 = vld [vmem:[%s7 + $0x48] sm:$0xff]
    %v5961 = vld [vmem:[%s7 + $0x50] sm:$0xf]
    %v5962 = vld [vmem:[%s7 + $0x54] sm:$0xff]
    %v5963 = vld [vmem:[%s7 + $0x5c] sm:$0xf]
    %v5964 = vld [vmem:[%s7 + $0x60] sm:$0xff]
    %v5965 = vld [vmem:[%s7 + $0x68] sm:$0xf]
    %v5966 = vld [vmem:[%s7 + $0x6c] sm:$0xff]
    %v5967 = vld [vmem:[%s7 + $0x74] sm:$0xf]
    %v5968 = vld [vmem:[%s7 + $0x78] sm:$0xff]
    %v5969 = vld [vmem:[%s7 + $0x80] sm:$0xf]
    %v5970 = vld [vmem:[%s7 + $0x84] sm:$0xff]
    %v5971 = vld [vmem:[%s7 + $0x8c] sm:$0xf]
    %v5972 = vld [vmem:[%s7 + $0x90] sm:$0xff]
    %v5973 = vld [vmem:[%s7 + $0x98] sm:$0xf]
    %v5974 = vld [vmem:[%s7 + $0x9c] sm:$0xff]
    %v5975 = vld [vmem:[%s7 + $0xa4] sm:$0xf]
    %v5976 = vld [vmem:[%s7 + $0xa8] sm:$0xff]
    %v5977 = vld [vmem:[%s7 + $0xb0] sm:$0xf]
    %v5978 = vld [vmem:[%s7 + $0xb4] sm:$0xff]
    %v5979 = vld [vmem:[%s7 + $0xbc] sm:$0xf]
    %v5980 = vld [vmem:[%s7 + $0xc0] sm:$0xff]
    %v5981 = vld [vmem:[%s7 + $0xc8] sm:$0xf]
    %v5982 = vld [vmem:[%s7 + $0xcc] sm:$0xff]
    %v5983 = vld [vmem:[%s7 + $0xd4] sm:$0xf]
    %v5984 = vld [vmem:[%s7 + $0xd8] sm:$0xff]
    %v5985 = vld [vmem:[%s7 + $0xe0] sm:$0xf]
    %v5986 = vld [vmem:[%s7 + $0xe4] sm:$0xff]
    %v5987 = vld [vmem:[%s7 + $0xec] sm:$0xf]
    %v5988 = vld [vmem:[%s7 + $0xf0] sm:$0xff]
    %v5989 = vld [vmem:[%s7 + $0xf8] sm:$0xf]
    %v5990 = vld [vmem:[%s7 + $0xfc] sm:$0xff]
    %v5991 = vld [vmem:[%s7 + $0x104] sm:$0xf]
    %v5992 = vld [vmem:[%s7 + $0x108] sm:$0xff]
    %v5993 = vld [vmem:[%s7 + $0x110] sm:$0xf]
    %v5994 = vld [vmem:[%s7 + $0x114] sm:$0xff]
    %v5995 = vld [vmem:[%s7 + $0x11c] sm:$0xf]
    %v5996 = vld [vmem:[%s7 + $0x120] sm:$0xff]
    %v5997 = vld [vmem:[%s7 + $0x128] sm:$0xf]
    %v5998 = vld [vmem:[%s7 + $0x12c] sm:$0xff]
    %v5999 = vld [vmem:[%s7 + $0x134] sm:$0xf]
    %v6000 = vld [vmem:[%s7 + $0x138] sm:$0xff]
    %v6001 = vld [vmem:[%s7 + $0x140] sm:$0xf]
    %v6002 = vld [vmem:[%s7 + $0x144] sm:$0xff]
    %v6003 = vld [vmem:[%s7 + $0x14c] sm:$0xf]
    %v6004 = vld [vmem:[%s7 + $0x150] sm:$0xff]
    %v6005 = vld [vmem:[%s7 + $0x158] sm:$0xf]
    %v6006 = vld [vmem:[%s7 + $0x15c] sm:$0xff]
    %v6007 = vld [vmem:[%s7 + $0x164] sm:$0xf]
    %v6008 = vld [vmem:[%s7 + $0x168] sm:$0xff]
    %v6009 = vld [vmem:[%s7 + $0x170] sm:$0xf]
    %v6010 = vld [vmem:[%s7 + $0x174] sm:$0xff]
    %v6011 = vld [vmem:[%s7 + $0x17c] sm:$0xf]
    %v6012 = vld [vmem:[%s7 + $0x180] sm:$0xff]
    %v6013 = vld [vmem:[%s7 + $0x188] sm:$0xf]
    %v6014 = vld [vmem:[%s7 + $0x18c] sm:$0xff]
    %v6015 = vld [vmem:[%s7 + $0x194] sm:$0xf]
    %v6016 = vld [vmem:[%s7 + $0x198] sm:$0xff]
    %v6017 = vld [vmem:[%s7 + $0x1a0] sm:$0xf]
    %v6018 = vld [vmem:[%s7 + $0x1a4] sm:$0xff]
    %v6019 = vld [vmem:[%s7 + $0x1ac] sm:$0xf]
    %v6020 = vld [vmem:[%s7 + $0x1b0] sm:$0xff]
    %v6021 = vld [vmem:[%s7 + $0x1b8] sm:$0xf]
    %v6022 = vld [vmem:[%s7 + $0x1bc] sm:$0xff]
    %v6023 = vld [vmem:[%s7 + $0x1c4] sm:$0xf]
    %v6024 = vld [vmem:[%s7 + $0x1c8] sm:$0xff]
    %v6025 = vld [vmem:[%s7 + $0x1d0] sm:$0xf]
    %v6026 = vld [vmem:[%s7 + $0x1d4] sm:$0xff]
    %v6027 = vld [vmem:[%s7 + $0x1dc] sm:$0xf]
    %v6028 = vld [vmem:[%s7 + $0x1e0] sm:$0xff]
    %v6029 = vld [vmem:[%s7 + $0x1e8] sm:$0xf]
    %v6030 = vld [vmem:[%s7 + $0x1ec] sm:$0xff]
    %v6031 = vld [vmem:[%s7 + $0x1f4] sm:$0xf]
    %v6032 = vld [vmem:[%s7 + $0x1f8] sm:$0xff]
    %v6033 = vld [vmem:[%s7 + $0x200] sm:$0xf]
    %v6034 = vld [vmem:[%s7 + $0x204] sm:$0xff]
    %v6035 = vld [vmem:[%s7 + $0x20c] sm:$0xf]
    %v6036 = vld [vmem:[%s7 + $0x210] sm:$0xff]
    %v6037 = vld [vmem:[%s7 + $0x218] sm:$0xf]
    %v6038 = vld [vmem:[%s7 + $0x21c] sm:$0xff]
    %v6039 = vld [vmem:[%s7 + $0x224] sm:$0xf]
    %v6040 = vld [vmem:[%s7 + $0x228] sm:$0xff]
    %v6041 = vld [vmem:[%s7 + $0x230] sm:$0xf]
    %v6042 = vld [vmem:[%s7 + $0x234] sm:$0xff]
    %v6043 = vld [vmem:[%s7 + $0x23c] sm:$0xf]
    %v6044 = vld [vmem:[%s7 + $0x240] sm:$0xff]
    %v6045 = vld [vmem:[%s7 + $0x248] sm:$0xf]
    %v6046 = vld [vmem:[%s7 + $0x24c] sm:$0xff]
    %v6047 = vld [vmem:[%s7 + $0x254] sm:$0xf]
    %v6048 = vld [vmem:[%s7 + $0x258] sm:$0xff]
    %v6049 = vld [vmem:[%s7 + $0x260] sm:$0xf]
    %v6050 = vld [vmem:[%s7 + $0x264] sm:$0xff]
    %v6051 = vld [vmem:[%s7 + $0x26c] sm:$0xf]
    %v6052 = vld [vmem:[%s7 + $0x270] sm:$0xff]
    %v6053 = vld [vmem:[%s7 + $0x278] sm:$0xf]
    %v6054 = vld [vmem:[%s7 + $0x27c] sm:$0xff]
    %v6055 = vld [vmem:[%s7 + $0x284] sm:$0xf]
    %v6056 = vld [vmem:[%s7 + $0x288] sm:$0xff]
    %v6057 = vld [vmem:[%s7 + $0x290] sm:$0xf]
    %v6058 = vld [vmem:[%s7 + $0x294] sm:$0xff]
    %v6059 = vld [vmem:[%s7 + $0x29c] sm:$0xf]
    %v6060 = vld [vmem:[%s7 + $0x2a0] sm:$0xff]
    %v6061 = vld [vmem:[%s7 + $0x2a8] sm:$0xf]
    %v6062 = vld [vmem:[%s7 + $0x2ac] sm:$0xff]
    %v6063 = vld [vmem:[%s7 + $0x2b4] sm:$0xf]
    %v6064 = vld [vmem:[%s7 + $0x2b8] sm:$0xff]
    %v6065 = vld [vmem:[%s7 + $0x2c0] sm:$0xf]
    %v6066 = vld [vmem:[%s7 + $0x2c4] sm:$0xff]
    %v6067 = vld [vmem:[%s7 + $0x2cc] sm:$0xf]
    %v6068 = vld [vmem:[%s7 + $0x2d0] sm:$0xff]
    %v6069 = vld [vmem:[%s7 + $0x2d8] sm:$0xf]
    %v6070 = vld [vmem:[%s7 + $0x2dc] sm:$0xff]
    %v6071 = vld [vmem:[%s7 + $0x2e4] sm:$0xf]
    %v6072 = vld [vmem:[%s7 + $0x2e8] sm:$0xff]
    %v6073 = vld [vmem:[%s7 + $0x2f0] sm:$0xf]
    %v6074 = vld [vmem:[%s7 + $0x2f4] sm:$0xff]
    %v6075 = vld [vmem:[%s7 + $0x2fc] sm:$0xf]
    %v6076 = vld [vmem:[%s7 + $0x300] sm:$0xff]
    %v6077 = vld [vmem:[%s7 + $0x308] sm:$0xf]
    %v6078 = vld [vmem:[%s7 + $0x30c] sm:$0xff]
    %v6079 = vld [vmem:[%s7 + $0x314] sm:$0xf]
    %v6080 = vld [vmem:[%s7 + $0x318] sm:$0xff]
    %v6081 = vld [vmem:[%s7 + $0x320] sm:$0xf]
    %v6082 = vld [vmem:[%s7 + $0x324] sm:$0xff]
    %v6083 = vld [vmem:[%s7 + $0x32c] sm:$0xf]
    %v6084 = vld [vmem:[%s7 + $0x330] sm:$0xff]
    %v6085 = vld [vmem:[%s7 + $0x338] sm:$0xf]
    %v6086 = vld [vmem:[%s7 + $0x33c] sm:$0xff]
    %v6087 = vld [vmem:[%s7 + $0x344] sm:$0xf]
    %v6088 = vld [vmem:[%s7 + $0x348] sm:$0xff]
    %v6089 = vld [vmem:[%s7 + $0x350] sm:$0xf]
    %v6090 = vld [vmem:[%s7 + $0x354] sm:$0xff]
    %v6091 = vld [vmem:[%s7 + $0x35c] sm:$0xf]
    %v6092 = vld [vmem:[%s7 + $0x360] sm:$0xff]
    %v6093 = vld [vmem:[%s7 + $0x368] sm:$0xf]
    %v6094 = vld [vmem:[%s7 + $0x36c] sm:$0xff]
    %v6095 = vld [vmem:[%s7 + $0x374] sm:$0xf]
    %v6096 = vld [vmem:[%s7 + $0x378] sm:$0xff]
    %v6097 = vld [vmem:[%s7 + $0x380] sm:$0xf]
    %v6098 = vld [vmem:[%s7 + $0x384] sm:$0xff]
    %v6099 = vld [vmem:[%s7 + $0x38c] sm:$0xf]
    %v6100 = vld [vmem:[%s7 + $0x390] sm:$0xff]
    %v6101 = vld [vmem:[%s7 + $0x398] sm:$0xf]
    %v6102 = vld [vmem:[%s7 + $0x39c] sm:$0xff]
    %v6103 = vld [vmem:[%s7 + $0x3a4] sm:$0xf]
    %v6104 = vld [vmem:[%s7 + $0x3a8] sm:$0xff]
    %v6105 = vld [vmem:[%s7 + $0x3b0] sm:$0xf]
    %v6106 = vld [vmem:[%s7 + $0x3b4] sm:$0xff]
    %v6107 = vld [vmem:[%s7 + $0x3bc] sm:$0xf]
    %v6108 = vld [vmem:[%s7 + $0x3c0] sm:$0xff]
    %v6109 = vld [vmem:[%s7 + $0x3c8] sm:$0xf]
    %v6110 = vld [vmem:[%s7 + $0x3cc] sm:$0xff]
    %v6111 = vld [vmem:[%s7 + $0x3d4] sm:$0xf]
    %v6112 = vld [vmem:[%s7 + $0x3d8] sm:$0xff]
    %v6113 = vld [vmem:[%s7 + $0x3e0] sm:$0xf]
    %v6114 = vld [vmem:[%s7 + $0x3e4] sm:$0xff]
    %v6115 = vld [vmem:[%s7 + $0x3ec] sm:$0xf]
    %v6116 = vld [vmem:[%s7 + $0x3f0] sm:$0xff]
    %v6117 = vld [vmem:[%s7 + $0x3f8] sm:$0xf]
    %v6118 = vld [vmem:[%s7 + $0x3fc] sm:$0xff]
    %v6119 = vld [vmem:[%s7 + $0x404] sm:$0xf]
    %v6120 = vld [vmem:[%s7 + $0x408] sm:$0xff]
    %v6121 = vld [vmem:[%s7 + $0x410] sm:$0xf]
    %v6122 = vld [vmem:[%s7 + $0x414] sm:$0xff]
    %v6123 = vld [vmem:[%s7 + $0x41c] sm:$0xf]
    %v6124 = vld [vmem:[%s7 + $0x420] sm:$0xff]
    %v6125 = vld [vmem:[%s7 + $0x428] sm:$0xf]
    %v6126 = vld [vmem:[%s7 + $0x42c] sm:$0xff]
    %v6127 = vld [vmem:[%s7 + $0x434] sm:$0xf]
    %v6128 = vld [vmem:[%s7 + $0x438] sm:$0xff]
    %v6129 = vld [vmem:[%s7 + $0x440] sm:$0xf]
    %v6130 = vld [vmem:[%s7 + $0x444] sm:$0xff]
    %v6131 = vld [vmem:[%s7 + $0x44c] sm:$0xf]
    %v6132 = vld [vmem:[%s7 + $0x450] sm:$0xff]
    %v6133 = vld [vmem:[%s7 + $0x458] sm:$0xf]
    %v6134 = vld [vmem:[%s7 + $0x45c] sm:$0xff]
    %v6135 = vld [vmem:[%s7 + $0x464] sm:$0xf]
    %v6136 = vld [vmem:[%s7 + $0x468] sm:$0xff]
    %v6137 = vld [vmem:[%s7 + $0x470] sm:$0xf]
    %v6138 = vld [vmem:[%s7 + $0x474] sm:$0xff]
    %v6139 = vld [vmem:[%s7 + $0x47c] sm:$0xf]
    %v6140 = vld [vmem:[#allocation11] sm:$0x7]
    %v6142 = vlaneseq
    %v6143 = vshrl.u32 %v6142, 7
    %v6144 = vsub.s32 0, %v6143
    %v6145 = vrot.slane %v6140, %v6144
    %v6146 = vlaneseq
    %v6147 = vshrl.u32 %v6146, 7
    %v6148 = vsub.s32 1, %v6147
    %v6149 = vrot.slane %v6140, %v6148
    %v6150 = vlaneseq
    %v6151 = vshrl.u32 %v6150, 7
    %v6152 = vsub.s32 2, %v6151
    %v6153 = vrot.slane %v6140, %v6152
    %v6349 = vunpack.c.l.b16 %v5948
    %v6350 = vunpack.c.h.b16 %v5948
    %v6351 = vunpack.c.l.b16 %v5949
    %v6352 = vunpack.c.l.b16 %v5950
    %v6353 = vunpack.c.h.b16 %v5950
    %v6354 = vunpack.c.l.b16 %v5951
    %v6355 = vunpack.c.l.b16 %v5952
    %v6356 = vunpack.c.h.b16 %v5952
    %v6357 = vunpack.c.l.b16 %v5953
    %v6358 = vunpack.c.l.b16 %v5954
    %v6359 = vunpack.c.h.b16 %v5954
    %v6360 = vunpack.c.l.b16 %v5955
    %v6361 = vunpack.c.l.b16 %v5956
    %v6362 = vunpack.c.h.b16 %v5956
    %v6363 = vunpack.c.l.b16 %v5957
    %v6364 = vunpack.c.l.b16 %v5958
    %v6365 = vunpack.c.h.b16 %v5958
    %v6366 = vunpack.c.l.b16 %v5959
    %v6367 = vunpack.c.l.b16 %v5960
    %v6368 = vunpack.c.h.b16 %v5960
    %v6369 = vunpack.c.l.b16 %v5961
    %v6370 = vunpack.c.l.b16 %v5962
    %v6371 = vunpack.c.h.b16 %v5962
    %v6372 = vunpack.c.l.b16 %v5963
    %v6373 = vunpack.c.l.b16 %v5964
    %v6374 = vunpack.c.h.b16 %v5964
    %v6375 = vunpack.c.l.b16 %v5965
    %v6376 = vunpack.c.l.b16 %v5966
    %v6377 = vunpack.c.h.b16 %v5966
    %v6378 = vunpack.c.l.b16 %v5967
    %v6379 = vunpack.c.l.b16 %v5968
    %v6380 = vunpack.c.h.b16 %v5968
    %v6381 = vunpack.c.l.b16 %v5969
    %v6382 = vunpack.c.l.b16 %v5970
    %v6383 = vunpack.c.h.b16 %v5970
    %v6384 = vunpack.c.l.b16 %v5971
    %v6385 = vunpack.c.l.b16 %v5972
    %v6386 = vunpack.c.h.b16 %v5972
    %v6387 = vunpack.c.l.b16 %v5973
    %v6388 = vunpack.c.l.b16 %v5974
    %v6389 = vunpack.c.h.b16 %v5974
    %v6390 = vunpack.c.l.b16 %v5975
    %v6391 = vunpack.c.l.b16 %v5976
    %v6392 = vunpack.c.h.b16 %v5976
    %v6393 = vunpack.c.l.b16 %v5977
    %v6394 = vunpack.c.l.b16 %v5978
    %v6395 = vunpack.c.h.b16 %v5978
    %v6396 = vunpack.c.l.b16 %v5979
    %v6397 = vunpack.c.l.b16 %v5980
    %v6398 = vunpack.c.h.b16 %v5980
    %v6399 = vunpack.c.l.b16 %v5981
    %v6400 = vunpack.c.l.b16 %v5982
    %v6401 = vunpack.c.h.b16 %v5982
    %v6402 = vunpack.c.l.b16 %v5983
    %v6403 = vunpack.c.l.b16 %v5984
    %v6404 = vunpack.c.h.b16 %v5984
    %v6405 = vunpack.c.l.b16 %v5985
    %v6406 = vunpack.c.l.b16 %v5986
    %v6407 = vunpack.c.h.b16 %v5986
    %v6408 = vunpack.c.l.b16 %v5987
    %v6409 = vunpack.c.l.b16 %v5988
    %v6410 = vunpack.c.h.b16 %v5988
    %v6411 = vunpack.c.l.b16 %v5989
    %v6412 = vunpack.c.l.b16 %v5990
    %v6413 = vunpack.c.h.b16 %v5990
    %v6414 = vunpack.c.l.b16 %v5991
    %v6415 = vunpack.c.l.b16 %v5992
    %v6416 = vunpack.c.h.b16 %v5992
    %v6417 = vunpack.c.l.b16 %v5993
    %v6418 = vunpack.c.l.b16 %v5994
    %v6419 = vunpack.c.h.b16 %v5994
    %v6420 = vunpack.c.l.b16 %v5995
    %v6421 = vunpack.c.l.b16 %v5996
    %v6422 = vunpack.c.h.b16 %v5996
    %v6423 = vunpack.c.l.b16 %v5997
    %v6424 = vunpack.c.l.b16 %v5998
    %v6425 = vunpack.c.h.b16 %v5998
    %v6426 = vunpack.c.l.b16 %v5999
    %v6427 = vunpack.c.l.b16 %v6000
    %v6428 = vunpack.c.h.b16 %v6000
    %v6429 = vunpack.c.l.b16 %v6001
    %v6430 = vunpack.c.l.b16 %v6002
    %v6431 = vunpack.c.h.b16 %v6002
    %v6432 = vunpack.c.l.b16 %v6003
    %v6433 = vunpack.c.l.b16 %v6004
    %v6434 = vunpack.c.h.b16 %v6004
    %v6435 = vunpack.c.l.b16 %v6005
    %v6436 = vunpack.c.l.b16 %v6006
    %v6437 = vunpack.c.h.b16 %v6006
    %v6438 = vunpack.c.l.b16 %v6007
    %v6439 = vunpack.c.l.b16 %v6008
    %v6440 = vunpack.c.h.b16 %v6008
    %v6441 = vunpack.c.l.b16 %v6009
    %v6442 = vunpack.c.l.b16 %v6010
    %v6443 = vunpack.c.h.b16 %v6010
    %v6444 = vunpack.c.l.b16 %v6011
    %v6445 = vunpack.c.l.b16 %v6012
    %v6446 = vunpack.c.h.b16 %v6012
    %v6447 = vunpack.c.l.b16 %v6013
    %v6448 = vunpack.c.l.b16 %v6014
    %v6449 = vunpack.c.h.b16 %v6014
    %v6450 = vunpack.c.l.b16 %v6015
    %v6451 = vunpack.c.l.b16 %v6016
    %v6452 = vunpack.c.h.b16 %v6016
    %v6453 = vunpack.c.l.b16 %v6017
    %v6454 = vunpack.c.l.b16 %v6018
    %v6455 = vunpack.c.h.b16 %v6018
    %v6456 = vunpack.c.l.b16 %v6019
    %v6457 = vunpack.c.l.b16 %v6020
    %v6458 = vunpack.c.h.b16 %v6020
    %v6459 = vunpack.c.l.b16 %v6021
    %v6460 = vunpack.c.l.b16 %v6022
    %v6461 = vunpack.c.h.b16 %v6022
    %v6462 = vunpack.c.l.b16 %v6023
    %v6463 = vunpack.c.l.b16 %v6024
    %v6464 = vunpack.c.h.b16 %v6024
    %v6465 = vunpack.c.l.b16 %v6025
    %v6466 = vunpack.c.l.b16 %v6026
    %v6467 = vunpack.c.h.b16 %v6026
    %v6468 = vunpack.c.l.b16 %v6027
    %v6469 = vunpack.c.l.b16 %v6028
    %v6470 = vunpack.c.h.b16 %v6028
    %v6471 = vunpack.c.l.b16 %v6029
    %v6472 = vunpack.c.l.b16 %v6030
    %v6473 = vunpack.c.h.b16 %v6030
    %v6474 = vunpack.c.l.b16 %v6031
    %v6475 = vunpack.c.l.b16 %v6032
    %v6476 = vunpack.c.h.b16 %v6032
    %v6477 = vunpack.c.l.b16 %v6033
    %v6478 = vunpack.c.l.b16 %v6034
    %v6479 = vunpack.c.h.b16 %v6034
    %v6480 = vunpack.c.l.b16 %v6035
    %v6481 = vunpack.c.l.b16 %v6036
    %v6482 = vunpack.c.h.b16 %v6036
    %v6483 = vunpack.c.l.b16 %v6037
    %v6484 = vunpack.c.l.b16 %v6038
    %v6485 = vunpack.c.h.b16 %v6038
    %v6486 = vunpack.c.l.b16 %v6039
    %v6487 = vunpack.c.l.b16 %v6040
    %v6488 = vunpack.c.h.b16 %v6040
    %v6489 = vunpack.c.l.b16 %v6041
    %v6490 = vunpack.c.l.b16 %v6042
    %v6491 = vunpack.c.h.b16 %v6042
    %v6492 = vunpack.c.l.b16 %v6043
    %v6493 = vunpack.c.l.b16 %v6044
    %v6494 = vunpack.c.h.b16 %v6044
    %v6495 = vunpack.c.l.b16 %v6045
    %v6496 = vunpack.c.l.b16 %v6046
    %v6497 = vunpack.c.h.b16 %v6046
    %v6498 = vunpack.c.l.b16 %v6047
    %v6499 = vunpack.c.l.b16 %v6048
    %v6500 = vunpack.c.h.b16 %v6048
    %v6501 = vunpack.c.l.b16 %v6049
    %v6502 = vunpack.c.l.b16 %v6050
    %v6503 = vunpack.c.h.b16 %v6050
    %v6504 = vunpack.c.l.b16 %v6051
    %v6505 = vunpack.c.l.b16 %v6052
    %v6506 = vunpack.c.h.b16 %v6052
    %v6507 = vunpack.c.l.b16 %v6053
    %v6508 = vunpack.c.l.b16 %v6054
    %v6509 = vunpack.c.h.b16 %v6054
    %v6510 = vunpack.c.l.b16 %v6055
    %v6511 = vunpack.c.l.b16 %v6056
    %v6512 = vunpack.c.h.b16 %v6056
    %v6513 = vunpack.c.l.b16 %v6057
    %v6514 = vunpack.c.l.b16 %v6058
    %v6515 = vunpack.c.h.b16 %v6058
    %v6516 = vunpack.c.l.b16 %v6059
    %v6517 = vunpack.c.l.b16 %v6060
    %v6518 = vunpack.c.h.b16 %v6060
    %v6519 = vunpack.c.l.b16 %v6061
    %v6520 = vunpack.c.l.b16 %v6062
    %v6521 = vunpack.c.h.b16 %v6062
    %v6522 = vunpack.c.l.b16 %v6063
    %v6523 = vunpack.c.l.b16 %v6064
    %v6524 = vunpack.c.h.b16 %v6064
    %v6525 = vunpack.c.l.b16 %v6065
    %v6526 = vunpack.c.l.b16 %v6066
    %v6527 = vunpack.c.h.b16 %v6066
    %v6528 = vunpack.c.l.b16 %v6067
    %v6529 = vunpack.c.l.b16 %v6068
    %v6530 = vunpack.c.h.b16 %v6068
    %v6531 = vunpack.c.l.b16 %v6069
    %v6532 = vunpack.c.l.b16 %v6070
    %v6533 = vunpack.c.h.b16 %v6070
    %v6534 = vunpack.c.l.b16 %v6071
    %v6535 = vunpack.c.l.b16 %v6072
    %v6536 = vunpack.c.h.b16 %v6072
    %v6537 = vunpack.c.l.b16 %v6073
    %v6538 = vunpack.c.l.b16 %v6074
    %v6539 = vunpack.c.h.b16 %v6074
    %v6540 = vunpack.c.l.b16 %v6075
    %v6541 = vunpack.c.l.b16 %v6076
    %v6542 = vunpack.c.h.b16 %v6076
    %v6543 = vunpack.c.l.b16 %v6077
    %v6544 = vunpack.c.l.b16 %v6078
    %v6545 = vunpack.c.h.b16 %v6078
    %v6546 = vunpack.c.l.b16 %v6079
    %v6547 = vunpack.c.l.b16 %v6080
    %v6548 = vunpack.c.h.b16 %v6080
    %v6549 = vunpack.c.l.b16 %v6081
    %v6550 = vunpack.c.l.b16 %v6082
    %v6551 = vunpack.c.h.b16 %v6082
    %v6552 = vunpack.c.l.b16 %v6083
    %v6553 = vunpack.c.l.b16 %v6084
    %v6554 = vunpack.c.h.b16 %v6084
    %v6555 = vunpack.c.l.b16 %v6085
    %v6556 = vunpack.c.l.b16 %v6086
    %v6557 = vunpack.c.h.b16 %v6086
    %v6558 = vunpack.c.l.b16 %v6087
    %v6559 = vunpack.c.l.b16 %v6088
    %v6560 = vunpack.c.h.b16 %v6088
    %v6561 = vunpack.c.l.b16 %v6089
    %v6562 = vunpack.c.l.b16 %v6090
    %v6563 = vunpack.c.h.b16 %v6090
    %v6564 = vunpack.c.l.b16 %v6091
    %v6565 = vunpack.c.l.b16 %v6092
    %v6566 = vunpack.c.h.b16 %v6092
    %v6567 = vunpack.c.l.b16 %v6093
    %v6568 = vunpack.c.l.b16 %v6094
    %v6569 = vunpack.c.h.b16 %v6094
    %v6570 = vunpack.c.l.b16 %v6095
    %v6571 = vunpack.c.l.b16 %v6096
    %v6572 = vunpack.c.h.b16 %v6096
    %v6573 = vunpack.c.l.b16 %v6097
    %v6574 = vunpack.c.l.b16 %v6098
    %v6575 = vunpack.c.h.b16 %v6098
    %v6576 = vunpack.c.l.b16 %v6099
    %v6577 = vunpack.c.l.b16 %v6100
    %v6578 = vunpack.c.h.b16 %v6100
    %v6579 = vunpack.c.l.b16 %v6101
    %v6580 = vunpack.c.l.b16 %v6102
    %v6581 = vunpack.c.h.b16 %v6102
    %v6582 = vunpack.c.l.b16 %v6103
    %v6583 = vunpack.c.l.b16 %v6104
    %v6584 = vunpack.c.h.b16 %v6104
    %v6585 = vunpack.c.l.b16 %v6105
    %v6586 = vunpack.c.l.b16 %v6106
    %v6587 = vunpack.c.h.b16 %v6106
    %v6588 = vunpack.c.l.b16 %v6107
    %v6589 = vunpack.c.l.b16 %v6108
    %v6590 = vunpack.c.h.b16 %v6108
    %v6591 = vunpack.c.l.b16 %v6109
    %v6592 = vunpack.c.l.b16 %v6110
    %v6593 = vunpack.c.h.b16 %v6110
    %v6594 = vunpack.c.l.b16 %v6111
    %v6595 = vunpack.c.l.b16 %v6112
    %v6596 = vunpack.c.h.b16 %v6112
    %v6597 = vunpack.c.l.b16 %v6113
    %v6598 = vunpack.c.l.b16 %v6114
    %v6599 = vunpack.c.h.b16 %v6114
    %v6600 = vunpack.c.l.b16 %v6115
    %v6601 = vunpack.c.l.b16 %v6116
    %v6602 = vunpack.c.h.b16 %v6116
    %v6603 = vunpack.c.l.b16 %v6117
    %v6604 = vunpack.c.l.b16 %v6118
    %v6605 = vunpack.c.h.b16 %v6118
    %v6606 = vunpack.c.l.b16 %v6119
    %v6607 = vunpack.c.l.b16 %v6120
    %v6608 = vunpack.c.h.b16 %v6120
    %v6609 = vunpack.c.l.b16 %v6121
    %v6610 = vunpack.c.l.b16 %v6122
    %v6611 = vunpack.c.h.b16 %v6122
    %v6612 = vunpack.c.l.b16 %v6123
    %v6613 = vunpack.c.l.b16 %v6124
    %v6614 = vunpack.c.h.b16 %v6124
    %v6615 = vunpack.c.l.b16 %v6125
    %v6616 = vunpack.c.l.b16 %v6126
    %v6617 = vunpack.c.h.b16 %v6126
    %v6618 = vunpack.c.l.b16 %v6127
    %v6619 = vunpack.c.l.b16 %v6128
    %v6620 = vunpack.c.h.b16 %v6128
    %v6621 = vunpack.c.l.b16 %v6129
    %v6622 = vunpack.c.l.b16 %v6130
    %v6623 = vunpack.c.h.b16 %v6130
    %v6624 = vunpack.c.l.b16 %v6131
    %v6625 = vunpack.c.l.b16 %v6132
    %v6626 = vunpack.c.h.b16 %v6132
    %v6627 = vunpack.c.l.b16 %v6133
    %v6628 = vunpack.c.l.b16 %v6134
    %v6629 = vunpack.c.h.b16 %v6134
    %v6630 = vunpack.c.l.b16 %v6135
    %v6631 = vunpack.c.l.b16 %v6136
    %v6632 = vunpack.c.h.b16 %v6136
    %v6633 = vunpack.c.l.b16 %v6137
    %v6634 = vunpack.c.l.b16 %v6138
    %v6635 = vunpack.c.h.b16 %v6138
    %v6636 = vunpack.c.l.b16 %v6139
    %v6637 = vpack.c.b16 %v6352, %v6349
    %v6638 = vpack.c.b16 %v6353, %v6350
    %v6639 = vpack.c.b16 %v6354, %v6351
    %v6640 = vpack.c.b16 %v6358, %v6355
    %v6641 = vpack.c.b16 %v6359, %v6356
    %v6642 = vpack.c.b16 %v6360, %v6357
    %v6643 = vpack.c.b16 %v6364, %v6361
    %v6644 = vpack.c.b16 %v6365, %v6362
    %v6645 = vpack.c.b16 %v6366, %v6363
    %v6646 = vpack.c.b16 %v6370, %v6367
    %v6647 = vpack.c.b16 %v6371, %v6368
    %v6648 = vpack.c.b16 %v6372, %v6369
    %v6649 = vpack.c.b16 %v6376, %v6373
    %v6650 = vpack.c.b16 %v6377, %v6374
    %v6651 = vpack.c.b16 %v6378, %v6375
    %v6652 = vpack.c.b16 %v6382, %v6379
    %v6653 = vpack.c.b16 %v6383, %v6380
    %v6654 = vpack.c.b16 %v6384, %v6381
    %v6655 = vpack.c.b16 %v6388, %v6385
    %v6656 = vpack.c.b16 %v6389, %v6386
    %v6657 = vpack.c.b16 %v6390, %v6387
    %v6658 = vpack.c.b16 %v6394, %v6391
    %v6659 = vpack.c.b16 %v6395, %v6392
    %v6660 = vpack.c.b16 %v6396, %v6393
    %v6661 = vpack.c.b16 %v6400, %v6397
    %v6662 = vpack.c.b16 %v6401, %v6398
    %v6663 = vpack.c.b16 %v6402, %v6399
    %v6664 = vpack.c.b16 %v6406, %v6403
    %v6665 = vpack.c.b16 %v6407, %v6404
    %v6666 = vpack.c.b16 %v6408, %v6405
    %v6667 = vpack.c.b16 %v6412, %v6409
    %v6668 = vpack.c.b16 %v6413, %v6410
    %v6669 = vpack.c.b16 %v6414, %v6411
    %v6670 = vpack.c.b16 %v6418, %v6415
    %v6671 = vpack.c.b16 %v6419, %v6416
    %v6672 = vpack.c.b16 %v6420, %v6417
    %v6673 = vpack.c.b16 %v6424, %v6421
    %v6674 = vpack.c.b16 %v6425, %v6422
    %v6675 = vpack.c.b16 %v6426, %v6423
    %v6676 = vpack.c.b16 %v6430, %v6427
    %v6677 = vpack.c.b16 %v6431, %v6428
    %v6678 = vpack.c.b16 %v6432, %v6429
    %v6679 = vpack.c.b16 %v6436, %v6433
    %v6680 = vpack.c.b16 %v6437, %v6434
    %v6681 = vpack.c.b16 %v6438, %v6435
    %v6682 = vpack.c.b16 %v6442, %v6439
    %v6683 = vpack.c.b16 %v6443, %v6440
    %v6684 = vpack.c.b16 %v6444, %v6441
    %v6685 = vpack.c.b16 %v6448, %v6445
    %v6686 = vpack.c.b16 %v6449, %v6446
    %v6687 = vpack.c.b16 %v6450, %v6447
    %v6688 = vpack.c.b16 %v6454, %v6451
    %v6689 = vpack.c.b16 %v6455, %v6452
    %v6690 = vpack.c.b16 %v6456, %v6453
    %v6691 = vpack.c.b16 %v6460, %v6457
    %v6692 = vpack.c.b16 %v6461, %v6458
    %v6693 = vpack.c.b16 %v6462, %v6459
    %v6694 = vpack.c.b16 %v6466, %v6463
    %v6695 = vpack.c.b16 %v6467, %v6464
    %v6696 = vpack.c.b16 %v6468, %v6465
    %v6697 = vpack.c.b16 %v6472, %v6469
    %v6698 = vpack.c.b16 %v6473, %v6470
    %v6699 = vpack.c.b16 %v6474, %v6471
    %v6700 = vpack.c.b16 %v6478, %v6475
    %v6701 = vpack.c.b16 %v6479, %v6476
    %v6702 = vpack.c.b16 %v6480, %v6477
    %v6703 = vpack.c.b16 %v6484, %v6481
    %v6704 = vpack.c.b16 %v6485, %v6482
    %v6705 = vpack.c.b16 %v6486, %v6483
    %v6706 = vpack.c.b16 %v6490, %v6487
    %v6707 = vpack.c.b16 %v6491, %v6488
    %v6708 = vpack.c.b16 %v6492, %v6489
    %v6709 = vpack.c.b16 %v6496, %v6493
    %v6710 = vpack.c.b16 %v6497, %v6494
    %v6711 = vpack.c.b16 %v6498, %v6495
    %v6712 = vpack.c.b16 %v6502, %v6499
    %v6713 = vpack.c.b16 %v6503, %v6500
    %v6714 = vpack.c.b16 %v6504, %v6501
    %v6715 = vpack.c.b16 %v6508, %v6505
    %v6716 = vpack.c.b16 %v6509, %v6506
    %v6717 = vpack.c.b16 %v6510, %v6507
    %v6718 = vpack.c.b16 %v6514, %v6511
    %v6719 = vpack.c.b16 %v6515, %v6512
    %v6720 = vpack.c.b16 %v6516, %v6513
    %v6721 = vpack.c.b16 %v6520, %v6517
    %v6722 = vpack.c.b16 %v6521, %v6518
    %v6723 = vpack.c.b16 %v6522, %v6519
    %v6724 = vpack.c.b16 %v6526, %v6523
    %v6725 = vpack.c.b16 %v6527, %v6524
    %v6726 = vpack.c.b16 %v6528, %v6525
    %v6727 = vpack.c.b16 %v6532, %v6529
    %v6728 = vpack.c.b16 %v6533, %v6530
    %v6729 = vpack.c.b16 %v6534, %v6531
    %v6730 = vpack.c.b16 %v6538, %v6535
    %v6731 = vpack.c.b16 %v6539, %v6536
    %v6732 = vpack.c.b16 %v6540, %v6537
    %v6733 = vpack.c.b16 %v6544, %v6541
    %v6734 = vpack.c.b16 %v6545, %v6542
    %v6735 = vpack.c.b16 %v6546, %v6543
    %v6736 = vpack.c.b16 %v6550, %v6547
    %v6737 = vpack.c.b16 %v6551, %v6548
    %v6738 = vpack.c.b16 %v6552, %v6549
    %v6739 = vpack.c.b16 %v6556, %v6553
    %v6740 = vpack.c.b16 %v6557, %v6554
    %v6741 = vpack.c.b16 %v6558, %v6555
    %v6742 = vpack.c.b16 %v6562, %v6559
    %v6743 = vpack.c.b16 %v6563, %v6560
    %v6744 = vpack.c.b16 %v6564, %v6561
    %v6745 = vpack.c.b16 %v6568, %v6565
    %v6746 = vpack.c.b16 %v6569, %v6566
    %v6747 = vpack.c.b16 %v6570, %v6567
    %v6748 = vpack.c.b16 %v6574, %v6571
    %v6749 = vpack.c.b16 %v6575, %v6572
    %v6750 = vpack.c.b16 %v6576, %v6573
    %v6751 = vpack.c.b16 %v6580, %v6577
    %v6752 = vpack.c.b16 %v6581, %v6578
    %v6753 = vpack.c.b16 %v6582, %v6579
    %v6754 = vpack.c.b16 %v6586, %v6583
    %v6755 = vpack.c.b16 %v6587, %v6584
    %v6756 = vpack.c.b16 %v6588, %v6585
    %v6757 = vpack.c.b16 %v6592, %v6589
    %v6758 = vpack.c.b16 %v6593, %v6590
    %v6759 = vpack.c.b16 %v6594, %v6591
    %v6760 = vpack.c.b16 %v6598, %v6595
    %v6761 = vpack.c.b16 %v6599, %v6596
    %v6762 = vpack.c.b16 %v6600, %v6597
    %v6763 = vpack.c.b16 %v6604, %v6601
    %v6764 = vpack.c.b16 %v6605, %v6602
    %v6765 = vpack.c.b16 %v6606, %v6603
    %v6766 = vpack.c.b16 %v6610, %v6607
    %v6767 = vpack.c.b16 %v6611, %v6608
    %v6768 = vpack.c.b16 %v6612, %v6609
    %v6769 = vpack.c.b16 %v6616, %v6613
    %v6770 = vpack.c.b16 %v6617, %v6614
    %v6771 = vpack.c.b16 %v6618, %v6615
    %v6772 = vpack.c.b16 %v6622, %v6619
    %v6773 = vpack.c.b16 %v6623, %v6620
    %v6774 = vpack.c.b16 %v6624, %v6621
    %v6775 = vpack.c.b16 %v6628, %v6625
    %v6776 = vpack.c.b16 %v6629, %v6626
    %v6777 = vpack.c.b16 %v6630, %v6627
    %v6778 = vpack.c.b16 %v6634, %v6631
    %v6779 = vpack.c.b16 %v6635, %v6632
    %v6780 = vpack.c.b16 %v6636, %v6633
    %6925 = vmatprep.subr.bf16.mxu0 %v6638
    %6926 = vmatpush1.bf16.msra.mxu0 %v6637
    %6927 = vmatprep.subr.bf16.mxu0 %v6641
    %6928 = vmatpush1.bf16.msra.mxu0 %v6640
    %6929 = vmatprep.subr.bf16.mxu0 %v6644
    %6930 = vmatpush1.bf16.msra.mxu0 %v6643
    %6931 = vmatprep.subr.bf16.mxu0 %v6647
    %6932 = vmatpush1.bf16.msra.mxu0 %v6646
    %6933 = vmatprep.subr.bf16.mxu0 %v6650
    %6934 = vmatpush1.bf16.msra.mxu0 %v6649
    %6935 = vmatprep.subr.bf16.mxu0 %v6653
    %6936 = vmatpush1.bf16.msra.mxu0 %v6652
    %6937 = vmatprep.subr.bf16.mxu0 %v6656
    %6938 = vmatpush1.bf16.msra.mxu0 %v6655
    %6939 = vmatprep.subr.bf16.mxu0 %v6659
    %6940 = vmatpush1.bf16.msra.mxu0 %v6658
    %6941 = vmatprep.subr.bf16.mxu0 %v6662
    %6942 = vmatpush1.bf16.msra.mxu0 %v6661
    %6943 = vmatprep.subr.bf16.mxu0 %v6665
    %6944 = vmatpush1.bf16.msra.mxu0 %v6664
    %6945 = vmatprep.subr.bf16.mxu0 %v6668
    %6946 = vmatpush1.bf16.msra.mxu0 %v6667
    %6947 = vmatprep.subr.bf16.mxu0 %v6671
    %6948 = vmatpush1.bf16.msra.mxu0 %v6670
    %6949 = vmatprep.subr.bf16.mxu0 %v6674
    %6950 = vmatpush1.bf16.msra.mxu0 %v6673
    %6951 = vmatprep.subr.bf16.mxu0 %v6677
    %6952 = vmatpush1.bf16.msra.mxu0 %v6676
    %6953 = vmatprep.subr.bf16.mxu0 %v6680
    %6954 = vmatpush1.bf16.msra.mxu0 %v6679
    %6955 = vmatprep.subr.bf16.mxu0 %v6683
    %6956 = vmatpush1.bf16.msra.mxu0 %v6682
    %6957 = vmatprep.mubr.bf16.mxu0 %v5943
    %6958 = vmatmul.mubr.bf16.gmra.mrb[0].mxu0 %v5942
    %v6959 = vpop.f32.mrb[0].mxu0
    %v6960 = vadd.f32 %v6145, %v6959
    %v6961 = vpop.f32.mrb[0].mxu0
    %v6962 = vadd.f32 %v6149, %v6961
    %v6963 = vpop.f32.mrb[0].mxu0
    %v6964 = vpop.f32.mrb[0].mxu0
    %6965 = vdwg.mxu0
    %6966 = vmatprep.subr.bf16.mxu0 %v6686
    %6967 = vmatpush1.bf16.msra.mxu0 %v6685
    %6968 = vmatprep.subr.bf16.mxu0 %v6689
    %6969 = vmatpush1.bf16.msra.mxu0 %v6688
    %6970 = vmatprep.subr.bf16.mxu0 %v6692
    %6971 = vmatpush1.bf16.msra.mxu0 %v6691
    %6972 = vmatprep.subr.bf16.mxu0 %v6695
    %6973 = vmatpush1.bf16.msra.mxu0 %v6694
    %6974 = vmatprep.subr.bf16.mxu0 %v6698
    %6975 = vmatpush1.bf16.msra.mxu0 %v6697
    %6976 = vmatprep.subr.bf16.mxu0 %v6701
    %6977 = vmatpush1.bf16.msra.mxu0 %v6700
    %6978 = vmatprep.subr.bf16.mxu0 %v6704
    %6979 = vmatpush1.bf16.msra.mxu0 %v6703
    %6980 = vmatprep.subr.bf16.mxu0 %v6707
    %6981 = vmatpush1.bf16.msra.mxu0 %v6706
    %6982 = vmatprep.subr.bf16.mxu0 %v6710
    %6983 = vmatpush1.bf16.msra.mxu0 %v6709
    %6984 = vmatprep.subr.bf16.mxu0 %v6713
    %6985 = vmatpush1.bf16.msra.mxu0 %v6712
    %6986 = vmatprep.subr.bf16.mxu0 %v6716
    %6987 = vmatpush1.bf16.msra.mxu0 %v6715
    %6988 = vmatprep.subr.bf16.mxu0 %v6719
    %6989 = vmatpush1.bf16.msra.mxu0 %v6718
    %6990 = vmatprep.subr.bf16.mxu0 %v6722
    %6991 = vmatpush1.bf16.msra.mxu0 %v6721
    %6992 = vmatprep.subr.bf16.mxu0 %v6725
    %6993 = vmatpush1.bf16.msra.mxu0 %v6724
    %6994 = vmatprep.subr.bf16.mxu0 %v6728
    %6995 = vmatpush1.bf16.msra.mxu0 %v6727
    %6996 = vmatprep.subr.bf16.mxu0 %v6731
    %6997 = vmatpush1.bf16.msra.mxu0 %v6730
    %6998 = vmatprep.mubr.bf16.mxu0 %v5945
    %6999 = vmatmul.mubr.bf16.gmra.mrb[0].mxu0 %v5944
    %v7000 = vpop.f32.mrb[0].mxu0
    %v7001 = vadd.f32 %v6960, %v7000
    %v7002 = vpop.f32.mrb[0].mxu0
    %v7003 = vadd.f32 %v6962, %v7002
    %v7004 = vpop.f32.mrb[0].mxu0
    %v7005 = vpop.f32.mrb[0].mxu0
    %7006 = vdwg.mxu0
    %7007 = vmatprep.subr.bf16.mxu0 %v6734
    %7008 = vmatpush1.bf16.msra.mxu0 %v6733
    %7009 = vmatprep.subr.bf16.mxu0 %v6737
    %7010 = vmatpush1.bf16.msra.mxu0 %v6736
    %7011 = vmatprep.subr.bf16.mxu0 %v6740
    %7012 = vmatpush1.bf16.msra.mxu0 %v6739
    %7013 = vmatprep.subr.bf16.mxu0 %v6743
    %7014 = vmatpush1.bf16.msra.mxu0 %v6742
    %7015 = vmatprep.subr.bf16.mxu0 %v6746
    %7016 = vmatpush1.bf16.msra.mxu0 %v6745
    %7017 = vmatprep.subr.bf16.mxu0 %v6749
    %7018 = vmatpush1.bf16.msra.mxu0 %v6748
    %7019 = vmatprep.subr.bf16.mxu0 %v6752
    %7020 = vmatpush1.bf16.msra.mxu0 %v6751
    %7021 = vmatprep.subr.bf16.mxu0 %v6755
    %7022 = vmatpush1.bf16.msra.mxu0 %v6754
    %7023 = vmatprep.subr.bf16.mxu0 %v6758
    %7024 = vmatpush1.bf16.msra.mxu0 %v6757
    %7025 = vmatprep.subr.bf16.mxu0 %v6761
    %7026 = vmatpush1.bf16.msra.mxu0 %v6760
    %7027 = vmatprep.subr.bf16.mxu0 %v6764
    %7028 = vmatpush1.bf16.msra.mxu0 %v6763
    %7029 = vmatprep.subr.bf16.mxu0 %v6767
    %7030 = vmatpush1.bf16.msra.mxu0 %v6766
    %7031 = vmatprep.subr.bf16.mxu0 %v6770
    %7032 = vmatpush1.bf16.msra.mxu0 %v6769
    %7033 = vmatprep.subr.bf16.mxu0 %v6773
    %7034 = vmatpush1.bf16.msra.mxu0 %v6772
    %7035 = vmatprep.subr.bf16.mxu0 %v6776
    %7036 = vmatpush1.bf16.msra.mxu0 %v6775
    %7037 = vmatprep.subr.bf16.mxu0 %v6779
    %7038 = vmatpush1.bf16.msra.mxu0 %v6778
    %7039 = vmatprep.mubr.bf16.mxu0 %v5947
    %7040 = vmatmul.mubr.bf16.gmra.mrb[0].mxu0 %v5946
    %v7041 = vpop.f32.mrb[0].mxu0
    %v7042 = vadd.f32 %v7001, %v7041
    %v7043 = vpop.f32.mrb[0].mxu0
    %v7044 = vadd.f32 %v7003, %v7043
    %v7045 = vpop.f32.mrb[0].mxu0
    %v7046 = vpop.f32.mrb[0].mxu0
    %7047 = vdwg.mxu0
    %7048 = vmatprep.subr.bf16.mxu0 0
    %7049 = vmatpush1.bf16.msra.mxu0 %v6639
    %7050 = vmatprep.subr.bf16.mxu0 0
    %7051 = vmatpush1.bf16.msra.mxu0 %v6642
    %7052 = vmatprep.subr.bf16.mxu0 0
    %7053 = vmatpush1.bf16.msra.mxu0 %v6645
    %7054 = vmatprep.subr.bf16.mxu0 0
    %7055 = vmatpush1.bf16.msra.mxu0 %v6648
    %7056 = vmatprep.subr.bf16.mxu0 0
    %7057 = vmatpush1.bf16.msra.mxu0 %v6651
    %7058 = vmatprep.subr.bf16.mxu0 0
    %7059 = vmatpush1.bf16.msra.mxu0 %v6654
    %7060 = vmatprep.subr.bf16.mxu0 0
    %7061 = vmatpush1.bf16.msra.mxu0 %v6657
    %7062 = vmatprep.subr.bf16.mxu0 0
    %7063 = vmatpush1.bf16.msra.mxu0 %v6660
    %7064 = vmatprep.subr.bf16.mxu0 0
    %7065 = vmatpush1.bf16.msra.mxu0 %v6663
    %7066 = vmatprep.subr.bf16.mxu0 0
    %7067 = vmatpush1.bf16.msra.mxu0 %v6666
    %7068 = vmatprep.subr.bf16.mxu0 0
    %7069 = vmatpush1.bf16.msra.mxu0 %v6669
    %7070 = vmatprep.subr.bf16.mxu0 0
    %7071 = vmatpush1.bf16.msra.mxu0 %v6672
    %7072 = vmatprep.subr.bf16.mxu0 0
    %7073 = vmatpush1.bf16.msra.mxu0 %v6675
    %7074 = vmatprep.subr.bf16.mxu0 0
    %7075 = vmatpush1.bf16.msra.mxu0 %v6678
    %7076 = vmatprep.subr.bf16.mxu0 0
    %7077 = vmatpush1.bf16.msra.mxu0 %v6681
    %7078 = vmatprep.subr.bf16.mxu0 0
    %7079 = vmatpush1.bf16.msra.mxu0 %v6684
    %7080 = vmatprep.mubr.bf16.mxu0 %v5943
    %7081 = vmatmul.mubr.bf16.gmra.mrb[0].mxu0 %v5942
    %v7082 = vpop.f32.mrb[0].mxu0
    %v7083 = vadd.f32 %v6153, %v7082
    %v7084 = vpop.f32.mrb[0].mxu0
    %v7085 = vpop.f32.mrb[0].mxu0
    %v7086 = vpop.f32.mrb[0].mxu0
    %7087 = vdwg.mxu0
    %7088 = vmatprep.subr.bf16.mxu0 0
    %7089 = vmatpush1.bf16.msra.mxu0 %v6687
    %7090 = vmatprep.subr.bf16.mxu0 0
    %7091 = vmatpush1.bf16.msra.mxu0 %v6690
    %7092 = vmatprep.subr.bf16.mxu0 0
    %7093 = vmatpush1.bf16.msra.mxu0 %v6693
    %7094 = vmatprep.subr.bf16.mxu0 0
    %7095 = vmatpush1.bf16.msra.mxu0 %v6696
    %7096 = vmatprep.subr.bf16.mxu0 0
    %7097 = vmatpush1.bf16.msra.mxu0 %v6699
    %7098 = vmatprep.subr.bf16.mxu0 0
    %7099 = vmatpush1.bf16.msra.mxu0 %v6702
    %7100 = vmatprep.subr.bf16.mxu0 0
    %7101 = vmatpush1.bf16.msra.mxu0 %v6705
    %7102 = vmatprep.subr.bf16.mxu0 0
    %7103 = vmatpush1.bf16.msra.mxu0 %v6708
    %7104 = vmatprep.subr.bf16.mxu0 0
    %7105 = vmatpush1.bf16.msra.mxu0 %v6711
    %7106 = vmatprep.subr.bf16.mxu0 0
    %7107 = vmatpush1.bf16.msra.mxu0 %v6714
    %7108 = vmatprep.subr.bf16.mxu0 0
    %7109 = vmatpush1.bf16.msra.mxu0 %v6717
    %7110 = vmatprep.subr.bf16.mxu0 0
    %7111 = vmatpush1.bf16.msra.mxu0 %v6720
    %7112 = vmatprep.subr.bf16.mxu0 0
    %7113 = vmatpush1.bf16.msra.mxu0 %v6723
    %7114 = vmatprep.subr.bf16.mxu0 0
    %7115 = vmatpush1.bf16.msra.mxu0 %v6726
    %7116 = vmatprep.subr.bf16.mxu0 0
    %7117 = vmatpush1.bf16.msra.mxu0 %v6729
    %7118 = vmatprep.subr.bf16.mxu0 0
    %7119 = vmatpush1.bf16.msra.mxu0 %v6732
    %7120 = vmatprep.mubr.bf16.mxu0 %v5945
    %7121 = vmatmul.mubr.bf16.gmra.mrb[0].mxu0 %v5944
    %v7122 = vpop.f32.mrb[0].mxu0
    %v7123 = vadd.f32 %v7083, %v7122
    %v7124 = vpop.f32.mrb[0].mxu0
    %v7125 = vpop.f32.mrb[0].mxu0
    %v7126 = vpop.f32.mrb[0].mxu0
    %7127 = vdwg.mxu0
    %7128 = vmatprep.subr.bf16.mxu0 0
    %7129 = vmatpush1.bf16.msra.mxu0 %v6735
    %7130 = vmatprep.subr.bf16.mxu0 0
    %7131 = vmatpush1.bf16.msra.mxu0 %v6738
    %7132 = vmatprep.subr.bf16.mxu0 0
    %7133 = vmatpush1.bf16.msra.mxu0 %v6741
    %7134 = vmatprep.subr.bf16.mxu0 0
    %7135 = vmatpush1.bf16.msra.mxu0 %v6744
    %7136 = vmatprep.subr.bf16.mxu0 0
    %7137 = vmatpush1.bf16.msra.mxu0 %v6747
    %7138 = vmatprep.subr.bf16.mxu0 0
    %7139 = vmatpush1.bf16.msra.mxu0 %v6750
    %7140 = vmatprep.subr.bf16.mxu0 0
    %7141 = vmatpush1.bf16.msra.mxu0 %v6753
    %7142 = vmatprep.subr.bf16.mxu0 0
    %7143 = vmatpush1.bf16.msra.mxu0 %v6756
    %7144 = vmatprep.subr.bf16.mxu0 0
    %7145 = vmatpush1.bf16.msra.mxu0 %v6759
    %7146 = vmatprep.subr.bf16.mxu0 0
    %7147 = vmatpush1.bf16.msra.mxu0 %v6762
    %7148 = vmatprep.subr.bf16.mxu0 0
    %7149 = vmatpush1.bf16.msra.mxu0 %v6765
    %7150 = vmatprep.subr.bf16.mxu0 0
    %7151 = vmatpush1.bf16.msra.mxu0 %v6768
    %7152 = vmatprep.subr.bf16.mxu0 0
    %7153 = vmatpush1.bf16.msra.mxu0 %v6771
    %7154 = vmatprep.subr.bf16.mxu0 0
    %7155 = vmatpush1.bf16.msra.mxu0 %v6774
    %7156 = vmatprep.subr.bf16.mxu0 0
    %7157 = vmatpush1.bf16.msra.mxu0 %v6777
    %7158 = vmatprep.subr.bf16.mxu0 0
    %7159 = vmatpush1.bf16.msra.mxu0 %v6780
    %7160 = vmatprep.mubr.bf16.mxu0 %v5947
    %7161 = vmatmul.mubr.bf16.gmra.mrb[0].mxu0 %v5946
    %v7162 = vpop.f32.mrb[0].mxu0
    %v7163 = vadd.f32 %v7123, %v7162
    %v7164 = vpop.f32.mrb[0].mxu0
    %v7165 = vpop.f32.mrb[0].mxu0
    %v7166 = vpop.f32.mrb[0].mxu0
    %7167 = vdwg.mxu0
    %v7168 = vmax.f32 %v7042, 0.0
    %v7169 = vmax.f32 %v7044, 0.0
    %v7170 = vmax.f32 %v7163, 0.0
    %v7171 = vpack.c.bf16 %v7168, %v7168
    %v7172 = vpack.c.bf16 %v7169, %v7169
    %v7173 = vpack.c.bf16 %v7170, %v7170
    %v7174 = vld [vmem:[#allocation13] sm:$0xff]
    %v7175 = vld [vmem:[#allocation13 + $0x8] sm:$0xff]
    %v7176 = vld [vmem:[#allocation13 + $0x10] sm:$0xff]
    %v7177 = vld [vmem:[#allocation13 + $0x18] sm:$0xff]
    %v7178 = vld [vmem:[#allocation13 + $0x20] sm:$0xff]
    %v7179 = vld [vmem:[#allocation13 + $0x28] sm:$0xff]
    %v7180 = vld [vmem:[#allocation13 + $0x30] sm:$0xff]
    %v7181 = vld [vmem:[#allocation13 + $0x38] sm:$0xff]
    %v7182 = vld [vmem:[#allocation13 + $0x40] sm:$0xff]
    %v7183 = vld [vmem:[#allocation13 + $0x48] sm:$0xff]
    %v7184 = vld [vmem:[#allocation13 + $0x50] sm:$0xff]
    %v7185 = vld [vmem:[#allocation13 + $0x58] sm:$0xff]
    %v7186 = vld [vmem:[#allocation13 + $0x60] sm:$0xff]
    %v7187 = vld [vmem:[#allocation13 + $0x68] sm:$0xff]
    %v7188 = vld [vmem:[#allocation13 + $0x70] sm:$0xff]
    %v7189 = vld [vmem:[#allocation13 + $0x78] sm:$0xff]
    %v7190 = vld [vmem:[#allocation13 + $0x80] sm:$0xff]
    %v7191 = vld [vmem:[#allocation13 + $0x88] sm:$0xff]
    %v7192 = vld [vmem:[#allocation13 + $0x90] sm:$0xff]
    %v7193 = vld [vmem:[#allocation13 + $0x98] sm:$0xff]
    %v7194 = vld [vmem:[#allocation13 + $0xa0] sm:$0xff]
    %v7195 = vld [vmem:[#allocation13 + $0xa8] sm:$0xff]
    %v7196 = vld [vmem:[#allocation13 + $0xb0] sm:$0xff]
    %v7197 = vld [vmem:[#allocation13 + $0xb8] sm:$0xff]
    %v7198 = vld [vmem:[#allocation13 + $0xc0] sm:$0xff]
    %v7199 = vld [vmem:[#allocation13 + $0xc8] sm:$0xff]
    %v7200 = vld [vmem:[#allocation13 + $0xd0] sm:$0xff]
    %v7201 = vld [vmem:[#allocation13 + $0xd8] sm:$0xff]
    %v7202 = vld [vmem:[#allocation13 + $0xe0] sm:$0xff]
    %v7203 = vld [vmem:[#allocation13 + $0xe8] sm:$0xff]
    %v7204 = vld [vmem:[#allocation13 + $0xf0] sm:$0xff]
    %v7205 = vld [vmem:[#allocation13 + $0xf8] sm:$0xff]
    %v7206 = vld [vmem:[#allocation13 + $0x100] sm:$0xff]
    %v7207 = vld [vmem:[#allocation13 + $0x108] sm:$0xff]
    %v7208 = vld [vmem:[#allocation13 + $0x110] sm:$0xff]
    %v7209 = vld [vmem:[#allocation13 + $0x118] sm:$0xff]
    %v7210 = vld [vmem:[#allocation13 + $0x120] sm:$0xff]
    %v7211 = vld [vmem:[#allocation13 + $0x128] sm:$0xff]
    %v7212 = vld [vmem:[#allocation13 + $0x130] sm:$0xff]
    %v7213 = vld [vmem:[#allocation13 + $0x138] sm:$0xff]
    %v7214 = vld [vmem:[#allocation13 + $0x140] sm:$0xff]
    %v7215 = vld [vmem:[#allocation13 + $0x148] sm:$0xff]
    %v7216 = vld [vmem:[#allocation13 + $0x150] sm:$0xff]
    %v7217 = vld [vmem:[#allocation13 + $0x158] sm:$0xff]
    %v7218 = vld [vmem:[#allocation13 + $0x160] sm:$0xff]
    %v7219 = vld [vmem:[#allocation13 + $0x168] sm:$0xff]
    %v7220 = vld [vmem:[#allocation13 + $0x170] sm:$0xff]
    %v7221 = vld [vmem:[#allocation13 + $0x178] sm:$0xff]
    %v7222 = vld [vmem:[#allocation13 + $0x180] sm:$0xff]
    %v7223 = vld [vmem:[#allocation13 + $0x188] sm:$0xff]
    %v7224 = vld [vmem:[#allocation13 + $0x190] sm:$0xff]
    %v7225 = vld [vmem:[#allocation13 + $0x198] sm:$0xff]
    %v7226 = vld [vmem:[#allocation13 + $0x1a0] sm:$0xff]
    %v7227 = vld [vmem:[#allocation13 + $0x1a8] sm:$0xff]
    %v7228 = vld [vmem:[#allocation13 + $0x1b0] sm:$0xff]
    %v7229 = vld [vmem:[#allocation13 + $0x1b8] sm:$0xff]
    %v7230 = vld [vmem:[#allocation13 + $0x1c0] sm:$0xff]
    %v7231 = vld [vmem:[#allocation13 + $0x1c8] sm:$0xff]
    %v7232 = vld [vmem:[#allocation13 + $0x1d0] sm:$0xff]
    %v7233 = vld [vmem:[#allocation13 + $0x1d8] sm:$0xff]
    %v7234 = vld [vmem:[#allocation13 + $0x1e0] sm:$0xff]
    %v7235 = vld [vmem:[#allocation13 + $0x1e8] sm:$0xff]
    %v7236 = vld [vmem:[#allocation13 + $0x1f0] sm:$0xff]
    %v7237 = vld [vmem:[#allocation13 + $0x1f8] sm:$0xff]
    %v7238 = vld [vmem:[#allocation13 + $0x200] sm:$0xff]
    %v7239 = vld [vmem:[#allocation13 + $0x208] sm:$0xff]
    %v7240 = vld [vmem:[#allocation13 + $0x210] sm:$0xff]
    %v7241 = vld [vmem:[#allocation13 + $0x218] sm:$0xff]
    %v7242 = vld [vmem:[#allocation13 + $0x220] sm:$0xff]
    %v7243 = vld [vmem:[#allocation13 + $0x228] sm:$0xff]
    %v7244 = vld [vmem:[#allocation13 + $0x230] sm:$0xff]
    %v7245 = vld [vmem:[#allocation13 + $0x238] sm:$0xff]
    %v7246 = vld [vmem:[#allocation13 + $0x240] sm:$0xff]
    %v7247 = vld [vmem:[#allocation13 + $0x248] sm:$0xff]
    %v7248 = vld [vmem:[#allocation13 + $0x250] sm:$0xff]
    %v7249 = vld [vmem:[#allocation13 + $0x258] sm:$0xff]
    %v7250 = vld [vmem:[#allocation13 + $0x260] sm:$0xff]
    %v7251 = vld [vmem:[#allocation13 + $0x268] sm:$0xff]
    %v7252 = vld [vmem:[#allocation13 + $0x270] sm:$0xff]
    %v7253 = vld [vmem:[#allocation13 + $0x278] sm:$0xff]
    %v7254 = vld [vmem:[#allocation13 + $0x280] sm:$0xff]
    %v7255 = vld [vmem:[#allocation13 + $0x288] sm:$0xff]
    %v7256 = vld [vmem:[#allocation13 + $0x290] sm:$0xff]
    %v7257 = vld [vmem:[#allocation13 + $0x298] sm:$0xff]
    %v7258 = vpack.c.bf16 %v3386, %v3386
    %v7259 = vpack.c.bf16 %v3387, %v3387
    %v7260 = vld [vmem:[#allocation14] sm:$0xff]
    %v7261 = vld [vmem:[#allocation14 + $0x8] sm:$0xff]
    %v7262 = vld [vmem:[#allocation14 + $0x10] sm:$0xff]
    %v7263 = vld [vmem:[#allocation14 + $0x18] sm:$0xff]
    %v7264 = vld [vmem:[#allocation14 + $0x20] sm:$0xff]
    %v7265 = vld [vmem:[#allocation14 + $0x28] sm:$0xff]
    %v7266 = vld [vmem:[#allocation14 + $0x30] sm:$0xff]
    %v7267 = vld [vmem:[#allocation14 + $0x38] sm:$0xff]
    %v7268 = vld [vmem:[#allocation14 + $0x40] sm:$0xff]
    %v7269 = vld [vmem:[#allocation14 + $0x48] sm:$0xff]
    %v7270 = vld [vmem:[#allocation14 + $0x50] sm:$0xff]
    %v7271 = vld [vmem:[#allocation14 + $0x58] sm:$0xff]
    %v7272 = vld [vmem:[#allocation14 + $0x60] sm:$0xff]
    %v7273 = vld [vmem:[#allocation14 + $0x68] sm:$0xff]
    %v7274 = vld [vmem:[#allocation14 + $0x70] sm:$0xff]
    %v7275 = vld [vmem:[#allocation14 + $0x78] sm:$0xff]
    %v7276 = vld [vmem:[#allocation14 + $0x80] sm:$0xff]
    %v7277 = vld [vmem:[#allocation14 + $0x88] sm:$0xff]
    %v7278 = vld [vmem:[#allocation14 + $0x90] sm:$0xff]
    %v7279 = vld [vmem:[#allocation14 + $0x98] sm:$0xff]
    %v7280 = vld [vmem:[#allocation14 + $0xa0] sm:$0xff]
    %v7281 = vld [vmem:[#allocation14 + $0xa8] sm:$0xff]
    %v7282 = vld [vmem:[#allocation14 + $0xb0] sm:$0xff]
    %v7283 = vld [vmem:[#allocation14 + $0xb8] sm:$0xff]
    %v7284 = vld [vmem:[#allocation14 + $0xc0] sm:$0xff]
    %v7285 = vld [vmem:[#allocation14 + $0xc8] sm:$0xff]
    %v7286 = vld [vmem:[#allocation14 + $0xd0] sm:$0xff]
    %v7287 = vld [vmem:[#allocation14 + $0xd8] sm:$0xff]
    %v7288 = vld [vmem:[#allocation14 + $0xe0] sm:$0xff]
    %v7289 = vld [vmem:[#allocation14 + $0xe8] sm:$0xff]
    %v7290 = vld [vmem:[#allocation14 + $0xf0] sm:$0xff]
    %v7291 = vld [vmem:[#allocation14 + $0xf8] sm:$0xff]
    %v7292 = vld [vmem:[#allocation14 + $0x100] sm:$0xff]
    %v7293 = vld [vmem:[#allocation14 + $0x108] sm:$0xff]
    %v7294 = vld [vmem:[#allocation14 + $0x110] sm:$0xff]
    %v7295 = vld [vmem:[#allocation14 + $0x118] sm:$0xff]
    %v7296 = vld [vmem:[#allocation14 + $0x120] sm:$0xff]
    %v7297 = vld [vmem:[#allocation14 + $0x128] sm:$0xff]
    %v7298 = vld [vmem:[#allocation14 + $0x130] sm:$0xff]
    %v7299 = vld [vmem:[#allocation14 + $0x138] sm:$0xff]
    %v7300 = vld [vmem:[#allocation14 + $0x140] sm:$0xff]
    %v7301 = vld [vmem:[#allocation14 + $0x148] sm:$0xff]
    %v7302 = vld [vmem:[#allocation14 + $0x150] sm:$0xff]
    %v7303 = vld [vmem:[#allocation14 + $0x158] sm:$0xff]
    %v7304 = vld [vmem:[#allocation14 + $0x160] sm:$0xff]
    %v7305 = vld [vmem:[#allocation14 + $0x168] sm:$0xff]
    %v7306 = vld [vmem:[#allocation14 + $0x170] sm:$0xff]
    %v7307 = vld [vmem:[#allocation14 + $0x178] sm:$0xff]
    %v7308 = vld [vmem:[#allocation14 + $0x180] sm:$0xff]
    %v7309 = vld [vmem:[#allocation14 + $0x188] sm:$0xff]
    %v7310 = vld [vmem:[#allocation14 + $0x190] sm:$0xff]
    %v7311 = vld [vmem:[#allocation14 + $0x198] sm:$0xff]
    %v7312 = vld [vmem:[#allocation14 + $0x1a0] sm:$0xff]
    %v7313 = vld [vmem:[#allocation14 + $0x1a8] sm:$0xff]
    %v7314 = vld [vmem:[#allocation14 + $0x1b0] sm:$0xff]
    %v7315 = vld [vmem:[#allocation14 + $0x1b8] sm:$0xff]
    %v7316 = vld [vmem:[#allocation14 + $0x1c0] sm:$0xff]
    %v7317 = vld [vmem:[#allocation14 + $0x1c8] sm:$0xff]
    %v7318 = vld [vmem:[#allocation14 + $0x1d0] sm:$0xff]
    %v7319 = vld [vmem:[#allocation14 + $0x1d8] sm:$0xff]
    %v7320 = vld [vmem:[#allocation14 + $0x1e0] sm:$0xff]
    %v7321 = vld [vmem:[#allocation14 + $0x1e8] sm:$0xff]
    %v7322 = vld [vmem:[#allocation14 + $0x1f0] sm:$0xff]
    %v7323 = vld [vmem:[#allocation14 + $0x1f8] sm:$0xff]
    %v7388 = vunpack.c.l.b16 %v7260
    %v7389 = vunpack.c.h.b16 %v7260
    %v7390 = vunpack.c.l.b16 %v7261
    %v7391 = vunpack.c.h.b16 %v7261
    %v7392 = vunpack.c.l.b16 %v7262
    %v7393 = vunpack.c.h.b16 %v7262
    %v7394 = vunpack.c.l.b16 %v7263
    %v7395 = vunpack.c.h.b16 %v7263
    %v7396 = vunpack.c.l.b16 %v7264
    %v7397 = vunpack.c.h.b16 %v7264
    %v7398 = vunpack.c.l.b16 %v7265
    %v7399 = vunpack.c.h.b16 %v7265
    %v7400 = vunpack.c.l.b16 %v7266
    %v7401 = vunpack.c.h.b16 %v7266
    %v7402 = vunpack.c.l.b16 %v7267
    %v7403 = vunpack.c.h.b16 %v7267
    %v7404 = vunpack.c.l.b16 %v7268
    %v7405 = vunpack.c.h.b16 %v7268
    %v7406 = vunpack.c.l.b16 %v7269
    %v7407 = vunpack.c.h.b16 %v7269
    %v7408 = vunpack.c.l.b16 %v7270
    %v7409 = vunpack.c.h.b16 %v7270
    %v7410 = vunpack.c.l.b16 %v7271
    %v7411 = vunpack.c.h.b16 %v7271
    %v7412 = vunpack.c.l.b16 %v7272
    %v7413 = vunpack.c.h.b16 %v7272
    %v7414 = vunpack.c.l.b16 %v7273
    %v7415 = vunpack.c.h.b16 %v7273
    %v7416 = vunpack.c.l.b16 %v7274
    %v7417 = vunpack.c.h.b16 %v7274
    %v7418 = vunpack.c.l.b16 %v7275
    %v7419 = vunpack.c.h.b16 %v7275
    %v7420 = vunpack.c.l.b16 %v7276
    %v7421 = vunpack.c.h.b16 %v7276
    %v7422 = vunpack.c.l.b16 %v7277
    %v7423 = vunpack.c.h.b16 %v7277
    %v7424 = vunpack.c.l.b16 %v7278
    %v7425 = vunpack.c.h.b16 %v7278
    %v7426 = vunpack.c.l.b16 %v7279
    %v7427 = vunpack.c.h.b16 %v7279
    %v7428 = vunpack.c.l.b16 %v7280
    %v7429 = vunpack.c.h.b16 %v7280
    %v7430 = vunpack.c.l.b16 %v7281
    %v7431 = vunpack.c.h.b16 %v7281
    %v7432 = vunpack.c.l.b16 %v7282
    %v7433 = vunpack.c.h.b16 %v7282
    %v7434 = vunpack.c.l.b16 %v7283
    %v7435 = vunpack.c.h.b16 %v7283
    %v7436 = vunpack.c.l.b16 %v7284
    %v7437 = vunpack.c.h.b16 %v7284
    %v7438 = vunpack.c.l.b16 %v7285
    %v7439 = vunpack.c.h.b16 %v7285
    %v7440 = vunpack.c.l.b16 %v7286
    %v7441 = vunpack.c.h.b16 %v7286
    %v7442 = vunpack.c.l.b16 %v7287
    %v7443 = vunpack.c.h.b16 %v7287
    %v7444 = vunpack.c.l.b16 %v7288
    %v7445 = vunpack.c.h.b16 %v7288
    %v7446 = vunpack.c.l.b16 %v7289
    %v7447 = vunpack.c.h.b16 %v7289
    %v7448 = vunpack.c.l.b16 %v7290
    %v7449 = vunpack.c.h.b16 %v7290
    %v7450 = vunpack.c.l.b16 %v7291
    %v7451 = vunpack.c.h.b16 %v7291
    %v7452 = vunpack.c.l.b16 %v7292
    %v7453 = vunpack.c.h.b16 %v7292
    %v7454 = vunpack.c.l.b16 %v7293
    %v7455 = vunpack.c.h.b16 %v7293
    %v7456 = vunpack.c.l.b16 %v7294
    %v7457 = vunpack.c.h.b16 %v7294
    %v7458 = vunpack.c.l.b16 %v7295
    %v7459 = vunpack.c.h.b16 %v7295
    %v7460 = vunpack.c.l.b16 %v7296
    %v7461 = vunpack.c.h.b16 %v7296
    %v7462 = vunpack.c.l.b16 %v7297
    %v7463 = vunpack.c.h.b16 %v7297
    %v7464 = vunpack.c.l.b16 %v7298
    %v7465 = vunpack.c.h.b16 %v7298
    %v7466 = vunpack.c.l.b16 %v7299
    %v7467 = vunpack.c.h.b16 %v7299
    %v7468 = vunpack.c.l.b16 %v7300
    %v7469 = vunpack.c.h.b16 %v7300
    %v7470 = vunpack.c.l.b16 %v7301
    %v7471 = vunpack.c.h.b16 %v7301
    %v7472 = vunpack.c.l.b16 %v7302
    %v7473 = vunpack.c.h.b16 %v7302
    %v7474 = vunpack.c.l.b16 %v7303
    %v7475 = vunpack.c.h.b16 %v7303
    %v7476 = vunpack.c.l.b16 %v7304
    %v7477 = vunpack.c.h.b16 %v7304
    %v7478 = vunpack.c.l.b16 %v7305
    %v7479 = vunpack.c.h.b16 %v7305
    %v7480 = vunpack.c.l.b16 %v7306
    %v7481 = vunpack.c.h.b16 %v7306
    %v7482 = vunpack.c.l.b16 %v7307
    %v7483 = vunpack.c.h.b16 %v7307
    %v7484 = vunpack.c.l.b16 %v7308
    %v7485 = vunpack.c.h.b16 %v7308
    %v7486 = vunpack.c.l.b16 %v7309
    %v7487 = vunpack.c.h.b16 %v7309
    %v7488 = vunpack.c.l.b16 %v7310
    %v7489 = vunpack.c.h.b16 %v7310
    %v7490 = vunpack.c.l.b16 %v7311
    %v7491 = vunpack.c.h.b16 %v7311
    %v7492 = vunpack.c.l.b16 %v7312
    %v7493 = vunpack.c.h.b16 %v7312
    %v7494 = vunpack.c.l.b16 %v7313
    %v7495 = vunpack.c.h.b16 %v7313
    %v7496 = vunpack.c.l.b16 %v7314
    %v7497 = vunpack.c.h.b16 %v7314
    %v7498 = vunpack.c.l.b16 %v7315
    %v7499 = vunpack.c.h.b16 %v7315
    %v7500 = vunpack.c.l.b16 %v7316
    %v7501 = vunpack.c.h.b16 %v7316
    %v7502 = vunpack.c.l.b16 %v7317
    %v7503 = vunpack.c.h.b16 %v7317
    %v7504 = vunpack.c.l.b16 %v7318
    %v7505 = vunpack.c.h.b16 %v7318
    %v7506 = vunpack.c.l.b16 %v7319
    %v7507 = vunpack.c.h.b16 %v7319
    %v7508 = vunpack.c.l.b16 %v7320
    %v7509 = vunpack.c.h.b16 %v7320
    %v7510 = vunpack.c.l.b16 %v7321
    %v7511 = vunpack.c.h.b16 %v7321
    %v7512 = vunpack.c.l.b16 %v7322
    %v7513 = vunpack.c.h.b16 %v7322
    %v7514 = vunpack.c.l.b16 %v7323
    %v7515 = vunpack.c.h.b16 %v7323
    %v7516 = vpack.c.b16 %v7392, %v7388
    %v7517 = vpack.c.b16 %v7393, %v7389
    %v7518 = vpack.c.b16 %v7394, %v7390
    %v7519 = vpack.c.b16 %v7395, %v7391
    %v7520 = vpack.c.b16 %v7400, %v7396
    %v7521 = vpack.c.b16 %v7401, %v7397
    %v7522 = vpack.c.b16 %v7402, %v7398
    %v7523 = vpack.c.b16 %v7403, %v7399
    %v7524 = vpack.c.b16 %v7408, %v7404
    %v7525 = vpack.c.b16 %v7409, %v7405
    %v7526 = vpack.c.b16 %v7410, %v7406
    %v7527 = vpack.c.b16 %v7411, %v7407
    %v7528 = vpack.c.b16 %v7416, %v7412
    %v7529 = vpack.c.b16 %v7417, %v7413
    %v7530 = vpack.c.b16 %v7418, %v7414
    %v7531 = vpack.c.b16 %v7419, %v7415
    %v7532 = vpack.c.b16 %v7424, %v7420
    %v7533 = vpack.c.b16 %v7425, %v7421
    %v7534 = vpack.c.b16 %v7426, %v7422
    %v7535 = vpack.c.b16 %v7427, %v7423
    %v7536 = vpack.c.b16 %v7432, %v7428
    %v7537 = vpack.c.b16 %v7433, %v7429
    %v7538 = vpack.c.b16 %v7434, %v7430
    %v7539 = vpack.c.b16 %v7435, %v7431
    %v7540 = vpack.c.b16 %v7440, %v7436
    %v7541 = vpack.c.b16 %v7441, %v7437
    %v7542 = vpack.c.b16 %v7442, %v7438
    %v7543 = vpack.c.b16 %v7443, %v7439
    %v7544 = vpack.c.b16 %v7448, %v7444
    %v7545 = vpack.c.b16 %v7449, %v7445
    %v7546 = vpack.c.b16 %v7450, %v7446
    %v7547 = vpack.c.b16 %v7451, %v7447
    %v7548 = vpack.c.b16 %v7456, %v7452
    %v7549 = vpack.c.b16 %v7457, %v7453
    %v7550 = vpack.c.b16 %v7458, %v7454
    %v7551 = vpack.c.b16 %v7459, %v7455
    %v7552 = vpack.c.b16 %v7464, %v7460
    %v7553 = vpack.c.b16 %v7465, %v7461
    %v7554 = vpack.c.b16 %v7466, %v7462
    %v7555 = vpack.c.b16 %v7467, %v7463
    %v7556 = vpack.c.b16 %v7472, %v7468
    %v7557 = vpack.c.b16 %v7473, %v7469
    %v7558 = vpack.c.b16 %v7474, %v7470
    %v7559 = vpack.c.b16 %v7475, %v7471
    %v7560 = vpack.c.b16 %v7480, %v7476
    %v7561 = vpack.c.b16 %v7481, %v7477
    %v7562 = vpack.c.b16 %v7482, %v7478
    %v7563 = vpack.c.b16 %v7483, %v7479
    %v7564 = vpack.c.b16 %v7488, %v7484
    %v7565 = vpack.c.b16 %v7489, %v7485
    %v7566 = vpack.c.b16 %v7490, %v7486
    %v7567 = vpack.c.b16 %v7491, %v7487
    %v7568 = vpack.c.b16 %v7496, %v7492
    %v7569 = vpack.c.b16 %v7497, %v7493
    %v7570 = vpack.c.b16 %v7498, %v7494
    %v7571 = vpack.c.b16 %v7499, %v7495
    %v7572 = vpack.c.b16 %v7504, %v7500
    %v7573 = vpack.c.b16 %v7505, %v7501
    %v7574 = vpack.c.b16 %v7506, %v7502
    %v7575 = vpack.c.b16 %v7507, %v7503
    %v7576 = vpack.c.b16 %v7512, %v7508
    %v7577 = vpack.c.b16 %v7513, %v7509
    %v7578 = vpack.c.b16 %v7514, %v7510
    %v7579 = vpack.c.b16 %v7515, %v7511
    %7644 = vmatprep.subr.bf16.mxu0 %v7517
    %7645 = vmatpush1.bf16.msra.mxu0 %v7516
    %7646 = vmatprep.subr.bf16.mxu0 %v7521
    %7647 = vmatpush1.bf16.msra.mxu0 %v7520
    %7648 = vmatprep.subr.bf16.mxu0 %v7525
    %7649 = vmatpush1.bf16.msra.mxu0 %v7524
    %7650 = vmatprep.subr.bf16.mxu0 %v7529
    %7651 = vmatpush1.bf16.msra.mxu0 %v7528
    %7652 = vmatprep.subr.bf16.mxu0 %v7533
    %7653 = vmatpush1.bf16.msra.mxu0 %v7532
    %7654 = vmatprep.subr.bf16.mxu0 %v7537
    %7655 = vmatpush1.bf16.msra.mxu0 %v7536
    %7656 = vmatprep.subr.bf16.mxu0 %v7541
    %7657 = vmatpush1.bf16.msra.mxu0 %v7540
    %7658 = vmatprep.subr.bf16.mxu0 %v7545
    %7659 = vmatpush1.bf16.msra.mxu0 %v7544
    %7660 = vmatprep.subr.bf16.mxu0 %v7549
    %7661 = vmatpush1.bf16.msra.mxu0 %v7548
    %7662 = vmatprep.subr.bf16.mxu0 %v7553
    %7663 = vmatpush1.bf16.msra.mxu0 %v7552
    %7664 = vmatprep.subr.bf16.mxu0 %v7557
    %7665 = vmatpush1.bf16.msra.mxu0 %v7556
    %7666 = vmatprep.subr.bf16.mxu0 %v7561
    %7667 = vmatpush1.bf16.msra.mxu0 %v7560
    %7668 = vmatprep.subr.bf16.mxu0 %v7565
    %7669 = vmatpush1.bf16.msra.mxu0 %v7564
    %7670 = vmatprep.subr.bf16.mxu0 %v7569
    %7671 = vmatpush1.bf16.msra.mxu0 %v7568
    %7672 = vmatprep.subr.bf16.mxu0 %v7573
    %7673 = vmatpush1.bf16.msra.mxu0 %v7572
    %7674 = vmatprep.subr.bf16.mxu0 %v7577
    %7675 = vmatpush1.bf16.msra.mxu0 %v7576
    %7676 = vmatprep.mubr.bf16.mxu0 %v7259
    %7677 = vmatmul.mubr.bf16.gmra.mrb[0].mxu0 %v7258
    %v7678 = vpop.f32.mrb[0].mxu0
    %v7679 = vadd.f32 0.0, %v7678
    %v7680 = vpop.f32.mrb[0].mxu0
    %v7681 = vadd.f32 0.0, %v7680
    %v7682 = vpop.f32.mrb[0].mxu0
    %v7683 = vpop.f32.mrb[0].mxu0
    %7684 = vdwg.mxu0
    %7685 = vmatprep.subr.bf16.mxu0 %v7519
    %7686 = vmatpush1.bf16.msra.mxu0 %v7518
    %7687 = vmatprep.subr.bf16.mxu0 %v7523
    %7688 = vmatpush1.bf16.msra.mxu0 %v7522
    %7689 = vmatprep.subr.bf16.mxu0 %v7527
    %7690 = vmatpush1.bf16.msra.mxu0 %v7526
    %7691 = vmatprep.subr.bf16.mxu0 %v7531
    %7692 = vmatpush1.bf16.msra.mxu0 %v7530
    %7693 = vmatprep.subr.bf16.mxu0 %v7535
    %7694 = vmatpush1.bf16.msra.mxu0 %v7534
    %7695 = vmatprep.subr.bf16.mxu0 %v7539
    %7696 = vmatpush1.bf16.msra.mxu0 %v7538
    %7697 = vmatprep.subr.bf16.mxu0 %v7543
    %7698 = vmatpush1.bf16.msra.mxu0 %v7542
    %7699 = vmatprep.subr.bf16.mxu0 %v7547
    %7700 = vmatpush1.bf16.msra.mxu0 %v7546
    %7701 = vmatprep.subr.bf16.mxu0 %v7551
    %7702 = vmatpush1.bf16.msra.mxu0 %v7550
    %7703 = vmatprep.subr.bf16.mxu0 %v7555
    %7704 = vmatpush1.bf16.msra.mxu0 %v7554
    %7705 = vmatprep.subr.bf16.mxu0 %v7559
    %7706 = vmatpush1.bf16.msra.mxu0 %v7558
    %7707 = vmatprep.subr.bf16.mxu0 %v7563
    %7708 = vmatpush1.bf16.msra.mxu0 %v7562
    %7709 = vmatprep.subr.bf16.mxu0 %v7567
    %7710 = vmatpush1.bf16.msra.mxu0 %v7566
    %7711 = vmatprep.subr.bf16.mxu0 %v7571
    %7712 = vmatpush1.bf16.msra.mxu0 %v7570
    %7713 = vmatprep.subr.bf16.mxu0 %v7575
    %7714 = vmatpush1.bf16.msra.mxu0 %v7574
    %7715 = vmatprep.subr.bf16.mxu0 %v7579
    %7716 = vmatpush1.bf16.msra.mxu0 %v7578
    %7717 = vmatprep.mubr.bf16.mxu0 %v7259
    %7718 = vmatmul.mubr.bf16.gmra.mrb[0].mxu0 %v7258
    %v7719 = vpop.f32.mrb[0].mxu0
    %v7720 = vadd.f32 0.0, %v7719
    %v7721 = vpop.f32.mrb[0].mxu0
    %v7722 = vadd.f32 0.0, %v7721
    %v7723 = vpop.f32.mrb[0].mxu0
    %v7724 = vpop.f32.mrb[0].mxu0
    %7725 = vdwg.mxu0
    %v7810 = vunpack.c.l.b16 %v7174
    %v7811 = vunpack.c.h.b16 %v7174
    %v7812 = vunpack.c.l.b16 %v7175
    %v7813 = vunpack.c.h.b16 %v7175
    %v7814 = vunpack.c.l.b16 %v7176
    %v7815 = vunpack.c.h.b16 %v7176
    %v7816 = vunpack.c.l.b16 %v7177
    %v7817 = vunpack.c.h.b16 %v7177
    %v7818 = vunpack.c.l.b16 %v7178
    %v7819 = vunpack.c.h.b16 %v7178
    %v7820 = vunpack.c.l.b16 %v7179
    %v7821 = vunpack.c.h.b16 %v7179
    %v7822 = vunpack.c.l.b16 %v7180
    %v7823 = vunpack.c.h.b16 %v7180
    %v7824 = vunpack.c.l.b16 %v7181
    %v7825 = vunpack.c.h.b16 %v7181
    %v7826 = vunpack.c.l.b16 %v7182
    %v7827 = vunpack.c.h.b16 %v7182
    %v7828 = vunpack.c.l.b16 %v7183
    %v7829 = vunpack.c.h.b16 %v7183
    %v7830 = vunpack.c.l.b16 %v7184
    %v7831 = vunpack.c.h.b16 %v7184
    %v7832 = vunpack.c.l.b16 %v7185
    %v7833 = vunpack.c.h.b16 %v7185
    %v7834 = vunpack.c.l.b16 %v7186
    %v7835 = vunpack.c.h.b16 %v7186
    %v7836 = vunpack.c.l.b16 %v7187
    %v7837 = vunpack.c.h.b16 %v7187
    %v7838 = vunpack.c.l.b16 %v7188
    %v7839 = vunpack.c.h.b16 %v7188
    %v7840 = vunpack.c.l.b16 %v7189
    %v7841 = vunpack.c.h.b16 %v7189
    %v7842 = vunpack.c.l.b16 %v7190
    %v7843 = vunpack.c.h.b16 %v7190
    %v7844 = vunpack.c.l.b16 %v7191
    %v7845 = vunpack.c.h.b16 %v7191
    %v7846 = vunpack.c.l.b16 %v7192
    %v7847 = vunpack.c.h.b16 %v7192
    %v7848 = vunpack.c.l.b16 %v7193
    %v7849 = vunpack.c.h.b16 %v7193
    %v7850 = vunpack.c.l.b16 %v7194
    %v7851 = vunpack.c.h.b16 %v7194
    %v7852 = vunpack.c.l.b16 %v7195
    %v7853 = vunpack.c.h.b16 %v7195
    %v7854 = vunpack.c.l.b16 %v7196
    %v7855 = vunpack.c.h.b16 %v7196
    %v7856 = vunpack.c.l.b16 %v7197
    %v7857 = vunpack.c.h.b16 %v7197
    %v7858 = vunpack.c.l.b16 %v7198
    %v7859 = vunpack.c.h.b16 %v7198
    %v7860 = vunpack.c.l.b16 %v7199
    %v7861 = vunpack.c.h.b16 %v7199
    %v7862 = vunpack.c.l.b16 %v7200
    %v7863 = vunpack.c.h.b16 %v7200
    %v7864 = vunpack.c.l.b16 %v7201
    %v7865 = vunpack.c.h.b16 %v7201
    %v7866 = vunpack.c.l.b16 %v7202
    %v7867 = vunpack.c.h.b16 %v7202
    %v7868 = vunpack.c.l.b16 %v7203
    %v7869 = vunpack.c.h.b16 %v7203
    %v7870 = vunpack.c.l.b16 %v7204
    %v7871 = vunpack.c.h.b16 %v7204
    %v7872 = vunpack.c.l.b16 %v7205
    %v7873 = vunpack.c.h.b16 %v7205
    %v7874 = vunpack.c.l.b16 %v7206
    %v7875 = vunpack.c.h.b16 %v7206
    %v7876 = vunpack.c.l.b16 %v7207
    %v7877 = vunpack.c.h.b16 %v7207
    %v7878 = vunpack.c.l.b16 %v7208
    %v7879 = vunpack.c.h.b16 %v7208
    %v7880 = vunpack.c.l.b16 %v7209
    %v7881 = vunpack.c.h.b16 %v7209
    %v7882 = vunpack.c.l.b16 %v7210
    %v7883 = vunpack.c.h.b16 %v7210
    %v7884 = vunpack.c.l.b16 %v7211
    %v7885 = vunpack.c.h.b16 %v7211
    %v7886 = vunpack.c.l.b16 %v7212
    %v7887 = vunpack.c.h.b16 %v7212
    %v7888 = vunpack.c.l.b16 %v7213
    %v7889 = vunpack.c.h.b16 %v7213
    %v7890 = vunpack.c.l.b16 %v7214
    %v7891 = vunpack.c.h.b16 %v7214
    %v7892 = vunpack.c.l.b16 %v7215
    %v7893 = vunpack.c.h.b16 %v7215
    %v7894 = vunpack.c.l.b16 %v7216
    %v7895 = vunpack.c.h.b16 %v7216
    %v7896 = vunpack.c.l.b16 %v7217
    %v7897 = vunpack.c.h.b16 %v7217
    %v7898 = vunpack.c.l.b16 %v7218
    %v7899 = vunpack.c.h.b16 %v7218
    %v7900 = vunpack.c.l.b16 %v7219
    %v7901 = vunpack.c.h.b16 %v7219
    %v7902 = vunpack.c.l.b16 %v7220
    %v7903 = vunpack.c.h.b16 %v7220
    %v7904 = vunpack.c.l.b16 %v7221
    %v7905 = vunpack.c.h.b16 %v7221
    %v7906 = vunpack.c.l.b16 %v7222
    %v7907 = vunpack.c.h.b16 %v7222
    %v7908 = vunpack.c.l.b16 %v7223
    %v7909 = vunpack.c.h.b16 %v7223
    %v7910 = vunpack.c.l.b16 %v7224
    %v7911 = vunpack.c.h.b16 %v7224
    %v7912 = vunpack.c.l.b16 %v7225
    %v7913 = vunpack.c.h.b16 %v7225
    %v7914 = vunpack.c.l.b16 %v7226
    %v7915 = vunpack.c.h.b16 %v7226
    %v7916 = vunpack.c.l.b16 %v7227
    %v7917 = vunpack.c.h.b16 %v7227
    %v7918 = vunpack.c.l.b16 %v7228
    %v7919 = vunpack.c.h.b16 %v7228
    %v7920 = vunpack.c.l.b16 %v7229
    %v7921 = vunpack.c.h.b16 %v7229
    %v7922 = vunpack.c.l.b16 %v7230
    %v7923 = vunpack.c.h.b16 %v7230
    %v7924 = vunpack.c.l.b16 %v7231
    %v7925 = vunpack.c.h.b16 %v7231
    %v7926 = vunpack.c.l.b16 %v7232
    %v7927 = vunpack.c.h.b16 %v7232
    %v7928 = vunpack.c.l.b16 %v7233
    %v7929 = vunpack.c.h.b16 %v7233
    %v7930 = vunpack.c.l.b16 %v7234
    %v7931 = vunpack.c.h.b16 %v7234
    %v7932 = vunpack.c.l.b16 %v7235
    %v7933 = vunpack.c.h.b16 %v7235
    %v7934 = vunpack.c.l.b16 %v7236
    %v7935 = vunpack.c.h.b16 %v7236
    %v7936 = vunpack.c.l.b16 %v7237
    %v7937 = vunpack.c.h.b16 %v7237
    %v7938 = vunpack.c.l.b16 %v7238
    %v7939 = vunpack.c.h.b16 %v7238
    %v7940 = vunpack.c.l.b16 %v7239
    %v7941 = vunpack.c.h.b16 %v7239
    %v7942 = vunpack.c.l.b16 %v7240
    %v7943 = vunpack.c.h.b16 %v7240
    %v7944 = vunpack.c.l.b16 %v7241
    %v7945 = vunpack.c.h.b16 %v7241
    %v7946 = vunpack.c.l.b16 %v7242
    %v7947 = vunpack.c.h.b16 %v7242
    %v7948 = vunpack.c.l.b16 %v7243
    %v7949 = vunpack.c.h.b16 %v7243
    %v7950 = vunpack.c.l.b16 %v7244
    %v7951 = vunpack.c.h.b16 %v7244
    %v7952 = vunpack.c.l.b16 %v7245
    %v7953 = vunpack.c.h.b16 %v7245
    %v7954 = vunpack.c.l.b16 %v7246
    %v7955 = vunpack.c.h.b16 %v7246
    %v7956 = vunpack.c.l.b16 %v7247
    %v7957 = vunpack.c.h.b16 %v7247
    %v7958 = vunpack.c.l.b16 %v7248
    %v7959 = vunpack.c.h.b16 %v7248
    %v7960 = vunpack.c.l.b16 %v7249
    %v7961 = vunpack.c.h.b16 %v7249
    %v7962 = vunpack.c.l.b16 %v7250
    %v7963 = vunpack.c.h.b16 %v7250
    %v7964 = vunpack.c.l.b16 %v7251
    %v7965 = vunpack.c.h.b16 %v7251
    %v7966 = vunpack.c.l.b16 %v7252
    %v7967 = vunpack.c.h.b16 %v7252
    %v7968 = vunpack.c.l.b16 %v7253
    %v7969 = vunpack.c.h.b16 %v7253
    %v7970 = vunpack.c.l.b16 %v7254
    %v7971 = vunpack.c.h.b16 %v7254
    %v7972 = vunpack.c.l.b16 %v7255
    %v7973 = vunpack.c.h.b16 %v7255
    %v7974 = vunpack.c.l.b16 %v7256
    %v7975 = vunpack.c.h.b16 %v7256
    %v7976 = vunpack.c.l.b16 %v7257
    %v7977 = vunpack.c.h.b16 %v7257
    %v7978 = vpack.c.b16 %v7814, %v7810
    %v7979 = vpack.c.b16 %v7815, %v7811
    %v7980 = vpack.c.b16 %v7816, %v7812
    %v7981 = vpack.c.b16 %v7817, %v7813
    %v7982 = vpack.c.b16 %v7822, %v7818
    %v7983 = vpack.c.b16 %v7823, %v7819
    %v7984 = vpack.c.b16 %v7824, %v7820
    %v7985 = vpack.c.b16 %v7825, %v7821
    %v7986 = vpack.c.b16 %v7830, %v7826
    %v7987 = vpack.c.b16 %v7831, %v7827
    %v7988 = vpack.c.b16 %v7832, %v7828
    %v7989 = vpack.c.b16 %v7833, %v7829
    %v7990 = vpack.c.b16 %v7838, %v7834
    %v7991 = vpack.c.b16 %v7839, %v7835
    %v7992 = vpack.c.b16 %v7840, %v7836
    %v7993 = vpack.c.b16 %v7841, %v7837
    %v7994 = vpack.c.b16 %v7846, %v7842
    %v7995 = vpack.c.b16 %v7847, %v7843
    %v7996 = vpack.c.b16 %v7848, %v7844
    %v7997 = vpack.c.b16 %v7849, %v7845
    %v7998 = vpack.c.b16 %v7854, %v7850
    %v7999 = vpack.c.b16 %v7855, %v7851
    %v8000 = vpack.c.b16 %v7856, %v7852
    %v8001 = vpack.c.b16 %v7857, %v7853
    %v8002 = vpack.c.b16 %v7862, %v7858
    %v8003 = vpack.c.b16 %v7863, %v7859
    %v8004 = vpack.c.b16 %v7864, %v7860
    %v8005 = vpack.c.b16 %v7865, %v7861
    %v8006 = vpack.c.b16 %v7870, %v7866
    %v8007 = vpack.c.b16 %v7871, %v7867
    %v8008 = vpack.c.b16 %v7872, %v7868
    %v8009 = vpack.c.b16 %v7873, %v7869
    %v8010 = vpack.c.b16 %v7878, %v7874
    %v8011 = vpack.c.b16 %v7879, %v7875
    %v8012 = vpack.c.b16 %v7880, %v7876
    %v8013 = vpack.c.b16 %v7881, %v7877
    %v8014 = vpack.c.b16 %v7886, %v7882
    %v8015 = vpack.c.b16 %v7887, %v7883
    %v8016 = vpack.c.b16 %v7888, %v7884
    %v8017 = vpack.c.b16 %v7889, %v7885
    %v8018 = vpack.c.b16 %v7894, %v7890
    %v8019 = vpack.c.b16 %v7895, %v7891
    %v8020 = vpack.c.b16 %v7896, %v7892
    %v8021 = vpack.c.b16 %v7897, %v7893
    %v8022 = vpack.c.b16 %v7902, %v7898
    %v8023 = vpack.c.b16 %v7903, %v7899
    %v8024 = vpack.c.b16 %v7904, %v7900
    %v8025 = vpack.c.b16 %v7905, %v7901
    %v8026 = vpack.c.b16 %v7910, %v7906
    %v8027 = vpack.c.b16 %v7911, %v7907
    %v8028 = vpack.c.b16 %v7912, %v7908
    %v8029 = vpack.c.b16 %v7913, %v7909
    %v8030 = vpack.c.b16 %v7918, %v7914
    %v8031 = vpack.c.b16 %v7919, %v7915
    %v8032 = vpack.c.b16 %v7920, %v7916
    %v8033 = vpack.c.b16 %v7921, %v7917
    %v8034 = vpack.c.b16 %v7926, %v7922
    %v8035 = vpack.c.b16 %v7927, %v7923
    %v8036 = vpack.c.b16 %v7928, %v7924
    %v8037 = vpack.c.b16 %v7929, %v7925
    %v8038 = vpack.c.b16 %v7934, %v7930
    %v8039 = vpack.c.b16 %v7935, %v7931
    %v8040 = vpack.c.b16 %v7936, %v7932
    %v8041 = vpack.c.b16 %v7937, %v7933
    %v8042 = vpack.c.b16 %v7942, %v7938
    %v8043 = vpack.c.b16 %v7943, %v7939
    %v8044 = vpack.c.b16 %v7944, %v7940
    %v8045 = vpack.c.b16 %v7945, %v7941
    %v8046 = vpack.c.b16 %v7950, %v7946
    %v8047 = vpack.c.b16 %v7951, %v7947
    %v8048 = vpack.c.b16 %v7952, %v7948
    %v8049 = vpack.c.b16 %v7953, %v7949
    %v8050 = vpack.c.b16 %v7958, %v7954
    %v8051 = vpack.c.b16 %v7959, %v7955
    %v8052 = vpack.c.b16 %v7960, %v7956
    %v8053 = vpack.c.b16 %v7961, %v7957
    %v8054 = vpack.c.b16 %v7966, %v7962
    %v8055 = vpack.c.b16 %v7967, %v7963
    %v8056 = vpack.c.b16 %v7968, %v7964
    %v8057 = vpack.c.b16 %v7969, %v7965
    %v8058 = vpack.c.b16 %v7974, %v7970
    %v8059 = vpack.c.b16 %v7975, %v7971
    %v8060 = vpack.c.b16 %v7976, %v7972
    %v8061 = vpack.c.b16 %v7977, %v7973
    %vm8146 = vcmask 654336
    %v8148 = vsel %vm8146, %v7173, 0
    %8150 = vmatprep.subr.bf16.mxu0 %v7979
    %8151 = vmatpush1.bf16.msra.mxu0 %v7978
    %8152 = vmatprep.subr.bf16.mxu0 %v7983
    %8153 = vmatpush1.bf16.msra.mxu0 %v7982
    %8154 = vmatprep.subr.bf16.mxu0 %v7987
    %8155 = vmatpush1.bf16.msra.mxu0 %v7986
    %8156 = vmatprep.subr.bf16.mxu0 %v7991
    %8157 = vmatpush1.bf16.msra.mxu0 %v7990
    %8158 = vmatprep.subr.bf16.mxu0 %v7995
    %8159 = vmatpush1.bf16.msra.mxu0 %v7994
    %8160 = vmatprep.subr.bf16.mxu0 %v7999
    %8161 = vmatpush1.bf16.msra.mxu0 %v7998
    %8162 = vmatprep.subr.bf16.mxu0 %v8003
    %8163 = vmatpush1.bf16.msra.mxu0 %v8002
    %8164 = vmatprep.subr.bf16.mxu0 %v8007
    %8165 = vmatpush1.bf16.msra.mxu0 %v8006
    %8166 = vmatprep.subr.bf16.mxu0 %v8011
    %8167 = vmatpush1.bf16.msra.mxu0 %v8010
    %8168 = vmatprep.subr.bf16.mxu0 %v8015
    %8169 = vmatpush1.bf16.msra.mxu0 %v8014
    %8170 = vmatprep.subr.bf16.mxu0 %v8019
    %8171 = vmatpush1.bf16.msra.mxu0 %v8018
    %8172 = vmatprep.subr.bf16.mxu0 %v8023
    %8173 = vmatpush1.bf16.msra.mxu0 %v8022
    %8174 = vmatprep.subr.bf16.mxu0 %v8027
    %8175 = vmatpush1.bf16.msra.mxu0 %v8026
    %8176 = vmatprep.subr.bf16.mxu0 %v8031
    %8177 = vmatpush1.bf16.msra.mxu0 %v8030
    %8178 = vmatprep.subr.bf16.mxu0 %v8035
    %8179 = vmatpush1.bf16.msra.mxu0 %v8034
    %8180 = vmatprep.subr.bf16.mxu0 %v8039
    %8181 = vmatpush1.bf16.msra.mxu0 %v8038
    %8182 = vmatprep.mubr.bf16.mxu0 %v7172
    %8183 = vmatmul.mubr.bf16.gmra.mrb[0].mxu0 %v7171
    %v8184 = vpop.f32.mrb[0].mxu0
    %v8185 = vadd.f32 %v7679, %v8184
    %v8186 = vpop.f32.mrb[0].mxu0
    %v8187 = vadd.f32 %v7681, %v8186
    %v8188 = vpop.f32.mrb[0].mxu0
    %v8189 = vpop.f32.mrb[0].mxu0
    %8190 = vdwg.mxu0
    %8191 = vmatprep.subr.bf16.mxu0 %v8043
    %8192 = vmatpush1.bf16.msra.mxu0 %v8042
    %8193 = vmatprep.subr.bf16.mxu0 %v8047
    %8194 = vmatpush1.bf16.msra.mxu0 %v8046
    %8195 = vmatprep.subr.bf16.mxu0 %v8051
    %8196 = vmatpush1.bf16.msra.mxu0 %v8050
    %8197 = vmatprep.subr.bf16.mxu0 %v8055
    %8198 = vmatpush1.bf16.msra.mxu0 %v8054
    %8199 = vmatprep.subr.bf16.mxu0 %v8059
    %8200 = vmatpush1.bf16.msra.mxu0 %v8058
    %8201 = vmatprep.subr.bf16.mxu0 0
    %8202 = vmatpush1.bf16.msra.mxu0 0
    %8203 = vmatprep.subr.bf16.mxu0 0
    %8204 = vmatpush1.bf16.msra.mxu0 0
    %8205 = vmatprep.subr.bf16.mxu0 0
    %8206 = vmatpush1.bf16.msra.mxu0 0
    %8207 = vmatprep.subr.bf16.mxu0 0
    %8208 = vmatpush1.bf16.msra.mxu0 0
    %8209 = vmatprep.subr.bf16.mxu0 0
    %8210 = vmatpush1.bf16.msra.mxu0 0
    %8211 = vmatprep.subr.bf16.mxu0 0
    %8212 = vmatpush1.bf16.msra.mxu0 0
    %8213 = vmatprep.subr.bf16.mxu0 0
    %8214 = vmatpush1.bf16.msra.mxu0 0
    %8215 = vmatprep.subr.bf16.mxu0 0
    %8216 = vmatpush1.bf16.msra.mxu0 0
    %8217 = vmatprep.subr.bf16.mxu0 0
    %8218 = vmatpush1.bf16.msra.mxu0 0
    %8219 = vmatprep.subr.bf16.mxu0 0
    %8220 = vmatpush1.bf16.msra.mxu0 0
    %8221 = vmatprep.subr.bf16.mxu0 0
    %8222 = vmatpush1.bf16.msra.mxu0 0
    %8223 = vmatprep.mubr.bf16.mxu0 0
    %8224 = vmatmul.mubr.bf16.gmra.mrb[0].mxu0 %v8148
    %v8225 = vpop.f32.mrb[0].mxu0
    %v8226 = vadd.f32 %v8185, %v8225
    %v8227 = vpop.f32.mrb[0].mxu0
    %v8228 = vadd.f32 %v8187, %v8227
    %v8229 = vpop.f32.mrb[0].mxu0
    %v8230 = vpop.f32.mrb[0].mxu0
    %8231 = vdwg.mxu0
    %8232 = vmatprep.subr.bf16.mxu0 %v7981
    %8233 = vmatpush1.bf16.msra.mxu0 %v7980
    %8234 = vmatprep.subr.bf16.mxu0 %v7985
    %8235 = vmatpush1.bf16.msra.mxu0 %v7984
    %8236 = vmatprep.subr.bf16.mxu0 %v7989
    %8237 = vmatpush1.bf16.msra.mxu0 %v7988
    %8238 = vmatprep.subr.bf16.mxu0 %v7993
    %8239 = vmatpush1.bf16.msra.mxu0 %v7992
    %8240 = vmatprep.subr.bf16.mxu0 %v7997
    %8241 = vmatpush1.bf16.msra.mxu0 %v7996
    %8242 = vmatprep.subr.bf16.mxu0 %v8001
    %8243 = vmatpush1.bf16.msra.mxu0 %v8000
    %8244 = vmatprep.subr.bf16.mxu0 %v8005
    %8245 = vmatpush1.bf16.msra.mxu0 %v8004
    %8246 = vmatprep.subr.bf16.mxu0 %v8009
    %8247 = vmatpush1.bf16.msra.mxu0 %v8008
    %8248 = vmatprep.subr.bf16.mxu0 %v8013
    %8249 = vmatpush1.bf16.msra.mxu0 %v8012
    %8250 = vmatprep.subr.bf16.mxu0 %v8017
    %8251 = vmatpush1.bf16.msra.mxu0 %v8016
    %8252 = vmatprep.subr.bf16.mxu0 %v8021
    %8253 = vmatpush1.bf16.msra.mxu0 %v8020
    %8254 = vmatprep.subr.bf16.mxu0 %v8025
    %8255 = vmatpush1.bf16.msra.mxu0 %v8024
    %8256 = vmatprep.subr.bf16.mxu0 %v8029
    %8257 = vmatpush1.bf16.msra.mxu0 %v8028
    %8258 = vmatprep.subr.bf16.mxu0 %v8033
    %8259 = vmatpush1.bf16.msra.mxu0 %v8032
    %8260 = vmatprep.subr.bf16.mxu0 %v8037
    %8261 = vmatpush1.bf16.msra.mxu0 %v8036
    %8262 = vmatprep.subr.bf16.mxu0 %v8041
    %8263 = vmatpush1.bf16.msra.mxu0 %v8040
    %8264 = vmatprep.mubr.bf16.mxu0 %v7172
    %8265 = vmatmul.mubr.bf16.gmra.mrb[0].mxu0 %v7171
    %v8266 = vpop.f32.mrb[0].mxu0
    %v8267 = vadd.f32 %v7720, %v8266
    %v8268 = vpop.f32.mrb[0].mxu0
    %v8269 = vadd.f32 %v7722, %v8268
    %v8270 = vpop.f32.mrb[0].mxu0
    %v8271 = vpop.f32.mrb[0].mxu0
    %8272 = vdwg.mxu0
    %8273 = vmatprep.subr.bf16.mxu0 %v8045
    %8274 = vmatpush1.bf16.msra.mxu0 %v8044
    %8275 = vmatprep.subr.bf16.mxu0 %v8049
    %8276 = vmatpush1.bf16.msra.mxu0 %v8048
    %8277 = vmatprep.subr.bf16.mxu0 %v8053
    %8278 = vmatpush1.bf16.msra.mxu0 %v8052
    %8279 = vmatprep.subr.bf16.mxu0 %v8057
    %8280 = vmatpush1.bf16.msra.mxu0 %v8056
    %8281 = vmatprep.subr.bf16.mxu0 %v8061
    %8282 = vmatpush1.bf16.msra.mxu0 %v8060
    %8283 = vmatprep.subr.bf16.mxu0 0
    %8284 = vmatpush1.bf16.msra.mxu0 0
    %8285 = vmatprep.subr.bf16.mxu0 0
    %8286 = vmatpush1.bf16.msra.mxu0 0
    %8287 = vmatprep.subr.bf16.mxu0 0
    %8288 = vmatpush1.bf16.msra.mxu0 0
    %8289 = vmatprep.subr.bf16.mxu0 0
    %8290 = vmatpush1.bf16.msra.mxu0 0
    %8291 = vmatprep.subr.bf16.mxu0 0
    %8292 = vmatpush1.bf16.msra.mxu0 0
    %8293 = vmatprep.subr.bf16.mxu0 0
    %8294 = vmatpush1.bf16.msra.mxu0 0
    %8295 = vmatprep.subr.bf16.mxu0 0
    %8296 = vmatpush1.bf16.msra.mxu0 0
    %8297 = vmatprep.subr.bf16.mxu0 0
    %8298 = vmatpush1.bf16.msra.mxu0 0
    %8299 = vmatprep.subr.bf16.mxu0 0
    %8300 = vmatpush1.bf16.msra.mxu0 0
    %8301 = vmatprep.subr.bf16.mxu0 0
    %8302 = vmatpush1.bf16.msra.mxu0 0
    %8303 = vmatprep.subr.bf16.mxu0 0
    %8304 = vmatpush1.bf16.msra.mxu0 0
    %8305 = vmatprep.mubr.bf16.mxu0 0
    %8306 = vmatmul.mubr.bf16.gmra.mrb[0].mxu0 %v8148
    %v8307 = vpop.f32.mrb[0].mxu0
    %v8308 = vadd.f32 %v8267, %v8307
    %v8309 = vpop.f32.mrb[0].mxu0
    %v8310 = vadd.f32 %v8269, %v8309
    %v8311 = vpop.f32.mrb[0].mxu0
    %v8312 = vpop.f32.mrb[0].mxu0
    %8313 = vdwg.mxu0
    %v8314 = vpack.c.bf16 %v3388, %v3388
    %v8315 = vld [vmem:[#allocation16] sm:$0xff]
    %v8316 = vld [vmem:[#allocation16 + $0x8] sm:$0xff]
    %v8317 = vld [vmem:[#allocation16 + $0x10] sm:$0xff]
    %v8318 = vld [vmem:[#allocation16 + $0x18] sm:$0xff]
    %v8319 = vld [vmem:[#allocation16 + $0x20] sm:$0xff]
    %v8320 = vld [vmem:[#allocation16 + $0x28] sm:$0xff]
    %v8321 = vld [vmem:[#allocation16 + $0x30] sm:$0xff]
    %v8322 = vld [vmem:[#allocation16 + $0x38] sm:$0xff]
    %v8323 = vld [vmem:[#allocation16 + $0x40] sm:$0xff]
    %v8324 = vld [vmem:[#allocation16 + $0x48] sm:$0xff]
    %v8325 = vld [vmem:[#allocation16 + $0x50] sm:$0xff]
    %v8326 = vld [vmem:[#allocation16 + $0x58] sm:$0xff]
    %v8327 = vld [vmem:[#allocation16 + $0x60] sm:$0xff]
    %v8328 = vld [vmem:[#allocation16 + $0x68] sm:$0xff]
    %v8329 = vld [vmem:[#allocation16 + $0x70] sm:$0xff]
    %v8330 = vld [vmem:[#allocation16 + $0x78] sm:$0xff]
    %v8331 = vld [vmem:[#allocation16 + $0x80] sm:$0xff]
    %v8332 = vld [vmem:[#allocation16 + $0x88] sm:$0xff]
    %v8333 = vld [vmem:[#allocation16 + $0x90] sm:$0xff]
    %v8334 = vld [vmem:[#allocation16 + $0x98] sm:$0xff]
    %v8335 = vld [vmem:[#allocation16 + $0xa0] sm:$0xff]
    %v8336 = vld [vmem:[#allocation16 + $0xa8] sm:$0xff]
    %v8337 = vld [vmem:[#allocation16 + $0xb0] sm:$0xff]
    %v8338 = vld [vmem:[#allocation16 + $0xb8] sm:$0xff]
    %v8339 = vld [vmem:[#allocation16 + $0xc0] sm:$0xff]
    %v8340 = vld [vmem:[#allocation16 + $0xc8] sm:$0xff]
    %v8341 = vld [vmem:[#allocation16 + $0xd0] sm:$0xff]
    %v8342 = vld [vmem:[#allocation16 + $0xd8] sm:$0xff]
    %v8343 = vld [vmem:[#allocation16 + $0xe0] sm:$0xff]
    %v8344 = vld [vmem:[#allocation16 + $0xe8] sm:$0xff]
    %v8345 = vld [vmem:[#allocation16 + $0xf0] sm:$0xff]
    %v8346 = vld [vmem:[#allocation16 + $0xf8] sm:$0xff]
    %v8379 = vunpack.c.l.b16 %v8315
    %v8380 = vunpack.c.h.b16 %v8315
    %v8381 = vunpack.c.l.b16 %v8316
    %v8382 = vunpack.c.h.b16 %v8316
    %v8383 = vunpack.c.l.b16 %v8317
    %v8384 = vunpack.c.h.b16 %v8317
    %v8385 = vunpack.c.l.b16 %v8318
    %v8386 = vunpack.c.h.b16 %v8318
    %v8387 = vunpack.c.l.b16 %v8319
    %v8388 = vunpack.c.h.b16 %v8319
    %v8389 = vunpack.c.l.b16 %v8320
    %v8390 = vunpack.c.h.b16 %v8320
    %v8391 = vunpack.c.l.b16 %v8321
    %v8392 = vunpack.c.h.b16 %v8321
    %v8393 = vunpack.c.l.b16 %v8322
    %v8394 = vunpack.c.h.b16 %v8322
    %v8395 = vunpack.c.l.b16 %v8323
    %v8396 = vunpack.c.h.b16 %v8323
    %v8397 = vunpack.c.l.b16 %v8324
    %v8398 = vunpack.c.h.b16 %v8324
    %v8399 = vunpack.c.l.b16 %v8325
    %v8400 = vunpack.c.h.b16 %v8325
    %v8401 = vunpack.c.l.b16 %v8326
    %v8402 = vunpack.c.h.b16 %v8326
    %v8403 = vunpack.c.l.b16 %v8327
    %v8404 = vunpack.c.h.b16 %v8327
    %v8405 = vunpack.c.l.b16 %v8328
    %v8406 = vunpack.c.h.b16 %v8328
    %v8407 = vunpack.c.l.b16 %v8329
    %v8408 = vunpack.c.h.b16 %v8329
    %v8409 = vunpack.c.l.b16 %v8330
    %v8410 = vunpack.c.h.b16 %v8330
    %v8411 = vunpack.c.l.b16 %v8331
    %v8412 = vunpack.c.h.b16 %v8331
    %v8413 = vunpack.c.l.b16 %v8332
    %v8414 = vunpack.c.h.b16 %v8332
    %v8415 = vunpack.c.l.b16 %v8333
    %v8416 = vunpack.c.h.b16 %v8333
    %v8417 = vunpack.c.l.b16 %v8334
    %v8418 = vunpack.c.h.b16 %v8334
    %v8419 = vunpack.c.l.b16 %v8335
    %v8420 = vunpack.c.h.b16 %v8335
    %v8421 = vunpack.c.l.b16 %v8336
    %v8422 = vunpack.c.h.b16 %v8336
    %v8423 = vunpack.c.l.b16 %v8337
    %v8424 = vunpack.c.h.b16 %v8337
    %v8425 = vunpack.c.l.b16 %v8338
    %v8426 = vunpack.c.h.b16 %v8338
    %v8427 = vunpack.c.l.b16 %v8339
    %v8428 = vunpack.c.h.b16 %v8339
    %v8429 = vunpack.c.l.b16 %v8340
    %v8430 = vunpack.c.h.b16 %v8340
    %v8431 = vunpack.c.l.b16 %v8341
    %v8432 = vunpack.c.h.b16 %v8341
    %v8433 = vunpack.c.l.b16 %v8342
    %v8434 = vunpack.c.h.b16 %v8342
    %v8435 = vunpack.c.l.b16 %v8343
    %v8436 = vunpack.c.h.b16 %v8343
    %v8437 = vunpack.c.l.b16 %v8344
    %v8438 = vunpack.c.h.b16 %v8344
    %v8439 = vunpack.c.l.b16 %v8345
    %v8440 = vunpack.c.h.b16 %v8345
    %v8441 = vunpack.c.l.b16 %v8346
    %v8442 = vunpack.c.h.b16 %v8346
    %v8443 = vpack.c.b16 %v8383, %v8379
    %v8444 = vpack.c.b16 %v8384, %v8380
    %v8445 = vpack.c.b16 %v8385, %v8381
    %v8446 = vpack.c.b16 %v8386, %v8382
    %v8447 = vpack.c.b16 %v8391, %v8387
    %v8448 = vpack.c.b16 %v8392, %v8388
    %v8449 = vpack.c.b16 %v8393, %v8389
    %v8450 = vpack.c.b16 %v8394, %v8390
    %v8451 = vpack.c.b16 %v8399, %v8395
    %v8452 = vpack.c.b16 %v8400, %v8396
    %v8453 = vpack.c.b16 %v8401, %v8397
    %v8454 = vpack.c.b16 %v8402, %v8398
    %v8455 = vpack.c.b16 %v8407, %v8403
    %v8456 = vpack.c.b16 %v8408, %v8404
    %v8457 = vpack.c.b16 %v8409, %v8405
    %v8458 = vpack.c.b16 %v8410, %v8406
    %v8459 = vpack.c.b16 %v8415, %v8411
    %v8460 = vpack.c.b16 %v8416, %v8412
    %v8461 = vpack.c.b16 %v8417, %v8413
    %v8462 = vpack.c.b16 %v8418, %v8414
    %v8463 = vpack.c.b16 %v8423, %v8419
    %v8464 = vpack.c.b16 %v8424, %v8420
    %v8465 = vpack.c.b16 %v8425, %v8421
    %v8466 = vpack.c.b16 %v8426, %v8422
    %v8467 = vpack.c.b16 %v8431, %v8427
    %v8468 = vpack.c.b16 %v8432, %v8428
    %v8469 = vpack.c.b16 %v8433, %v8429
    %v8470 = vpack.c.b16 %v8434, %v8430
    %v8471 = vpack.c.b16 %v8439, %v8435
    %v8472 = vpack.c.b16 %v8440, %v8436
    %v8473 = vpack.c.b16 %v8441, %v8437
    %v8474 = vpack.c.b16 %v8442, %v8438
    %8507 = vmatprep.subr.bf16.mxu0 %v8444
    %8508 = vmatpush1.bf16.msra.mxu0 %v8443
    %8509 = vmatprep.subr.bf16.mxu0 %v8448
    %8510 = vmatpush1.bf16.msra.mxu0 %v8447
    %8511 = vmatprep.subr.bf16.mxu0 %v8452
    %8512 = vmatpush1.bf16.msra.mxu0 %v8451
    %8513 = vmatprep.subr.bf16.mxu0 %v8456
    %8514 = vmatpush1.bf16.msra.mxu0 %v8455
    %8515 = vmatprep.subr.bf16.mxu0 %v8460
    %8516 = vmatpush1.bf16.msra.mxu0 %v8459
    %8517 = vmatprep.subr.bf16.mxu0 %v8464
    %8518 = vmatpush1.bf16.msra.mxu0 %v8463
    %8519 = vmatprep.subr.bf16.mxu0 %v8468
    %8520 = vmatpush1.bf16.msra.mxu0 %v8467
    %8521 = vmatprep.subr.bf16.mxu0 %v8472
    %8522 = vmatpush1.bf16.msra.mxu0 %v8471
    %8523 = vmatprep.subr.bf16.mxu0 0
    %8524 = vmatpush1.bf16.msra.mxu0 0
    %8525 = vmatprep.subr.bf16.mxu0 0
    %8526 = vmatpush1.bf16.msra.mxu0 0
    %8527 = vmatprep.subr.bf16.mxu0 0
    %8528 = vmatpush1.bf16.msra.mxu0 0
    %8529 = vmatprep.subr.bf16.mxu0 0
    %8530 = vmatpush1.bf16.msra.mxu0 0
    %8531 = vmatprep.subr.bf16.mxu0 0
    %8532 = vmatpush1.bf16.msra.mxu0 0
    %8533 = vmatprep.subr.bf16.mxu0 0
    %8534 = vmatpush1.bf16.msra.mxu0 0
    %8535 = vmatprep.subr.bf16.mxu0 0
    %8536 = vmatpush1.bf16.msra.mxu0 0
    %8537 = vmatprep.subr.bf16.mxu0 0
    %8538 = vmatpush1.bf16.msra.mxu0 0
    %8539 = vmatprep.mubr.bf16.mxu0 0
    %8540 = vmatmul.mubr.bf16.gmra.mrb[0].mxu0 %v8314
    %v8541 = vpop.f32.mrb[0].mxu0
    %v8542 = vadd.f32 0.0, %v8541
    %v8543 = vpop.f32.mrb[0].mxu0
    %v8544 = vadd.f32 0.0, %v8543
    %v8545 = vpop.f32.mrb[0].mxu0
    %v8546 = vpop.f32.mrb[0].mxu0
    %8547 = vdwg.mxu0
    %8548 = vmatprep.subr.bf16.mxu0 %v8446
    %8549 = vmatpush1.bf16.msra.mxu0 %v8445
    %8550 = vmatprep.subr.bf16.mxu0 %v8450
    %8551 = vmatpush1.bf16.msra.mxu0 %v8449
    %8552 = vmatprep.subr.bf16.mxu0 %v8454
    %8553 = vmatpush1.bf16.msra.mxu0 %v8453
    %8554 = vmatprep.subr.bf16.mxu0 %v8458
    %8555 = vmatpush1.bf16.msra.mxu0 %v8457
    %8556 = vmatprep.subr.bf16.mxu0 %v8462
    %8557 = vmatpush1.bf16.msra.mxu0 %v8461
    %8558 = vmatprep.subr.bf16.mxu0 %v8466
    %8559 = vmatpush1.bf16.msra.mxu0 %v8465
    %8560 = vmatprep.subr.bf16.mxu0 %v8470
    %8561 = vmatpush1.bf16.msra.mxu0 %v8469
    %8562 = vmatprep.subr.bf16.mxu0 %v8474
    %8563 = vmatpush1.bf16.msra.mxu0 %v8473
    %8564 = vmatprep.subr.bf16.mxu0 0
    %8565 = vmatpush1.bf16.msra.mxu0 0
    %8566 = vmatprep.subr.bf16.mxu0 0
    %8567 = vmatpush1.bf16.msra.mxu0 0
    %8568 = vmatprep.subr.bf16.mxu0 0
    %8569 = vmatpush1.bf16.msra.mxu0 0
    %8570 = vmatprep.subr.bf16.mxu0 0
    %8571 = vmatpush1.bf16.msra.mxu0 0
    %8572 = vmatprep.subr.bf16.mxu0 0
    %8573 = vmatpush1.bf16.msra.mxu0 0
    %8574 = vmatprep.subr.bf16.mxu0 0
    %8575 = vmatpush1.bf16.msra.mxu0 0
    %8576 = vmatprep.subr.bf16.mxu0 0
    %8577 = vmatpush1.bf16.msra.mxu0 0
    %8578 = vmatprep.subr.bf16.mxu0 0
    %8579 = vmatpush1.bf16.msra.mxu0 0
    %8580 = vmatprep.mubr.bf16.mxu0 0
    %8581 = vmatmul.mubr.bf16.gmra.mrb[0].mxu0 %v8314
    %v8582 = vpop.f32.mrb[0].mxu0
    %v8583 = vadd.f32 0.0, %v8582
    %v8584 = vpop.f32.mrb[0].mxu0
    %v8585 = vadd.f32 0.0, %v8584
    %v8586 = vpop.f32.mrb[0].mxu0
    %v8587 = vpop.f32.mrb[0].mxu0
    %8588 = vdwg.mxu0
    %v8589 = vadd.f32 %v8226, %v8542
    %v8590 = vadd.f32 %v8228, %v8544
    %v8591 = vadd.f32 %v8308, %v8583
    %v8592 = vadd.f32 %v8310, %v8585
    %v8593 = vld [vmem:[#allocation17] sm:$0xf]
    %v8595 = vlaneseq
    %v8596 = vshrl.u32 %v8595, 7
    %v8597 = vsub.s32 0, %v8596
    %v8598 = vrot.slane %v8593, %v8597
    %v8599 = vlaneseq
    %v8600 = vshrl.u32 %v8599, 7
    %v8601 = vsub.s32 1, %v8600
    %v8602 = vrot.slane %v8593, %v8601
    %v8603 = vlaneseq
    %v8604 = vshrl.u32 %v8603, 7
    %v8605 = vsub.s32 2, %v8604
    %v8606 = vrot.slane %v8593, %v8605
    %v8607 = vlaneseq
    %v8608 = vshrl.u32 %v8607, 7
    %v8609 = vsub.s32 3, %v8608
    %v8610 = vrot.slane %v8593, %v8609
    %v8615 = vadd.f32 %v8589, %v8598
    %v8616 = vadd.f32 %v8590, %v8602
    %v8617 = vadd.f32 %v8591, %v8606
    %v8618 = vadd.f32 %v8592, %v8610
    %vm8619 = vcmp.gt.f32.partialorder %v8615, 0.0
    %vm8620 = vcmp.gt.f32.partialorder %v8616, 0.0
    %vm8621 = vcmp.gt.f32.partialorder %v8617, 0.0
    %vm8622 = vcmp.gt.f32.partialorder %v8618, 0.0
    %v8623 = vmul.f32 %v8615, 0.01
    %v8624 = vmul.f32 %v8616, 0.01
    %v8625 = vmul.f32 %v8617, 0.01
    %v8626 = vmul.f32 %v8618, 0.01
    %v8627 = vsel %vm8619, %v8615, %v8623
    %v8628 = vsel %vm8620, %v8616, %v8624
    %v8629 = vsel %vm8621, %v8617, %v8625
    %v8630 = vsel %vm8622, %v8618, %v8626
    %v8631 = vpack.c.bf16 %v8627, %v8627
    %v8632 = vpack.c.bf16 %v8628, %v8628
    %v8633 = vpack.c.bf16 %v8629, %v8629
    %v8634 = vpack.c.bf16 %v8630, %v8630
    %v8635 = vld [vmem:[#allocation19] sm:$0xff]
    %v8636 = vld [vmem:[#allocation19 + $0x8] sm:$0xff]
    %v8637 = vld [vmem:[#allocation19 + $0x10] sm:$0xff]
    %v8638 = vld [vmem:[#allocation19 + $0x18] sm:$0xff]
    %v8639 = vld [vmem:[#allocation19 + $0x20] sm:$0xff]
    %v8640 = vld [vmem:[#allocation19 + $0x28] sm:$0xff]
    %v8641 = vld [vmem:[#allocation19 + $0x30] sm:$0xff]
    %v8642 = vld [vmem:[#allocation19 + $0x38] sm:$0xff]
    %v8643 = vld [vmem:[#allocation19 + $0x40] sm:$0xff]
    %v8644 = vld [vmem:[#allocation19 + $0x48] sm:$0xff]
    %v8645 = vld [vmem:[#allocation19 + $0x50] sm:$0xff]
    %v8646 = vld [vmem:[#allocation19 + $0x58] sm:$0xff]
    %v8647 = vld [vmem:[#allocation19 + $0x60] sm:$0xff]
    %v8648 = vld [vmem:[#allocation19 + $0x68] sm:$0xff]
    %v8649 = vld [vmem:[#allocation19 + $0x70] sm:$0xff]
    %v8650 = vld [vmem:[#allocation19 + $0x78] sm:$0xff]
    %v8651 = vld [vmem:[#allocation19 + $0x80] sm:$0xff]
    %v8652 = vld [vmem:[#allocation19 + $0x88] sm:$0xff]
    %v8653 = vld [vmem:[#allocation19 + $0x90] sm:$0xff]
    %v8654 = vld [vmem:[#allocation19 + $0x98] sm:$0xff]
    %v8655 = vld [vmem:[#allocation19 + $0xa0] sm:$0xff]
    %v8656 = vld [vmem:[#allocation19 + $0xa8] sm:$0xff]
    %v8657 = vld [vmem:[#allocation19 + $0xb0] sm:$0xff]
    %v8658 = vld [vmem:[#allocation19 + $0xb8] sm:$0xff]
    %v8659 = vld [vmem:[#allocation19 + $0xc0] sm:$0xff]
    %v8660 = vld [vmem:[#allocation19 + $0xc8] sm:$0xff]
    %v8661 = vld [vmem:[#allocation19 + $0xd0] sm:$0xff]
    %v8662 = vld [vmem:[#allocation19 + $0xd8] sm:$0xff]
    %v8663 = vld [vmem:[#allocation19 + $0xe0] sm:$0xff]
    %v8664 = vld [vmem:[#allocation19 + $0xe8] sm:$0xff]
    %v8665 = vld [vmem:[#allocation19 + $0xf0] sm:$0xff]
    %v8666 = vld [vmem:[#allocation19 + $0xf8] sm:$0xff]
    %v8667 = vld [vmem:[#allocation19 + $0x100] sm:$0xff]
    %v8668 = vld [vmem:[#allocation19 + $0x108] sm:$0xff]
    %v8669 = vld [vmem:[#allocation19 + $0x110] sm:$0xff]
    %v8670 = vld [vmem:[#allocation19 + $0x118] sm:$0xff]
    %v8671 = vld [vmem:[#allocation19 + $0x120] sm:$0xff]
    %v8672 = vld [vmem:[#allocation19 + $0x128] sm:$0xff]
    %v8673 = vld [vmem:[#allocation19 + $0x130] sm:$0xff]
    %v8674 = vld [vmem:[#allocation19 + $0x138] sm:$0xff]
    %v8675 = vld [vmem:[#allocation19 + $0x140] sm:$0xff]
    %v8676 = vld [vmem:[#allocation19 + $0x148] sm:$0xff]
    %v8677 = vld [vmem:[#allocation19 + $0x150] sm:$0xff]
    %v8678 = vld [vmem:[#allocation19 + $0x158] sm:$0xff]
    %v8679 = vld [vmem:[#allocation19 + $0x160] sm:$0xff]
    %v8680 = vld [vmem:[#allocation19 + $0x168] sm:$0xff]
    %v8681 = vld [vmem:[#allocation19 + $0x170] sm:$0xff]
    %v8682 = vld [vmem:[#allocation19 + $0x178] sm:$0xff]
    %v8683 = vld [vmem:[#allocation19 + $0x180] sm:$0xff]
    %v8684 = vld [vmem:[#allocation19 + $0x188] sm:$0xff]
    %v8685 = vld [vmem:[#allocation19 + $0x190] sm:$0xff]
    %v8686 = vld [vmem:[#allocation19 + $0x198] sm:$0xff]
    %v8687 = vld [vmem:[#allocation19 + $0x1a0] sm:$0xff]
    %v8688 = vld [vmem:[#allocation19 + $0x1a8] sm:$0xff]
    %v8689 = vld [vmem:[#allocation19 + $0x1b0] sm:$0xff]
    %v8690 = vld [vmem:[#allocation19 + $0x1b8] sm:$0xff]
    %v8691 = vld [vmem:[#allocation19 + $0x1c0] sm:$0xff]
    %v8692 = vld [vmem:[#allocation19 + $0x1c8] sm:$0xff]
    %v8693 = vld [vmem:[#allocation19 + $0x1d0] sm:$0xff]
    %v8694 = vld [vmem:[#allocation19 + $0x1d8] sm:$0xff]
    %v8695 = vld [vmem:[#allocation19 + $0x1e0] sm:$0xff]
    %v8696 = vld [vmem:[#allocation19 + $0x1e8] sm:$0xff]
    %v8697 = vld [vmem:[#allocation19 + $0x1f0] sm:$0xff]
    %v8698 = vld [vmem:[#allocation19 + $0x1f8] sm:$0xff]
    %v8699 = vld [vmem:[#allocation19 + $0x200] sm:$0xff]
    %v8700 = vld [vmem:[#allocation19 + $0x208] sm:$0xff]
    %v8701 = vld [vmem:[#allocation19 + $0x210] sm:$0xff]
    %v8702 = vld [vmem:[#allocation19 + $0x218] sm:$0xff]
    %v8703 = vld [vmem:[#allocation19 + $0x220] sm:$0xff]
    %v8704 = vld [vmem:[#allocation19 + $0x228] sm:$0xff]
    %v8705 = vld [vmem:[#allocation19 + $0x230] sm:$0xff]
    %v8706 = vld [vmem:[#allocation19 + $0x238] sm:$0xff]
    %v8707 = vld [vmem:[#allocation19 + $0x240] sm:$0xff]
    %v8708 = vld [vmem:[#allocation19 + $0x248] sm:$0xff]
    %v8709 = vld [vmem:[#allocation19 + $0x250] sm:$0xff]
    %v8710 = vld [vmem:[#allocation19 + $0x258] sm:$0xff]
    %v8711 = vld [vmem:[#allocation19 + $0x260] sm:$0xff]
    %v8712 = vld [vmem:[#allocation19 + $0x268] sm:$0xff]
    %v8713 = vld [vmem:[#allocation19 + $0x270] sm:$0xff]
    %v8714 = vld [vmem:[#allocation19 + $0x278] sm:$0xff]
    %v8715 = vld [vmem:[#allocation19 + $0x280] sm:$0xff]
    %v8716 = vld [vmem:[#allocation19 + $0x288] sm:$0xff]
    %v8717 = vld [vmem:[#allocation19 + $0x290] sm:$0xff]
    %v8718 = vld [vmem:[#allocation19 + $0x298] sm:$0xff]
    %v8719 = vld [vmem:[#allocation19 + $0x2a0] sm:$0xff]
    %v8720 = vld [vmem:[#allocation19 + $0x2a8] sm:$0xff]
    %v8721 = vld [vmem:[#allocation19 + $0x2b0] sm:$0xff]
    %v8722 = vld [vmem:[#allocation19 + $0x2b8] sm:$0xff]
    %v8723 = vld [vmem:[#allocation19 + $0x2c0] sm:$0xff]
    %v8724 = vld [vmem:[#allocation19 + $0x2c8] sm:$0xff]
    %v8725 = vld [vmem:[#allocation19 + $0x2d0] sm:$0xff]
    %v8726 = vld [vmem:[#allocation19 + $0x2d8] sm:$0xff]
    %v8727 = vld [vmem:[#allocation19 + $0x2e0] sm:$0xff]
    %v8728 = vld [vmem:[#allocation19 + $0x2e8] sm:$0xff]
    %v8729 = vld [vmem:[#allocation19 + $0x2f0] sm:$0xff]
    %v8730 = vld [vmem:[#allocation19 + $0x2f8] sm:$0xff]
    %v8731 = vld [vmem:[#allocation19 + $0x300] sm:$0xff]
    %v8732 = vld [vmem:[#allocation19 + $0x308] sm:$0xff]
    %v8733 = vld [vmem:[#allocation19 + $0x310] sm:$0xff]
    %v8734 = vld [vmem:[#allocation19 + $0x318] sm:$0xff]
    %v8735 = vld [vmem:[#allocation19 + $0x320] sm:$0xff]
    %v8736 = vld [vmem:[#allocation19 + $0x328] sm:$0xff]
    %v8737 = vld [vmem:[#allocation19 + $0x330] sm:$0xff]
    %v8738 = vld [vmem:[#allocation19 + $0x338] sm:$0xff]
    %v8739 = vld [vmem:[#allocation19 + $0x340] sm:$0xff]
    %v8740 = vld [vmem:[#allocation19 + $0x348] sm:$0xff]
    %v8741 = vld [vmem:[#allocation19 + $0x350] sm:$0xff]
    %v8742 = vld [vmem:[#allocation19 + $0x358] sm:$0xff]
    %v8743 = vld [vmem:[#allocation19 + $0x360] sm:$0xff]
    %v8744 = vld [vmem:[#allocation19 + $0x368] sm:$0xff]
    %v8745 = vld [vmem:[#allocation19 + $0x370] sm:$0xff]
    %v8746 = vld [vmem:[#allocation19 + $0x378] sm:$0xff]
    %v8747 = vld [vmem:[#allocation19 + $0x380] sm:$0xff]
    %v8748 = vld [vmem:[#allocation19 + $0x388] sm:$0xff]
    %v8749 = vld [vmem:[#allocation19 + $0x390] sm:$0xff]
    %v8750 = vld [vmem:[#allocation19 + $0x398] sm:$0xff]
    %v8751 = vld [vmem:[#allocation19 + $0x3a0] sm:$0xff]
    %v8752 = vld [vmem:[#allocation19 + $0x3a8] sm:$0xff]
    %v8753 = vld [vmem:[#allocation19 + $0x3b0] sm:$0xff]
    %v8754 = vld [vmem:[#allocation19 + $0x3b8] sm:$0xff]
    %v8755 = vld [vmem:[#allocation19 + $0x3c0] sm:$0xff]
    %v8756 = vld [vmem:[#allocation19 + $0x3c8] sm:$0xff]
    %v8757 = vld [vmem:[#allocation19 + $0x3d0] sm:$0xff]
    %v8758 = vld [vmem:[#allocation19 + $0x3d8] sm:$0xff]
    %v8759 = vld [vmem:[#allocation19 + $0x3e0] sm:$0xff]
    %v8760 = vld [vmem:[#allocation19 + $0x3e8] sm:$0xff]
    %v8761 = vld [vmem:[#allocation19 + $0x3f0] sm:$0xff]
    %v8762 = vld [vmem:[#allocation19 + $0x3f8] sm:$0xff]
    %v8763 = vld [vmem:[#allocation19 + $0x400] sm:$0xff]
    %v8764 = vld [vmem:[#allocation19 + $0x408] sm:$0xff]
    %v8765 = vld [vmem:[#allocation19 + $0x410] sm:$0xff]
    %v8766 = vld [vmem:[#allocation19 + $0x418] sm:$0xff]
    %v8767 = vld [vmem:[#allocation19 + $0x420] sm:$0xff]
    %v8768 = vld [vmem:[#allocation19 + $0x428] sm:$0xff]
    %v8769 = vld [vmem:[#allocation19 + $0x430] sm:$0xff]
    %v8770 = vld [vmem:[#allocation19 + $0x438] sm:$0xff]
    %v8771 = vld [vmem:[#allocation19 + $0x440] sm:$0xff]
    %v8772 = vld [vmem:[#allocation19 + $0x448] sm:$0xff]
    %v8773 = vld [vmem:[#allocation19 + $0x450] sm:$0xff]
    %v8774 = vld [vmem:[#allocation19 + $0x458] sm:$0xff]
    %v8775 = vld [vmem:[#allocation19 + $0x460] sm:$0xff]
    %v8776 = vld [vmem:[#allocation19 + $0x468] sm:$0xff]
    %v8777 = vld [vmem:[#allocation19 + $0x470] sm:$0xff]
    %v8778 = vld [vmem:[#allocation19 + $0x478] sm:$0xff]
    %v8779 = vld [vmem:[#allocation19 + $0x480] sm:$0xff]
    %v8780 = vld [vmem:[#allocation19 + $0x488] sm:$0xff]
    %v8781 = vld [vmem:[#allocation19 + $0x490] sm:$0xff]
    %v8782 = vld [vmem:[#allocation19 + $0x498] sm:$0xff]
    %v8783 = vld [vmem:[#allocation19 + $0x4a0] sm:$0xff]
    %v8784 = vld [vmem:[#allocation19 + $0x4a8] sm:$0xff]
    %v8785 = vld [vmem:[#allocation19 + $0x4b0] sm:$0xff]
    %v8786 = vld [vmem:[#allocation19 + $0x4b8] sm:$0xff]
    %v8787 = vld [vmem:[#allocation19 + $0x4c0] sm:$0xff]
    %v8788 = vld [vmem:[#allocation19 + $0x4c8] sm:$0xff]
    %v8789 = vld [vmem:[#allocation19 + $0x4d0] sm:$0xff]
    %v8790 = vld [vmem:[#allocation19 + $0x4d8] sm:$0xff]
    %v8791 = vld [vmem:[#allocation19 + $0x4e0] sm:$0xff]
    %v8792 = vld [vmem:[#allocation19 + $0x4e8] sm:$0xff]
    %v8793 = vld [vmem:[#allocation19 + $0x4f0] sm:$0xff]
    %v8794 = vld [vmem:[#allocation19 + $0x4f8] sm:$0xff]
    %v8795 = vld [vmem:[#allocation19 + $0x500] sm:$0xff]
    %v8796 = vld [vmem:[#allocation19 + $0x508] sm:$0xff]
    %v8797 = vld [vmem:[#allocation19 + $0x510] sm:$0xff]
    %v8798 = vld [vmem:[#allocation19 + $0x518] sm:$0xff]
    %v8799 = vld [vmem:[#allocation19 + $0x520] sm:$0xff]
    %v8800 = vld [vmem:[#allocation19 + $0x528] sm:$0xff]
    %v8801 = vld [vmem:[#allocation19 + $0x530] sm:$0xff]
    %v8802 = vld [vmem:[#allocation19 + $0x538] sm:$0xff]
    %v8803 = vld [vmem:[#allocation19 + $0x540] sm:$0xff]
    %v8804 = vld [vmem:[#allocation19 + $0x548] sm:$0xff]
    %v8805 = vld [vmem:[#allocation19 + $0x550] sm:$0xff]
    %v8806 = vld [vmem:[#allocation19 + $0x558] sm:$0xff]
    %v8807 = vld [vmem:[#allocation19 + $0x560] sm:$0xff]
    %v8808 = vld [vmem:[#allocation19 + $0x568] sm:$0xff]
    %v8809 = vld [vmem:[#allocation19 + $0x570] sm:$0xff]
    %v8810 = vld [vmem:[#allocation19 + $0x578] sm:$0xff]
    %v8811 = vld [vmem:[#allocation19 + $0x580] sm:$0xff]
    %v8812 = vld [vmem:[#allocation19 + $0x588] sm:$0xff]
    %v8813 = vld [vmem:[#allocation19 + $0x590] sm:$0xff]
    %v8814 = vld [vmem:[#allocation19 + $0x598] sm:$0xff]
    %v8815 = vld [vmem:[#allocation19 + $0x5a0] sm:$0xff]
    %v8816 = vld [vmem:[#allocation19 + $0x5a8] sm:$0xff]
    %v8817 = vld [vmem:[#allocation19 + $0x5b0] sm:$0xff]
    %v8818 = vld [vmem:[#allocation19 + $0x5b8] sm:$0xff]
    %v8819 = vld [vmem:[#allocation19 + $0x5c0] sm:$0xff]
    %v8820 = vld [vmem:[#allocation19 + $0x5c8] sm:$0xff]
    %v8821 = vld [vmem:[#allocation19 + $0x5d0] sm:$0xff]
    %v8822 = vld [vmem:[#allocation19 + $0x5d8] sm:$0xff]
    %v8823 = vld [vmem:[#allocation19 + $0x5e0] sm:$0xff]
    %v8824 = vld [vmem:[#allocation19 + $0x5e8] sm:$0xff]
    %v8825 = vld [vmem:[#allocation19 + $0x5f0] sm:$0xff]
    %v8826 = vld [vmem:[#allocation19 + $0x5f8] sm:$0xff]
    %v8827 = vld [vmem:[#allocation19 + $0x600] sm:$0xff]
    %v8828 = vld [vmem:[#allocation19 + $0x608] sm:$0xff]
    %v8829 = vld [vmem:[#allocation19 + $0x610] sm:$0xff]
    %v8830 = vld [vmem:[#allocation19 + $0x618] sm:$0xff]
    %v8831 = vld [vmem:[#allocation19 + $0x620] sm:$0xff]
    %v8832 = vld [vmem:[#allocation19 + $0x628] sm:$0xff]
    %v8833 = vld [vmem:[#allocation19 + $0x630] sm:$0xff]
    %v8834 = vld [vmem:[#allocation19 + $0x638] sm:$0xff]
    %v8835 = vld [vmem:[#allocation19 + $0x640] sm:$0xff]
    %v8836 = vld [vmem:[#allocation19 + $0x648] sm:$0xff]
    %v8837 = vld [vmem:[#allocation19 + $0x650] sm:$0xff]
    %v8838 = vld [vmem:[#allocation19 + $0x658] sm:$0xff]
    %v8839 = vld [vmem:[#allocation19 + $0x660] sm:$0xff]
    %v8840 = vld [vmem:[#allocation19 + $0x668] sm:$0xff]
    %v8841 = vld [vmem:[#allocation19 + $0x670] sm:$0xff]
    %v8842 = vld [vmem:[#allocation19 + $0x678] sm:$0xff]
    %v8843 = vld [vmem:[#allocation19 + $0x680] sm:$0xff]
    %v8844 = vld [vmem:[#allocation19 + $0x688] sm:$0xff]
    %v8845 = vld [vmem:[#allocation19 + $0x690] sm:$0xff]
    %v8846 = vld [vmem:[#allocation19 + $0x698] sm:$0xff]
    %v8847 = vld [vmem:[#allocation19 + $0x6a0] sm:$0xff]
    %v8848 = vld [vmem:[#allocation19 + $0x6a8] sm:$0xff]
    %v8849 = vld [vmem:[#allocation19 + $0x6b0] sm:$0xff]
    %v8850 = vld [vmem:[#allocation19 + $0x6b8] sm:$0xff]
    %v8851 = vld [vmem:[#allocation19 + $0x6c0] sm:$0xff]
    %v8852 = vld [vmem:[#allocation19 + $0x6c8] sm:$0xff]
    %v8853 = vld [vmem:[#allocation19 + $0x6d0] sm:$0xff]
    %v8854 = vld [vmem:[#allocation19 + $0x6d8] sm:$0xff]
    %v8855 = vld [vmem:[#allocation19 + $0x6e0] sm:$0xff]
    %v8856 = vld [vmem:[#allocation19 + $0x6e8] sm:$0xff]
    %v8857 = vld [vmem:[#allocation19 + $0x6f0] sm:$0xff]
    %v8858 = vld [vmem:[#allocation19 + $0x6f8] sm:$0xff]
    %v8859 = vld [vmem:[#allocation19 + $0x700] sm:$0xff]
    %v8860 = vld [vmem:[#allocation19 + $0x708] sm:$0xff]
    %v8861 = vld [vmem:[#allocation19 + $0x710] sm:$0xff]
    %v8862 = vld [vmem:[#allocation19 + $0x718] sm:$0xff]
    %v8863 = vld [vmem:[#allocation19 + $0x720] sm:$0xff]
    %v8864 = vld [vmem:[#allocation19 + $0x728] sm:$0xff]
    %v8865 = vld [vmem:[#allocation19 + $0x730] sm:$0xff]
    %v8866 = vld [vmem:[#allocation19 + $0x738] sm:$0xff]
    %v8867 = vld [vmem:[#allocation19 + $0x740] sm:$0xff]
    %v8868 = vld [vmem:[#allocation19 + $0x748] sm:$0xff]
    %v8869 = vld [vmem:[#allocation19 + $0x750] sm:$0xff]
    %v8870 = vld [vmem:[#allocation19 + $0x758] sm:$0xff]
    %v8871 = vld [vmem:[#allocation19 + $0x760] sm:$0xff]
    %v8872 = vld [vmem:[#allocation19 + $0x768] sm:$0xff]
    %v8873 = vld [vmem:[#allocation19 + $0x770] sm:$0xff]
    %v8874 = vld [vmem:[#allocation19 + $0x778] sm:$0xff]
    %v8875 = vld [vmem:[#allocation19 + $0x780] sm:$0xff]
    %v8876 = vld [vmem:[#allocation19 + $0x788] sm:$0xff]
    %v8877 = vld [vmem:[#allocation19 + $0x790] sm:$0xff]
    %v8878 = vld [vmem:[#allocation19 + $0x798] sm:$0xff]
    %v8879 = vld [vmem:[#allocation19 + $0x7a0] sm:$0xff]
    %v8880 = vld [vmem:[#allocation19 + $0x7a8] sm:$0xff]
    %v8881 = vld [vmem:[#allocation19 + $0x7b0] sm:$0xff]
    %v8882 = vld [vmem:[#allocation19 + $0x7b8] sm:$0xff]
    %v8883 = vld [vmem:[#allocation19 + $0x7c0] sm:$0xff]
    %v8884 = vld [vmem:[#allocation19 + $0x7c8] sm:$0xff]
    %v8885 = vld [vmem:[#allocation19 + $0x7d0] sm:$0xff]
    %v8886 = vld [vmem:[#allocation19 + $0x7d8] sm:$0xff]
    %v8887 = vld [vmem:[#allocation19 + $0x7e0] sm:$0xff]
    %v8888 = vld [vmem:[#allocation19 + $0x7e8] sm:$0xff]
    %v8889 = vld [vmem:[#allocation19 + $0x7f0] sm:$0xff]
    %v8890 = vld [vmem:[#allocation19 + $0x7f8] sm:$0xff]
    %v8893 = vunpack.c.l.s4 1983009808
    %v8894 = vunpack.c.0.s8 %v8893
    %v8895 = vlaneseq
    %v8896 = vshrl.u32 %v8895, 7
    %v8897 = vsub.s32 %v8894, %v8896
    %v8898 = vrot.slane %v272, %v8897
    %v8899 = vcombine.high %v8898, %v8898
    %v8902 = vpack.c.bf16 %v8898, %v8898
    %v8903 = vpack.c.bf16 %v8899, %v8899
    %v8904 = vld [vmem:[#allocation20] sm:$0xff]
    %v8905 = vld [vmem:[#allocation20 + $0x8] sm:$0xff]
    %v8906 = vld [vmem:[#allocation20 + $0x10] sm:$0xff]
    %v8907 = vld [vmem:[#allocation20 + $0x18] sm:$0xff]
    %v8908 = vld [vmem:[#allocation20 + $0x20] sm:$0xff]
    %v8909 = vld [vmem:[#allocation20 + $0x28] sm:$0xff]
    %v8910 = vld [vmem:[#allocation20 + $0x30] sm:$0xff]
    %v8911 = vld [vmem:[#allocation20 + $0x38] sm:$0xff]
    %v8912 = vld [vmem:[#allocation20 + $0x40] sm:$0xff]
    %v8913 = vld [vmem:[#allocation20 + $0x48] sm:$0xff]
    %v8914 = vld [vmem:[#allocation20 + $0x50] sm:$0xff]
    %v8915 = vld [vmem:[#allocation20 + $0x58] sm:$0xff]
    %v8916 = vld [vmem:[#allocation20 + $0x60] sm:$0xff]
    %v8917 = vld [vmem:[#allocation20 + $0x68] sm:$0xff]
    %v8918 = vld [vmem:[#allocation20 + $0x70] sm:$0xff]
    %v8919 = vld [vmem:[#allocation20 + $0x78] sm:$0xff]
    %v8920 = vld [vmem:[#allocation20 + $0x80] sm:$0xff]
    %v8921 = vld [vmem:[#allocation20 + $0x88] sm:$0xff]
    %v8922 = vld [vmem:[#allocation20 + $0x90] sm:$0xff]
    %v8923 = vld [vmem:[#allocation20 + $0x98] sm:$0xff]
    %v8924 = vld [vmem:[#allocation20 + $0xa0] sm:$0xff]
    %v8925 = vld [vmem:[#allocation20 + $0xa8] sm:$0xff]
    %v8926 = vld [vmem:[#allocation20 + $0xb0] sm:$0xff]
    %v8927 = vld [vmem:[#allocation20 + $0xb8] sm:$0xff]
    %v8928 = vld [vmem:[#allocation20 + $0xc0] sm:$0xff]
    %v8929 = vld [vmem:[#allocation20 + $0xc8] sm:$0xff]
    %v8930 = vld [vmem:[#allocation20 + $0xd0] sm:$0xff]
    %v8931 = vld [vmem:[#allocation20 + $0xd8] sm:$0xff]
    %v8932 = vld [vmem:[#allocation20 + $0xe0] sm:$0xff]
    %v8933 = vld [vmem:[#allocation20 + $0xe8] sm:$0xff]
    %v8934 = vld [vmem:[#allocation20 + $0xf0] sm:$0xff]
    %v8935 = vld [vmem:[#allocation20 + $0xf8] sm:$0xff]
    %v8936 = vld [vmem:[#allocation20 + $0x100] sm:$0xff]
    %v8937 = vld [vmem:[#allocation20 + $0x108] sm:$0xff]
    %v8938 = vld [vmem:[#allocation20 + $0x110] sm:$0xff]
    %v8939 = vld [vmem:[#allocation20 + $0x118] sm:$0xff]
    %v8940 = vld [vmem:[#allocation20 + $0x120] sm:$0xff]
    %v8941 = vld [vmem:[#allocation20 + $0x128] sm:$0xff]
    %v8942 = vld [vmem:[#allocation20 + $0x130] sm:$0xff]
    %v8943 = vld [vmem:[#allocation20 + $0x138] sm:$0xff]
    %v8944 = vld [vmem:[#allocation20 + $0x140] sm:$0xff]
    %v8945 = vld [vmem:[#allocation20 + $0x148] sm:$0xff]
    %v8946 = vld [vmem:[#allocation20 + $0x150] sm:$0xff]
    %v8947 = vld [vmem:[#allocation20 + $0x158] sm:$0xff]
    %v8948 = vld [vmem:[#allocation20 + $0x160] sm:$0xff]
    %v8949 = vld [vmem:[#allocation20 + $0x168] sm:$0xff]
    %v8950 = vld [vmem:[#allocation20 + $0x170] sm:$0xff]
    %v8951 = vld [vmem:[#allocation20 + $0x178] sm:$0xff]
    %v8952 = vld [vmem:[#allocation20 + $0x180] sm:$0xff]
    %v8953 = vld [vmem:[#allocation20 + $0x188] sm:$0xff]
    %v8954 = vld [vmem:[#allocation20 + $0x190] sm:$0xff]
    %v8955 = vld [vmem:[#allocation20 + $0x198] sm:$0xff]
    %v8956 = vld [vmem:[#allocation20 + $0x1a0] sm:$0xff]
    %v8957 = vld [vmem:[#allocation20 + $0x1a8] sm:$0xff]
    %v8958 = vld [vmem:[#allocation20 + $0x1b0] sm:$0xff]
    %v8959 = vld [vmem:[#allocation20 + $0x1b8] sm:$0xff]
    %v8960 = vld [vmem:[#allocation20 + $0x1c0] sm:$0xff]
    %v8961 = vld [vmem:[#allocation20 + $0x1c8] sm:$0xff]
    %v8962 = vld [vmem:[#allocation20 + $0x1d0] sm:$0xff]
    %v8963 = vld [vmem:[#allocation20 + $0x1d8] sm:$0xff]
    %v8964 = vld [vmem:[#allocation20 + $0x1e0] sm:$0xff]
    %v8965 = vld [vmem:[#allocation20 + $0x1e8] sm:$0xff]
    %v8966 = vld [vmem:[#allocation20 + $0x1f0] sm:$0xff]
    %v8967 = vld [vmem:[#allocation20 + $0x1f8] sm:$0xff]
    %v8968 = vld [vmem:[#allocation20 + $0x200] sm:$0xff]
    %v8969 = vld [vmem:[#allocation20 + $0x208] sm:$0xff]
    %v8970 = vld [vmem:[#allocation20 + $0x210] sm:$0xff]
    %v8971 = vld [vmem:[#allocation20 + $0x218] sm:$0xff]
    %v8972 = vld [vmem:[#allocation20 + $0x220] sm:$0xff]
    %v8973 = vld [vmem:[#allocation20 + $0x228] sm:$0xff]
    %v8974 = vld [vmem:[#allocation20 + $0x230] sm:$0xff]
    %v8975 = vld [vmem:[#allocation20 + $0x238] sm:$0xff]
    %v8976 = vld [vmem:[#allocation20 + $0x240] sm:$0xff]
    %v8977 = vld [vmem:[#allocation20 + $0x248] sm:$0xff]
    %v8978 = vld [vmem:[#allocation20 + $0x250] sm:$0xff]
    %v8979 = vld [vmem:[#allocation20 + $0x258] sm:$0xff]
    %v8980 = vld [vmem:[#allocation20 + $0x260] sm:$0xff]
    %v8981 = vld [vmem:[#allocation20 + $0x268] sm:$0xff]
    %v8982 = vld [vmem:[#allocation20 + $0x270] sm:$0xff]
    %v8983 = vld [vmem:[#allocation20 + $0x278] sm:$0xff]
    %v8984 = vld [vmem:[#allocation20 + $0x280] sm:$0xff]
    %v8985 = vld [vmem:[#allocation20 + $0x288] sm:$0xff]
    %v8986 = vld [vmem:[#allocation20 + $0x290] sm:$0xff]
    %v8987 = vld [vmem:[#allocation20 + $0x298] sm:$0xff]
    %v8988 = vld [vmem:[#allocation20 + $0x2a0] sm:$0xff]
    %v8989 = vld [vmem:[#allocation20 + $0x2a8] sm:$0xff]
    %v8990 = vld [vmem:[#allocation20 + $0x2b0] sm:$0xff]
    %v8991 = vld [vmem:[#allocation20 + $0x2b8] sm:$0xff]
    %v8992 = vld [vmem:[#allocation20 + $0x2c0] sm:$0xff]
    %v8993 = vld [vmem:[#allocation20 + $0x2c8] sm:$0xff]
    %v8994 = vld [vmem:[#allocation20 + $0x2d0] sm:$0xff]
    %v8995 = vld [vmem:[#allocation20 + $0x2d8] sm:$0xff]
    %v8996 = vld [vmem:[#allocation20 + $0x2e0] sm:$0xff]
    %v8997 = vld [vmem:[#allocation20 + $0x2e8] sm:$0xff]
    %v8998 = vld [vmem:[#allocation20 + $0x2f0] sm:$0xff]
    %v8999 = vld [vmem:[#allocation20 + $0x2f8] sm:$0xff]
    %v9000 = vld [vmem:[#allocation20 + $0x300] sm:$0xff]
    %v9001 = vld [vmem:[#allocation20 + $0x308] sm:$0xff]
    %v9002 = vld [vmem:[#allocation20 + $0x310] sm:$0xff]
    %v9003 = vld [vmem:[#allocation20 + $0x318] sm:$0xff]
    %v9004 = vld [vmem:[#allocation20 + $0x320] sm:$0xff]
    %v9005 = vld [vmem:[#allocation20 + $0x328] sm:$0xff]
    %v9006 = vld [vmem:[#allocation20 + $0x330] sm:$0xff]
    %v9007 = vld [vmem:[#allocation20 + $0x338] sm:$0xff]
    %v9008 = vld [vmem:[#allocation20 + $0x340] sm:$0xff]
    %v9009 = vld [vmem:[#allocation20 + $0x348] sm:$0xff]
    %v9010 = vld [vmem:[#allocation20 + $0x350] sm:$0xff]
    %v9011 = vld [vmem:[#allocation20 + $0x358] sm:$0xff]
    %v9012 = vld [vmem:[#allocation20 + $0x360] sm:$0xff]
    %v9013 = vld [vmem:[#allocation20 + $0x368] sm:$0xff]
    %v9014 = vld [vmem:[#allocation20 + $0x370] sm:$0xff]
    %v9015 = vld [vmem:[#allocation20 + $0x378] sm:$0xff]
    %v9016 = vld [vmem:[#allocation20 + $0x380] sm:$0xff]
    %v9017 = vld [vmem:[#allocation20 + $0x388] sm:$0xff]
    %v9018 = vld [vmem:[#allocation20 + $0x390] sm:$0xff]
    %v9019 = vld [vmem:[#allocation20 + $0x398] sm:$0xff]
    %v9020 = vld [vmem:[#allocation20 + $0x3a0] sm:$0xff]
    %v9021 = vld [vmem:[#allocation20 + $0x3a8] sm:$0xff]
    %v9022 = vld [vmem:[#allocation20 + $0x3b0] sm:$0xff]
    %v9023 = vld [vmem:[#allocation20 + $0x3b8] sm:$0xff]
    %v9024 = vld [vmem:[#allocation20 + $0x3c0] sm:$0xff]
    %v9025 = vld [vmem:[#allocation20 + $0x3c8] sm:$0xff]
    %v9026 = vld [vmem:[#allocation20 + $0x3d0] sm:$0xff]
    %v9027 = vld [vmem:[#allocation20 + $0x3d8] sm:$0xff]
    %v9028 = vld [vmem:[#allocation20 + $0x3e0] sm:$0xff]
    %v9029 = vld [vmem:[#allocation20 + $0x3e8] sm:$0xff]
    %v9030 = vld [vmem:[#allocation20 + $0x3f0] sm:$0xff]
    %v9031 = vld [vmem:[#allocation20 + $0x3f8] sm:$0xff]
    %v9160 = vunpack.c.l.b16 %v8904
    %v9161 = vunpack.c.h.b16 %v8904
    %v9162 = vunpack.c.l.b16 %v8905
    %v9163 = vunpack.c.h.b16 %v8905
    %v9164 = vunpack.c.l.b16 %v8906
    %v9165 = vunpack.c.h.b16 %v8906
    %v9166 = vunpack.c.l.b16 %v8907
    %v9167 = vunpack.c.h.b16 %v8907
    %v9168 = vunpack.c.l.b16 %v8908
    %v9169 = vunpack.c.h.b16 %v8908
    %v9170 = vunpack.c.l.b16 %v8909
    %v9171 = vunpack.c.h.b16 %v8909
    %v9172 = vunpack.c.l.b16 %v8910
    %v9173 = vunpack.c.h.b16 %v8910
    %v9174 = vunpack.c.l.b16 %v8911
    %v9175 = vunpack.c.h.b16 %v8911
    %v9176 = vunpack.c.l.b16 %v8912
    %v9177 = vunpack.c.h.b16 %v8912
    %v9178 = vunpack.c.l.b16 %v8913
    %v9179 = vunpack.c.h.b16 %v8913
    %v9180 = vunpack.c.l.b16 %v8914
    %v9181 = vunpack.c.h.b16 %v8914
    %v9182 = vunpack.c.l.b16 %v8915
    %v9183 = vunpack.c.h.b16 %v8915
    %v9184 = vunpack.c.l.b16 %v8916
    %v9185 = vunpack.c.h.b16 %v8916
    %v9186 = vunpack.c.l.b16 %v8917
    %v9187 = vunpack.c.h.b16 %v8917
    %v9188 = vunpack.c.l.b16 %v8918
    %v9189 = vunpack.c.h.b16 %v8918
    %v9190 = vunpack.c.l.b16 %v8919
    %v9191 = vunpack.c.h.b16 %v8919
    %v9192 = vunpack.c.l.b16 %v8920
    %v9193 = vunpack.c.h.b16 %v8920
    %v9194 = vunpack.c.l.b16 %v8921
    %v9195 = vunpack.c.h.b16 %v8921
    %v9196 = vunpack.c.l.b16 %v8922
    %v9197 = vunpack.c.h.b16 %v8922
    %v9198 = vunpack.c.l.b16 %v8923
    %v9199 = vunpack.c.h.b16 %v8923
    %v9200 = vunpack.c.l.b16 %v8924
    %v9201 = vunpack.c.h.b16 %v8924
    %v9202 = vunpack.c.l.b16 %v8925
    %v9203 = vunpack.c.h.b16 %v8925
    %v9204 = vunpack.c.l.b16 %v8926
    %v9205 = vunpack.c.h.b16 %v8926
    %v9206 = vunpack.c.l.b16 %v8927
    %v9207 = vunpack.c.h.b16 %v8927
    %v9208 = vunpack.c.l.b16 %v8928
    %v9209 = vunpack.c.h.b16 %v8928
    %v9210 = vunpack.c.l.b16 %v8929
    %v9211 = vunpack.c.h.b16 %v8929
    %v9212 = vunpack.c.l.b16 %v8930
    %v9213 = vunpack.c.h.b16 %v8930
    %v9214 = vunpack.c.l.b16 %v8931
    %v9215 = vunpack.c.h.b16 %v8931
    %v9216 = vunpack.c.l.b16 %v8932
    %v9217 = vunpack.c.h.b16 %v8932
    %v9218 = vunpack.c.l.b16 %v8933
    %v9219 = vunpack.c.h.b16 %v8933
    %v9220 = vunpack.c.l.b16 %v8934
    %v9221 = vunpack.c.h.b16 %v8934
    %v9222 = vunpack.c.l.b16 %v8935
    %v9223 = vunpack.c.h.b16 %v8935
    %v9224 = vunpack.c.l.b16 %v8936
    %v9225 = vunpack.c.h.b16 %v8936
    %v9226 = vunpack.c.l.b16 %v8937
    %v9227 = vunpack.c.h.b16 %v8937
    %v9228 = vunpack.c.l.b16 %v8938
    %v9229 = vunpack.c.h.b16 %v8938
    %v9230 = vunpack.c.l.b16 %v8939
    %v9231 = vunpack.c.h.b16 %v8939
    %v9232 = vunpack.c.l.b16 %v8940
    %v9233 = vunpack.c.h.b16 %v8940
    %v9234 = vunpack.c.l.b16 %v8941
    %v9235 = vunpack.c.h.b16 %v8941
    %v9236 = vunpack.c.l.b16 %v8942
    %v9237 = vunpack.c.h.b16 %v8942
    %v9238 = vunpack.c.l.b16 %v8943
    %v9239 = vunpack.c.h.b16 %v8943
    %v9240 = vunpack.c.l.b16 %v8944
    %v9241 = vunpack.c.h.b16 %v8944
    %v9242 = vunpack.c.l.b16 %v8945
    %v9243 = vunpack.c.h.b16 %v8945
    %v9244 = vunpack.c.l.b16 %v8946
    %v9245 = vunpack.c.h.b16 %v8946
    %v9246 = vunpack.c.l.b16 %v8947
    %v9247 = vunpack.c.h.b16 %v8947
    %v9248 = vunpack.c.l.b16 %v8948
    %v9249 = vunpack.c.h.b16 %v8948
    %v9250 = vunpack.c.l.b16 %v8949
    %v9251 = vunpack.c.h.b16 %v8949
    %v9252 = vunpack.c.l.b16 %v8950
    %v9253 = vunpack.c.h.b16 %v8950
    %v9254 = vunpack.c.l.b16 %v8951
    %v9255 = vunpack.c.h.b16 %v8951
    %v9256 = vunpack.c.l.b16 %v8952
    %v9257 = vunpack.c.h.b16 %v8952
    %v9258 = vunpack.c.l.b16 %v8953
    %v9259 = vunpack.c.h.b16 %v8953
    %v9260 = vunpack.c.l.b16 %v8954
    %v9261 = vunpack.c.h.b16 %v8954
    %v9262 = vunpack.c.l.b16 %v8955
    %v9263 = vunpack.c.h.b16 %v8955
    %v9264 = vunpack.c.l.b16 %v8956
    %v9265 = vunpack.c.h.b16 %v8956
    %v9266 = vunpack.c.l.b16 %v8957
    %v9267 = vunpack.c.h.b16 %v8957
    %v9268 = vunpack.c.l.b16 %v8958
    %v9269 = vunpack.c.h.b16 %v8958
    %v9270 = vunpack.c.l.b16 %v8959
    %v9271 = vunpack.c.h.b16 %v8959
    %v9272 = vunpack.c.l.b16 %v8960
    %v9273 = vunpack.c.h.b16 %v8960
    %v9274 = vunpack.c.l.b16 %v8961
    %v9275 = vunpack.c.h.b16 %v8961
    %v9276 = vunpack.c.l.b16 %v8962
    %v9277 = vunpack.c.h.b16 %v8962
    %v9278 = vunpack.c.l.b16 %v8963
    %v9279 = vunpack.c.h.b16 %v8963
    %v9280 = vunpack.c.l.b16 %v8964
    %v9281 = vunpack.c.h.b16 %v8964
    %v9282 = vunpack.c.l.b16 %v8965
    %v9283 = vunpack.c.h.b16 %v8965
    %v9284 = vunpack.c.l.b16 %v8966
    %v9285 = vunpack.c.h.b16 %v8966
    %v9286 = vunpack.c.l.b16 %v8967
    %v9287 = vunpack.c.h.b16 %v8967
    %v9288 = vunpack.c.l.b16 %v8968
    %v9289 = vunpack.c.h.b16 %v8968
    %v9290 = vunpack.c.l.b16 %v8969
    %v9291 = vunpack.c.h.b16 %v8969
    %v9292 = vunpack.c.l.b16 %v8970
    %v9293 = vunpack.c.h.b16 %v8970
    %v9294 = vunpack.c.l.b16 %v8971
    %v9295 = vunpack.c.h.b16 %v8971
    %v9296 = vunpack.c.l.b16 %v8972
    %v9297 = vunpack.c.h.b16 %v8972
    %v9298 = vunpack.c.l.b16 %v8973
    %v9299 = vunpack.c.h.b16 %v8973
    %v9300 = vunpack.c.l.b16 %v8974
    %v9301 = vunpack.c.h.b16 %v8974
    %v9302 = vunpack.c.l.b16 %v8975
    %v9303 = vunpack.c.h.b16 %v8975
    %v9304 = vunpack.c.l.b16 %v8976
    %v9305 = vunpack.c.h.b16 %v8976
    %v9306 = vunpack.c.l.b16 %v8977
    %v9307 = vunpack.c.h.b16 %v8977
    %v9308 = vunpack.c.l.b16 %v8978
    %v9309 = vunpack.c.h.b16 %v8978
    %v9310 = vunpack.c.l.b16 %v8979
    %v9311 = vunpack.c.h.b16 %v8979
    %v9312 = vunpack.c.l.b16 %v8980
    %v9313 = vunpack.c.h.b16 %v8980
    %v9314 = vunpack.c.l.b16 %v8981
    %v9315 = vunpack.c.h.b16 %v8981
    %v9316 = vunpack.c.l.b16 %v8982
    %v9317 = vunpack.c.h.b16 %v8982
    %v9318 = vunpack.c.l.b16 %v8983
    %v9319 = vunpack.c.h.b16 %v8983
    %v9320 = vunpack.c.l.b16 %v8984
    %v9321 = vunpack.c.h.b16 %v8984
    %v9322 = vunpack.c.l.b16 %v8985
    %v9323 = vunpack.c.h.b16 %v8985
    %v9324 = vunpack.c.l.b16 %v8986
    %v9325 = vunpack.c.h.b16 %v8986
    %v9326 = vunpack.c.l.b16 %v8987
    %v9327 = vunpack.c.h.b16 %v8987
    %v9328 = vunpack.c.l.b16 %v8988
    %v9329 = vunpack.c.h.b16 %v8988
    %v9330 = vunpack.c.l.b16 %v8989
    %v9331 = vunpack.c.h.b16 %v8989
    %v9332 = vunpack.c.l.b16 %v8990
    %v9333 = vunpack.c.h.b16 %v8990
    %v9334 = vunpack.c.l.b16 %v8991
    %v9335 = vunpack.c.h.b16 %v8991
    %v9336 = vunpack.c.l.b16 %v8992
    %v9337 = vunpack.c.h.b16 %v8992
    %v9338 = vunpack.c.l.b16 %v8993
    %v9339 = vunpack.c.h.b16 %v8993
    %v9340 = vunpack.c.l.b16 %v8994
    %v9341 = vunpack.c.h.b16 %v8994
    %v9342 = vunpack.c.l.b16 %v8995
    %v9343 = vunpack.c.h.b16 %v8995
    %v9344 = vunpack.c.l.b16 %v8996
    %v9345 = vunpack.c.h.b16 %v8996
    %v9346 = vunpack.c.l.b16 %v8997
    %v9347 = vunpack.c.h.b16 %v8997
    %v9348 = vunpack.c.l.b16 %v8998
    %v9349 = vunpack.c.h.b16 %v8998
    %v9350 = vunpack.c.l.b16 %v8999
    %v9351 = vunpack.c.h.b16 %v8999
    %v9352 = vunpack.c.l.b16 %v9000
    %v9353 = vunpack.c.h.b16 %v9000
    %v9354 = vunpack.c.l.b16 %v9001
    %v9355 = vunpack.c.h.b16 %v9001
    %v9356 = vunpack.c.l.b16 %v9002
    %v9357 = vunpack.c.h.b16 %v9002
    %v9358 = vunpack.c.l.b16 %v9003
    %v9359 = vunpack.c.h.b16 %v9003
    %v9360 = vunpack.c.l.b16 %v9004
    %v9361 = vunpack.c.h.b16 %v9004
    %v9362 = vunpack.c.l.b16 %v9005
    %v9363 = vunpack.c.h.b16 %v9005
    %v9364 = vunpack.c.l.b16 %v9006
    %v9365 = vunpack.c.h.b16 %v9006
    %v9366 = vunpack.c.l.b16 %v9007
    %v9367 = vunpack.c.h.b16 %v9007
    %v9368 = vunpack.c.l.b16 %v9008
    %v9369 = vunpack.c.h.b16 %v9008
    %v9370 = vunpack.c.l.b16 %v9009
    %v9371 = vunpack.c.h.b16 %v9009
    %v9372 = vunpack.c.l.b16 %v9010
    %v9373 = vunpack.c.h.b16 %v9010
    %v9374 = vunpack.c.l.b16 %v9011
    %v9375 = vunpack.c.h.b16 %v9011
    %v9376 = vunpack.c.l.b16 %v9012
    %v9377 = vunpack.c.h.b16 %v9012
    %v9378 = vunpack.c.l.b16 %v9013
    %v9379 = vunpack.c.h.b16 %v9013
    %v9380 = vunpack.c.l.b16 %v9014
    %v9381 = vunpack.c.h.b16 %v9014
    %v9382 = vunpack.c.l.b16 %v9015
    %v9383 = vunpack.c.h.b16 %v9015
    %v9384 = vunpack.c.l.b16 %v9016
    %v9385 = vunpack.c.h.b16 %v9016
    %v9386 = vunpack.c.l.b16 %v9017
    %v9387 = vunpack.c.h.b16 %v9017
    %v9388 = vunpack.c.l.b16 %v9018
    %v9389 = vunpack.c.h.b16 %v9018
    %v9390 = vunpack.c.l.b16 %v9019
    %v9391 = vunpack.c.h.b16 %v9019
    %v9392 = vunpack.c.l.b16 %v9020
    %v9393 = vunpack.c.h.b16 %v9020
    %v9394 = vunpack.c.l.b16 %v9021
    %v9395 = vunpack.c.h.b16 %v9021
    %v9396 = vunpack.c.l.b16 %v9022
    %v9397 = vunpack.c.h.b16 %v9022
    %v9398 = vunpack.c.l.b16 %v9023
    %v9399 = vunpack.c.h.b16 %v9023
    %v9400 = vunpack.c.l.b16 %v9024
    %v9401 = vunpack.c.h.b16 %v9024
    %v9402 = vunpack.c.l.b16 %v9025
    %v9403 = vunpack.c.h.b16 %v9025
    %v9404 = vunpack.c.l.b16 %v9026
    %v9405 = vunpack.c.h.b16 %v9026
    %v9406 = vunpack.c.l.b16 %v9027
    %v9407 = vunpack.c.h.b16 %v9027
    %v9408 = vunpack.c.l.b16 %v9028
    %v9409 = vunpack.c.h.b16 %v9028
    %v9410 = vunpack.c.l.b16 %v9029
    %v9411 = vunpack.c.h.b16 %v9029
    %v9412 = vunpack.c.l.b16 %v9030
    %v9413 = vunpack.c.h.b16 %v9030
    %v9414 = vunpack.c.l.b16 %v9031
    %v9415 = vunpack.c.h.b16 %v9031
    %v9416 = vpack.c.b16 %v9168, %v9160
    %v9417 = vpack.c.b16 %v9169, %v9161
    %v9418 = vpack.c.b16 %v9170, %v9162
    %v9419 = vpack.c.b16 %v9171, %v9163
    %v9420 = vpack.c.b16 %v9172, %v9164
    %v9421 = vpack.c.b16 %v9173, %v9165
    %v9422 = vpack.c.b16 %v9174, %v9166
    %v9423 = vpack.c.b16 %v9175, %v9167
    %v9424 = vpack.c.b16 %v9184, %v9176
    %v9425 = vpack.c.b16 %v9185, %v9177
    %v9426 = vpack.c.b16 %v9186, %v9178
    %v9427 = vpack.c.b16 %v9187, %v9179
    %v9428 = vpack.c.b16 %v9188, %v9180
    %v9429 = vpack.c.b16 %v9189, %v9181
    %v9430 = vpack.c.b16 %v9190, %v9182
    %v9431 = vpack.c.b16 %v9191, %v9183
    %v9432 = vpack.c.b16 %v9200, %v9192
    %v9433 = vpack.c.b16 %v9201, %v9193
    %v9434 = vpack.c.b16 %v9202, %v9194
    %v9435 = vpack.c.b16 %v9203, %v9195
    %v9436 = vpack.c.b16 %v9204, %v9196
    %v9437 = vpack.c.b16 %v9205, %v9197
    %v9438 = vpack.c.b16 %v9206, %v9198
    %v9439 = vpack.c.b16 %v9207, %v9199
    %v9440 = vpack.c.b16 %v9216, %v9208
    %v9441 = vpack.c.b16 %v9217, %v9209
    %v9442 = vpack.c.b16 %v9218, %v9210
    %v9443 = vpack.c.b16 %v9219, %v9211
    %v9444 = vpack.c.b16 %v9220, %v9212
    %v9445 = vpack.c.b16 %v9221, %v9213
    %v9446 = vpack.c.b16 %v9222, %v9214
    %v9447 = vpack.c.b16 %v9223, %v9215
    %v9448 = vpack.c.b16 %v9232, %v9224
    %v9449 = vpack.c.b16 %v9233, %v9225
    %v9450 = vpack.c.b16 %v9234, %v9226
    %v9451 = vpack.c.b16 %v9235, %v9227
    %v9452 = vpack.c.b16 %v9236, %v9228
    %v9453 = vpack.c.b16 %v9237, %v9229
    %v9454 = vpack.c.b16 %v9238, %v9230
    %v9455 = vpack.c.b16 %v9239, %v9231
    %v9456 = vpack.c.b16 %v9248, %v9240
    %v9457 = vpack.c.b16 %v9249, %v9241
    %v9458 = vpack.c.b16 %v9250, %v9242
    %v9459 = vpack.c.b16 %v9251, %v9243
    %v9460 = vpack.c.b16 %v9252, %v9244
    %v9461 = vpack.c.b16 %v9253, %v9245
    %v9462 = vpack.c.b16 %v9254, %v9246
    %v9463 = vpack.c.b16 %v9255, %v9247
    %v9464 = vpack.c.b16 %v9264, %v9256
    %v9465 = vpack.c.b16 %v9265, %v9257
    %v9466 = vpack.c.b16 %v9266, %v9258
    %v9467 = vpack.c.b16 %v9267, %v9259
    %v9468 = vpack.c.b16 %v9268, %v9260
    %v9469 = vpack.c.b16 %v9269, %v9261
    %v9470 = vpack.c.b16 %v9270, %v9262
    %v9471 = vpack.c.b16 %v9271, %v9263
    %v9472 = vpack.c.b16 %v9280, %v9272
    %v9473 = vpack.c.b16 %v9281, %v9273
    %v9474 = vpack.c.b16 %v9282, %v9274
    %v9475 = vpack.c.b16 %v9283, %v9275
    %v9476 = vpack.c.b16 %v9284, %v9276
    %v9477 = vpack.c.b16 %v9285, %v9277
    %v9478 = vpack.c.b16 %v9286, %v9278
    %v9479 = vpack.c.b16 %v9287, %v9279
    %v9480 = vpack.c.b16 %v9296, %v9288
    %v9481 = vpack.c.b16 %v9297, %v9289
    %v9482 = vpack.c.b16 %v9298, %v9290
    %v9483 = vpack.c.b16 %v9299, %v9291
    %v9484 = vpack.c.b16 %v9300, %v9292
    %v9485 = vpack.c.b16 %v9301, %v9293
    %v9486 = vpack.c.b16 %v9302, %v9294
    %v9487 = vpack.c.b16 %v9303, %v9295
    %v9488 = vpack.c.b16 %v9312, %v9304
    %v9489 = vpack.c.b16 %v9313, %v9305
    %v9490 = vpack.c.b16 %v9314, %v9306
    %v9491 = vpack.c.b16 %v9315, %v9307
    %v9492 = vpack.c.b16 %v9316, %v9308
    %v9493 = vpack.c.b16 %v9317, %v9309
    %v9494 = vpack.c.b16 %v9318, %v9310
    %v9495 = vpack.c.b16 %v9319, %v9311
    %v9496 = vpack.c.b16 %v9328, %v9320
    %v9497 = vpack.c.b16 %v9329, %v9321
    %v9498 = vpack.c.b16 %v9330, %v9322
    %v9499 = vpack.c.b16 %v9331, %v9323
    %v9500 = vpack.c.b16 %v9332, %v9324
    %v9501 = vpack.c.b16 %v9333, %v9325
    %v9502 = vpack.c.b16 %v9334, %v9326
    %v9503 = vpack.c.b16 %v9335, %v9327
    %v9504 = vpack.c.b16 %v9344, %v9336
    %v9505 = vpack.c.b16 %v9345, %v9337
    %v9506 = vpack.c.b16 %v9346, %v9338
    %v9507 = vpack.c.b16 %v9347, %v9339
    %v9508 = vpack.c.b16 %v9348, %v9340
    %v9509 = vpack.c.b16 %v9349, %v9341
    %v9510 = vpack.c.b16 %v9350, %v9342
    %v9511 = vpack.c.b16 %v9351, %v9343
    %v9512 = vpack.c.b16 %v9360, %v9352
    %v9513 = vpack.c.b16 %v9361, %v9353
    %v9514 = vpack.c.b16 %v9362, %v9354
    %v9515 = vpack.c.b16 %v9363, %v9355
    %v9516 = vpack.c.b16 %v9364, %v9356
    %v9517 = vpack.c.b16 %v9365, %v9357
    %v9518 = vpack.c.b16 %v9366, %v9358
    %v9519 = vpack.c.b16 %v9367, %v9359
    %v9520 = vpack.c.b16 %v9376, %v9368
    %v9521 = vpack.c.b16 %v9377, %v9369
    %v9522 = vpack.c.b16 %v9378, %v9370
    %v9523 = vpack.c.b16 %v9379, %v9371
    %v9524 = vpack.c.b16 %v9380, %v9372
    %v9525 = vpack.c.b16 %v9381, %v9373
    %v9526 = vpack.c.b16 %v9382, %v9374
    %v9527 = vpack.c.b16 %v9383, %v9375
    %v9528 = vpack.c.b16 %v9392, %v9384
    %v9529 = vpack.c.b16 %v9393, %v9385
    %v9530 = vpack.c.b16 %v9394, %v9386
    %v9531 = vpack.c.b16 %v9395, %v9387
    %v9532 = vpack.c.b16 %v9396, %v9388
    %v9533 = vpack.c.b16 %v9397, %v9389
    %v9534 = vpack.c.b16 %v9398, %v9390
    %v9535 = vpack.c.b16 %v9399, %v9391
    %v9536 = vpack.c.b16 %v9408, %v9400
    %v9537 = vpack.c.b16 %v9409, %v9401
    %v9538 = vpack.c.b16 %v9410, %v9402
    %v9539 = vpack.c.b16 %v9411, %v9403
    %v9540 = vpack.c.b16 %v9412, %v9404
    %v9541 = vpack.c.b16 %v9413, %v9405
    %v9542 = vpack.c.b16 %v9414, %v9406
    %v9543 = vpack.c.b16 %v9415, %v9407
    %9672 = vmatprep.subr.bf16.mxu0 %v9417
    %9673 = vmatpush1.bf16.msra.mxu0 %v9416
    %9674 = vmatprep.subr.bf16.mxu0 %v9425
    %9675 = vmatpush1.bf16.msra.mxu0 %v9424
    %9676 = vmatprep.subr.bf16.mxu0 %v9433
    %9677 = vmatpush1.bf16.msra.mxu0 %v9432
    %9678 = vmatprep.subr.bf16.mxu0 %v9441
    %9679 = vmatpush1.bf16.msra.mxu0 %v9440
    %9680 = vmatprep.subr.bf16.mxu0 %v9449
    %9681 = vmatpush1.bf16.msra.mxu0 %v9448
    %9682 = vmatprep.subr.bf16.mxu0 %v9457
    %9683 = vmatpush1.bf16.msra.mxu0 %v9456
    %9684 = vmatprep.subr.bf16.mxu0 %v9465
    %9685 = vmatpush1.bf16.msra.mxu0 %v9464
    %9686 = vmatprep.subr.bf16.mxu0 %v9473
    %9687 = vmatpush1.bf16.msra.mxu0 %v9472
    %9688 = vmatprep.subr.bf16.mxu0 %v9481
    %9689 = vmatpush1.bf16.msra.mxu0 %v9480
    %9690 = vmatprep.subr.bf16.mxu0 %v9489
    %9691 = vmatpush1.bf16.msra.mxu0 %v9488
    %9692 = vmatprep.subr.bf16.mxu0 %v9497
    %9693 = vmatpush1.bf16.msra.mxu0 %v9496
    %9694 = vmatprep.subr.bf16.mxu0 %v9505
    %9695 = vmatpush1.bf16.msra.mxu0 %v9504
    %9696 = vmatprep.subr.bf16.mxu0 %v9513
    %9697 = vmatpush1.bf16.msra.mxu0 %v9512
    %9698 = vmatprep.subr.bf16.mxu0 %v9521
    %9699 = vmatpush1.bf16.msra.mxu0 %v9520
    %9700 = vmatprep.subr.bf16.mxu0 %v9529
    %9701 = vmatpush1.bf16.msra.mxu0 %v9528
    %9702 = vmatprep.subr.bf16.mxu0 %v9537
    %9703 = vmatpush1.bf16.msra.mxu0 %v9536
    %9704 = vmatprep.mubr.bf16.mxu0 %v8903
    %9705 = vmatmul.mubr.bf16.gmra.mrb[0].mxu0 %v8902
    %v9706 = vpop.f32.mrb[0].mxu0
    %v9707 = vadd.f32 0.0, %v9706
    %v9708 = vpop.f32.mrb[0].mxu0
    %v9709 = vadd.f32 0.0, %v9708
    %v9710 = vpop.f32.mrb[0].mxu0
    %v9711 = vpop.f32.mrb[0].mxu0
    %9712 = vdwg.mxu0
    %9713 = vmatprep.subr.bf16.mxu0 %v9419
    %9714 = vmatpush1.bf16.msra.mxu0 %v9418
    %9715 = vmatprep.subr.bf16.mxu0 %v9427
    %9716 = vmatpush1.bf16.msra.mxu0 %v9426
    %9717 = vmatprep.subr.bf16.mxu0 %v9435
    %9718 = vmatpush1.bf16.msra.mxu0 %v9434
    %9719 = vmatprep.subr.bf16.mxu0 %v9443
    %9720 = vmatpush1.bf16.msra.mxu0 %v9442
    %9721 = vmatprep.subr.bf16.mxu0 %v9451
    %9722 = vmatpush1.bf16.msra.mxu0 %v9450
    %9723 = vmatprep.subr.bf16.mxu0 %v9459
    %9724 = vmatpush1.bf16.msra.mxu0 %v9458
    %9725 = vmatprep.subr.bf16.mxu0 %v9467
    %9726 = vmatpush1.bf16.msra.mxu0 %v9466
    %9727 = vmatprep.subr.bf16.mxu0 %v9475
    %9728 = vmatpush1.bf16.msra.mxu0 %v9474
    %9729 = vmatprep.subr.bf16.mxu0 %v9483
    %9730 = vmatpush1.bf16.msra.mxu0 %v9482
    %9731 = vmatprep.subr.bf16.mxu0 %v9491
    %9732 = vmatpush1.bf16.msra.mxu0 %v9490
    %9733 = vmatprep.subr.bf16.mxu0 %v9499
    %9734 = vmatpush1.bf16.msra.mxu0 %v9498
    %9735 = vmatprep.subr.bf16.mxu0 %v9507
    %9736 = vmatpush1.bf16.msra.mxu0 %v9506
    %9737 = vmatprep.subr.bf16.mxu0 %v9515
    %9738 = vmatpush1.bf16.msra.mxu0 %v9514
    %9739 = vmatprep.subr.bf16.mxu0 %v9523
    %9740 = vmatpush1.bf16.msra.mxu0 %v9522
    %9741 = vmatprep.subr.bf16.mxu0 %v9531
    %9742 = vmatpush1.bf16.msra.mxu0 %v9530
    %9743 = vmatprep.subr.bf16.mxu0 %v9539
    %9744 = vmatpush1.bf16.msra.mxu0 %v9538
    %9745 = vmatprep.mubr.bf16.mxu0 %v8903
    %9746 = vmatmul.mubr.bf16.gmra.mrb[0].mxu0 %v8902
    %v9747 = vpop.f32.mrb[0].mxu0
    %v9748 = vadd.f32 0.0, %v9747
    %v9749 = vpop.f32.mrb[0].mxu0
    %v9750 = vadd.f32 0.0, %v9749
    %v9751 = vpop.f32.mrb[0].mxu0
    %v9752 = vpop.f32.mrb[0].mxu0
    %9753 = vdwg.mxu0
    %9754 = vmatprep.subr.bf16.mxu0 %v9421
    %9755 = vmatpush1.bf16.msra.mxu0 %v9420
    %9756 = vmatprep.subr.bf16.mxu0 %v9429
    %9757 = vmatpush1.bf16.msra.mxu0 %v9428
    %9758 = vmatprep.subr.bf16.mxu0 %v9437
    %9759 = vmatpush1.bf16.msra.mxu0 %v9436
    %9760 = vmatprep.subr.bf16.mxu0 %v9445
    %9761 = vmatpush1.bf16.msra.mxu0 %v9444
    %9762 = vmatprep.subr.bf16.mxu0 %v9453
    %9763 = vmatpush1.bf16.msra.mxu0 %v9452
    %9764 = vmatprep.subr.bf16.mxu0 %v9461
    %9765 = vmatpush1.bf16.msra.mxu0 %v9460
    %9766 = vmatprep.subr.bf16.mxu0 %v9469
    %9767 = vmatpush1.bf16.msra.mxu0 %v9468
    %9768 = vmatprep.subr.bf16.mxu0 %v9477
    %9769 = vmatpush1.bf16.msra.mxu0 %v9476
    %9770 = vmatprep.subr.bf16.mxu0 %v9485
    %9771 = vmatpush1.bf16.msra.mxu0 %v9484
    %9772 = vmatprep.subr.bf16.mxu0 %v9493
    %9773 = vmatpush1.bf16.msra.mxu0 %v9492
    %9774 = vmatprep.subr.bf16.mxu0 %v9501
    %9775 = vmatpush1.bf16.msra.mxu0 %v9500
    %9776 = vmatprep.subr.bf16.mxu0 %v9509
    %9777 = vmatpush1.bf16.msra.mxu0 %v9508
    %9778 = vmatprep.subr.bf16.mxu0 %v9517
    %9779 = vmatpush1.bf16.msra.mxu0 %v9516
    %9780 = vmatprep.subr.bf16.mxu0 %v9525
    %9781 = vmatpush1.bf16.msra.mxu0 %v9524
    %9782 = vmatprep.subr.bf16.mxu0 %v9533
    %9783 = vmatpush1.bf16.msra.mxu0 %v9532
    %9784 = vmatprep.subr.bf16.mxu0 %v9541
    %9785 = vmatpush1.bf16.msra.mxu0 %v9540
    %9786 = vmatprep.mubr.bf16.mxu0 %v8903
    %9787 = vmatmul.mubr.bf16.gmra.mrb[0].mxu0 %v8902
    %v9788 = vpop.f32.mrb[0].mxu0
    %v9789 = vadd.f32 0.0, %v9788
    %v9790 = vpop.f32.mrb[0].mxu0
    %v9791 = vadd.f32 0.0, %v9790
    %v9792 = vpop.f32.mrb[0].mxu0
    %v9793 = vpop.f32.mrb[0].mxu0
    %9794 = vdwg.mxu0
    %9795 = vmatprep.subr.bf16.mxu0 %v9423
    %9796 = vmatpush1.bf16.msra.mxu0 %v9422
    %9797 = vmatprep.subr.bf16.mxu0 %v9431
    %9798 = vmatpush1.bf16.msra.mxu0 %v9430
    %9799 = vmatprep.subr.bf16.mxu0 %v9439
    %9800 = vmatpush1.bf16.msra.mxu0 %v9438
    %9801 = vmatprep.subr.bf16.mxu0 %v9447
    %9802 = vmatpush1.bf16.msra.mxu0 %v9446
    %9803 = vmatprep.subr.bf16.mxu0 %v9455
    %9804 = vmatpush1.bf16.msra.mxu0 %v9454
    %9805 = vmatprep.subr.bf16.mxu0 %v9463
    %9806 = vmatpush1.bf16.msra.mxu0 %v9462
    %9807 = vmatprep.subr.bf16.mxu0 %v9471
    %9808 = vmatpush1.bf16.msra.mxu0 %v9470
    %9809 = vmatprep.subr.bf16.mxu0 %v9479
    %9810 = vmatpush1.bf16.msra.mxu0 %v9478
    %9811 = vmatprep.subr.bf16.mxu0 %v9487
    %9812 = vmatpush1.bf16.msra.mxu0 %v9486
    %9813 = vmatprep.subr.bf16.mxu0 %v9495
    %9814 = vmatpush1.bf16.msra.mxu0 %v9494
    %9815 = vmatprep.subr.bf16.mxu0 %v9503
    %9816 = vmatpush1.bf16.msra.mxu0 %v9502
    %9817 = vmatprep.subr.bf16.mxu0 %v9511
    %9818 = vmatpush1.bf16.msra.mxu0 %v9510
    %9819 = vmatprep.subr.bf16.mxu0 %v9519
    %9820 = vmatpush1.bf16.msra.mxu0 %v9518
    %9821 = vmatprep.subr.bf16.mxu0 %v9527
    %9822 = vmatpush1.bf16.msra.mxu0 %v9526
    %9823 = vmatprep.subr.bf16.mxu0 %v9535
    %9824 = vmatpush1.bf16.msra.mxu0 %v9534
    %9825 = vmatprep.subr.bf16.mxu0 %v9543
    %9826 = vmatpush1.bf16.msra.mxu0 %v9542
    %9827 = vmatprep.mubr.bf16.mxu0 %v8903
    %9828 = vmatmul.mubr.bf16.gmra.mrb[0].mxu0 %v8902
    %v9829 = vpop.f32.mrb[0].mxu0
    %v9830 = vadd.f32 0.0, %v9829
    %v9831 = vpop.f32.mrb[0].mxu0
    %v9832 = vadd.f32 0.0, %v9831
    %v9833 = vpop.f32.mrb[0].mxu0
    %v9834 = vpop.f32.mrb[0].mxu0
    %9835 = vdwg.mxu0
    %v10092 = vunpack.c.l.b16 %v8635
    %v10093 = vunpack.c.h.b16 %v8635
    %v10094 = vunpack.c.l.b16 %v8636
    %v10095 = vunpack.c.h.b16 %v8636
    %v10096 = vunpack.c.l.b16 %v8637
    %v10097 = vunpack.c.h.b16 %v8637
    %v10098 = vunpack.c.l.b16 %v8638
    %v10099 = vunpack.c.h.b16 %v8638
    %v10100 = vunpack.c.l.b16 %v8639
    %v10101 = vunpack.c.h.b16 %v8639
    %v10102 = vunpack.c.l.b16 %v8640
    %v10103 = vunpack.c.h.b16 %v8640
    %v10104 = vunpack.c.l.b16 %v8641
    %v10105 = vunpack.c.h.b16 %v8641
    %v10106 = vunpack.c.l.b16 %v8642
    %v10107 = vunpack.c.h.b16 %v8642
    %v10108 = vunpack.c.l.b16 %v8643
    %v10109 = vunpack.c.h.b16 %v8643
    %v10110 = vunpack.c.l.b16 %v8644
    %v10111 = vunpack.c.h.b16 %v8644
    %v10112 = vunpack.c.l.b16 %v8645
    %v10113 = vunpack.c.h.b16 %v8645
    %v10114 = vunpack.c.l.b16 %v8646
    %v10115 = vunpack.c.h.b16 %v8646
    %v10116 = vunpack.c.l.b16 %v8647
    %v10117 = vunpack.c.h.b16 %v8647
    %v10118 = vunpack.c.l.b16 %v8648
    %v10119 = vunpack.c.h.b16 %v8648
    %v10120 = vunpack.c.l.b16 %v8649
    %v10121 = vunpack.c.h.b16 %v8649
    %v10122 = vunpack.c.l.b16 %v8650
    %v10123 = vunpack.c.h.b16 %v8650
    %v10124 = vunpack.c.l.b16 %v8651
    %v10125 = vunpack.c.h.b16 %v8651
    %v10126 = vunpack.c.l.b16 %v8652
    %v10127 = vunpack.c.h.b16 %v8652
    %v10128 = vunpack.c.l.b16 %v8653
    %v10129 = vunpack.c.h.b16 %v8653
    %v10130 = vunpack.c.l.b16 %v8654
    %v10131 = vunpack.c.h.b16 %v8654
    %v10132 = vunpack.c.l.b16 %v8655
    %v10133 = vunpack.c.h.b16 %v8655
    %v10134 = vunpack.c.l.b16 %v8656
    %v10135 = vunpack.c.h.b16 %v8656
    %v10136 = vunpack.c.l.b16 %v8657
    %v10137 = vunpack.c.h.b16 %v8657
    %v10138 = vunpack.c.l.b16 %v8658
    %v10139 = vunpack.c.h.b16 %v8658
    %v10140 = vunpack.c.l.b16 %v8659
    %v10141 = vunpack.c.h.b16 %v8659
    %v10142 = vunpack.c.l.b16 %v8660
    %v10143 = vunpack.c.h.b16 %v8660
    %v10144 = vunpack.c.l.b16 %v8661
    %v10145 = vunpack.c.h.b16 %v8661
    %v10146 = vunpack.c.l.b16 %v8662
    %v10147 = vunpack.c.h.b16 %v8662
    %v10148 = vunpack.c.l.b16 %v8663
    %v10149 = vunpack.c.h.b16 %v8663
    %v10150 = vunpack.c.l.b16 %v8664
    %v10151 = vunpack.c.h.b16 %v8664
    %v10152 = vunpack.c.l.b16 %v8665
    %v10153 = vunpack.c.h.b16 %v8665
    %v10154 = vunpack.c.l.b16 %v8666
    %v10155 = vunpack.c.h.b16 %v8666
    %v10156 = vunpack.c.l.b16 %v8667
    %v10157 = vunpack.c.h.b16 %v8667
    %v10158 = vunpack.c.l.b16 %v8668
    %v10159 = vunpack.c.h.b16 %v8668
    %v10160 = vunpack.c.l.b16 %v8669
    %v10161 = vunpack.c.h.b16 %v8669
    %v10162 = vunpack.c.l.b16 %v8670
    %v10163 = vunpack.c.h.b16 %v8670
    %v10164 = vunpack.c.l.b16 %v8671
    %v10165 = vunpack.c.h.b16 %v8671
    %v10166 = vunpack.c.l.b16 %v8672
    %v10167 = vunpack.c.h.b16 %v8672
    %v10168 = vunpack.c.l.b16 %v8673
    %v10169 = vunpack.c.h.b16 %v8673
    %v10170 = vunpack.c.l.b16 %v8674
    %v10171 = vunpack.c.h.b16 %v8674
    %v10172 = vunpack.c.l.b16 %v8675
    %v10173 = vunpack.c.h.b16 %v8675
    %v10174 = vunpack.c.l.b16 %v8676
    %v10175 = vunpack.c.h.b16 %v8676
    %v10176 = vunpack.c.l.b16 %v8677
    %v10177 = vunpack.c.h.b16 %v8677
    %v10178 = vunpack.c.l.b16 %v8678
    %v10179 = vunpack.c.h.b16 %v8678
    %v10180 = vunpack.c.l.b16 %v8679
    %v10181 = vunpack.c.h.b16 %v8679
    %v10182 = vunpack.c.l.b16 %v8680
    %v10183 = vunpack.c.h.b16 %v8680
    %v10184 = vunpack.c.l.b16 %v8681
    %v10185 = vunpack.c.h.b16 %v8681
    %v10186 = vunpack.c.l.b16 %v8682
    %v10187 = vunpack.c.h.b16 %v8682
    %v10188 = vunpack.c.l.b16 %v8683
    %v10189 = vunpack.c.h.b16 %v8683
    %v10190 = vunpack.c.l.b16 %v8684
    %v10191 = vunpack.c.h.b16 %v8684
    %v10192 = vunpack.c.l.b16 %v8685
    %v10193 = vunpack.c.h.b16 %v8685
    %v10194 = vunpack.c.l.b16 %v8686
    %v10195 = vunpack.c.h.b16 %v8686
    %v10196 = vunpack.c.l.b16 %v8687
    %v10197 = vunpack.c.h.b16 %v8687
    %v10198 = vunpack.c.l.b16 %v8688
    %v10199 = vunpack.c.h.b16 %v8688
    %v10200 = vunpack.c.l.b16 %v8689
    %v10201 = vunpack.c.h.b16 %v8689
    %v10202 = vunpack.c.l.b16 %v8690
    %v10203 = vunpack.c.h.b16 %v8690
    %v10204 = vunpack.c.l.b16 %v8691
    %v10205 = vunpack.c.h.b16 %v8691
    %v10206 = vunpack.c.l.b16 %v8692
    %v10207 = vunpack.c.h.b16 %v8692
    %v10208 = vunpack.c.l.b16 %v8693
    %v10209 = vunpack.c.h.b16 %v8693
    %v10210 = vunpack.c.l.b16 %v8694
    %v10211 = vunpack.c.h.b16 %v8694
    %v10212 = vunpack.c.l.b16 %v8695
    %v10213 = vunpack.c.h.b16 %v8695
    %v10214 = vunpack.c.l.b16 %v8696
    %v10215 = vunpack.c.h.b16 %v8696
    %v10216 = vunpack.c.l.b16 %v8697
    %v10217 = vunpack.c.h.b16 %v8697
    %v10218 = vunpack.c.l.b16 %v8698
    %v10219 = vunpack.c.h.b16 %v8698
    %v10220 = vunpack.c.l.b16 %v8699
    %v10221 = vunpack.c.h.b16 %v8699
    %v10222 = vunpack.c.l.b16 %v8700
    %v10223 = vunpack.c.h.b16 %v8700
    %v10224 = vunpack.c.l.b16 %v8701
    %v10225 = vunpack.c.h.b16 %v8701
    %v10226 = vunpack.c.l.b16 %v8702
    %v10227 = vunpack.c.h.b16 %v8702
    %v10228 = vunpack.c.l.b16 %v8703
    %v10229 = vunpack.c.h.b16 %v8703
    %v10230 = vunpack.c.l.b16 %v8704
    %v10231 = vunpack.c.h.b16 %v8704
    %v10232 = vunpack.c.l.b16 %v8705
    %v10233 = vunpack.c.h.b16 %v8705
    %v10234 = vunpack.c.l.b16 %v8706
    %v10235 = vunpack.c.h.b16 %v8706
    %v10236 = vunpack.c.l.b16 %v8707
    %v10237 = vunpack.c.h.b16 %v8707
    %v10238 = vunpack.c.l.b16 %v8708
    %v10239 = vunpack.c.h.b16 %v8708
    %v10240 = vunpack.c.l.b16 %v8709
    %v10241 = vunpack.c.h.b16 %v8709
    %v10242 = vunpack.c.l.b16 %v8710
    %v10243 = vunpack.c.h.b16 %v8710
    %v10244 = vunpack.c.l.b16 %v8711
    %v10245 = vunpack.c.h.b16 %v8711
    %v10246 = vunpack.c.l.b16 %v8712
    %v10247 = vunpack.c.h.b16 %v8712
    %v10248 = vunpack.c.l.b16 %v8713
    %v10249 = vunpack.c.h.b16 %v8713
    %v10250 = vunpack.c.l.b16 %v8714
    %v10251 = vunpack.c.h.b16 %v8714
    %v10252 = vunpack.c.l.b16 %v8715
    %v10253 = vunpack.c.h.b16 %v8715
    %v10254 = vunpack.c.l.b16 %v8716
    %v10255 = vunpack.c.h.b16 %v8716
    %v10256 = vunpack.c.l.b16 %v8717
    %v10257 = vunpack.c.h.b16 %v8717
    %v10258 = vunpack.c.l.b16 %v8718
    %v10259 = vunpack.c.h.b16 %v8718
    %v10260 = vunpack.c.l.b16 %v8719
    %v10261 = vunpack.c.h.b16 %v8719
    %v10262 = vunpack.c.l.b16 %v8720
    %v10263 = vunpack.c.h.b16 %v8720
    %v10264 = vunpack.c.l.b16 %v8721
    %v10265 = vunpack.c.h.b16 %v8721
    %v10266 = vunpack.c.l.b16 %v8722
    %v10267 = vunpack.c.h.b16 %v8722
    %v10268 = vunpack.c.l.b16 %v8723
    %v10269 = vunpack.c.h.b16 %v8723
    %v10270 = vunpack.c.l.b16 %v8724
    %v10271 = vunpack.c.h.b16 %v8724
    %v10272 = vunpack.c.l.b16 %v8725
    %v10273 = vunpack.c.h.b16 %v8725
    %v10274 = vunpack.c.l.b16 %v8726
    %v10275 = vunpack.c.h.b16 %v8726
    %v10276 = vunpack.c.l.b16 %v8727
    %v10277 = vunpack.c.h.b16 %v8727
    %v10278 = vunpack.c.l.b16 %v8728
    %v10279 = vunpack.c.h.b16 %v8728
    %v10280 = vunpack.c.l.b16 %v8729
    %v10281 = vunpack.c.h.b16 %v8729
    %v10282 = vunpack.c.l.b16 %v8730
    %v10283 = vunpack.c.h.b16 %v8730
    %v10284 = vunpack.c.l.b16 %v8731
    %v10285 = vunpack.c.h.b16 %v8731
    %v10286 = vunpack.c.l.b16 %v8732
    %v10287 = vunpack.c.h.b16 %v8732
    %v10288 = vunpack.c.l.b16 %v8733
    %v10289 = vunpack.c.h.b16 %v8733
    %v10290 = vunpack.c.l.b16 %v8734
    %v10291 = vunpack.c.h.b16 %v8734
    %v10292 = vunpack.c.l.b16 %v8735
    %v10293 = vunpack.c.h.b16 %v8735
    %v10294 = vunpack.c.l.b16 %v8736
    %v10295 = vunpack.c.h.b16 %v8736
    %v10296 = vunpack.c.l.b16 %v8737
    %v10297 = vunpack.c.h.b16 %v8737
    %v10298 = vunpack.c.l.b16 %v8738
    %v10299 = vunpack.c.h.b16 %v8738
    %v10300 = vunpack.c.l.b16 %v8739
    %v10301 = vunpack.c.h.b16 %v8739
    %v10302 = vunpack.c.l.b16 %v8740
    %v10303 = vunpack.c.h.b16 %v8740
    %v10304 = vunpack.c.l.b16 %v8741
    %v10305 = vunpack.c.h.b16 %v8741
    %v10306 = vunpack.c.l.b16 %v8742
    %v10307 = vunpack.c.h.b16 %v8742
    %v10308 = vunpack.c.l.b16 %v8743
    %v10309 = vunpack.c.h.b16 %v8743
    %v10310 = vunpack.c.l.b16 %v8744
    %v10311 = vunpack.c.h.b16 %v8744
    %v10312 = vunpack.c.l.b16 %v8745
    %v10313 = vunpack.c.h.b16 %v8745
    %v10314 = vunpack.c.l.b16 %v8746
    %v10315 = vunpack.c.h.b16 %v8746
    %v10316 = vunpack.c.l.b16 %v8747
    %v10317 = vunpack.c.h.b16 %v8747
    %v10318 = vunpack.c.l.b16 %v8748
    %v10319 = vunpack.c.h.b16 %v8748
    %v10320 = vunpack.c.l.b16 %v8749
    %v10321 = vunpack.c.h.b16 %v8749
    %v10322 = vunpack.c.l.b16 %v8750
    %v10323 = vunpack.c.h.b16 %v8750
    %v10324 = vunpack.c.l.b16 %v8751
    %v10325 = vunpack.c.h.b16 %v8751
    %v10326 = vunpack.c.l.b16 %v8752
    %v10327 = vunpack.c.h.b16 %v8752
    %v10328 = vunpack.c.l.b16 %v8753
    %v10329 = vunpack.c.h.b16 %v8753
    %v10330 = vunpack.c.l.b16 %v8754
    %v10331 = vunpack.c.h.b16 %v8754
    %v10332 = vunpack.c.l.b16 %v8755
    %v10333 = vunpack.c.h.b16 %v8755
    %v10334 = vunpack.c.l.b16 %v8756
    %v10335 = vunpack.c.h.b16 %v8756
    %v10336 = vunpack.c.l.b16 %v8757
    %v10337 = vunpack.c.h.b16 %v8757
    %v10338 = vunpack.c.l.b16 %v8758
    %v10339 = vunpack.c.h.b16 %v8758
    %v10340 = vunpack.c.l.b16 %v8759
    %v10341 = vunpack.c.h.b16 %v8759
    %v10342 = vunpack.c.l.b16 %v8760
    %v10343 = vunpack.c.h.b16 %v8760
    %v10344 = vunpack.c.l.b16 %v8761
    %v10345 = vunpack.c.h.b16 %v8761
    %v10346 = vunpack.c.l.b16 %v8762
    %v10347 = vunpack.c.h.b16 %v8762
    %v10348 = vunpack.c.l.b16 %v8763
    %v10349 = vunpack.c.h.b16 %v8763
    %v10350 = vunpack.c.l.b16 %v8764
    %v10351 = vunpack.c.h.b16 %v8764
    %v10352 = vunpack.c.l.b16 %v8765
    %v10353 = vunpack.c.h.b16 %v8765
    %v10354 = vunpack.c.l.b16 %v8766
    %v10355 = vunpack.c.h.b16 %v8766
    %v10356 = vunpack.c.l.b16 %v8767
    %v10357 = vunpack.c.h.b16 %v8767
    %v10358 = vunpack.c.l.b16 %v8768
    %v10359 = vunpack.c.h.b16 %v8768
    %v10360 = vunpack.c.l.b16 %v8769
    %v10361 = vunpack.c.h.b16 %v8769
    %v10362 = vunpack.c.l.b16 %v8770
    %v10363 = vunpack.c.h.b16 %v8770
    %v10364 = vunpack.c.l.b16 %v8771
    %v10365 = vunpack.c.h.b16 %v8771
    %v10366 = vunpack.c.l.b16 %v8772
    %v10367 = vunpack.c.h.b16 %v8772
    %v10368 = vunpack.c.l.b16 %v8773
    %v10369 = vunpack.c.h.b16 %v8773
    %v10370 = vunpack.c.l.b16 %v8774
    %v10371 = vunpack.c.h.b16 %v8774
    %v10372 = vunpack.c.l.b16 %v8775
    %v10373 = vunpack.c.h.b16 %v8775
    %v10374 = vunpack.c.l.b16 %v8776
    %v10375 = vunpack.c.h.b16 %v8776
    %v10376 = vunpack.c.l.b16 %v8777
    %v10377 = vunpack.c.h.b16 %v8777
    %v10378 = vunpack.c.l.b16 %v8778
    %v10379 = vunpack.c.h.b16 %v8778
    %v10380 = vunpack.c.l.b16 %v8779
    %v10381 = vunpack.c.h.b16 %v8779
    %v10382 = vunpack.c.l.b16 %v8780
    %v10383 = vunpack.c.h.b16 %v8780
    %v10384 = vunpack.c.l.b16 %v8781
    %v10385 = vunpack.c.h.b16 %v8781
    %v10386 = vunpack.c.l.b16 %v8782
    %v10387 = vunpack.c.h.b16 %v8782
    %v10388 = vunpack.c.l.b16 %v8783
    %v10389 = vunpack.c.h.b16 %v8783
    %v10390 = vunpack.c.l.b16 %v8784
    %v10391 = vunpack.c.h.b16 %v8784
    %v10392 = vunpack.c.l.b16 %v8785
    %v10393 = vunpack.c.h.b16 %v8785
    %v10394 = vunpack.c.l.b16 %v8786
    %v10395 = vunpack.c.h.b16 %v8786
    %v10396 = vunpack.c.l.b16 %v8787
    %v10397 = vunpack.c.h.b16 %v8787
    %v10398 = vunpack.c.l.b16 %v8788
    %v10399 = vunpack.c.h.b16 %v8788
    %v10400 = vunpack.c.l.b16 %v8789
    %v10401 = vunpack.c.h.b16 %v8789
    %v10402 = vunpack.c.l.b16 %v8790
    %v10403 = vunpack.c.h.b16 %v8790
    %v10404 = vunpack.c.l.b16 %v8791
    %v10405 = vunpack.c.h.b16 %v8791
    %v10406 = vunpack.c.l.b16 %v8792
    %v10407 = vunpack.c.h.b16 %v8792
    %v10408 = vunpack.c.l.b16 %v8793
    %v10409 = vunpack.c.h.b16 %v8793
    %v10410 = vunpack.c.l.b16 %v8794
    %v10411 = vunpack.c.h.b16 %v8794
    %v10412 = vunpack.c.l.b16 %v8795
    %v10413 = vunpack.c.h.b16 %v8795
    %v10414 = vunpack.c.l.b16 %v8796
    %v10415 = vunpack.c.h.b16 %v8796
    %v10416 = vunpack.c.l.b16 %v8797
    %v10417 = vunpack.c.h.b16 %v8797
    %v10418 = vunpack.c.l.b16 %v8798
    %v10419 = vunpack.c.h.b16 %v8798
    %v10420 = vunpack.c.l.b16 %v8799
    %v10421 = vunpack.c.h.b16 %v8799
    %v10422 = vunpack.c.l.b16 %v8800
    %v10423 = vunpack.c.h.b16 %v8800
    %v10424 = vunpack.c.l.b16 %v8801
    %v10425 = vunpack.c.h.b16 %v8801
    %v10426 = vunpack.c.l.b16 %v8802
    %v10427 = vunpack.c.h.b16 %v8802
    %v10428 = vunpack.c.l.b16 %v8803
    %v10429 = vunpack.c.h.b16 %v8803
    %v10430 = vunpack.c.l.b16 %v8804
    %v10431 = vunpack.c.h.b16 %v8804
    %v10432 = vunpack.c.l.b16 %v8805
    %v10433 = vunpack.c.h.b16 %v8805
    %v10434 = vunpack.c.l.b16 %v8806
    %v10435 = vunpack.c.h.b16 %v8806
    %v10436 = vunpack.c.l.b16 %v8807
    %v10437 = vunpack.c.h.b16 %v8807
    %v10438 = vunpack.c.l.b16 %v8808
    %v10439 = vunpack.c.h.b16 %v8808
    %v10440 = vunpack.c.l.b16 %v8809
    %v10441 = vunpack.c.h.b16 %v8809
    %v10442 = vunpack.c.l.b16 %v8810
    %v10443 = vunpack.c.h.b16 %v8810
    %v10444 = vunpack.c.l.b16 %v8811
    %v10445 = vunpack.c.h.b16 %v8811
    %v10446 = vunpack.c.l.b16 %v8812
    %v10447 = vunpack.c.h.b16 %v8812
    %v10448 = vunpack.c.l.b16 %v8813
    %v10449 = vunpack.c.h.b16 %v8813
    %v10450 = vunpack.c.l.b16 %v8814
    %v10451 = vunpack.c.h.b16 %v8814
    %v10452 = vunpack.c.l.b16 %v8815
    %v10453 = vunpack.c.h.b16 %v8815
    %v10454 = vunpack.c.l.b16 %v8816
    %v10455 = vunpack.c.h.b16 %v8816
    %v10456 = vunpack.c.l.b16 %v8817
    %v10457 = vunpack.c.h.b16 %v8817
    %v10458 = vunpack.c.l.b16 %v8818
    %v10459 = vunpack.c.h.b16 %v8818
    %v10460 = vunpack.c.l.b16 %v8819
    %v10461 = vunpack.c.h.b16 %v8819
    %v10462 = vunpack.c.l.b16 %v8820
    %v10463 = vunpack.c.h.b16 %v8820
    %v10464 = vunpack.c.l.b16 %v8821
    %v10465 = vunpack.c.h.b16 %v8821
    %v10466 = vunpack.c.l.b16 %v8822
    %v10467 = vunpack.c.h.b16 %v8822
    %v10468 = vunpack.c.l.b16 %v8823
    %v10469 = vunpack.c.h.b16 %v8823
    %v10470 = vunpack.c.l.b16 %v8824
    %v10471 = vunpack.c.h.b16 %v8824
    %v10472 = vunpack.c.l.b16 %v8825
    %v10473 = vunpack.c.h.b16 %v8825
    %v10474 = vunpack.c.l.b16 %v8826
    %v10475 = vunpack.c.h.b16 %v8826
    %v10476 = vunpack.c.l.b16 %v8827
    %v10477 = vunpack.c.h.b16 %v8827
    %v10478 = vunpack.c.l.b16 %v8828
    %v10479 = vunpack.c.h.b16 %v8828
    %v10480 = vunpack.c.l.b16 %v8829
    %v10481 = vunpack.c.h.b16 %v8829
    %v10482 = vunpack.c.l.b16 %v8830
    %v10483 = vunpack.c.h.b16 %v8830
    %v10484 = vunpack.c.l.b16 %v8831
    %v10485 = vunpack.c.h.b16 %v8831
    %v10486 = vunpack.c.l.b16 %v8832
    %v10487 = vunpack.c.h.b16 %v8832
    %v10488 = vunpack.c.l.b16 %v8833
    %v10489 = vunpack.c.h.b16 %v8833
    %v10490 = vunpack.c.l.b16 %v8834
    %v10491 = vunpack.c.h.b16 %v8834
    %v10492 = vunpack.c.l.b16 %v8835
    %v10493 = vunpack.c.h.b16 %v8835
    %v10494 = vunpack.c.l.b16 %v8836
    %v10495 = vunpack.c.h.b16 %v8836
    %v10496 = vunpack.c.l.b16 %v8837
    %v10497 = vunpack.c.h.b16 %v8837
    %v10498 = vunpack.c.l.b16 %v8838
    %v10499 = vunpack.c.h.b16 %v8838
    %v10500 = vunpack.c.l.b16 %v8839
    %v10501 = vunpack.c.h.b16 %v8839
    %v10502 = vunpack.c.l.b16 %v8840
    %v10503 = vunpack.c.h.b16 %v8840
    %v10504 = vunpack.c.l.b16 %v8841
    %v10505 = vunpack.c.h.b16 %v8841
    %v10506 = vunpack.c.l.b16 %v8842
    %v10507 = vunpack.c.h.b16 %v8842
    %v10508 = vunpack.c.l.b16 %v8843
    %v10509 = vunpack.c.h.b16 %v8843
    %v10510 = vunpack.c.l.b16 %v8844
    %v10511 = vunpack.c.h.b16 %v8844
    %v10512 = vunpack.c.l.b16 %v8845
    %v10513 = vunpack.c.h.b16 %v8845
    %v10514 = vunpack.c.l.b16 %v8846
    %v10515 = vunpack.c.h.b16 %v8846
    %v10516 = vunpack.c.l.b16 %v8847
    %v10517 = vunpack.c.h.b16 %v8847
    %v10518 = vunpack.c.l.b16 %v8848
    %v10519 = vunpack.c.h.b16 %v8848
    %v10520 = vunpack.c.l.b16 %v8849
    %v10521 = vunpack.c.h.b16 %v8849
    %v10522 = vunpack.c.l.b16 %v8850
    %v10523 = vunpack.c.h.b16 %v8850
    %v10524 = vunpack.c.l.b16 %v8851
    %v10525 = vunpack.c.h.b16 %v8851
    %v10526 = vunpack.c.l.b16 %v8852
    %v10527 = vunpack.c.h.b16 %v8852
    %v10528 = vunpack.c.l.b16 %v8853
    %v10529 = vunpack.c.h.b16 %v8853
    %v10530 = vunpack.c.l.b16 %v8854
    %v10531 = vunpack.c.h.b16 %v8854
    %v10532 = vunpack.c.l.b16 %v8855
    %v10533 = vunpack.c.h.b16 %v8855
    %v10534 = vunpack.c.l.b16 %v8856
    %v10535 = vunpack.c.h.b16 %v8856
    %v10536 = vunpack.c.l.b16 %v8857
    %v10537 = vunpack.c.h.b16 %v8857
    %v10538 = vunpack.c.l.b16 %v8858
    %v10539 = vunpack.c.h.b16 %v8858
    %v10540 = vunpack.c.l.b16 %v8859
    %v10541 = vunpack.c.h.b16 %v8859
    %v10542 = vunpack.c.l.b16 %v8860
    %v10543 = vunpack.c.h.b16 %v8860
    %v10544 = vunpack.c.l.b16 %v8861
    %v10545 = vunpack.c.h.b16 %v8861
    %v10546 = vunpack.c.l.b16 %v8862
    %v10547 = vunpack.c.h.b16 %v8862
    %v10548 = vunpack.c.l.b16 %v8863
    %v10549 = vunpack.c.h.b16 %v8863
    %v10550 = vunpack.c.l.b16 %v8864
    %v10551 = vunpack.c.h.b16 %v8864
    %v10552 = vunpack.c.l.b16 %v8865
    %v10553 = vunpack.c.h.b16 %v8865
    %v10554 = vunpack.c.l.b16 %v8866
    %v10555 = vunpack.c.h.b16 %v8866
    %v10556 = vunpack.c.l.b16 %v8867
    %v10557 = vunpack.c.h.b16 %v8867
    %v10558 = vunpack.c.l.b16 %v8868
    %v10559 = vunpack.c.h.b16 %v8868
    %v10560 = vunpack.c.l.b16 %v8869
    %v10561 = vunpack.c.h.b16 %v8869
    %v10562 = vunpack.c.l.b16 %v8870
    %v10563 = vunpack.c.h.b16 %v8870
    %v10564 = vunpack.c.l.b16 %v8871
    %v10565 = vunpack.c.h.b16 %v8871
    %v10566 = vunpack.c.l.b16 %v8872
    %v10567 = vunpack.c.h.b16 %v8872
    %v10568 = vunpack.c.l.b16 %v8873
    %v10569 = vunpack.c.h.b16 %v8873
    %v10570 = vunpack.c.l.b16 %v8874
    %v10571 = vunpack.c.h.b16 %v8874
    %v10572 = vunpack.c.l.b16 %v8875
    %v10573 = vunpack.c.h.b16 %v8875
    %v10574 = vunpack.c.l.b16 %v8876
    %v10575 = vunpack.c.h.b16 %v8876
    %v10576 = vunpack.c.l.b16 %v8877
    %v10577 = vunpack.c.h.b16 %v8877
    %v10578 = vunpack.c.l.b16 %v8878
    %v10579 = vunpack.c.h.b16 %v8878
    %v10580 = vunpack.c.l.b16 %v8879
    %v10581 = vunpack.c.h.b16 %v8879
    %v10582 = vunpack.c.l.b16 %v8880
    %v10583 = vunpack.c.h.b16 %v8880
    %v10584 = vunpack.c.l.b16 %v8881
    %v10585 = vunpack.c.h.b16 %v8881
    %v10586 = vunpack.c.l.b16 %v8882
    %v10587 = vunpack.c.h.b16 %v8882
    %v10588 = vunpack.c.l.b16 %v8883
    %v10589 = vunpack.c.h.b16 %v8883
    %v10590 = vunpack.c.l.b16 %v8884
    %v10591 = vunpack.c.h.b16 %v8884
    %v10592 = vunpack.c.l.b16 %v8885
    %v10593 = vunpack.c.h.b16 %v8885
    %v10594 = vunpack.c.l.b16 %v8886
    %v10595 = vunpack.c.h.b16 %v8886
    %v10596 = vunpack.c.l.b16 %v8887
    %v10597 = vunpack.c.h.b16 %v8887
    %v10598 = vunpack.c.l.b16 %v8888
    %v10599 = vunpack.c.h.b16 %v8888
    %v10600 = vunpack.c.l.b16 %v8889
    %v10601 = vunpack.c.h.b16 %v8889
    %v10602 = vunpack.c.l.b16 %v8890
    %v10603 = vunpack.c.h.b16 %v8890
    %v10604 = vpack.c.b16 %v10100, %v10092
    %v10605 = vpack.c.b16 %v10101, %v10093
    %v10606 = vpack.c.b16 %v10102, %v10094
    %v10607 = vpack.c.b16 %v10103, %v10095
    %v10608 = vpack.c.b16 %v10104, %v10096
    %v10609 = vpack.c.b16 %v10105, %v10097
    %v10610 = vpack.c.b16 %v10106, %v10098
    %v10611 = vpack.c.b16 %v10107, %v10099
    %v10612 = vpack.c.b16 %v10116, %v10108
    %v10613 = vpack.c.b16 %v10117, %v10109
    %v10614 = vpack.c.b16 %v10118, %v10110
    %v10615 = vpack.c.b16 %v10119, %v10111
    %v10616 = vpack.c.b16 %v10120, %v10112
    %v10617 = vpack.c.b16 %v10121, %v10113
    %v10618 = vpack.c.b16 %v10122, %v10114
    %v10619 = vpack.c.b16 %v10123, %v10115
    %v10620 = vpack.c.b16 %v10132, %v10124
    %v10621 = vpack.c.b16 %v10133, %v10125
    %v10622 = vpack.c.b16 %v10134, %v10126
    %v10623 = vpack.c.b16 %v10135, %v10127
    %v10624 = vpack.c.b16 %v10136, %v10128
    %v10625 = vpack.c.b16 %v10137, %v10129
    %v10626 = vpack.c.b16 %v10138, %v10130
    %v10627 = vpack.c.b16 %v10139, %v10131
    %v10628 = vpack.c.b16 %v10148, %v10140
    %v10629 = vpack.c.b16 %v10149, %v10141
    %v10630 = vpack.c.b16 %v10150, %v10142
    %v10631 = vpack.c.b16 %v10151, %v10143
    %v10632 = vpack.c.b16 %v10152, %v10144
    %v10633 = vpack.c.b16 %v10153, %v10145
    %v10634 = vpack.c.b16 %v10154, %v10146
    %v10635 = vpack.c.b16 %v10155, %v10147
    %v10636 = vpack.c.b16 %v10164, %v10156
    %v10637 = vpack.c.b16 %v10165, %v10157
    %v10638 = vpack.c.b16 %v10166, %v10158
    %v10639 = vpack.c.b16 %v10167, %v10159
    %v10640 = vpack.c.b16 %v10168, %v10160
    %v10641 = vpack.c.b16 %v10169, %v10161
    %v10642 = vpack.c.b16 %v10170, %v10162
    %v10643 = vpack.c.b16 %v10171, %v10163
    %v10644 = vpack.c.b16 %v10180, %v10172
    %v10645 = vpack.c.b16 %v10181, %v10173
    %v10646 = vpack.c.b16 %v10182, %v10174
    %v10647 = vpack.c.b16 %v10183, %v10175
    %v10648 = vpack.c.b16 %v10184, %v10176
    %v10649 = vpack.c.b16 %v10185, %v10177
    %v10650 = vpack.c.b16 %v10186, %v10178
    %v10651 = vpack.c.b16 %v10187, %v10179
    %v10652 = vpack.c.b16 %v10196, %v10188
    %v10653 = vpack.c.b16 %v10197, %v10189
    %v10654 = vpack.c.b16 %v10198, %v10190
    %v10655 = vpack.c.b16 %v10199, %v10191
    %v10656 = vpack.c.b16 %v10200, %v10192
    %v10657 = vpack.c.b16 %v10201, %v10193
    %v10658 = vpack.c.b16 %v10202, %v10194
    %v10659 = vpack.c.b16 %v10203, %v10195
    %v10660 = vpack.c.b16 %v10212, %v10204
    %v10661 = vpack.c.b16 %v10213, %v10205
    %v10662 = vpack.c.b16 %v10214, %v10206
    %v10663 = vpack.c.b16 %v10215, %v10207
    %v10664 = vpack.c.b16 %v10216, %v10208
    %v10665 = vpack.c.b16 %v10217, %v10209
    %v10666 = vpack.c.b16 %v10218, %v10210
    %v10667 = vpack.c.b16 %v10219, %v10211
    %v10668 = vpack.c.b16 %v10228, %v10220
    %v10669 = vpack.c.b16 %v10229, %v10221
    %v10670 = vpack.c.b16 %v10230, %v10222
    %v10671 = vpack.c.b16 %v10231, %v10223
    %v10672 = vpack.c.b16 %v10232, %v10224
    %v10673 = vpack.c.b16 %v10233, %v10225
    %v10674 = vpack.c.b16 %v10234, %v10226
    %v10675 = vpack.c.b16 %v10235, %v10227
    %v10676 = vpack.c.b16 %v10244, %v10236
    %v10677 = vpack.c.b16 %v10245, %v10237
    %v10678 = vpack.c.b16 %v10246, %v10238
    %v10679 = vpack.c.b16 %v10247, %v10239
    %v10680 = vpack.c.b16 %v10248, %v10240
    %v10681 = vpack.c.b16 %v10249, %v10241
    %v10682 = vpack.c.b16 %v10250, %v10242
    %v10683 = vpack.c.b16 %v10251, %v10243
    %v10684 = vpack.c.b16 %v10260, %v10252
    %v10685 = vpack.c.b16 %v10261, %v10253
    %v10686 = vpack.c.b16 %v10262, %v10254
    %v10687 = vpack.c.b16 %v10263, %v10255
    %v10688 = vpack.c.b16 %v10264, %v10256
    %v10689 = vpack.c.b16 %v10265, %v10257
    %v10690 = vpack.c.b16 %v10266, %v10258
    %v10691 = vpack.c.b16 %v10267, %v10259
    %v10692 = vpack.c.b16 %v10276, %v10268
    %v10693 = vpack.c.b16 %v10277, %v10269
    %v10694 = vpack.c.b16 %v10278, %v10270
    %v10695 = vpack.c.b16 %v10279, %v10271
    %v10696 = vpack.c.b16 %v10280, %v10272
    %v10697 = vpack.c.b16 %v10281, %v10273
    %v10698 = vpack.c.b16 %v10282, %v10274
    %v10699 = vpack.c.b16 %v10283, %v10275
    %v10700 = vpack.c.b16 %v10292, %v10284
    %v10701 = vpack.c.b16 %v10293, %v10285
    %v10702 = vpack.c.b16 %v10294, %v10286
    %v10703 = vpack.c.b16 %v10295, %v10287
    %v10704 = vpack.c.b16 %v10296, %v10288
    %v10705 = vpack.c.b16 %v10297, %v10289
    %v10706 = vpack.c.b16 %v10298, %v10290
    %v10707 = vpack.c.b16 %v10299, %v10291
    %v10708 = vpack.c.b16 %v10308, %v10300
    %v10709 = vpack.c.b16 %v10309, %v10301
    %v10710 = vpack.c.b16 %v10310, %v10302
    %v10711 = vpack.c.b16 %v10311, %v10303
    %v10712 = vpack.c.b16 %v10312, %v10304
    %v10713 = vpack.c.b16 %v10313, %v10305
    %v10714 = vpack.c.b16 %v10314, %v10306
    %v10715 = vpack.c.b16 %v10315, %v10307
    %v10716 = vpack.c.b16 %v10324, %v10316
    %v10717 = vpack.c.b16 %v10325, %v10317
    %v10718 = vpack.c.b16 %v10326, %v10318
    %v10719 = vpack.c.b16 %v10327, %v10319
    %v10720 = vpack.c.b16 %v10328, %v10320
    %v10721 = vpack.c.b16 %v10329, %v10321
    %v10722 = vpack.c.b16 %v10330, %v10322
    %v10723 = vpack.c.b16 %v10331, %v10323
    %v10724 = vpack.c.b16 %v10340, %v10332
    %v10725 = vpack.c.b16 %v10341, %v10333
    %v10726 = vpack.c.b16 %v10342, %v10334
    %v10727 = vpack.c.b16 %v10343, %v10335
    %v10728 = vpack.c.b16 %v10344, %v10336
    %v10729 = vpack.c.b16 %v10345, %v10337
    %v10730 = vpack.c.b16 %v10346, %v10338
    %v10731 = vpack.c.b16 %v10347, %v10339
    %v10732 = vpack.c.b16 %v10356, %v10348
    %v10733 = vpack.c.b16 %v10357, %v10349
    %v10734 = vpack.c.b16 %v10358, %v10350
    %v10735 = vpack.c.b16 %v10359, %v10351
    %v10736 = vpack.c.b16 %v10360, %v10352
    %v10737 = vpack.c.b16 %v10361, %v10353
    %v10738 = vpack.c.b16 %v10362, %v10354
    %v10739 = vpack.c.b16 %v10363, %v10355
    %v10740 = vpack.c.b16 %v10372, %v10364
    %v10741 = vpack.c.b16 %v10373, %v10365
    %v10742 = vpack.c.b16 %v10374, %v10366
    %v10743 = vpack.c.b16 %v10375, %v10367
    %v10744 = vpack.c.b16 %v10376, %v10368
    %v10745 = vpack.c.b16 %v10377, %v10369
    %v10746 = vpack.c.b16 %v10378, %v10370
    %v10747 = vpack.c.b16 %v10379, %v10371
    %v10748 = vpack.c.b16 %v10388, %v10380
    %v10749 = vpack.c.b16 %v10389, %v10381
    %v10750 = vpack.c.b16 %v10390, %v10382
    %v10751 = vpack.c.b16 %v10391, %v10383
    %v10752 = vpack.c.b16 %v10392, %v10384
    %v10753 = vpack.c.b16 %v10393, %v10385
    %v10754 = vpack.c.b16 %v10394, %v10386
    %v10755 = vpack.c.b16 %v10395, %v10387
    %v10756 = vpack.c.b16 %v10404, %v10396
    %v10757 = vpack.c.b16 %v10405, %v10397
    %v10758 = vpack.c.b16 %v10406, %v10398
    %v10759 = vpack.c.b16 %v10407, %v10399
    %v10760 = vpack.c.b16 %v10408, %v10400
    %v10761 = vpack.c.b16 %v10409, %v10401
    %v10762 = vpack.c.b16 %v10410, %v10402
    %v10763 = vpack.c.b16 %v10411, %v10403
    %v10764 = vpack.c.b16 %v10420, %v10412
    %v10765 = vpack.c.b16 %v10421, %v10413
    %v10766 = vpack.c.b16 %v10422, %v10414
    %v10767 = vpack.c.b16 %v10423, %v10415
    %v10768 = vpack.c.b16 %v10424, %v10416
    %v10769 = vpack.c.b16 %v10425, %v10417
    %v10770 = vpack.c.b16 %v10426, %v10418
    %v10771 = vpack.c.b16 %v10427, %v10419
    %v10772 = vpack.c.b16 %v10436, %v10428
    %v10773 = vpack.c.b16 %v10437, %v10429
    %v10774 = vpack.c.b16 %v10438, %v10430
    %v10775 = vpack.c.b16 %v10439, %v10431
    %v10776 = vpack.c.b16 %v10440, %v10432
    %v10777 = vpack.c.b16 %v10441, %v10433
    %v10778 = vpack.c.b16 %v10442, %v10434
    %v10779 = vpack.c.b16 %v10443, %v10435
    %v10780 = vpack.c.b16 %v10452, %v10444
    %v10781 = vpack.c.b16 %v10453, %v10445
    %v10782 = vpack.c.b16 %v10454, %v10446
    %v10783 = vpack.c.b16 %v10455, %v10447
    %v10784 = vpack.c.b16 %v10456, %v10448
    %v10785 = vpack.c.b16 %v10457, %v10449
    %v10786 = vpack.c.b16 %v10458, %v10450
    %v10787 = vpack.c.b16 %v10459, %v10451
    %v10788 = vpack.c.b16 %v10468, %v10460
    %v10789 = vpack.c.b16 %v10469, %v10461
    %v10790 = vpack.c.b16 %v10470, %v10462
    %v10791 = vpack.c.b16 %v10471, %v10463
    %v10792 = vpack.c.b16 %v10472, %v10464
    %v10793 = vpack.c.b16 %v10473, %v10465
    %v10794 = vpack.c.b16 %v10474, %v10466
    %v10795 = vpack.c.b16 %v10475, %v10467
    %v10796 = vpack.c.b16 %v10484, %v10476
    %v10797 = vpack.c.b16 %v10485, %v10477
    %v10798 = vpack.c.b16 %v10486, %v10478
    %v10799 = vpack.c.b16 %v10487, %v10479
    %v10800 = vpack.c.b16 %v10488, %v10480
    %v10801 = vpack.c.b16 %v10489, %v10481
    %v10802 = vpack.c.b16 %v10490, %v10482
    %v10803 = vpack.c.b16 %v10491, %v10483
    %v10804 = vpack.c.b16 %v10500, %v10492
    %v10805 = vpack.c.b16 %v10501, %v10493
    %v10806 = vpack.c.b16 %v10502, %v10494
    %v10807 = vpack.c.b16 %v10503, %v10495
    %v10808 = vpack.c.b16 %v10504, %v10496
    %v10809 = vpack.c.b16 %v10505, %v10497
    %v10810 = vpack.c.b16 %v10506, %v10498
    %v10811 = vpack.c.b16 %v10507, %v10499
    %v10812 = vpack.c.b16 %v10516, %v10508
    %v10813 = vpack.c.b16 %v10517, %v10509
    %v10814 = vpack.c.b16 %v10518, %v10510
    %v10815 = vpack.c.b16 %v10519, %v10511
    %v10816 = vpack.c.b16 %v10520, %v10512
    %v10817 = vpack.c.b16 %v10521, %v10513
    %v10818 = vpack.c.b16 %v10522, %v10514
    %v10819 = vpack.c.b16 %v10523, %v10515
    %v10820 = vpack.c.b16 %v10532, %v10524
    %v10821 = vpack.c.b16 %v10533, %v10525
    %v10822 = vpack.c.b16 %v10534, %v10526
    %v10823 = vpack.c.b16 %v10535, %v10527
    %v10824 = vpack.c.b16 %v10536, %v10528
    %v10825 = vpack.c.b16 %v10537, %v10529
    %v10826 = vpack.c.b16 %v10538, %v10530
    %v10827 = vpack.c.b16 %v10539, %v10531
    %v10828 = vpack.c.b16 %v10548, %v10540
    %v10829 = vpack.c.b16 %v10549, %v10541
    %v10830 = vpack.c.b16 %v10550, %v10542
    %v10831 = vpack.c.b16 %v10551, %v10543
    %v10832 = vpack.c.b16 %v10552, %v10544
    %v10833 = vpack.c.b16 %v10553, %v10545
    %v10834 = vpack.c.b16 %v10554, %v10546
    %v10835 = vpack.c.b16 %v10555, %v10547
    %v10836 = vpack.c.b16 %v10564, %v10556
    %v10837 = vpack.c.b16 %v10565, %v10557
    %v10838 = vpack.c.b16 %v10566, %v10558
    %v10839 = vpack.c.b16 %v10567, %v10559
    %v10840 = vpack.c.b16 %v10568, %v10560
    %v10841 = vpack.c.b16 %v10569, %v10561
    %v10842 = vpack.c.b16 %v10570, %v10562
    %v10843 = vpack.c.b16 %v10571, %v10563
    %v10844 = vpack.c.b16 %v10580, %v10572
    %v10845 = vpack.c.b16 %v10581, %v10573
    %v10846 = vpack.c.b16 %v10582, %v10574
    %v10847 = vpack.c.b16 %v10583, %v10575
    %v10848 = vpack.c.b16 %v10584, %v10576
    %v10849 = vpack.c.b16 %v10585, %v10577
    %v10850 = vpack.c.b16 %v10586, %v10578
    %v10851 = vpack.c.b16 %v10587, %v10579
    %v10852 = vpack.c.b16 %v10596, %v10588
    %v10853 = vpack.c.b16 %v10597, %v10589
    %v10854 = vpack.c.b16 %v10598, %v10590
    %v10855 = vpack.c.b16 %v10599, %v10591
    %v10856 = vpack.c.b16 %v10600, %v10592
    %v10857 = vpack.c.b16 %v10601, %v10593
    %v10858 = vpack.c.b16 %v10602, %v10594
    %v10859 = vpack.c.b16 %v10603, %v10595
    %11116 = vmatprep.subr.bf16.mxu0 %v10605
    %11117 = vmatpush1.bf16.msra.mxu0 %v10604
    %11118 = vmatprep.subr.bf16.mxu0 %v10613
    %11119 = vmatpush1.bf16.msra.mxu0 %v10612
    %11120 = vmatprep.subr.bf16.mxu0 %v10621
    %11121 = vmatpush1.bf16.msra.mxu0 %v10620
    %11122 = vmatprep.subr.bf16.mxu0 %v10629
    %11123 = vmatpush1.bf16.msra.mxu0 %v10628
    %11124 = vmatprep.subr.bf16.mxu0 %v10637
    %11125 = vmatpush1.bf16.msra.mxu0 %v10636
    %11126 = vmatprep.subr.bf16.mxu0 %v10645
    %11127 = vmatpush1.bf16.msra.mxu0 %v10644
    %11128 = vmatprep.subr.bf16.mxu0 %v10653
    %11129 = vmatpush1.bf16.msra.mxu0 %v10652
    %11130 = vmatprep.subr.bf16.mxu0 %v10661
    %11131 = vmatpush1.bf16.msra.mxu0 %v10660
    %11132 = vmatprep.subr.bf16.mxu0 %v10669
    %11133 = vmatpush1.bf16.msra.mxu0 %v10668
    %11134 = vmatprep.subr.bf16.mxu0 %v10677
    %11135 = vmatpush1.bf16.msra.mxu0 %v10676
    %11136 = vmatprep.subr.bf16.mxu0 %v10685
    %11137 = vmatpush1.bf16.msra.mxu0 %v10684
    %11138 = vmatprep.subr.bf16.mxu0 %v10693
    %11139 = vmatpush1.bf16.msra.mxu0 %v10692
    %11140 = vmatprep.subr.bf16.mxu0 %v10701
    %11141 = vmatpush1.bf16.msra.mxu0 %v10700
    %11142 = vmatprep.subr.bf16.mxu0 %v10709
    %11143 = vmatpush1.bf16.msra.mxu0 %v10708
    %11144 = vmatprep.subr.bf16.mxu0 %v10717
    %11145 = vmatpush1.bf16.msra.mxu0 %v10716
    %11146 = vmatprep.subr.bf16.mxu0 %v10725
    %11147 = vmatpush1.bf16.msra.mxu0 %v10724
    %11148 = vmatprep.mubr.bf16.mxu0 %v8632
    %11149 = vmatmul.mubr.bf16.gmra.mrb[0].mxu0 %v8631
    %v11150 = vpop.f32.mrb[0].mxu0
    %v11151 = vadd.f32 %v9707, %v11150
    %v11152 = vpop.f32.mrb[0].mxu0
    %v11153 = vadd.f32 %v9709, %v11152
    %v11154 = vpop.f32.mrb[0].mxu0
    %v11155 = vpop.f32.mrb[0].mxu0
    %11156 = vdwg.mxu0
    %11157 = vmatprep.subr.bf16.mxu0 %v10733
    %11158 = vmatpush1.bf16.msra.mxu0 %v10732
    %11159 = vmatprep.subr.bf16.mxu0 %v10741
    %11160 = vmatpush1.bf16.msra.mxu0 %v10740
    %11161 = vmatprep.subr.bf16.mxu0 %v10749
    %11162 = vmatpush1.bf16.msra.mxu0 %v10748
    %11163 = vmatprep.subr.bf16.mxu0 %v10757
    %11164 = vmatpush1.bf16.msra.mxu0 %v10756
    %11165 = vmatprep.subr.bf16.mxu0 %v10765
    %11166 = vmatpush1.bf16.msra.mxu0 %v10764
    %11167 = vmatprep.subr.bf16.mxu0 %v10773
    %11168 = vmatpush1.bf16.msra.mxu0 %v10772
    %11169 = vmatprep.subr.bf16.mxu0 %v10781
    %11170 = vmatpush1.bf16.msra.mxu0 %v10780
    %11171 = vmatprep.subr.bf16.mxu0 %v10789
    %11172 = vmatpush1.bf16.msra.mxu0 %v10788
    %11173 = vmatprep.subr.bf16.mxu0 %v10797
    %11174 = vmatpush1.bf16.msra.mxu0 %v10796
    %11175 = vmatprep.subr.bf16.mxu0 %v10805
    %11176 = vmatpush1.bf16.msra.mxu0 %v10804
    %11177 = vmatprep.subr.bf16.mxu0 %v10813
    %11178 = vmatpush1.bf16.msra.mxu0 %v10812
    %11179 = vmatprep.subr.bf16.mxu0 %v10821
    %11180 = vmatpush1.bf16.msra.mxu0 %v10820
    %11181 = vmatprep.subr.bf16.mxu0 %v10829
    %11182 = vmatpush1.bf16.msra.mxu0 %v10828
    %11183 = vmatprep.subr.bf16.mxu0 %v10837
    %11184 = vmatpush1.bf16.msra.mxu0 %v10836
    %11185 = vmatprep.subr.bf16.mxu0 %v10845
    %11186 = vmatpush1.bf16.msra.mxu0 %v10844
    %11187 = vmatprep.subr.bf16.mxu0 %v10853
    %11188 = vmatpush1.bf16.msra.mxu0 %v10852
    %11189 = vmatprep.mubr.bf16.mxu0 %v8634
    %11190 = vmatmul.mubr.bf16.gmra.mrb[0].mxu0 %v8633
    %v11191 = vpop.f32.mrb[0].mxu0
    %v11192 = vadd.f32 %v11151, %v11191
    %v11193 = vpop.f32.mrb[0].mxu0
    %v11194 = vadd.f32 %v11153, %v11193
    %v11195 = vpop.f32.mrb[0].mxu0
    %v11196 = vpop.f32.mrb[0].mxu0
    %11197 = vdwg.mxu0
    %11198 = vmatprep.subr.bf16.mxu0 %v10607
    %11199 = vmatpush1.bf16.msra.mxu0 %v10606
    %11200 = vmatprep.subr.bf16.mxu0 %v10615
    %11201 = vmatpush1.bf16.msra.mxu0 %v10614
    %11202 = vmatprep.subr.bf16.mxu0 %v10623
    %11203 = vmatpush1.bf16.msra.mxu0 %v10622
    %11204 = vmatprep.subr.bf16.mxu0 %v10631
    %11205 = vmatpush1.bf16.msra.mxu0 %v10630
    %11206 = vmatprep.subr.bf16.mxu0 %v10639
    %11207 = vmatpush1.bf16.msra.mxu0 %v10638
    %11208 = vmatprep.subr.bf16.mxu0 %v10647
    %11209 = vmatpush1.bf16.msra.mxu0 %v10646
    %11210 = vmatprep.subr.bf16.mxu0 %v10655
    %11211 = vmatpush1.bf16.msra.mxu0 %v10654
    %11212 = vmatprep.subr.bf16.mxu0 %v10663
    %11213 = vmatpush1.bf16.msra.mxu0 %v10662
    %11214 = vmatprep.subr.bf16.mxu0 %v10671
    %11215 = vmatpush1.bf16.msra.mxu0 %v10670
    %11216 = vmatprep.subr.bf16.mxu0 %v10679
    %11217 = vmatpush1.bf16.msra.mxu0 %v10678
    %11218 = vmatprep.subr.bf16.mxu0 %v10687
    %11219 = vmatpush1.bf16.msra.mxu0 %v10686
    %11220 = vmatprep.subr.bf16.mxu0 %v10695
    %11221 = vmatpush1.bf16.msra.mxu0 %v10694
    %11222 = vmatprep.subr.bf16.mxu0 %v10703
    %11223 = vmatpush1.bf16.msra.mxu0 %v10702
    %11224 = vmatprep.subr.bf16.mxu0 %v10711
    %11225 = vmatpush1.bf16.msra.mxu0 %v10710
    %11226 = vmatprep.subr.bf16.mxu0 %v10719
    %11227 = vmatpush1.bf16.msra.mxu0 %v10718
    %11228 = vmatprep.subr.bf16.mxu0 %v10727
    %11229 = vmatpush1.bf16.msra.mxu0 %v10726
    %11230 = vmatprep.mubr.bf16.mxu0 %v8632
    %11231 = vmatmul.mubr.bf16.gmra.mrb[0].mxu0 %v8631
    %v11232 = vpop.f32.mrb[0].mxu0
    %v11233 = vadd.f32 %v9748, %v11232
    %v11234 = vpop.f32.mrb[0].mxu0
    %v11235 = vadd.f32 %v9750, %v11234
    %v11236 = vpop.f32.mrb[0].mxu0
    %v11237 = vpop.f32.mrb[0].mxu0
    %11238 = vdwg.mxu0
    %11239 = vmatprep.subr.bf16.mxu0 %v10735
    %11240 = vmatpush1.bf16.msra.mxu0 %v10734
    %11241 = vmatprep.subr.bf16.mxu0 %v10743
    %11242 = vmatpush1.bf16.msra.mxu0 %v10742
    %11243 = vmatprep.subr.bf16.mxu0 %v10751
    %11244 = vmatpush1.bf16.msra.mxu0 %v10750
    %11245 = vmatprep.subr.bf16.mxu0 %v10759
    %11246 = vmatpush1.bf16.msra.mxu0 %v10758
    %11247 = vmatprep.subr.bf16.mxu0 %v10767
    %11248 = vmatpush1.bf16.msra.mxu0 %v10766
    %11249 = vmatprep.subr.bf16.mxu0 %v10775
    %11250 = vmatpush1.bf16.msra.mxu0 %v10774
    %11251 = vmatprep.subr.bf16.mxu0 %v10783
    %11252 = vmatpush1.bf16.msra.mxu0 %v10782
    %11253 = vmatprep.subr.bf16.mxu0 %v10791
    %11254 = vmatpush1.bf16.msra.mxu0 %v10790
    %11255 = vmatprep.subr.bf16.mxu0 %v10799
    %11256 = vmatpush1.bf16.msra.mxu0 %v10798
    %11257 = vmatprep.subr.bf16.mxu0 %v10807
    %11258 = vmatpush1.bf16.msra.mxu0 %v10806
    %11259 = vmatprep.subr.bf16.mxu0 %v10815
    %11260 = vmatpush1.bf16.msra.mxu0 %v10814
    %11261 = vmatprep.subr.bf16.mxu0 %v10823
    %11262 = vmatpush1.bf16.msra.mxu0 %v10822
    %11263 = vmatprep.subr.bf16.mxu0 %v10831
    %11264 = vmatpush1.bf16.msra.mxu0 %v10830
    %11265 = vmatprep.subr.bf16.mxu0 %v10839
    %11266 = vmatpush1.bf16.msra.mxu0 %v10838
    %11267 = vmatprep.subr.bf16.mxu0 %v10847
    %11268 = vmatpush1.bf16.msra.mxu0 %v10846
    %11269 = vmatprep.subr.bf16.mxu0 %v10855
    %11270 = vmatpush1.bf16.msra.mxu0 %v10854
    %11271 = vmatprep.mubr.bf16.mxu0 %v8634
    %11272 = vmatmul.mubr.bf16.gmra.mrb[0].mxu0 %v8633
    %v11273 = vpop.f32.mrb[0].mxu0
    %v11274 = vadd.f32 %v11233, %v11273
    %v11275 = vpop.f32.mrb[0].mxu0
    %v11276 = vadd.f32 %v11235, %v11275
    %v11277 = vpop.f32.mrb[0].mxu0
    %v11278 = vpop.f32.mrb[0].mxu0
    %11279 = vdwg.mxu0
    %11280 = vmatprep.subr.bf16.mxu0 %v10609
    %11281 = vmatpush1.bf16.msra.mxu0 %v10608
    %11282 = vmatprep.subr.bf16.mxu0 %v10617
    %11283 = vmatpush1.bf16.msra.mxu0 %v10616
    %11284 = vmatprep.subr.bf16.mxu0 %v10625
    %11285 = vmatpush1.bf16.msra.mxu0 %v10624
    %11286 = vmatprep.subr.bf16.mxu0 %v10633
    %11287 = vmatpush1.bf16.msra.mxu0 %v10632
    %11288 = vmatprep.subr.bf16.mxu0 %v10641
    %11289 = vmatpush1.bf16.msra.mxu0 %v10640
    %11290 = vmatprep.subr.bf16.mxu0 %v10649
    %11291 = vmatpush1.bf16.msra.mxu0 %v10648
    %11292 = vmatprep.subr.bf16.mxu0 %v10657
    %11293 = vmatpush1.bf16.msra.mxu0 %v10656
    %11294 = vmatprep.subr.bf16.mxu0 %v10665
    %11295 = vmatpush1.bf16.msra.mxu0 %v10664
    %11296 = vmatprep.subr.bf16.mxu0 %v10673
    %11297 = vmatpush1.bf16.msra.mxu0 %v10672
    %11298 = vmatprep.subr.bf16.mxu0 %v10681
    %11299 = vmatpush1.bf16.msra.mxu0 %v10680
    %11300 = vmatprep.subr.bf16.mxu0 %v10689
    %11301 = vmatpush1.bf16.msra.mxu0 %v10688
    %11302 = vmatprep.subr.bf16.mxu0 %v10697
    %11303 = vmatpush1.bf16.msra.mxu0 %v10696
    %11304 = vmatprep.subr.bf16.mxu0 %v10705
    %11305 = vmatpush1.bf16.msra.mxu0 %v10704
    %11306 = vmatprep.subr.bf16.mxu0 %v10713
    %11307 = vmatpush1.bf16.msra.mxu0 %v10712
    %11308 = vmatprep.subr.bf16.mxu0 %v10721
    %11309 = vmatpush1.bf16.msra.mxu0 %v10720
    %11310 = vmatprep.subr.bf16.mxu0 %v10729
    %11311 = vmatpush1.bf16.msra.mxu0 %v10728
    %11312 = vmatprep.mubr.bf16.mxu0 %v8632
    %11313 = vmatmul.mubr.bf16.gmra.mrb[0].mxu0 %v8631
    %v11314 = vpop.f32.mrb[0].mxu0
    %v11315 = vadd.f32 %v9789, %v11314
    %v11316 = vpop.f32.mrb[0].mxu0
    %v11317 = vadd.f32 %v9791, %v11316
    %v11318 = vpop.f32.mrb[0].mxu0
    %v11319 = vpop.f32.mrb[0].mxu0
    %11320 = vdwg.mxu0
    %11321 = vmatprep.subr.bf16.mxu0 %v10737
    %11322 = vmatpush1.bf16.msra.mxu0 %v10736
    %11323 = vmatprep.subr.bf16.mxu0 %v10745
    %11324 = vmatpush1.bf16.msra.mxu0 %v10744
    %11325 = vmatprep.subr.bf16.mxu0 %v10753
    %11326 = vmatpush1.bf16.msra.mxu0 %v10752
    %11327 = vmatprep.subr.bf16.mxu0 %v10761
    %11328 = vmatpush1.bf16.msra.mxu0 %v10760
    %11329 = vmatprep.subr.bf16.mxu0 %v10769
    %11330 = vmatpush1.bf16.msra.mxu0 %v10768
    %11331 = vmatprep.subr.bf16.mxu0 %v10777
    %11332 = vmatpush1.bf16.msra.mxu0 %v10776
    %11333 = vmatprep.subr.bf16.mxu0 %v10785
    %11334 = vmatpush1.bf16.msra.mxu0 %v10784
    %11335 = vmatprep.subr.bf16.mxu0 %v10793
    %11336 = vmatpush1.bf16.msra.mxu0 %v10792
    %11337 = vmatprep.subr.bf16.mxu0 %v10801
    %11338 = vmatpush1.bf16.msra.mxu0 %v10800
    %11339 = vmatprep.subr.bf16.mxu0 %v10809
    %11340 = vmatpush1.bf16.msra.mxu0 %v10808
    %11341 = vmatprep.subr.bf16.mxu0 %v10817
    %11342 = vmatpush1.bf16.msra.mxu0 %v10816
    %11343 = vmatprep.subr.bf16.mxu0 %v10825
    %11344 = vmatpush1.bf16.msra.mxu0 %v10824
    %11345 = vmatprep.subr.bf16.mxu0 %v10833
    %11346 = vmatpush1.bf16.msra.mxu0 %v10832
    %11347 = vmatprep.subr.bf16.mxu0 %v10841
    %11348 = vmatpush1.bf16.msra.mxu0 %v10840
    %11349 = vmatprep.subr.bf16.mxu0 %v10849
    %11350 = vmatpush1.bf16.msra.mxu0 %v10848
    %11351 = vmatprep.subr.bf16.mxu0 %v10857
    %11352 = vmatpush1.bf16.msra.mxu0 %v10856
    %11353 = vmatprep.mubr.bf16.mxu0 %v8634
    %11354 = vmatmul.mubr.bf16.gmra.mrb[0].mxu0 %v8633
    %v11355 = vpop.f32.mrb[0].mxu0
    %v11356 = vadd.f32 %v11315, %v11355
    %v11357 = vpop.f32.mrb[0].mxu0
    %v11358 = vadd.f32 %v11317, %v11357
    %v11359 = vpop.f32.mrb[0].mxu0
    %v11360 = vpop.f32.mrb[0].mxu0
    %11361 = vdwg.mxu0
    %11362 = vmatprep.subr.bf16.mxu0 %v10611
    %11363 = vmatpush1.bf16.msra.mxu0 %v10610
    %11364 = vmatprep.subr.bf16.mxu0 %v10619
    %11365 = vmatpush1.bf16.msra.mxu0 %v10618
    %11366 = vmatprep.subr.bf16.mxu0 %v10627
    %11367 = vmatpush1.bf16.msra.mxu0 %v10626
    %11368 = vmatprep.subr.bf16.mxu0 %v10635
    %11369 = vmatpush1.bf16.msra.mxu0 %v10634
    %11370 = vmatprep.subr.bf16.mxu0 %v10643
    %11371 = vmatpush1.bf16.msra.mxu0 %v10642
    %11372 = vmatprep.subr.bf16.mxu0 %v10651
    %11373 = vmatpush1.bf16.msra.mxu0 %v10650
    %11374 = vmatprep.subr.bf16.mxu0 %v10659
    %11375 = vmatpush1.bf16.msra.mxu0 %v10658
    %11376 = vmatprep.subr.bf16.mxu0 %v10667
    %11377 = vmatpush1.bf16.msra.mxu0 %v10666
    %11378 = vmatprep.subr.bf16.mxu0 %v10675
    %11379 = vmatpush1.bf16.msra.mxu0 %v10674
    %11380 = vmatprep.subr.bf16.mxu0 %v10683
    %11381 = vmatpush1.bf16.msra.mxu0 %v10682
    %11382 = vmatprep.subr.bf16.mxu0 %v10691
    %11383 = vmatpush1.bf16.msra.mxu0 %v10690
    %11384 = vmatprep.subr.bf16.mxu0 %v10699
    %11385 = vmatpush1.bf16.msra.mxu0 %v10698
    %11386 = vmatprep.subr.bf16.mxu0 %v10707
    %11387 = vmatpush1.bf16.msra.mxu0 %v10706
    %11388 = vmatprep.subr.bf16.mxu0 %v10715
    %11389 = vmatpush1.bf16.msra.mxu0 %v10714
    %11390 = vmatprep.subr.bf16.mxu0 %v10723
    %11391 = vmatpush1.bf16.msra.mxu0 %v10722
    %11392 = vmatprep.subr.bf16.mxu0 %v10731
    %11393 = vmatpush1.bf16.msra.mxu0 %v10730
    %11394 = vmatprep.mubr.bf16.mxu0 %v8632
    %11395 = vmatmul.mubr.bf16.gmra.mrb[0].mxu0 %v8631
    %v11396 = vpop.f32.mrb[0].mxu0
    %v11397 = vadd.f32 %v9830, %v11396
    %v11398 = vpop.f32.mrb[0].mxu0
    %v11399 = vadd.f32 %v9832, %v11398
    %v11400 = vpop.f32.mrb[0].mxu0
    %v11401 = vpop.f32.mrb[0].mxu0
    %11402 = vdwg.mxu0
    %11403 = vmatprep.subr.bf16.mxu0 %v10739
    %11404 = vmatpush1.bf16.msra.mxu0 %v10738
    %11405 = vmatprep.subr.bf16.mxu0 %v10747
    %11406 = vmatpush1.bf16.msra.mxu0 %v10746
    %11407 = vmatprep.subr.bf16.mxu0 %v10755
    %11408 = vmatpush1.bf16.msra.mxu0 %v10754
    %11409 = vmatprep.subr.bf16.mxu0 %v10763
    %11410 = vmatpush1.bf16.msra.mxu0 %v10762
    %11411 = vmatprep.subr.bf16.mxu0 %v10771
    %11412 = vmatpush1.bf16.msra.mxu0 %v10770
    %11413 = vmatprep.subr.bf16.mxu0 %v10779
    %11414 = vmatpush1.bf16.msra.mxu0 %v10778
    %11415 = vmatprep.subr.bf16.mxu0 %v10787
    %11416 = vmatpush1.bf16.msra.mxu0 %v10786
    %11417 = vmatprep.subr.bf16.mxu0 %v10795
    %11418 = vmatpush1.bf16.msra.mxu0 %v10794
    %11419 = vmatprep.subr.bf16.mxu0 %v10803
    %11420 = vmatpush1.bf16.msra.mxu0 %v10802
    %11421 = vmatprep.subr.bf16.mxu0 %v10811
    %11422 = vmatpush1.bf16.msra.mxu0 %v10810
    %11423 = vmatprep.subr.bf16.mxu0 %v10819
    %11424 = vmatpush1.bf16.msra.mxu0 %v10818
    %11425 = vmatprep.subr.bf16.mxu0 %v10827
    %11426 = vmatpush1.bf16.msra.mxu0 %v10826
    %11427 = vmatprep.subr.bf16.mxu0 %v10835
    %11428 = vmatpush1.bf16.msra.mxu0 %v10834
    %11429 = vmatprep.subr.bf16.mxu0 %v10843
    %11430 = vmatpush1.bf16.msra.mxu0 %v10842
    %11431 = vmatprep.subr.bf16.mxu0 %v10851
    %11432 = vmatpush1.bf16.msra.mxu0 %v10850
    %11433 = vmatprep.subr.bf16.mxu0 %v10859
    %11434 = vmatpush1.bf16.msra.mxu0 %v10858
    %11435 = vmatprep.mubr.bf16.mxu0 %v8634
    %11436 = vmatmul.mubr.bf16.gmra.mrb[0].mxu0 %v8633
    %v11437 = vpop.f32.mrb[0].mxu0
    %v11438 = vadd.f32 %v11397, %v11437
    %v11439 = vpop.f32.mrb[0].mxu0
    %v11440 = vadd.f32 %v11399, %v11439
    %v11441 = vpop.f32.mrb[0].mxu0
    %v11442 = vpop.f32.mrb[0].mxu0
    %11443 = vdwg.mxu0
    %v11444 = vld [vmem:[#allocation22] sm:$0xff]
    %v11446 = vlaneseq
    %v11447 = vshrl.u32 %v11446, 7
    %v11448 = vsub.s32 0, %v11447
    %v11449 = vrot.slane %v11444, %v11448
    %v11450 = vlaneseq
    %v11451 = vshrl.u32 %v11450, 7
    %v11452 = vsub.s32 1, %v11451
    %v11453 = vrot.slane %v11444, %v11452
    %v11454 = vlaneseq
    %v11455 = vshrl.u32 %v11454, 7
    %v11456 = vsub.s32 2, %v11455
    %v11457 = vrot.slane %v11444, %v11456
    %v11458 = vlaneseq
    %v11459 = vshrl.u32 %v11458, 7
    %v11460 = vsub.s32 3, %v11459
    %v11461 = vrot.slane %v11444, %v11460
    %v11462 = vlaneseq
    %v11463 = vshrl.u32 %v11462, 7
    %v11464 = vsub.s32 4, %v11463
    %v11465 = vrot.slane %v11444, %v11464
    %v11466 = vlaneseq
    %v11467 = vshrl.u32 %v11466, 7
    %v11468 = vsub.s32 5, %v11467
    %v11469 = vrot.slane %v11444, %v11468
    %v11470 = vlaneseq
    %v11471 = vshrl.u32 %v11470, 7
    %v11472 = vsub.s32 6, %v11471
    %v11473 = vrot.slane %v11444, %v11472
    %v11474 = vlaneseq
    %v11475 = vshrl.u32 %v11474, 7
    %v11476 = vsub.s32 7, %v11475
    %v11477 = vrot.slane %v11444, %v11476
    %v11486 = vadd.f32 %v11192, %v11449
    %v11487 = vadd.f32 %v11194, %v11453
    %v11488 = vadd.f32 %v11274, %v11457
    %v11489 = vadd.f32 %v11276, %v11461
    %v11490 = vadd.f32 %v11356, %v11465
    %v11491 = vadd.f32 %v11358, %v11469
    %v11492 = vadd.f32 %v11438, %v11473
    %v11493 = vadd.f32 %v11440, %v11477
    %v11494 = vxor.u32 %v11486, 2147483648
    %v11495 = vxor.u32 %v11487, 2147483648
    %v11496 = vmul.f32 %v11494, 1.442695
    %v11497 = vpow.pop %v11496
    %v11498 = vmul.f32 %v11495, 1.442695
    %v11499 = vpow.pop %v11498
    %v11500 = vadd.f32 %v11497, 1.0
    %v11501 = vadd.f32 %v11499, 1.0
    %v11502 = vrcp.pop %v11500
    %v11503 = vmul.f32 1.0, %v11502
    %v11504 = vrcp.pop %v11501
    %v11505 = vmul.f32 1.0, %v11504
    %v11506 = vxor.u32 %v11488, 2147483648
    %v11507 = vxor.u32 %v11489, 2147483648
    %v11508 = vmul.f32 %v11506, 1.442695
    %v11509 = vpow.pop %v11508
    %v11510 = vmul.f32 %v11507, 1.442695
    %v11511 = vpow.pop %v11510
    %v11512 = vadd.f32 %v11509, 1.0
    %v11513 = vadd.f32 %v11511, 1.0
    %v11514 = vrcp.pop %v11512
    %v11515 = vmul.f32 1.0, %v11514
    %v11516 = vrcp.pop %v11513
    %v11517 = vmul.f32 1.0, %v11516
    %v11518 = vtanh.pop %v11490
    %v11519 = vtanh.pop %v11491
    %v11520 = vxor.u32 %v11492, 2147483648
    %v11521 = vxor.u32 %v11493, 2147483648
    %v11522 = vmul.f32 %v11520, 1.442695
    %v11523 = vpow.pop %v11522
    %v11524 = vmul.f32 %v11521, 1.442695
    %v11525 = vpow.pop %v11524
    %v11526 = vadd.f32 %v11523, 1.0
    %v11527 = vadd.f32 %v11525, 1.0
    %v11528 = vrcp.pop %v11526
    %v11529 = vmul.f32 1.0, %v11528
    %v11530 = vrcp.pop %v11527
    %v11531 = vmul.f32 1.0, %v11530
    %v11534 = vunpack.c.l.s4 1983009808
    %v11535 = vunpack.c.0.s8 %v11534
    %v11536 = vlaneseq
    %v11537 = vshrl.u32 %v11536, 7
    %v11538 = vsub.s32 %v11535, %v11537
    %v11539 = vrot.slane %v273, %v11538
    %v11540 = vcombine.high %v11539, %v11539
    %v11543 = vmul.f32 %v11515, %v11539
    %v11544 = vmul.f32 %v11517, %v11540
    %v11545 = vmul.f32 %v11503, %v11518
    %v11546 = vmul.f32 %v11505, %v11519
    %v11547 = vadd.f32 %v11543, %v11545
    %v11548 = vadd.f32 %v11544, %v11546
    %v11549 = vtanh.pop %v11547
    %v11550 = vtanh.pop %v11548
    %v11551 = vmul.f32 %v11529, %v11549
    %v11552 = vmul.f32 %v11531, %v11550
    %v11553 = vpack.c.bf16 %v11551, %v11551
    %v11554 = vpack.c.bf16 %v11552, %v11552
    %v11555 = vld [vmem:[#allocation23] sm:$0xf]
    %v11556 = vld [vmem:[#allocation23 + $0x4] sm:$0xf]
    %v11557 = vld [vmem:[#allocation23 + $0x8] sm:$0xf]
    %v11558 = vld [vmem:[#allocation23 + $0xc] sm:$0xf]
    %v11559 = vld [vmem:[#allocation23 + $0x10] sm:$0xf]
    %v11560 = vld [vmem:[#allocation23 + $0x14] sm:$0xf]
    %v11561 = vld [vmem:[#allocation23 + $0x18] sm:$0xf]
    %v11562 = vld [vmem:[#allocation23 + $0x1c] sm:$0xf]
    %v11563 = vld [vmem:[#allocation23 + $0x20] sm:$0xf]
    %v11564 = vld [vmem:[#allocation23 + $0x24] sm:$0xf]
    %v11565 = vld [vmem:[#allocation23 + $0x28] sm:$0xf]
    %v11566 = vld [vmem:[#allocation23 + $0x2c] sm:$0xf]
    %v11567 = vld [vmem:[#allocation23 + $0x30] sm:$0xf]
    %v11568 = vld [vmem:[#allocation23 + $0x34] sm:$0xf]
    %v11569 = vld [vmem:[#allocation23 + $0x38] sm:$0xf]
    %v11570 = vld [vmem:[#allocation23 + $0x3c] sm:$0xf]
    %v11571 = vld [vmem:[#allocation23 + $0x40] sm:$0xf]
    %v11572 = vld [vmem:[#allocation23 + $0x44] sm:$0xf]
    %v11573 = vld [vmem:[#allocation23 + $0x48] sm:$0xf]
    %v11574 = vld [vmem:[#allocation23 + $0x4c] sm:$0xf]
    %v11575 = vld [vmem:[#allocation23 + $0x50] sm:$0xf]
    %v11576 = vld [vmem:[#allocation23 + $0x54] sm:$0xf]
    %v11577 = vld [vmem:[#allocation23 + $0x58] sm:$0xf]
    %v11578 = vld [vmem:[#allocation23 + $0x5c] sm:$0xf]
    %v11579 = vld [vmem:[#allocation23 + $0x60] sm:$0xf]
    %v11580 = vld [vmem:[#allocation23 + $0x64] sm:$0xf]
    %v11581 = vld [vmem:[#allocation23 + $0x68] sm:$0xf]
    %v11582 = vld [vmem:[#allocation23 + $0x6c] sm:$0xf]
    %v11583 = vld [vmem:[#allocation23 + $0x70] sm:$0xf]
    %v11584 = vld [vmem:[#allocation23 + $0x74] sm:$0xf]
    %v11585 = vld [vmem:[#allocation23 + $0x78] sm:$0xf]
    %v11586 = vld [vmem:[#allocation23 + $0x7c] sm:$0xf]
    %v11587 = vld [vmem:[#allocation25] sm:$0x1]
    %v11589 = vlaneseq
    %v11590 = vshrl.u32 %v11589, 7
    %v11591 = vsub.s32 0, %v11590
    %v11592 = vrot.slane %v11587, %v11591
    %v11626 = vunpack.c.l.b16 %v11555
    %v11627 = vunpack.c.l.b16 %v11556
    %v11628 = vunpack.c.l.b16 %v11557
    %v11629 = vunpack.c.l.b16 %v11558
    %v11630 = vunpack.c.l.b16 %v11559
    %v11631 = vunpack.c.l.b16 %v11560
    %v11632 = vunpack.c.l.b16 %v11561
    %v11633 = vunpack.c.l.b16 %v11562
    %v11634 = vunpack.c.l.b16 %v11563
    %v11635 = vunpack.c.l.b16 %v11564
    %v11636 = vunpack.c.l.b16 %v11565
    %v11637 = vunpack.c.l.b16 %v11566
    %v11638 = vunpack.c.l.b16 %v11567
    %v11639 = vunpack.c.l.b16 %v11568
    %v11640 = vunpack.c.l.b16 %v11569
    %v11641 = vunpack.c.l.b16 %v11570
    %v11642 = vunpack.c.l.b16 %v11571
    %v11643 = vunpack.c.l.b16 %v11572
    %v11644 = vunpack.c.l.b16 %v11573
    %v11645 = vunpack.c.l.b16 %v11574
    %v11646 = vunpack.c.l.b16 %v11575
    %v11647 = vunpack.c.l.b16 %v11576
    %v11648 = vunpack.c.l.b16 %v11577
    %v11649 = vunpack.c.l.b16 %v11578
    %v11650 = vunpack.c.l.b16 %v11579
    %v11651 = vunpack.c.l.b16 %v11580
    %v11652 = vunpack.c.l.b16 %v11581
    %v11653 = vunpack.c.l.b16 %v11582
    %v11654 = vunpack.c.l.b16 %v11583
    %v11655 = vunpack.c.l.b16 %v11584
    %v11656 = vunpack.c.l.b16 %v11585
    %v11657 = vunpack.c.l.b16 %v11586
    %v11658 = vpack.c.b16 %v11627, %v11626
    %v11659 = vpack.c.b16 %v11629, %v11628
    %v11660 = vpack.c.b16 %v11631, %v11630
    %v11661 = vpack.c.b16 %v11633, %v11632
    %v11662 = vpack.c.b16 %v11635, %v11634
    %v11663 = vpack.c.b16 %v11637, %v11636
    %v11664 = vpack.c.b16 %v11639, %v11638
    %v11665 = vpack.c.b16 %v11641, %v11640
    %v11666 = vpack.c.b16 %v11643, %v11642
    %v11667 = vpack.c.b16 %v11645, %v11644
    %v11668 = vpack.c.b16 %v11647, %v11646
    %v11669 = vpack.c.b16 %v11649, %v11648
    %v11670 = vpack.c.b16 %v11651, %v11650
    %v11671 = vpack.c.b16 %v11653, %v11652
    %v11672 = vpack.c.b16 %v11655, %v11654
    %v11673 = vpack.c.b16 %v11657, %v11656
    %11690 = vmatprep.subr.bf16.mxu0 0
    %11691 = vmatpush1.bf16.msra.mxu0 %v11658
    %11692 = vmatprep.subr.bf16.mxu0 0
    %11693 = vmatpush1.bf16.msra.mxu0 %v11659
    %11694 = vmatprep.subr.bf16.mxu0 0
    %11695 = vmatpush1.bf16.msra.mxu0 %v11660
    %11696 = vmatprep.subr.bf16.mxu0 0
    %11697 = vmatpush1.bf16.msra.mxu0 %v11661
    %11698 = vmatprep.subr.bf16.mxu0 0
    %11699 = vmatpush1.bf16.msra.mxu0 %v11662
    %11700 = vmatprep.subr.bf16.mxu0 0
    %11701 = vmatpush1.bf16.msra.mxu0 %v11663
    %11702 = vmatprep.subr.bf16.mxu0 0
    %11703 = vmatpush1.bf16.msra.mxu0 %v11664
    %11704 = vmatprep.subr.bf16.mxu0 0
    %11705 = vmatpush1.bf16.msra.mxu0 %v11665
    %11706 = vmatprep.subr.bf16.mxu0 0
    %11707 = vmatpush1.bf16.msra.mxu0 %v11666
    %11708 = vmatprep.subr.bf16.mxu0 0
    %11709 = vmatpush1.bf16.msra.mxu0 %v11667
    %11710 = vmatprep.subr.bf16.mxu0 0
    %11711 = vmatpush1.bf16.msra.mxu0 %v11668
    %11712 = vmatprep.subr.bf16.mxu0 0
    %11713 = vmatpush1.bf16.msra.mxu0 %v11669
    %11714 = vmatprep.subr.bf16.mxu0 0
    %11715 = vmatpush1.bf16.msra.mxu0 %v11670
    %11716 = vmatprep.subr.bf16.mxu0 0
    %11717 = vmatpush1.bf16.msra.mxu0 %v11671
    %11718 = vmatprep.subr.bf16.mxu0 0
    %11719 = vmatpush1.bf16.msra.mxu0 %v11672
    %11720 = vmatprep.subr.bf16.mxu0 0
    %11721 = vmatpush1.bf16.msra.mxu0 %v11673
    %11722 = vmatprep.mubr.bf16.mxu0 %v11554
    %11723 = vmatmul.mubr.bf16.gmra.mrb[0].mxu0 %v11553
    %v11724 = vpop.f32.mrb[0].mxu0
    %v11725 = vadd.f32 %v11592, %v11724
    %v11726 = vpop.f32.mrb[0].mxu0
    %v11727 = vpop.f32.mrb[0].mxu0
    %v11728 = vpop.f32.mrb[0].mxu0
    %11729 = vdwg.mxu0
    %v11730 = vpack.c.bf16 %v11725, %v11725
    %v11731 = vld [vmem:[%s18] sm:$0xf]
    %v11732 = vld [vmem:[%s18 + $0x4] sm:$0xf]
    %v11733 = vld [vmem:[%s18 + $0x8] sm:$0xf]
    %v11734 = vld [vmem:[%s18 + $0xc] sm:$0xf]
    %v11735 = vld [vmem:[%s18 + $0x10] sm:$0xf]
    %v11736 = vld [vmem:[%s18 + $0x14] sm:$0xf]
    %v11737 = vld [vmem:[%s18 + $0x18] sm:$0xf]
    %v11738 = vld [vmem:[%s18 + $0x1c] sm:$0xf]
    %v11739 = vld [vmem:[%s18 + $0x20] sm:$0xf]
    %v11740 = vld [vmem:[%s18 + $0x24] sm:$0xf]
    %v11741 = vld [vmem:[%s18 + $0x28] sm:$0xf]
    %v11742 = vld [vmem:[%s18 + $0x2c] sm:$0xf]
    %v11743 = vld [vmem:[%s18 + $0x30] sm:$0xf]
    %v11744 = vld [vmem:[%s18 + $0x34] sm:$0xf]
    %v11745 = vld [vmem:[%s18 + $0x38] sm:$0xf]
    %v11746 = vld [vmem:[%s18 + $0x3c] sm:$0xf]
    %v11747 = vld [vmem:[#allocation26] sm:$0x1]
    %v11749 = vlaneseq
    %v11750 = vshrl.u32 %v11749, 7
    %v11751 = vsub.s32 0, %v11750
    %v11752 = vrot.slane %v11747, %v11751
    %v11770 = vunpack.c.l.b16 %v11731
    %v11771 = vunpack.c.l.b16 %v11732
    %v11772 = vunpack.c.l.b16 %v11733
    %v11773 = vunpack.c.l.b16 %v11734
    %v11774 = vunpack.c.l.b16 %v11735
    %v11775 = vunpack.c.l.b16 %v11736
    %v11776 = vunpack.c.l.b16 %v11737
    %v11777 = vunpack.c.l.b16 %v11738
    %v11778 = vunpack.c.l.b16 %v11739
    %v11779 = vunpack.c.l.b16 %v11740
    %v11780 = vunpack.c.l.b16 %v11741
    %v11781 = vunpack.c.l.b16 %v11742
    %v11782 = vunpack.c.l.b16 %v11743
    %v11783 = vunpack.c.l.b16 %v11744
    %v11784 = vunpack.c.l.b16 %v11745
    %v11785 = vunpack.c.l.b16 %v11746
    %v11786 = vpack.c.b16 %v11771, %v11770
    %v11787 = vpack.c.b16 %v11773, %v11772
    %v11788 = vpack.c.b16 %v11775, %v11774
    %v11789 = vpack.c.b16 %v11777, %v11776
    %v11790 = vpack.c.b16 %v11779, %v11778
    %v11791 = vpack.c.b16 %v11781, %v11780
    %v11792 = vpack.c.b16 %v11783, %v11782
    %v11793 = vpack.c.b16 %v11785, %v11784
    %11802 = vmatprep.subr.bf16.mxu0 0
    %11803 = vmatpush1.bf16.msra.mxu0 %v11786
    %11804 = vmatprep.subr.bf16.mxu0 0
    %11805 = vmatpush1.bf16.msra.mxu0 %v11787
    %11806 = vmatprep.subr.bf16.mxu0 0
    %11807 = vmatpush1.bf16.msra.mxu0 %v11788
    %11808 = vmatprep.subr.bf16.mxu0 0
    %11809 = vmatpush1.bf16.msra.mxu0 %v11789
    %11810 = vmatprep.subr.bf16.mxu0 0
    %11811 = vmatpush1.bf16.msra.mxu0 %v11790
    %11812 = vmatprep.subr.bf16.mxu0 0
    %11813 = vmatpush1.bf16.msra.mxu0 %v11791
    %11814 = vmatprep.subr.bf16.mxu0 0
    %11815 = vmatpush1.bf16.msra.mxu0 %v11792
    %11816 = vmatprep.subr.bf16.mxu0 0
    %11817 = vmatpush1.bf16.msra.mxu0 %v11793
    %11818 = vmatprep.subr.bf16.mxu0 0
    %11819 = vmatpush1.bf16.msra.mxu0 0
    %11820 = vmatprep.subr.bf16.mxu0 0
    %11821 = vmatpush1.bf16.msra.mxu0 0
    %11822 = vmatprep.subr.bf16.mxu0 0
    %11823 = vmatpush1.bf16.msra.mxu0 0
    %11824 = vmatprep.subr.bf16.mxu0 0
    %11825 = vmatpush1.bf16.msra.mxu0 0
    %11826 = vmatprep.subr.bf16.mxu0 0
    %11827 = vmatpush1.bf16.msra.mxu0 0
    %11828 = vmatprep.subr.bf16.mxu0 0
    %11829 = vmatpush1.bf16.msra.mxu0 0
    %11830 = vmatprep.subr.bf16.mxu0 0
    %11831 = vmatpush1.bf16.msra.mxu0 0
    %11832 = vmatprep.subr.bf16.mxu0 0
    %11833 = vmatpush1.bf16.msra.mxu0 0
    %11834 = vmatprep.mubr.bf16.mxu0 0
    %11835 = vmatmul.mubr.bf16.gmra.mrb[0].mxu0 %v11730
    %v11836 = vpop.f32.mrb[0].mxu0
    %v11837 = vadd.f32 %v11752, %v11836
    %v11838 = vpop.f32.mrb[0].mxu0
    %v11839 = vpop.f32.mrb[0].mxu0
    %v11840 = vpop.f32.mrb[0].mxu0
    %11841 = vdwg.mxu0
    %vm11842 = vcmask 58368
    %11843 = vst.msk [vmem:[%s20] sm:$0x3] %vm11842, %v11837
    %v11846 = vcombine.low %v11551, %v11552
    %v11848 = vunpack.c.l.s4 1983009808
    %v11849 = vunpack.c.0.s8 %v11848
    %v11850 = vlaneseq
    %v11851 = vshrl.u32 %v11850, 7
    %v11852 = vsub.s32 %v11849, %v11851
    %v11853 = vrot.slane %v11846, %v11852
    %11855 = vst [vmem:[#allocation28] sm:$0xf] %v11853
    %v11858 = vcombine.low %v11547, %v11548
    %v11860 = vunpack.c.l.s4 1983009808
    %v11861 = vunpack.c.0.s8 %v11860
    %v11862 = vlaneseq
    %v11863 = vshrl.u32 %v11862, 7
    %v11864 = vsub.s32 %v11861, %v11863
    %v11865 = vrot.slane %v11858, %v11864
    %11867 = vst [vmem:[#allocation29] sm:$0xf] %v11865
    // Predicated region
    $region146: #{a3c_lstm_forward.1} parent=1 // pred_check
      _
    $region147: #{a3c_lstm_forward.1} parent=1 // pred_check_branch
      %11869 = sbr.rel (0) target = $region149
    $region148: #{a3c_lstm_forward.1} parent=1 // pred_region
      _
    $region149: #{a3c_lstm_forward.1} parent=1 // pred_fallthru
      _
    // Predicated region
    $region150: #{a3c_lstm_forward.1} parent=1 // pred_check
      _
    $region151: #{a3c_lstm_forward.1} parent=1 // pred_check_branch
      %11871 = sbr.rel (0) target = $region153
    $region152: #{a3c_lstm_forward.1} parent=1 // pred_region
      %s11873 = ssub.s32 64, 64
      %11874 = vsyncadd [#allocation4], %s11873
      %s11876 = sshll.u32 [#allocation28], 4
      %s11877 = int_to_ptr.vmem [resolvable:$true] %s11876
      %11879 = dma.vmem_to_hbm [thread:$0]  %s11877, 64, %s21, [#allocation4]
    $region153: #{a3c_lstm_forward.1} parent=1 // pred_fallthru
      _
    // Predicated region
    $region154: #{a3c_lstm_forward.1} parent=1 // pred_check
      _
    $region155: #{a3c_lstm_forward.1} parent=1 // pred_check_branch
      %11881 = sbr.rel (0) target = $region157
    $region156: #{a3c_lstm_forward.1} parent=1 // pred_region
      %s11883 = ssub.s32 64, 64
      %11884 = vsyncadd [#allocation30], %s11883
      %s11886 = sshll.u32 [#allocation29], 4
      %s11887 = int_to_ptr.vmem [resolvable:$true] %s11886
      %11889 = dma.vmem_to_hbm [thread:$0]  %s11887, 64, %s22, [#allocation30]
    $region157: #{a3c_lstm_forward.1} parent=1 // pred_fallthru
      _
    // Predicated region
    $region158: #{a3c_lstm_forward.1} parent=1 // pred_check
      _
    $region159: #{a3c_lstm_forward.1} parent=1 // pred_check_branch
      %11891 = sbr.rel (0) target = $region161
    $region160: #{a3c_lstm_forward.1} parent=1 // pred_region
      _
    $region161: #{a3c_lstm_forward.1} parent=1 // pred_fallthru
      _
    // Predicated region
    $region162: #{a3c_lstm_forward.1} parent=1 // pred_check
      _
    $region163: #{a3c_lstm_forward.1} parent=1 // pred_check_branch
      %11893 = sbr.rel (0) target = $region165
    $region164: #{a3c_lstm_forward.1} parent=1 // pred_region
      %11894 = dma.done [#allocation4], 64
    $region165: #{a3c_lstm_forward.1} parent=1 // pred_fallthru
      _
    // Predicated region
    $region166: #{a3c_lstm_forward.1} parent=1 // pred_check
      _
    $region167: #{a3c_lstm_forward.1} parent=1 // pred_check_branch
      %11896 = sbr.rel (0) target = $region169
    $region168: #{a3c_lstm_forward.1} parent=1 // pred_region
      %11897 = dma.done [#allocation30], 64
    $region169: #{a3c_lstm_forward.1} parent=1 // pred_fallthru
      _
    %11898 = vsyncpa [#allocation3], 1
    %11899 = vsyncpa [#allocation6], 1
    %11900 = vsyncpa [#allocation9], 1
    %11901 = vsyncpa [#allocation12], 1
    %11902 = vsyncpa [#allocation15], 1
    %11903 = vsyncpa [#allocation18], 1
    %11904 = vsyncpa [#allocation21], 1
    %11905 = vsyncpa [#allocation24], 1
    %11906 = vsyncpa [#allocation27], 1
    %11907 = vsyncpa [#allocation4], 1
    %11908 = vsyncpa [#allocation30], 1

</llo_original>
